<compile_context>
chip_gen: v5e
topology: v5e:2x2
jax: 0.10.0
libtpu: 0.0.40
codegen_flags: <defaults>
</compile_context>

<pallas_src>
import math
import jax
import jax.numpy as jnp
from jax import lax
from jax.experimental import pallas as pl
from jax.experimental.pallas import tpu as pltpu

D_MODEL = 64
N_HEADS = 8
HEAD_DIM = D_MODEL // N_HEADS
FFN = D_MODEL * 4
MARKET_DIM = 19
STRAT_DIM = 7
N_LAYERS = 3
LN_EPS = 1e-5
COMPUTE_DTYPE = jnp.bfloat16      # MXU input dtype; accumulation & elementwise math stay f32


# --------------------------------------------------------------------------
# helpers
# --------------------------------------------------------------------------
def _full_spec(shape):
    """BlockSpec covering a whole (small, VMEM-resident) weight array."""
    return pl.BlockSpec(shape, lambda g, nd=len(shape): (0,) * nd)


def _layernorm(x, gamma, beta):
    mu = jnp.mean(x, axis=-1, keepdims=True)
    var = jnp.mean(jnp.square(x - mu), axis=-1, keepdims=True)
    return (x - mu) * lax.rsqrt(var + LN_EPS) * gamma + beta


# --------------------------------------------------------------------------
# fused forward kernel: embeddings -> 3 encoder layers -> heads
# --------------------------------------------------------------------------
def fused_forward_kernel(mkt_ref, strat_ref,
                         wm_ref, bm_ref, ws_ref, bs_ref, pe_ref,
                         wq_ref, bq_ref, wk_ref, bk_ref, wv_ref, bv_ref,
                         wo_ref, bo_ref, g1_ref, be1_ref, w1_ref, b1_ref,
                         w2_ref, b2_ref, g2_ref, be2_ref,
                         wh1_ref, bh1_ref, wh2_ref, bh2_ref,
                         out_ref):
    Bt = mkt_ref.shape[0]
    N = strat_ref.shape[1]
    S = N + 1
    L, H, D, Dh = wq_ref.shape
    scale = 1.0 / math.sqrt(Dh)
    cdt = wq_ref.dtype                               # bf16 MXU inputs

    def mm(a, w):                                    # row-batched 2D matmul, f32 accumulate
        return jnp.dot(a.astype(cdt), w, preferred_element_type=jnp.float32)

    def bmm(eq, a, b):                               # head-batched matmul, f32 accumulate
        return jnp.einsum(eq, a.astype(cdt), b.astype(cdt),
                          preferred_element_type=jnp.float32)

    # ---- embeddings + positional encoding --------------------------------
    pe = pe_ref[...]                                                  # (S, D) f32
    me = mm(mkt_ref[...], wm_ref[...]) + bm_ref[...]                  # (Bt, D)
    seqs = []
    for b in range(Bt):                                               # static, tiny
        se_b = mm(strat_ref[b], ws_ref[...]) + bs_ref[...]            # (N, D)
        seqs.append(jnp.concatenate([me[b:b + 1, :], se_b], axis=0) + pe)
    x = jnp.concatenate(seqs, axis=0)                                 # (Bt*S, D) f32

    # ---- transformer encoder layers (post-norm, relu FFN, eval mode) -----
    for l in range(L):                               # static unroll; layer weights loaded once
        wq, wk, wv = wq_ref[l], wk_ref[l], wv_ref[l]                  # (H, D, Dh)
        bq, bk, bv = bq_ref[l], bk_ref[l], bv_ref[l]                  # (H, 1, Dh)
        wo, bo = wo_ref[l], bo_ref[l]                                 # (H, Dh, D), (1, D)
        g1, be1 = g1_ref[l], be1_ref[l]
        w1, b1, w2, b2 = w1_ref[l], b1_ref[l], w2_ref[l], b2_ref[l]
        g2, be2 = g2_ref[l], be2_ref[l]

        attn_rows = []
        for b in range(Bt):                          # per-sequence attention (static loop)
            xb = x[b * S:(b + 1) * S, :]                              # (S, D)
            xh = jnp.broadcast_to(xb.astype(cdt)[None], (H, S, D))    # (H, S, D)
            q = jnp.einsum('hsd,hde->hse', xh, wq,
                           preferred_element_type=jnp.float32) + bq   # (H, S, Dh)
            k = jnp.einsum('hsd,hde->hse', xh, wk,
                           preferred_element_type=jnp.float32) + bk
            v = jnp.einsum('hsd,hde->hse', xh, wv,
                           preferred_element_type=jnp.float32) + bv
            s = bmm('hqd,hkd->hqk', q, k) * scale                     # (H, S, S) f32
            s = s - jnp.max(s, axis=-1, keepdims=True)
            p = jnp.exp(s)
            p = p / jnp.sum(p, axis=-1, keepdims=True)
            ctx = bmm('hqk,hkd->hqd', p, v)                           # (H, S, Dh)
            proj = bmm('hqd,hde->hqe', ctx, wo)                       # (H, S, D)
            attn_rows.append(jnp.sum(proj, axis=0) + bo)              # heads merged + out-proj
        attn = jnp.concatenate(attn_rows, axis=0)                     # (Bt*S, D)

        y = _layernorm(x + attn, g1, be1)                             # post-norm #1 (f32)
        h1 = jnp.maximum(mm(y, w1) + b1, 0.0)                         # (Bt*S, FFN)
        h2 = mm(h1, w2) + b2                                          # (Bt*S, D)
        x = _layernorm(y + h2, g2, be2)                               # post-norm #2

    # ---- fused strategy-weight / confidence heads -------------------------
    reps = jnp.concatenate([x[b * S + 1:(b + 1) * S, :] for b in range(Bt)],
                           axis=0)                                    # (Bt*N, D) drop market tok
    hh = jnp.maximum(mm(reps, wh1_ref[...]) + bh1_ref[...], 0.0)      # (Bt*N, D)
    logits = mm(hh, wh2_ref[...]) + bh2_ref[...]                      # (Bt*N, 2)
    conf = jax.nn.sigmoid(logits[:, 1:2])                             # (Bt*N, 1)
    wlog = logits[:, 0:1]
    for b in range(Bt):                              # softmax over the N strategies per sequence
        wb = wlog[b * N:(b + 1) * N, :]
        wb = wb - jnp.max(wb, axis=0, keepdims=True)
        e = jnp.exp(wb)
        sm = e / jnp.sum(e, axis=0, keepdims=True)
        out_ref[b] = jnp.concatenate([sm, conf[b * N:(b + 1) * N, :]], axis=1)   # (N, 2)


# --------------------------------------------------------------------------
# wrapper: single pallas_call for the whole forward pass
# --------------------------------------------------------------------------
_WEIGHT_ORDER = ("wm", "bm", "ws", "bs", "pe",
                 "wq", "bq", "wk", "bk", "wv", "bv", "wo", "bo",
                 "g1", "be1", "w1", "b1", "w2", "b2", "g2", "be2",
                 "wh1", "bh1", "wh2", "bh2")


def attention_strategy_forward(market_state, strategy_performances, params):
    B, market_dim = market_state.shape
    _, N, strat_dim = strategy_performances.shape
    Bt = B                       # whole batch per grid step (small model); chunk for very large B
    assert B % Bt == 0
    weights = [params[k] for k in _WEIGHT_ORDER]

    in_specs = ([pl.BlockSpec((Bt, market_dim), lambda g: (g, 0)),
                 pl.BlockSpec((Bt, N, strat_dim), lambda g: (g, 0, 0))]
                + [_full_spec(w.shape) for w in weights])

    out = pl.pallas_call(
        fused_forward_kernel,
        out_shape=jax.ShapeDtypeStruct((B, N, 2), jnp.float32),
        grid=(B // Bt,),
        in_specs=in_specs,
        out_specs=pl.BlockSpec((Bt, N, 2), lambda g: (g, 0, 0)),
        compiler_params=pltpu.CompilerParams(dimension_semantics=("parallel",)),
    )(market_state, strategy_performances, *weights)

    strategy_weights = out[..., 0]                                    # (B, N), already softmaxed
    confidence_scores = out[..., 1]                                   # (B, N)
    attention_weights = jnp.ones_like(strategy_weights)               # matches torch.ones_like
    return strategy_weights, confidence_scores, attention_weights


# --------------------------------------------------------------------------
# deterministic parameter init (xavier_uniform weights, zero biases)
# --------------------------------------------------------------------------
def _xavier(key, shape_out_in):
    fan_out, fan_in = shape_out_in
    bound = math.sqrt(6.0 / (fan_in + fan_out))
    return jax.random.uniform(key, shape_out_in, jnp.float32, -bound, bound)


def make_positional_encoding(seq_len, d_model):
    position = jnp.arange(seq_len, dtype=jnp.float32)[:, None]
    div_term = jnp.exp(jnp.arange(0, d_model, 2, dtype=jnp.float32)
                       * (-math.log(10000.0) / d_model))
    pe = jnp.zeros((seq_len, d_model), jnp.float32)
    pe = pe.at[:, 0::2].set(jnp.sin(position * div_term))
    pe = pe.at[:, 1::2].set(jnp.cos(position * div_term))
    return pe


def init_params(key, seq_len, compute_dtype=COMPUTE_DTYPE):
    keys = iter(jax.random.split(key, 64))
    zeros = lambda *s: jnp.zeros(s, jnp.float32)
    ones = lambda *s: jnp.ones(s, jnp.float32)
    c = lambda a: a.astype(compute_dtype)

    def head_stack_in(w_out_in):
        # torch (out=D, in=D) weight -> (H, D, Dh) so that q_h = x @ stack[h]
        return w_out_in.T.reshape(D_MODEL, N_HEADS, HEAD_DIM).transpose(1, 0, 2)

    params = {
        "wm": c(_xavier(next(keys), (D_MODEL, MARKET_DIM)).T),        # (19, 64)
        "bm": zeros(1, D_MODEL),
        "ws": c(_xavier(next(keys), (D_MODEL, STRAT_DIM)).T),         # (7, 64)
        "bs": zeros(1, D_MODEL),
        "pe": make_positional_encoding(seq_len, D_MODEL),             # (S, 64)
    }

    per_layer = {k: [] for k in ("wq", "bq", "wk", "bk", "wv", "bv", "wo", "bo",
                                 "g1", "be1", "w1", "b1", "w2", "b2", "g2", "be2")}
    for _ in range(N_LAYERS):
        in_proj = _xavier(next(keys), (3 * D_MODEL, D_MODEL))         # fused qkv, torch layout
        per_layer["wq"].append(head_stack_in(in_proj[:D_MODEL]))
        per_layer["wk"].append(head_stack_in(in_proj[D_MODEL:2 * D_MODEL]))
        per_layer["wv"].append(head_stack_in(in_proj[2 * D_MODEL:]))
        per_layer["bq"].append(zeros(N_HEADS, 1, HEAD_DIM))
        per_layer["bk"].append(zeros(N_HEADS, 1, HEAD_DIM))
        per_layer["bv"].append(zeros(N_HEADS, 1, HEAD_DIM))
        wo = _xavier(next(keys), (D_MODEL, D_MODEL))
        per_layer["wo"].append(wo.T.reshape(N_HEADS, HEAD_DIM, D_MODEL))   # (H, Dh, D)
        per_layer["bo"].append(zeros(1, D_MODEL))
        per_layer["g1"].append(ones(1, D_MODEL))
        per_layer["be1"].append(zeros(1, D_MODEL))
        per_layer["w1"].append(_xavier(next(keys), (FFN, D_MODEL)).T)      # (64, 256)
        per_layer["b1"].append(zeros(1, FFN))
        per_layer["w2"].append(_xavier(next(keys), (D_MODEL, FFN)).T)      # (256, 64)
        per_layer["b2"].append(zeros(1, D_MODEL))
        per_layer["g2"].append(ones(1, D_MODEL))
        per_layer["be2"].append(zeros(1, D_MODEL))
    for k, v in per_layer.items():
        stacked = jnp.stack(v, axis=0)
        params[k] = c(stacked) if k in ("wq", "wk", "wv", "wo", "w1", "w2") else stacked

    # fused heads: hidden lanes [0:32) -> weight head, [32:64) -> confidence head
    w1w = _xavier(next(keys), (D_MODEL // 2, D_MODEL))
    w1c = _xavier(next(keys), (D_MODEL // 2, D_MODEL))
    w2w = _xavier(next(keys), (1, D_MODEL // 2))
    w2c = _xavier(next(keys), (1, D_MODEL // 2))
    wh2 = jnp.zeros((D_MODEL, 2), jnp.float32)
    wh2 = wh2.at[:D_MODEL // 2, 0].set(w2w[0])
    wh2 = wh2.at[D_MODEL // 2:, 1].set(w2c[0])
    params.update({
        "wh1": c(jnp.concatenate([w1w.T, w1c.T], axis=1)),            # (64, 64)
        "bh1": zeros(1, D_MODEL),
        "wh2": c(wh2),                                                # (64, 2)
        "bh2": zeros(1, 2),
    })
    return params


# --------------------------------------------------------------------------
if __name__ == "__main__":
    root = jax.random.PRNGKey(0)
    k_param, k_mkt, k_strat = jax.random.split(root, 3)

    B, N = 2, 5                       # batch, n_strategies
    S = N + 1                         # market token + strategies

    params = init_params(k_param, S)
    market_state = jax.random.normal(k_mkt, (B, MARKET_DIM), jnp.float32)
    strategy_performances = jax.random.normal(k_strat, (B, N, STRAT_DIM), jnp.float32)

    fwd = jax.jit(attention_strategy_forward)
    weights, confidence, attn_w = fwd(market_state, strategy_performances, params)
    jax.block_until_ready((weights, confidence, attn_w))

    assert weights.shape == (B, N)
    assert confidence.shape == (B, N)
    assert attn_w.shape == (B, N)
    assert bool(jnp.allclose(jnp.sum(weights, axis=-1), 1.0, atol=1e-5))
    assert bool(jnp.all((confidence > 0.0) & (confidence < 1.0)))
    assert bool(jnp.all(attn_w == 1.0))
    print("KERNEL_OK")
</pallas_src>

<mosaic_0001>
module attributes {stable_mosaic.version = 11 : i64} {
  func.func @fused_forward_kernel(%arg0: i32, %arg1: memref<2x19xf32, #tpu.memory_space<vmem>>, %arg2: memref<2x5x7xf32, #tpu.memory_space<vmem>>, %arg3: memref<19x64xbf16, #tpu.memory_space<vmem>>, %arg4: memref<1x64xf32, #tpu.memory_space<vmem>>, %arg5: memref<7x64xbf16, #tpu.memory_space<vmem>>, %arg6: memref<1x64xf32, #tpu.memory_space<vmem>>, %arg7: memref<6x64xf32, #tpu.memory_space<vmem>>, %arg8: memref<3x8x64x8xbf16, #tpu.memory_space<vmem>>, %arg9: memref<3x8x1x8xf32, #tpu.memory_space<vmem>>, %arg10: memref<3x8x64x8xbf16, #tpu.memory_space<vmem>>, %arg11: memref<3x8x1x8xf32, #tpu.memory_space<vmem>>, %arg12: memref<3x8x64x8xbf16, #tpu.memory_space<vmem>>, %arg13: memref<3x8x1x8xf32, #tpu.memory_space<vmem>>, %arg14: memref<3x8x8x64xbf16, #tpu.memory_space<vmem>>, %arg15: memref<3x1x64xf32, #tpu.memory_space<vmem>>, %arg16: memref<3x1x64xf32, #tpu.memory_space<vmem>>, %arg17: memref<3x1x64xf32, #tpu.memory_space<vmem>>, %arg18: memref<3x64x256xbf16, #tpu.memory_space<vmem>>, %arg19: memref<3x1x256xf32, #tpu.memory_space<vmem>>, %arg20: memref<3x256x64xbf16, #tpu.memory_space<vmem>>, %arg21: memref<3x1x64xf32, #tpu.memory_space<vmem>>, %arg22: memref<3x1x64xf32, #tpu.memory_space<vmem>>, %arg23: memref<3x1x64xf32, #tpu.memory_space<vmem>>, %arg24: memref<64x64xbf16, #tpu.memory_space<vmem>>, %arg25: memref<1x64xf32, #tpu.memory_space<vmem>>, %arg26: memref<64x2xbf16, #tpu.memory_space<vmem>>, %arg27: memref<1x2xf32, #tpu.memory_space<vmem>>, %arg28: memref<2x5x2xf32, #tpu.memory_space<vmem>>) attributes {dimension_semantics = [#tpu.dimension_semantics<parallel>], iteration_bounds = array<i64: 1>, scalar_prefetch = 0 : i64, scratch_operands = 0 : i64, tpu.core_type = #tpu.core_type<tc>, window_params = [{transform_indices = @transform_0, window_bounds = array<i64: 2, 19>}, {transform_indices = @transform_1, window_bounds = array<i64: 2, 5, 7>}, {pipeline_mode = #tpu.pipeline_mode<synchronous>, transform_indices = @transform_2, window_bounds = array<i64: 19, 64>}, {pipeline_mode = #tpu.pipeline_mode<synchronous>, transform_indices = @transform_3, window_bounds = array<i64: 1, 64>}, {pipeline_mode = #tpu.pipeline_mode<synchronous>, transform_indices = @transform_4, window_bounds = array<i64: 7, 64>}, {pipeline_mode = #tpu.pipeline_mode<synchronous>, transform_indices = @transform_5, window_bounds = array<i64: 1, 64>}, {pipeline_mode = #tpu.pipeline_mode<synchronous>, transform_indices = @transform_6, window_bounds = array<i64: 6, 64>}, {pipeline_mode = #tpu.pipeline_mode<synchronous>, transform_indices = @transform_7, window_bounds = array<i64: 3, 8, 64, 8>}, {pipeline_mode = #tpu.pipeline_mode<synchronous>, transform_indices = @transform_8, window_bounds = array<i64: 3, 8, 1, 8>}, {pipeline_mode = #tpu.pipeline_mode<synchronous>, transform_indices = @transform_9, window_bounds = array<i64: 3, 8, 64, 8>}, {pipeline_mode = #tpu.pipeline_mode<synchronous>, transform_indices = @transform_10, window_bounds = array<i64: 3, 8, 1, 8>}, {pipeline_mode = #tpu.pipeline_mode<synchronous>, transform_indices = @transform_11, window_bounds = array<i64: 3, 8, 64, 8>}, {pipeline_mode = #tpu.pipeline_mode<synchronous>, transform_indices = @transform_12, window_bounds = array<i64: 3, 8, 1, 8>}, {pipeline_mode = #tpu.pipeline_mode<synchronous>, transform_indices = @transform_13, window_bounds = array<i64: 3, 8, 8, 64>}, {pipeline_mode = #tpu.pipeline_mode<synchronous>, transform_indices = @transform_14, window_bounds = array<i64: 3, 1, 64>}, {pipeline_mode = #tpu.pipeline_mode<synchronous>, transform_indices = @transform_15, window_bounds = array<i64: 3, 1, 64>}, {pipeline_mode = #tpu.pipeline_mode<synchronous>, transform_indices = @transform_16, window_bounds = array<i64: 3, 1, 64>}, {pipeline_mode = #tpu.pipeline_mode<synchronous>, transform_indices = @transform_17, window_bounds = array<i64: 3, 64, 256>}, {pipeline_mode = #tpu.pipeline_mode<synchronous>, transform_indices = @transform_18, window_bounds = array<i64: 3, 1, 256>}, {pipeline_mode = #tpu.pipeline_mode<synchronous>, transform_indices = @transform_19, window_bounds = array<i64: 3, 256, 64>}, {pipeline_mode = #tpu.pipeline_mode<synchronous>, transform_indices = @transform_20, window_bounds = array<i64: 3, 1, 64>}, {pipeline_mode = #tpu.pipeline_mode<synchronous>, transform_indices = @transform_21, window_bounds = array<i64: 3, 1, 64>}, {pipeline_mode = #tpu.pipeline_mode<synchronous>, transform_indices = @transform_22, window_bounds = array<i64: 3, 1, 64>}, {pipeline_mode = #tpu.pipeline_mode<synchronous>, transform_indices = @transform_23, window_bounds = array<i64: 64, 64>}, {pipeline_mode = #tpu.pipeline_mode<synchronous>, transform_indices = @transform_24, window_bounds = array<i64: 1, 64>}, {pipeline_mode = #tpu.pipeline_mode<synchronous>, transform_indices = @transform_25, window_bounds = array<i64: 64, 2>}, {pipeline_mode = #tpu.pipeline_mode<synchronous>, transform_indices = @transform_26, window_bounds = array<i64: 1, 2>}, {transform_indices = @transform_27, window_bounds = array<i64: 2, 5, 2>}]} {
    %c0 = arith.constant 0 : index
    %c0_0 = arith.constant 0 : index
    %0 = vector.load %arg7[%c0, %c0_0] : memref<6x64xf32, #tpu.memory_space<vmem>>, vector<6x64xf32>
    %c0_1 = arith.constant 0 : index
    %c0_2 = arith.constant 0 : index
    %1 = vector.load %arg1[%c0_1, %c0_2] : memref<2x19xf32, #tpu.memory_space<vmem>>, vector<2x19xf32>
    %c0_3 = arith.constant 0 : index
    %c0_4 = arith.constant 0 : index
    %2 = vector.load %arg3[%c0_3, %c0_4] : memref<19x64xbf16, #tpu.memory_space<vmem>>, vector<19x64xbf16>
    %3 = arith.truncf %1 : vector<2x19xf32> to vector<2x19xbf16>
    %cst = arith.constant dense<0.000000e+00> : vector<2x64xf32>
    %4 = tpu.matmul %3, %2, %cst {dimension_numbers = #tpu.dot_dimension_numbers<[1], [0], [0], [1], [0, 0, 1, 1], [], []>} : vector<2x19xbf16>, vector<19x64xbf16>, vector<2x64xf32> -> vector<2x64xf32>
    %c0_5 = arith.constant 0 : index
    %c0_6 = arith.constant 0 : index
    %5 = vector.load %arg4[%c0_5, %c0_6] : memref<1x64xf32, #tpu.memory_space<vmem>>, vector<1x64xf32>
    %6 = vector.broadcast %5 : vector<1x64xf32> to vector<2x64xf32>
    %7 = arith.addf %4, %6 : vector<2x64xf32>
    %c0_7 = arith.constant 0 : index
    %c0_8 = arith.constant 0 : index
    %c0_9 = arith.constant 0 : index
    %8 = vector.load %arg2[%c0_7, %c0_8, %c0_9] : memref<2x5x7xf32, #tpu.memory_space<vmem>>, vector<1x5x7xf32>
    %9 = vector.shape_cast %8 : vector<1x5x7xf32> to vector<5x7xf32>
    %c0_10 = arith.constant 0 : index
    %c0_11 = arith.constant 0 : index
    %10 = vector.load %arg5[%c0_10, %c0_11] : memref<7x64xbf16, #tpu.memory_space<vmem>>, vector<7x64xbf16>
    %11 = arith.truncf %9 : vector<5x7xf32> to vector<5x7xbf16>
    %cst_12 = arith.constant dense<0.000000e+00> : vector<5x64xf32>
    %12 = tpu.matmul %11, %10, %cst_12 {dimension_numbers = #tpu.dot_dimension_numbers<[1], [0], [0], [1], [0, 0, 1, 1], [], []>} : vector<5x7xbf16>, vector<7x64xbf16>, vector<5x64xf32> -> vector<5x64xf32>
    %c0_13 = arith.constant 0 : index
    %c0_14 = arith.constant 0 : index
    %13 = vector.load %arg6[%c0_13, %c0_14] : memref<1x64xf32, #tpu.memory_space<vmem>>, vector<1x64xf32>
    %14 = vector.broadcast %13 : vector<1x64xf32> to vector<5x64xf32>
    %15 = arith.addf %12, %14 : vector<5x64xf32>
    %16 = vector.extract_strided_slice %7 {offsets = [0, 0], sizes = [1, 64], strides = [1, 1]} : vector<2x64xf32> to vector<1x64xf32>
    %17 = tpu.concatenate %16, %15 in 0 : vector<1x64xf32>, vector<5x64xf32> -> vector<6x64xf32>
    %18 = arith.addf %17, %0 : vector<6x64xf32>
    %c1 = arith.constant 1 : index
    %c0_15 = arith.constant 0 : index
    %c0_16 = arith.constant 0 : index
    %19 = vector.load %arg2[%c1, %c0_15, %c0_16] : memref<2x5x7xf32, #tpu.memory_space<vmem>>, vector<1x5x7xf32>
    %20 = vector.shape_cast %19 : vector<1x5x7xf32> to vector<5x7xf32>
    %c0_17 = arith.constant 0 : index
    %c0_18 = arith.constant 0 : index
    %21 = vector.load %arg5[%c0_17, %c0_18] : memref<7x64xbf16, #tpu.memory_space<vmem>>, vector<7x64xbf16>
    %22 = arith.truncf %20 : vector<5x7xf32> to vector<5x7xbf16>
    %cst_19 = arith.constant dense<0.000000e+00> : vector<5x64xf32>
    %23 = tpu.matmul %22, %21, %cst_19 {dimension_numbers = #tpu.dot_dimension_numbers<[1], [0], [0], [1], [0, 0, 1, 1], [], []>} : vector<5x7xbf16>, vector<7x64xbf16>, vector<5x64xf32> -> vector<5x64xf32>
    %c0_20 = arith.constant 0 : index
    %c0_21 = arith.constant 0 : index
    %24 = vector.load %arg6[%c0_20, %c0_21] : memref<1x64xf32, #tpu.memory_space<vmem>>, vector<1x64xf32>
    %25 = vector.broadcast %24 : vector<1x64xf32> to vector<5x64xf32>
    %26 = arith.addf %23, %25 : vector<5x64xf32>
    %27 = vector.extract_strided_slice %7 {offsets = [1, 0], sizes = [1, 64], strides = [1, 1]} : vector<2x64xf32> to vector<1x64xf32>
    %28 = tpu.concatenate %27, %26 in 0 : vector<1x64xf32>, vector<5x64xf32> -> vector<6x64xf32>
    %29 = arith.addf %28, %0 : vector<6x64xf32>
    %30 = tpu.concatenate %18, %29 in 0 : vector<6x64xf32>, vector<6x64xf32> -> vector<12x64xf32>
    %c0_22 = arith.constant 0 : index
    %c0_23 = arith.constant 0 : index
    %c0_24 = arith.constant 0 : index
    %c0_25 = arith.constant 0 : index
    %31 = vector.load %arg8[%c0_22, %c0_23, %c0_24, %c0_25] : memref<3x8x64x8xbf16, #tpu.memory_space<vmem>>, vector<1x8x64x8xbf16>
    %32 = vector.shape_cast %31 : vector<1x8x64x8xbf16> to vector<8x64x8xbf16>
    %c0_26 = arith.constant 0 : index
    %c0_27 = arith.constant 0 : index
    %c0_28 = arith.constant 0 : index
    %c0_29 = arith.constant 0 : index
    %33 = vector.load %arg10[%c0_26, %c0_27, %c0_28, %c0_29] : memref<3x8x64x8xbf16, #tpu.memory_space<vmem>>, vector<1x8x64x8xbf16>
    %34 = vector.shape_cast %33 : vector<1x8x64x8xbf16> to vector<8x64x8xbf16>
    %c0_30 = arith.constant 0 : index
    %c0_31 = arith.constant 0 : index
    %c0_32 = arith.constant 0 : index
    %c0_33 = arith.constant 0 : index
    %35 = vector.load %arg12[%c0_30, %c0_31, %c0_32, %c0_33] : memref<3x8x64x8xbf16, #tpu.memory_space<vmem>>, vector<1x8x64x8xbf16>
    %36 = vector.shape_cast %35 : vector<1x8x64x8xbf16> to vector<8x64x8xbf16>
    %c0_34 = arith.constant 0 : index
    %c0_35 = arith.constant 0 : index
    %c0_36 = arith.constant 0 : index
    %c0_37 = arith.constant 0 : index
    %37 = vector.load %arg9[%c0_34, %c0_35, %c0_36, %c0_37] : memref<3x8x1x8xf32, #tpu.memory_space<vmem>>, vector<1x8x1x8xf32>
    %38 = vector.shape_cast %37 : vector<1x8x1x8xf32> to vector<8x1x8xf32>
    %c0_38 = arith.constant 0 : index
    %c0_39 = arith.constant 0 : index
    %c0_40 = arith.constant 0 : index
    %c0_41 = arith.constant 0 : index
    %39 = vector.load %arg11[%c0_38, %c0_39, %c0_40, %c0_41] : memref<3x8x1x8xf32, #tpu.memory_space<vmem>>, vector<1x8x1x8xf32>
    %40 = vector.shape_cast %39 : vector<1x8x1x8xf32> to vector<8x1x8xf32>
    %c0_42 = arith.constant 0 : index
    %c0_43 = arith.constant 0 : index
    %c0_44 = arith.constant 0 : index
    %c0_45 = arith.constant 0 : index
    %41 = vector.load %arg13[%c0_42, %c0_43, %c0_44, %c0_45] : memref<3x8x1x8xf32, #tpu.memory_space<vmem>>, vector<1x8x1x8xf32>
    %42 = vector.shape_cast %41 : vector<1x8x1x8xf32> to vector<8x1x8xf32>
    %c0_46 = arith.constant 0 : index
    %c0_47 = arith.constant 0 : index
    %c0_48 = arith.constant 0 : index
    %c0_49 = arith.constant 0 : index
    %43 = vector.load %arg14[%c0_46, %c0_47, %c0_48, %c0_49] : memref<3x8x8x64xbf16, #tpu.memory_space<vmem>>, vector<1x8x8x64xbf16>
    %44 = vector.shape_cast %43 : vector<1x8x8x64xbf16> to vector<8x8x64xbf16>
    %c0_50 = arith.constant 0 : index
    %c0_51 = arith.constant 0 : index
    %c0_52 = arith.constant 0 : index
    %45 = vector.load %arg15[%c0_50, %c0_51, %c0_52] : memref<3x1x64xf32, #tpu.memory_space<vmem>>, vector<1x1x64xf32>
    %46 = vector.shape_cast %45 : vector<1x1x64xf32> to vector<1x64xf32>
    %c0_53 = arith.constant 0 : index
    %c0_54 = arith.constant 0 : index
    %c0_55 = arith.constant 0 : index
    %47 = vector.load %arg16[%c0_53, %c0_54, %c0_55] : memref<3x1x64xf32, #tpu.memory_space<vmem>>, vector<1x1x64xf32>
    %48 = vector.shape_cast %47 : vector<1x1x64xf32> to vector<1x64xf32>
    %c0_56 = arith.constant 0 : index
    %c0_57 = arith.constant 0 : index
    %c0_58 = arith.constant 0 : index
    %49 = vector.load %arg17[%c0_56, %c0_57, %c0_58] : memref<3x1x64xf32, #tpu.memory_space<vmem>>, vector<1x1x64xf32>
    %50 = vector.shape_cast %49 : vector<1x1x64xf32> to vector<1x64xf32>
    %c0_59 = arith.constant 0 : index
    %c0_60 = arith.constant 0 : index
    %c0_61 = arith.constant 0 : index
    %51 = vector.load %arg18[%c0_59, %c0_60, %c0_61] : memref<3x64x256xbf16, #tpu.memory_space<vmem>>, vector<1x64x256xbf16>
    %52 = vector.shape_cast %51 : vector<1x64x256xbf16> to vector<64x256xbf16>
    %c0_62 = arith.constant 0 : index
    %c0_63 = arith.constant 0 : index
    %c0_64 = arith.constant 0 : index
    %53 = vector.load %arg19[%c0_62, %c0_63, %c0_64] : memref<3x1x256xf32, #tpu.memory_space<vmem>>, vector<1x1x256xf32>
    %54 = vector.shape_cast %53 : vector<1x1x256xf32> to vector<1x256xf32>
    %c0_65 = arith.constant 0 : index
    %c0_66 = arith.constant 0 : index
    %c0_67 = arith.constant 0 : index
    %55 = vector.load %arg20[%c0_65, %c0_66, %c0_67] : memref<3x256x64xbf16, #tpu.memory_space<vmem>>, vector<1x256x64xbf16>
    %56 = vector.shape_cast %55 : vector<1x256x64xbf16> to vector<256x64xbf16>
    %c0_68 = arith.constant 0 : index
    %c0_69 = arith.constant 0 : index
    %c0_70 = arith.constant 0 : index
    %57 = vector.load %arg21[%c0_68, %c0_69, %c0_70] : memref<3x1x64xf32, #tpu.memory_space<vmem>>, vector<1x1x64xf32>
    %58 = vector.shape_cast %57 : vector<1x1x64xf32> to vector<1x64xf32>
    %c0_71 = arith.constant 0 : index
    %c0_72 = arith.constant 0 : index
    %c0_73 = arith.constant 0 : index
    %59 = vector.load %arg22[%c0_71, %c0_72, %c0_73] : memref<3x1x64xf32, #tpu.memory_space<vmem>>, vector<1x1x64xf32>
    %60 = vector.shape_cast %59 : vector<1x1x64xf32> to vector<1x64xf32>
    %c0_74 = arith.constant 0 : index
    %c0_75 = arith.constant 0 : index
    %c0_76 = arith.constant 0 : index
    %61 = vector.load %arg23[%c0_74, %c0_75, %c0_76] : memref<3x1x64xf32, #tpu.memory_space<vmem>>, vector<1x1x64xf32>
    %62 = vector.shape_cast %61 : vector<1x1x64xf32> to vector<1x64xf32>
    %63 = vector.extract_strided_slice %30 {offsets = [0, 0], sizes = [6, 64], strides = [1, 1]} : vector<12x64xf32> to vector<6x64xf32>
    %64 = arith.truncf %63 : vector<6x64xf32> to vector<6x64xbf16>
    %65 = vector.shape_cast %64 : vector<6x64xbf16> to vector<1x6x64xbf16>
    %66 = vector.shape_cast %65 : vector<1x6x64xbf16> to vector<1x6x64xbf16>
    %67 = vector.broadcast %66 : vector<1x6x64xbf16> to vector<8x6x64xbf16>
    "tpu.trace_start"() <{level = 10 : i32, message = "hsd,hde->hse"}> : () -> ()
    %cst_77 = arith.constant dense<0.000000e+00> : vector<8x6x8xf32>
    %68 = tpu.matmul %67, %32, %cst_77 {dimension_numbers = #tpu.dot_dimension_numbers<[2], [1], [1], [2], [0, 0, 0, 1, 1, 2], [0], [0]>} : vector<8x6x64xbf16>, vector<8x64x8xbf16>, vector<8x6x8xf32> -> vector<8x6x8xf32>
    "tpu.trace_stop"() : () -> ()
    %69 = vector.broadcast %38 : vector<8x1x8xf32> to vector<8x6x8xf32>
    %70 = arith.addf %68, %69 : vector<8x6x8xf32>
    "tpu.trace_start"() <{level = 10 : i32, message = "hsd,hde->hse"}> : () -> ()
    %cst_78 = arith.constant dense<0.000000e+00> : vector<8x6x8xf32>
    %71 = tpu.matmul %67, %34, %cst_78 {dimension_numbers = #tpu.dot_dimension_numbers<[2], [1], [1], [2], [0, 0, 0, 1, 1, 2], [0], [0]>} : vector<8x6x64xbf16>, vector<8x64x8xbf16>, vector<8x6x8xf32> -> vector<8x6x8xf32>
    "tpu.trace_stop"() : () -> ()
    %72 = vector.broadcast %40 : vector<8x1x8xf32> to vector<8x6x8xf32>
    %73 = arith.addf %71, %72 : vector<8x6x8xf32>
    "tpu.trace_start"() <{level = 10 : i32, message = "hsd,hde->hse"}> : () -> ()
    %cst_79 = arith.constant dense<0.000000e+00> : vector<8x6x8xf32>
    %74 = tpu.matmul %67, %36, %cst_79 {dimension_numbers = #tpu.dot_dimension_numbers<[2], [1], [1], [2], [0, 0, 0, 1, 1, 2], [0], [0]>} : vector<8x6x64xbf16>, vector<8x64x8xbf16>, vector<8x6x8xf32> -> vector<8x6x8xf32>
    "tpu.trace_stop"() : () -> ()
    %75 = vector.broadcast %42 : vector<8x1x8xf32> to vector<8x6x8xf32>
    %76 = arith.addf %74, %75 : vector<8x6x8xf32>
    %77 = arith.truncf %70 : vector<8x6x8xf32> to vector<8x6x8xbf16>
    %78 = arith.truncf %73 : vector<8x6x8xf32> to vector<8x6x8xbf16>
    "tpu.trace_start"() <{level = 10 : i32, message = "hqd,hkd->hqk"}> : () -> ()
    %cst_80 = arith.constant dense<0.000000e+00> : vector<8x6x6xf32>
    %79 = tpu.matmul %77, %78, %cst_80 {dimension_numbers = #tpu.dot_dimension_numbers<[2], [2], [1], [1], [0, 0, 0, 1, 1, 1], [0], [0]>} : vector<8x6x8xbf16>, vector<8x6x8xbf16>, vector<8x6x6xf32> -> vector<8x6x6xf32>
    "tpu.trace_stop"() : () -> ()
    %cst_81 = arith.constant 0.353553385 : f32
    %80 = vector.broadcast %cst_81 : f32 to vector<8x6x6xf32>
    %81 = arith.mulf %79, %80 : vector<8x6x6xf32>
    %cst_82 = arith.constant dense<0xFF800000> : vector<8x6xf32>
    %82 = vector.multi_reduction <maximumf>, %81, %cst_82 [2] : vector<8x6x6xf32> to vector<8x6xf32>
    %83 = vector.shape_cast %82 : vector<8x6xf32> to vector<8x6x1xf32>
    %84 = vector.broadcast %83 : vector<8x6x1xf32> to vector<8x6x6xf32>
    %85 = arith.subf %81, %84 : vector<8x6x6xf32>
    %86 = math.exp %85 : vector<8x6x6xf32>
    %cst_83 = arith.constant dense<0.000000e+00> : vector<8x6xf32>
    %87 = vector.multi_reduction <add>, %86, %cst_83 [2] : vector<8x6x6xf32> to vector<8x6xf32>
    %88 = vector.shape_cast %87 : vector<8x6xf32> to vector<8x6x1xf32>
    %89 = vector.broadcast %88 : vector<8x6x1xf32> to vector<8x6x6xf32>
    %90 = arith.divf %86, %89 : vector<8x6x6xf32>
    %91 = arith.truncf %90 : vector<8x6x6xf32> to vector<8x6x6xbf16>
    %92 = arith.truncf %76 : vector<8x6x8xf32> to vector<8x6x8xbf16>
    "tpu.trace_start"() <{level = 10 : i32, message = "hqk,hkd->hqd"}> : () -> ()
    %cst_84 = arith.constant dense<0.000000e+00> : vector<8x6x8xf32>
    %93 = tpu.matmul %91, %92, %cst_84 {dimension_numbers = #tpu.dot_dimension_numbers<[2], [1], [1], [2], [0, 0, 0, 1, 1, 2], [0], [0]>} : vector<8x6x6xbf16>, vector<8x6x8xbf16>, vector<8x6x8xf32> -> vector<8x6x8xf32>
    "tpu.trace_stop"() : () -> ()
    %94 = arith.truncf %93 : vector<8x6x8xf32> to vector<8x6x8xbf16>
    "tpu.trace_start"() <{level = 10 : i32, message = "hqd,hde->hqe"}> : () -> ()
    %cst_85 = arith.constant dense<0.000000e+00> : vector<8x6x64xf32>
    %95 = tpu.matmul %94, %44, %cst_85 {dimension_numbers = #tpu.dot_dimension_numbers<[2], [1], [1], [2], [0, 0, 0, 1, 1, 2], [0], [0]>} : vector<8x6x8xbf16>, vector<8x8x64xbf16>, vector<8x6x64xf32> -> vector<8x6x64xf32>
    "tpu.trace_stop"() : () -> ()
    %cst_86 = arith.constant dense<0.000000e+00> : vector<6x64xf32>
    %96 = vector.multi_reduction <add>, %95, %cst_86 [0] : vector<8x6x64xf32> to vector<6x64xf32>
    %97 = vector.broadcast %46 : vector<1x64xf32> to vector<6x64xf32>
    %98 = arith.addf %96, %97 : vector<6x64xf32>
    %99 = vector.extract_strided_slice %30 {offsets = [6, 0], sizes = [6, 64], strides = [1, 1]} : vector<12x64xf32> to vector<6x64xf32>
    %100 = arith.truncf %99 : vector<6x64xf32> to vector<6x64xbf16>
    %101 = vector.shape_cast %100 : vector<6x64xbf16> to vector<1x6x64xbf16>
    %102 = vector.shape_cast %101 : vector<1x6x64xbf16> to vector<1x6x64xbf16>
    %103 = vector.broadcast %102 : vector<1x6x64xbf16> to vector<8x6x64xbf16>
    "tpu.trace_start"() <{level = 10 : i32, message = "hsd,hde->hse"}> : () -> ()
    %cst_87 = arith.constant dense<0.000000e+00> : vector<8x6x8xf32>
    %104 = tpu.matmul %103, %32, %cst_87 {dimension_numbers = #tpu.dot_dimension_numbers<[2], [1], [1], [2], [0, 0, 0, 1, 1, 2], [0], [0]>} : vector<8x6x64xbf16>, vector<8x64x8xbf16>, vector<8x6x8xf32> -> vector<8x6x8xf32>
    "tpu.trace_stop"() : () -> ()
    %105 = vector.broadcast %38 : vector<8x1x8xf32> to vector<8x6x8xf32>
    %106 = arith.addf %104, %105 : vector<8x6x8xf32>
    "tpu.trace_start"() <{level = 10 : i32, message = "hsd,hde->hse"}> : () -> ()
    %cst_88 = arith.constant dense<0.000000e+00> : vector<8x6x8xf32>
    %107 = tpu.matmul %103, %34, %cst_88 {dimension_numbers = #tpu.dot_dimension_numbers<[2], [1], [1], [2], [0, 0, 0, 1, 1, 2], [0], [0]>} : vector<8x6x64xbf16>, vector<8x64x8xbf16>, vector<8x6x8xf32> -> vector<8x6x8xf32>
    "tpu.trace_stop"() : () -> ()
    %108 = vector.broadcast %40 : vector<8x1x8xf32> to vector<8x6x8xf32>
    %109 = arith.addf %107, %108 : vector<8x6x8xf32>
    "tpu.trace_start"() <{level = 10 : i32, message = "hsd,hde->hse"}> : () -> ()
    %cst_89 = arith.constant dense<0.000000e+00> : vector<8x6x8xf32>
    %110 = tpu.matmul %103, %36, %cst_89 {dimension_numbers = #tpu.dot_dimension_numbers<[2], [1], [1], [2], [0, 0, 0, 1, 1, 2], [0], [0]>} : vector<8x6x64xbf16>, vector<8x64x8xbf16>, vector<8x6x8xf32> -> vector<8x6x8xf32>
    "tpu.trace_stop"() : () -> ()
    %111 = vector.broadcast %42 : vector<8x1x8xf32> to vector<8x6x8xf32>
    %112 = arith.addf %110, %111 : vector<8x6x8xf32>
    %113 = arith.truncf %106 : vector<8x6x8xf32> to vector<8x6x8xbf16>
    %114 = arith.truncf %109 : vector<8x6x8xf32> to vector<8x6x8xbf16>
    "tpu.trace_start"() <{level = 10 : i32, message = "hqd,hkd->hqk"}> : () -> ()
    %cst_90 = arith.constant dense<0.000000e+00> : vector<8x6x6xf32>
    %115 = tpu.matmul %113, %114, %cst_90 {dimension_numbers = #tpu.dot_dimension_numbers<[2], [2], [1], [1], [0, 0, 0, 1, 1, 1], [0], [0]>} : vector<8x6x8xbf16>, vector<8x6x8xbf16>, vector<8x6x6xf32> -> vector<8x6x6xf32>
    "tpu.trace_stop"() : () -> ()
    %cst_91 = arith.constant 0.353553385 : f32
    %116 = vector.broadcast %cst_91 : f32 to vector<8x6x6xf32>
    %117 = arith.mulf %115, %116 : vector<8x6x6xf32>
    %cst_92 = arith.constant dense<0xFF800000> : vector<8x6xf32>
    %118 = vector.multi_reduction <maximumf>, %117, %cst_92 [2] : vector<8x6x6xf32> to vector<8x6xf32>
    %119 = vector.shape_cast %118 : vector<8x6xf32> to vector<8x6x1xf32>
    %120 = vector.broadcast %119 : vector<8x6x1xf32> to vector<8x6x6xf32>
    %121 = arith.subf %117, %120 : vector<8x6x6xf32>
    %122 = math.exp %121 : vector<8x6x6xf32>
    %cst_93 = arith.constant dense<0.000000e+00> : vector<8x6xf32>
    %123 = vector.multi_reduction <add>, %122, %cst_93 [2] : vector<8x6x6xf32> to vector<8x6xf32>
    %124 = vector.shape_cast %123 : vector<8x6xf32> to vector<8x6x1xf32>
    %125 = vector.broadcast %124 : vector<8x6x1xf32> to vector<8x6x6xf32>
    %126 = arith.divf %122, %125 : vector<8x6x6xf32>
    %127 = arith.truncf %126 : vector<8x6x6xf32> to vector<8x6x6xbf16>
    %128 = arith.truncf %112 : vector<8x6x8xf32> to vector<8x6x8xbf16>
    "tpu.trace_start"() <{level = 10 : i32, message = "hqk,hkd->hqd"}> : () -> ()
    %cst_94 = arith.constant dense<0.000000e+00> : vector<8x6x8xf32>
    %129 = tpu.matmul %127, %128, %cst_94 {dimension_numbers = #tpu.dot_dimension_numbers<[2], [1], [1], [2], [0, 0, 0, 1, 1, 2], [0], [0]>} : vector<8x6x6xbf16>, vector<8x6x8xbf16>, vector<8x6x8xf32> -> vector<8x6x8xf32>
    "tpu.trace_stop"() : () -> ()
    %130 = arith.truncf %129 : vector<8x6x8xf32> to vector<8x6x8xbf16>
    "tpu.trace_start"() <{level = 10 : i32, message = "hqd,hde->hqe"}> : () -> ()
    %cst_95 = arith.constant dense<0.000000e+00> : vector<8x6x64xf32>
    %131 = tpu.matmul %130, %44, %cst_95 {dimension_numbers = #tpu.dot_dimension_numbers<[2], [1], [1], [2], [0, 0, 0, 1, 1, 2], [0], [0]>} : vector<8x6x8xbf16>, vector<8x8x64xbf16>, vector<8x6x64xf32> -> vector<8x6x64xf32>
    "tpu.trace_stop"() : () -> ()
    %cst_96 = arith.constant dense<0.000000e+00> : vector<6x64xf32>
    %132 = vector.multi_reduction <add>, %131, %cst_96 [0] : vector<8x6x64xf32> to vector<6x64xf32>
    %133 = vector.broadcast %46 : vector<1x64xf32> to vector<6x64xf32>
    %134 = arith.addf %132, %133 : vector<6x64xf32>
    %135 = tpu.concatenate %98, %134 in 0 : vector<6x64xf32>, vector<6x64xf32> -> vector<12x64xf32>
    %136 = arith.addf %30, %135 : vector<12x64xf32>
    %cst_97 = arith.constant dense<0.000000e+00> : vector<12xf32>
    %137 = vector.multi_reduction <add>, %136, %cst_97 [1] : vector<12x64xf32> to vector<12xf32>
    %138 = vector.shape_cast %137 : vector<12xf32> to vector<12x1xf32>
    %cst_98 = arith.constant 6.400000e+01 : f32
    %139 = vector.broadcast %cst_98 : f32 to vector<12x1xf32>
    %140 = arith.divf %138, %139 : vector<12x1xf32>
    %141 = vector.broadcast %140 : vector<12x1xf32> to vector<12x64xf32>
    %142 = arith.subf %136, %141 : vector<12x64xf32>
    %143 = arith.mulf %142, %142 : vector<12x64xf32>
    %cst_99 = arith.constant dense<0.000000e+00> : vector<12xf32>
    %144 = vector.multi_reduction <add>, %143, %cst_99 [1] : vector<12x64xf32> to vector<12xf32>
    %145 = vector.shape_cast %144 : vector<12xf32> to vector<12x1xf32>
    %cst_100 = arith.constant 6.400000e+01 : f32
    %146 = vector.broadcast %cst_100 : f32 to vector<12x1xf32>
    %147 = arith.divf %145, %146 : vector<12x1xf32>
    %148 = vector.broadcast %140 : vector<12x1xf32> to vector<12x64xf32>
    %149 = arith.subf %136, %148 : vector<12x64xf32>
    %cst_101 = arith.constant 9.99999974E-6 : f32
    %150 = vector.broadcast %cst_101 : f32 to vector<12x1xf32>
    %151 = arith.addf %147, %150 : vector<12x1xf32>
    %152 = math.rsqrt %151 : vector<12x1xf32>
    %153 = vector.broadcast %152 : vector<12x1xf32> to vector<12x64xf32>
    %154 = arith.mulf %149, %153 : vector<12x64xf32>
    %155 = vector.broadcast %48 : vector<1x64xf32> to vector<12x64xf32>
    %156 = arith.mulf %154, %155 : vector<12x64xf32>
    %157 = vector.broadcast %50 : vector<1x64xf32> to vector<12x64xf32>
    %158 = arith.addf %156, %157 : vector<12x64xf32>
    %159 = arith.truncf %158 : vector<12x64xf32> to vector<12x64xbf16>
    %cst_102 = arith.constant dense<0.000000e+00> : vector<12x256xf32>
    %160 = tpu.matmul %159, %52, %cst_102 {dimension_numbers = #tpu.dot_dimension_numbers<[1], [0], [0], [1], [0, 0, 1, 1], [], []>} : vector<12x64xbf16>, vector<64x256xbf16>, vector<12x256xf32> -> vector<12x256xf32>
    %161 = vector.broadcast %54 : vector<1x256xf32> to vector<12x256xf32>
    %162 = arith.addf %160, %161 : vector<12x256xf32>
    %cst_103 = arith.constant 0.000000e+00 : f32
    %163 = vector.broadcast %cst_103 : f32 to vector<12x256xf32>
    %164 = arith.maximumf %162, %163 : vector<12x256xf32>
    %165 = arith.truncf %164 : vector<12x256xf32> to vector<12x256xbf16>
    %cst_104 = arith.constant dense<0.000000e+00> : vector<12x64xf32>
    %166 = tpu.matmul %165, %56, %cst_104 {dimension_numbers = #tpu.dot_dimension_numbers<[1], [0], [0], [1], [0, 0, 1, 1], [], []>} : vector<12x256xbf16>, vector<256x64xbf16>, vector<12x64xf32> -> vector<12x64xf32>
    %167 = vector.broadcast %58 : vector<1x64xf32> to vector<12x64xf32>
    %168 = arith.addf %166, %167 : vector<12x64xf32>
    %169 = arith.addf %158, %168 : vector<12x64xf32>
    %cst_105 = arith.constant dense<0.000000e+00> : vector<12xf32>
    %170 = vector.multi_reduction <add>, %169, %cst_105 [1] : vector<12x64xf32> to vector<12xf32>
    %171 = vector.shape_cast %170 : vector<12xf32> to vector<12x1xf32>
    %cst_106 = arith.constant 6.400000e+01 : f32
    %172 = vector.broadcast %cst_106 : f32 to vector<12x1xf32>
    %173 = arith.divf %171, %172 : vector<12x1xf32>
    %174 = vector.broadcast %173 : vector<12x1xf32> to vector<12x64xf32>
    %175 = arith.subf %169, %174 : vector<12x64xf32>
    %176 = arith.mulf %175, %175 : vector<12x64xf32>
    %cst_107 = arith.constant dense<0.000000e+00> : vector<12xf32>
    %177 = vector.multi_reduction <add>, %176, %cst_107 [1] : vector<12x64xf32> to vector<12xf32>
    %178 = vector.shape_cast %177 : vector<12xf32> to vector<12x1xf32>
    %cst_108 = arith.constant 6.400000e+01 : f32
    %179 = vector.broadcast %cst_108 : f32 to vector<12x1xf32>
    %180 = arith.divf %178, %179 : vector<12x1xf32>
    %181 = vector.broadcast %173 : vector<12x1xf32> to vector<12x64xf32>
    %182 = arith.subf %169, %181 : vector<12x64xf32>
    %cst_109 = arith.constant 9.99999974E-6 : f32
    %183 = vector.broadcast %cst_109 : f32 to vector<12x1xf32>
    %184 = arith.addf %180, %183 : vector<12x1xf32>
    %185 = math.rsqrt %184 : vector<12x1xf32>
    %186 = vector.broadcast %185 : vector<12x1xf32> to vector<12x64xf32>
    %187 = arith.mulf %182, %186 : vector<12x64xf32>
    %188 = vector.broadcast %60 : vector<1x64xf32> to vector<12x64xf32>
    %189 = arith.mulf %187, %188 : vector<12x64xf32>
    %190 = vector.broadcast %62 : vector<1x64xf32> to vector<12x64xf32>
    %191 = arith.addf %189, %190 : vector<12x64xf32>
    %c1_110 = arith.constant 1 : index
    %c0_111 = arith.constant 0 : index
    %c0_112 = arith.constant 0 : index
    %c0_113 = arith.constant 0 : index
    %192 = vector.load %arg8[%c1_110, %c0_111, %c0_112, %c0_113] : memref<3x8x64x8xbf16, #tpu.memory_space<vmem>>, vector<1x8x64x8xbf16>
    %193 = vector.shape_cast %192 : vector<1x8x64x8xbf16> to vector<8x64x8xbf16>
    %c1_114 = arith.constant 1 : index
    %c0_115 = arith.constant 0 : index
    %c0_116 = arith.constant 0 : index
    %c0_117 = arith.constant 0 : index
    %194 = vector.load %arg10[%c1_114, %c0_115, %c0_116, %c0_117] : memref<3x8x64x8xbf16, #tpu.memory_space<vmem>>, vector<1x8x64x8xbf16>
    %195 = vector.shape_cast %194 : vector<1x8x64x8xbf16> to vector<8x64x8xbf16>
    %c1_118 = arith.constant 1 : index
    %c0_119 = arith.constant 0 : index
    %c0_120 = arith.constant 0 : index
    %c0_121 = arith.constant 0 : index
    %196 = vector.load %arg12[%c1_118, %c0_119, %c0_120, %c0_121] : memref<3x8x64x8xbf16, #tpu.memory_space<vmem>>, vector<1x8x64x8xbf16>
    %197 = vector.shape_cast %196 : vector<1x8x64x8xbf16> to vector<8x64x8xbf16>
    %c1_122 = arith.constant 1 : index
    %c0_123 = arith.constant 0 : index
    %c0_124 = arith.constant 0 : index
    %c0_125 = arith.constant 0 : index
    %198 = vector.load %arg9[%c1_122, %c0_123, %c0_124, %c0_125] : memref<3x8x1x8xf32, #tpu.memory_space<vmem>>, vector<1x8x1x8xf32>
    %199 = vector.shape_cast %198 : vector<1x8x1x8xf32> to vector<8x1x8xf32>
    %c1_126 = arith.constant 1 : index
    %c0_127 = arith.constant 0 : index
    %c0_128 = arith.constant 0 : index
    %c0_129 = arith.constant 0 : index
    %200 = vector.load %arg11[%c1_126, %c0_127, %c0_128, %c0_129] : memref<3x8x1x8xf32, #tpu.memory_space<vmem>>, vector<1x8x1x8xf32>
    %201 = vector.shape_cast %200 : vector<1x8x1x8xf32> to vector<8x1x8xf32>
    %c1_130 = arith.constant 1 : index
    %c0_131 = arith.constant 0 : index
    %c0_132 = arith.constant 0 : index
    %c0_133 = arith.constant 0 : index
    %202 = vector.load %arg13[%c1_130, %c0_131, %c0_132, %c0_133] : memref<3x8x1x8xf32, #tpu.memory_space<vmem>>, vector<1x8x1x8xf32>
    %203 = vector.shape_cast %202 : vector<1x8x1x8xf32> to vector<8x1x8xf32>
    %c1_134 = arith.constant 1 : index
    %c0_135 = arith.constant 0 : index
    %c0_136 = arith.constant 0 : index
    %c0_137 = arith.constant 0 : index
    %204 = vector.load %arg14[%c1_134, %c0_135, %c0_136, %c0_137] : memref<3x8x8x64xbf16, #tpu.memory_space<vmem>>, vector<1x8x8x64xbf16>
    %205 = vector.shape_cast %204 : vector<1x8x8x64xbf16> to vector<8x8x64xbf16>
    %c1_138 = arith.constant 1 : index
    %c0_139 = arith.constant 0 : index
    %c0_140 = arith.constant 0 : index
    %206 = vector.load %arg15[%c1_138, %c0_139, %c0_140] : memref<3x1x64xf32, #tpu.memory_space<vmem>>, vector<1x1x64xf32>
    %207 = vector.shape_cast %206 : vector<1x1x64xf32> to vector<1x64xf32>
    %c1_141 = arith.constant 1 : index
    %c0_142 = arith.constant 0 : index
    %c0_143 = arith.constant 0 : index
    %208 = vector.load %arg16[%c1_141, %c0_142, %c0_143] : memref<3x1x64xf32, #tpu.memory_space<vmem>>, vector<1x1x64xf32>
    %209 = vector.shape_cast %208 : vector<1x1x64xf32> to vector<1x64xf32>
    %c1_144 = arith.constant 1 : index
    %c0_145 = arith.constant 0 : index
    %c0_146 = arith.constant 0 : index
    %210 = vector.load %arg17[%c1_144, %c0_145, %c0_146] : memref<3x1x64xf32, #tpu.memory_space<vmem>>, vector<1x1x64xf32>
    %211 = vector.shape_cast %210 : vector<1x1x64xf32> to vector<1x64xf32>
    %c1_147 = arith.constant 1 : index
    %c0_148 = arith.constant 0 : index
    %c0_149 = arith.constant 0 : index
    %212 = vector.load %arg18[%c1_147, %c0_148, %c0_149] : memref<3x64x256xbf16, #tpu.memory_space<vmem>>, vector<1x64x256xbf16>
    %213 = vector.shape_cast %212 : vector<1x64x256xbf16> to vector<64x256xbf16>
    %c1_150 = arith.constant 1 : index
    %c0_151 = arith.constant 0 : index
    %c0_152 = arith.constant 0 : index
    %214 = vector.load %arg19[%c1_150, %c0_151, %c0_152] : memref<3x1x256xf32, #tpu.memory_space<vmem>>, vector<1x1x256xf32>
    %215 = vector.shape_cast %214 : vector<1x1x256xf32> to vector<1x256xf32>
    %c1_153 = arith.constant 1 : index
    %c0_154 = arith.constant 0 : index
    %c0_155 = arith.constant 0 : index
    %216 = vector.load %arg20[%c1_153, %c0_154, %c0_155] : memref<3x256x64xbf16, #tpu.memory_space<vmem>>, vector<1x256x64xbf16>
    %217 = vector.shape_cast %216 : vector<1x256x64xbf16> to vector<256x64xbf16>
    %c1_156 = arith.constant 1 : index
    %c0_157 = arith.constant 0 : index
    %c0_158 = arith.constant 0 : index
    %218 = vector.load %arg21[%c1_156, %c0_157, %c0_158] : memref<3x1x64xf32, #tpu.memory_space<vmem>>, vector<1x1x64xf32>
    %219 = vector.shape_cast %218 : vector<1x1x64xf32> to vector<1x64xf32>
    %c1_159 = arith.constant 1 : index
    %c0_160 = arith.constant 0 : index
    %c0_161 = arith.constant 0 : index
    %220 = vector.load %arg22[%c1_159, %c0_160, %c0_161] : memref<3x1x64xf32, #tpu.memory_space<vmem>>, vector<1x1x64xf32>
    %221 = vector.shape_cast %220 : vector<1x1x64xf32> to vector<1x64xf32>
    %c1_162 = arith.constant 1 : index
    %c0_163 = arith.constant 0 : index
    %c0_164 = arith.constant 0 : index
    %222 = vector.load %arg23[%c1_162, %c0_163, %c0_164] : memref<3x1x64xf32, #tpu.memory_space<vmem>>, vector<1x1x64xf32>
    %223 = vector.shape_cast %222 : vector<1x1x64xf32> to vector<1x64xf32>
    %224 = vector.extract_strided_slice %191 {offsets = [0, 0], sizes = [6, 64], strides = [1, 1]} : vector<12x64xf32> to vector<6x64xf32>
    %225 = arith.truncf %224 : vector<6x64xf32> to vector<6x64xbf16>
    %226 = vector.shape_cast %225 : vector<6x64xbf16> to vector<1x6x64xbf16>
    %227 = vector.shape_cast %226 : vector<1x6x64xbf16> to vector<1x6x64xbf16>
    %228 = vector.broadcast %227 : vector<1x6x64xbf16> to vector<8x6x64xbf16>
    "tpu.trace_start"() <{level = 10 : i32, message = "hsd,hde->hse"}> : () -> ()
    %cst_165 = arith.constant dense<0.000000e+00> : vector<8x6x8xf32>
    %229 = tpu.matmul %228, %193, %cst_165 {dimension_numbers = #tpu.dot_dimension_numbers<[2], [1], [1], [2], [0, 0, 0, 1, 1, 2], [0], [0]>} : vector<8x6x64xbf16>, vector<8x64x8xbf16>, vector<8x6x8xf32> -> vector<8x6x8xf32>
    "tpu.trace_stop"() : () -> ()
    %230 = vector.broadcast %199 : vector<8x1x8xf32> to vector<8x6x8xf32>
    %231 = arith.addf %229, %230 : vector<8x6x8xf32>
    "tpu.trace_start"() <{level = 10 : i32, message = "hsd,hde->hse"}> : () -> ()
    %cst_166 = arith.constant dense<0.000000e+00> : vector<8x6x8xf32>
    %232 = tpu.matmul %228, %195, %cst_166 {dimension_numbers = #tpu.dot_dimension_numbers<[2], [1], [1], [2], [0, 0, 0, 1, 1, 2], [0], [0]>} : vector<8x6x64xbf16>, vector<8x64x8xbf16>, vector<8x6x8xf32> -> vector<8x6x8xf32>
    "tpu.trace_stop"() : () -> ()
    %233 = vector.broadcast %201 : vector<8x1x8xf32> to vector<8x6x8xf32>
    %234 = arith.addf %232, %233 : vector<8x6x8xf32>
    "tpu.trace_start"() <{level = 10 : i32, message = "hsd,hde->hse"}> : () -> ()
    %cst_167 = arith.constant dense<0.000000e+00> : vector<8x6x8xf32>
    %235 = tpu.matmul %228, %197, %cst_167 {dimension_numbers = #tpu.dot_dimension_numbers<[2], [1], [1], [2], [0, 0, 0, 1, 1, 2], [0], [0]>} : vector<8x6x64xbf16>, vector<8x64x8xbf16>, vector<8x6x8xf32> -> vector<8x6x8xf32>
    "tpu.trace_stop"() : () -> ()
    %236 = vector.broadcast %203 : vector<8x1x8xf32> to vector<8x6x8xf32>
    %237 = arith.addf %235, %236 : vector<8x6x8xf32>
    %238 = arith.truncf %231 : vector<8x6x8xf32> to vector<8x6x8xbf16>
    %239 = arith.truncf %234 : vector<8x6x8xf32> to vector<8x6x8xbf16>
    "tpu.trace_start"() <{level = 10 : i32, message = "hqd,hkd->hqk"}> : () -> ()
    %cst_168 = arith.constant dense<0.000000e+00> : vector<8x6x6xf32>
    %240 = tpu.matmul %238, %239, %cst_168 {dimension_numbers = #tpu.dot_dimension_numbers<[2], [2], [1], [1], [0, 0, 0, 1, 1, 1], [0], [0]>} : vector<8x6x8xbf16>, vector<8x6x8xbf16>, vector<8x6x6xf32> -> vector<8x6x6xf32>
    "tpu.trace_stop"() : () -> ()
    %cst_169 = arith.constant 0.353553385 : f32
    %241 = vector.broadcast %cst_169 : f32 to vector<8x6x6xf32>
    %242 = arith.mulf %240, %241 : vector<8x6x6xf32>
    %cst_170 = arith.constant dense<0xFF800000> : vector<8x6xf32>
    %243 = vector.multi_reduction <maximumf>, %242, %cst_170 [2] : vector<8x6x6xf32> to vector<8x6xf32>
    %244 = vector.shape_cast %243 : vector<8x6xf32> to vector<8x6x1xf32>
    %245 = vector.broadcast %244 : vector<8x6x1xf32> to vector<8x6x6xf32>
    %246 = arith.subf %242, %245 : vector<8x6x6xf32>
    %247 = math.exp %246 : vector<8x6x6xf32>
    %cst_171 = arith.constant dense<0.000000e+00> : vector<8x6xf32>
    %248 = vector.multi_reduction <add>, %247, %cst_171 [2] : vector<8x6x6xf32> to vector<8x6xf32>
    %249 = vector.shape_cast %248 : vector<8x6xf32> to vector<8x6x1xf32>
    %250 = vector.broadcast %249 : vector<8x6x1xf32> to vector<8x6x6xf32>
    %251 = arith.divf %247, %250 : vector<8x6x6xf32>
    %252 = arith.truncf %251 : vector<8x6x6xf32> to vector<8x6x6xbf16>
    %253 = arith.truncf %237 : vector<8x6x8xf32> to vector<8x6x8xbf16>
    "tpu.trace_start"() <{level = 10 : i32, message = "hqk,hkd->hqd"}> : () -> ()
    %cst_172 = arith.constant dense<0.000000e+00> : vector<8x6x8xf32>
    %254 = tpu.matmul %252, %253, %cst_172 {dimension_numbers = #tpu.dot_dimension_numbers<[2], [1], [1], [2], [0, 0, 0, 1, 1, 2], [0], [0]>} : vector<8x6x6xbf16>, vector<8x6x8xbf16>, vector<8x6x8xf32> -> vector<8x6x8xf32>
    "tpu.trace_stop"() : () -> ()
    %255 = arith.truncf %254 : vector<8x6x8xf32> to vector<8x6x8xbf16>
    "tpu.trace_start"() <{level = 10 : i32, message = "hqd,hde->hqe"}> : () -> ()
    %cst_173 = arith.constant dense<0.000000e+00> : vector<8x6x64xf32>
    %256 = tpu.matmul %255, %205, %cst_173 {dimension_numbers = #tpu.dot_dimension_numbers<[2], [1], [1], [2], [0, 0, 0, 1, 1, 2], [0], [0]>} : vector<8x6x8xbf16>, vector<8x8x64xbf16>, vector<8x6x64xf32> -> vector<8x6x64xf32>
    "tpu.trace_stop"() : () -> ()
    %cst_174 = arith.constant dense<0.000000e+00> : vector<6x64xf32>
    %257 = vector.multi_reduction <add>, %256, %cst_174 [0] : vector<8x6x64xf32> to vector<6x64xf32>
    %258 = vector.broadcast %207 : vector<1x64xf32> to vector<6x64xf32>
    %259 = arith.addf %257, %258 : vector<6x64xf32>
    %260 = vector.extract_strided_slice %191 {offsets = [6, 0], sizes = [6, 64], strides = [1, 1]} : vector<12x64xf32> to vector<6x64xf32>
    %261 = arith.truncf %260 : vector<6x64xf32> to vector<6x64xbf16>
    %262 = vector.shape_cast %261 : vector<6x64xbf16> to vector<1x6x64xbf16>
    %263 = vector.shape_cast %262 : vector<1x6x64xbf16> to vector<1x6x64xbf16>
    %264 = vector.broadcast %263 : vector<1x6x64xbf16> to vector<8x6x64xbf16>
    "tpu.trace_start"() <{level = 10 : i32, message = "hsd,hde->hse"}> : () -> ()
    %cst_175 = arith.constant dense<0.000000e+00> : vector<8x6x8xf32>
    %265 = tpu.matmul %264, %193, %cst_175 {dimension_numbers = #tpu.dot_dimension_numbers<[2], [1], [1], [2], [0, 0, 0, 1, 1, 2], [0], [0]>} : vector<8x6x64xbf16>, vector<8x64x8xbf16>, vector<8x6x8xf32> -> vector<8x6x8xf32>
    "tpu.trace_stop"() : () -> ()
    %266 = vector.broadcast %199 : vector<8x1x8xf32> to vector<8x6x8xf32>
    %267 = arith.addf %265, %266 : vector<8x6x8xf32>
    "tpu.trace_start"() <{level = 10 : i32, message = "hsd,hde->hse"}> : () -> ()
    %cst_176 = arith.constant dense<0.000000e+00> : vector<8x6x8xf32>
    %268 = tpu.matmul %264, %195, %cst_176 {dimension_numbers = #tpu.dot_dimension_numbers<[2], [1], [1], [2], [0, 0, 0, 1, 1, 2], [0], [0]>} : vector<8x6x64xbf16>, vector<8x64x8xbf16>, vector<8x6x8xf32> -> vector<8x6x8xf32>
    "tpu.trace_stop"() : () -> ()
    %269 = vector.broadcast %201 : vector<8x1x8xf32> to vector<8x6x8xf32>
    %270 = arith.addf %268, %269 : vector<8x6x8xf32>
    "tpu.trace_start"() <{level = 10 : i32, message = "hsd,hde->hse"}> : () -> ()
    %cst_177 = arith.constant dense<0.000000e+00> : vector<8x6x8xf32>
    %271 = tpu.matmul %264, %197, %cst_177 {dimension_numbers = #tpu.dot_dimension_numbers<[2], [1], [1], [2], [0, 0, 0, 1, 1, 2], [0], [0]>} : vector<8x6x64xbf16>, vector<8x64x8xbf16>, vector<8x6x8xf32> -> vector<8x6x8xf32>
    "tpu.trace_stop"() : () -> ()
    %272 = vector.broadcast %203 : vector<8x1x8xf32> to vector<8x6x8xf32>
    %273 = arith.addf %271, %272 : vector<8x6x8xf32>
    %274 = arith.truncf %267 : vector<8x6x8xf32> to vector<8x6x8xbf16>
    %275 = arith.truncf %270 : vector<8x6x8xf32> to vector<8x6x8xbf16>
    "tpu.trace_start"() <{level = 10 : i32, message = "hqd,hkd->hqk"}> : () -> ()
    %cst_178 = arith.constant dense<0.000000e+00> : vector<8x6x6xf32>
    %276 = tpu.matmul %274, %275, %cst_178 {dimension_numbers = #tpu.dot_dimension_numbers<[2], [2], [1], [1], [0, 0, 0, 1, 1, 1], [0], [0]>} : vector<8x6x8xbf16>, vector<8x6x8xbf16>, vector<8x6x6xf32> -> vector<8x6x6xf32>
    "tpu.trace_stop"() : () -> ()
    %cst_179 = arith.constant 0.353553385 : f32
    %277 = vector.broadcast %cst_179 : f32 to vector<8x6x6xf32>
    %278 = arith.mulf %276, %277 : vector<8x6x6xf32>
    %cst_180 = arith.constant dense<0xFF800000> : vector<8x6xf32>
    %279 = vector.multi_reduction <maximumf>, %278, %cst_180 [2] : vector<8x6x6xf32> to vector<8x6xf32>
    %280 = vector.shape_cast %279 : vector<8x6xf32> to vector<8x6x1xf32>
    %281 = vector.broadcast %280 : vector<8x6x1xf32> to vector<8x6x6xf32>
    %282 = arith.subf %278, %281 : vector<8x6x6xf32>
    %283 = math.exp %282 : vector<8x6x6xf32>
    %cst_181 = arith.constant dense<0.000000e+00> : vector<8x6xf32>
    %284 = vector.multi_reduction <add>, %283, %cst_181 [2] : vector<8x6x6xf32> to vector<8x6xf32>
    %285 = vector.shape_cast %284 : vector<8x6xf32> to vector<8x6x1xf32>
    %286 = vector.broadcast %285 : vector<8x6x1xf32> to vector<8x6x6xf32>
    %287 = arith.divf %283, %286 : vector<8x6x6xf32>
    %288 = arith.truncf %287 : vector<8x6x6xf32> to vector<8x6x6xbf16>
    %289 = arith.truncf %273 : vector<8x6x8xf32> to vector<8x6x8xbf16>
    "tpu.trace_start"() <{level = 10 : i32, message = "hqk,hkd->hqd"}> : () -> ()
    %cst_182 = arith.constant dense<0.000000e+00> : vector<8x6x8xf32>
    %290 = tpu.matmul %288, %289, %cst_182 {dimension_numbers = #tpu.dot_dimension_numbers<[2], [1], [1], [2], [0, 0, 0, 1, 1, 2], [0], [0]>} : vector<8x6x6xbf16>, vector<8x6x8xbf16>, vector<8x6x8xf32> -> vector<8x6x8xf32>
    "tpu.trace_stop"() : () -> ()
    %291 = arith.truncf %290 : vector<8x6x8xf32> to vector<8x6x8xbf16>
    "tpu.trace_start"() <{level = 10 : i32, message = "hqd,hde->hqe"}> : () -> ()
    %cst_183 = arith.constant dense<0.000000e+00> : vector<8x6x64xf32>
    %292 = tpu.matmul %291, %205, %cst_183 {dimension_numbers = #tpu.dot_dimension_numbers<[2], [1], [1], [2], [0, 0, 0, 1, 1, 2], [0], [0]>} : vector<8x6x8xbf16>, vector<8x8x64xbf16>, vector<8x6x64xf32> -> vector<8x6x64xf32>
    "tpu.trace_stop"() : () -> ()
    %cst_184 = arith.constant dense<0.000000e+00> : vector<6x64xf32>
    %293 = vector.multi_reduction <add>, %292, %cst_184 [0] : vector<8x6x64xf32> to vector<6x64xf32>
    %294 = vector.broadcast %207 : vector<1x64xf32> to vector<6x64xf32>
    %295 = arith.addf %293, %294 : vector<6x64xf32>
    %296 = tpu.concatenate %259, %295 in 0 : vector<6x64xf32>, vector<6x64xf32> -> vector<12x64xf32>
    %297 = arith.addf %191, %296 : vector<12x64xf32>
    %cst_185 = arith.constant dense<0.000000e+00> : vector<12xf32>
    %298 = vector.multi_reduction <add>, %297, %cst_185 [1] : vector<12x64xf32> to vector<12xf32>
    %299 = vector.shape_cast %298 : vector<12xf32> to vector<12x1xf32>
    %cst_186 = arith.constant 6.400000e+01 : f32
    %300 = vector.broadcast %cst_186 : f32 to vector<12x1xf32>
    %301 = arith.divf %299, %300 : vector<12x1xf32>
    %302 = vector.broadcast %301 : vector<12x1xf32> to vector<12x64xf32>
    %303 = arith.subf %297, %302 : vector<12x64xf32>
    %304 = arith.mulf %303, %303 : vector<12x64xf32>
    %cst_187 = arith.constant dense<0.000000e+00> : vector<12xf32>
    %305 = vector.multi_reduction <add>, %304, %cst_187 [1] : vector<12x64xf32> to vector<12xf32>
    %306 = vector.shape_cast %305 : vector<12xf32> to vector<12x1xf32>
    %cst_188 = arith.constant 6.400000e+01 : f32
    %307 = vector.broadcast %cst_188 : f32 to vector<12x1xf32>
    %308 = arith.divf %306, %307 : vector<12x1xf32>
    %309 = vector.broadcast %301 : vector<12x1xf32> to vector<12x64xf32>
    %310 = arith.subf %297, %309 : vector<12x64xf32>
    %cst_189 = arith.constant 9.99999974E-6 : f32
    %311 = vector.broadcast %cst_189 : f32 to vector<12x1xf32>
    %312 = arith.addf %308, %311 : vector<12x1xf32>
    %313 = math.rsqrt %312 : vector<12x1xf32>
    %314 = vector.broadcast %313 : vector<12x1xf32> to vector<12x64xf32>
    %315 = arith.mulf %310, %314 : vector<12x64xf32>
    %316 = vector.broadcast %209 : vector<1x64xf32> to vector<12x64xf32>
    %317 = arith.mulf %315, %316 : vector<12x64xf32>
    %318 = vector.broadcast %211 : vector<1x64xf32> to vector<12x64xf32>
    %319 = arith.addf %317, %318 : vector<12x64xf32>
    %320 = arith.truncf %319 : vector<12x64xf32> to vector<12x64xbf16>
    %cst_190 = arith.constant dense<0.000000e+00> : vector<12x256xf32>
    %321 = tpu.matmul %320, %213, %cst_190 {dimension_numbers = #tpu.dot_dimension_numbers<[1], [0], [0], [1], [0, 0, 1, 1], [], []>} : vector<12x64xbf16>, vector<64x256xbf16>, vector<12x256xf32> -> vector<12x256xf32>
    %322 = vector.broadcast %215 : vector<1x256xf32> to vector<12x256xf32>
    %323 = arith.addf %321, %322 : vector<12x256xf32>
    %cst_191 = arith.constant 0.000000e+00 : f32
    %324 = vector.broadcast %cst_191 : f32 to vector<12x256xf32>
    %325 = arith.maximumf %323, %324 : vector<12x256xf32>
    %326 = arith.truncf %325 : vector<12x256xf32> to vector<12x256xbf16>
    %cst_192 = arith.constant dense<0.000000e+00> : vector<12x64xf32>
    %327 = tpu.matmul %326, %217, %cst_192 {dimension_numbers = #tpu.dot_dimension_numbers<[1], [0], [0], [1], [0, 0, 1, 1], [], []>} : vector<12x256xbf16>, vector<256x64xbf16>, vector<12x64xf32> -> vector<12x64xf32>
    %328 = vector.broadcast %219 : vector<1x64xf32> to vector<12x64xf32>
    %329 = arith.addf %327, %328 : vector<12x64xf32>
    %330 = arith.addf %319, %329 : vector<12x64xf32>
    %cst_193 = arith.constant dense<0.000000e+00> : vector<12xf32>
    %331 = vector.multi_reduction <add>, %330, %cst_193 [1] : vector<12x64xf32> to vector<12xf32>
    %332 = vector.shape_cast %331 : vector<12xf32> to vector<12x1xf32>
    %cst_194 = arith.constant 6.400000e+01 : f32
    %333 = vector.broadcast %cst_194 : f32 to vector<12x1xf32>
    %334 = arith.divf %332, %333 : vector<12x1xf32>
    %335 = vector.broadcast %334 : vector<12x1xf32> to vector<12x64xf32>
    %336 = arith.subf %330, %335 : vector<12x64xf32>
    %337 = arith.mulf %336, %336 : vector<12x64xf32>
    %cst_195 = arith.constant dense<0.000000e+00> : vector<12xf32>
    %338 = vector.multi_reduction <add>, %337, %cst_195 [1] : vector<12x64xf32> to vector<12xf32>
    %339 = vector.shape_cast %338 : vector<12xf32> to vector<12x1xf32>
    %cst_196 = arith.constant 6.400000e+01 : f32
    %340 = vector.broadcast %cst_196 : f32 to vector<12x1xf32>
    %341 = arith.divf %339, %340 : vector<12x1xf32>
    %342 = vector.broadcast %334 : vector<12x1xf32> to vector<12x64xf32>
    %343 = arith.subf %330, %342 : vector<12x64xf32>
    %cst_197 = arith.constant 9.99999974E-6 : f32
    %344 = vector.broadcast %cst_197 : f32 to vector<12x1xf32>
    %345 = arith.addf %341, %344 : vector<12x1xf32>
    %346 = math.rsqrt %345 : vector<12x1xf32>
    %347 = vector.broadcast %346 : vector<12x1xf32> to vector<12x64xf32>
    %348 = arith.mulf %343, %347 : vector<12x64xf32>
    %349 = vector.broadcast %221 : vector<1x64xf32> to vector<12x64xf32>
    %350 = arith.mulf %348, %349 : vector<12x64xf32>
    %351 = vector.broadcast %223 : vector<1x64xf32> to vector<12x64xf32>
    %352 = arith.addf %350, %351 : vector<12x64xf32>
    %c2 = arith.constant 2 : index
    %c0_198 = arith.constant 0 : index
    %c0_199 = arith.constant 0 : index
    %c0_200 = arith.constant 0 : index
    %353 = vector.load %arg8[%c2, %c0_198, %c0_199, %c0_200] : memref<3x8x64x8xbf16, #tpu.memory_space<vmem>>, vector<1x8x64x8xbf16>
    %354 = vector.shape_cast %353 : vector<1x8x64x8xbf16> to vector<8x64x8xbf16>
    %c2_201 = arith.constant 2 : index
    %c0_202 = arith.constant 0 : index
    %c0_203 = arith.constant 0 : index
    %c0_204 = arith.constant 0 : index
    %355 = vector.load %arg10[%c2_201, %c0_202, %c0_203, %c0_204] : memref<3x8x64x8xbf16, #tpu.memory_space<vmem>>, vector<1x8x64x8xbf16>
    %356 = vector.shape_cast %355 : vector<1x8x64x8xbf16> to vector<8x64x8xbf16>
    %c2_205 = arith.constant 2 : index
    %c0_206 = arith.constant 0 : index
    %c0_207 = arith.constant 0 : index
    %c0_208 = arith.constant 0 : index
    %357 = vector.load %arg12[%c2_205, %c0_206, %c0_207, %c0_208] : memref<3x8x64x8xbf16, #tpu.memory_space<vmem>>, vector<1x8x64x8xbf16>
    %358 = vector.shape_cast %357 : vector<1x8x64x8xbf16> to vector<8x64x8xbf16>
    %c2_209 = arith.constant 2 : index
    %c0_210 = arith.constant 0 : index
    %c0_211 = arith.constant 0 : index
    %c0_212 = arith.constant 0 : index
    %359 = vector.load %arg9[%c2_209, %c0_210, %c0_211, %c0_212] : memref<3x8x1x8xf32, #tpu.memory_space<vmem>>, vector<1x8x1x8xf32>
    %360 = vector.shape_cast %359 : vector<1x8x1x8xf32> to vector<8x1x8xf32>
    %c2_213 = arith.constant 2 : index
    %c0_214 = arith.constant 0 : index
    %c0_215 = arith.constant 0 : index
    %c0_216 = arith.constant 0 : index
    %361 = vector.load %arg11[%c2_213, %c0_214, %c0_215, %c0_216] : memref<3x8x1x8xf32, #tpu.memory_space<vmem>>, vector<1x8x1x8xf32>
    %362 = vector.shape_cast %361 : vector<1x8x1x8xf32> to vector<8x1x8xf32>
    %c2_217 = arith.constant 2 : index
    %c0_218 = arith.constant 0 : index
    %c0_219 = arith.constant 0 : index
    %c0_220 = arith.constant 0 : index
    %363 = vector.load %arg13[%c2_217, %c0_218, %c0_219, %c0_220] : memref<3x8x1x8xf32, #tpu.memory_space<vmem>>, vector<1x8x1x8xf32>
    %364 = vector.shape_cast %363 : vector<1x8x1x8xf32> to vector<8x1x8xf32>
    %c2_221 = arith.constant 2 : index
    %c0_222 = arith.constant 0 : index
    %c0_223 = arith.constant 0 : index
    %c0_224 = arith.constant 0 : index
    %365 = vector.load %arg14[%c2_221, %c0_222, %c0_223, %c0_224] : memref<3x8x8x64xbf16, #tpu.memory_space<vmem>>, vector<1x8x8x64xbf16>
    %366 = vector.shape_cast %365 : vector<1x8x8x64xbf16> to vector<8x8x64xbf16>
    %c2_225 = arith.constant 2 : index
    %c0_226 = arith.constant 0 : index
    %c0_227 = arith.constant 0 : index
    %367 = vector.load %arg15[%c2_225, %c0_226, %c0_227] : memref<3x1x64xf32, #tpu.memory_space<vmem>>, vector<1x1x64xf32>
    %368 = vector.shape_cast %367 : vector<1x1x64xf32> to vector<1x64xf32>
    %c2_228 = arith.constant 2 : index
    %c0_229 = arith.constant 0 : index
    %c0_230 = arith.constant 0 : index
    %369 = vector.load %arg16[%c2_228, %c0_229, %c0_230] : memref<3x1x64xf32, #tpu.memory_space<vmem>>, vector<1x1x64xf32>
    %370 = vector.shape_cast %369 : vector<1x1x64xf32> to vector<1x64xf32>
    %c2_231 = arith.constant 2 : index
    %c0_232 = arith.constant 0 : index
    %c0_233 = arith.constant 0 : index
    %371 = vector.load %arg17[%c2_231, %c0_232, %c0_233] : memref<3x1x64xf32, #tpu.memory_space<vmem>>, vector<1x1x64xf32>
    %372 = vector.shape_cast %371 : vector<1x1x64xf32> to vector<1x64xf32>
    %c2_234 = arith.constant 2 : index
    %c0_235 = arith.constant 0 : index
    %c0_236 = arith.constant 0 : index
    %373 = vector.load %arg18[%c2_234, %c0_235, %c0_236] : memref<3x64x256xbf16, #tpu.memory_space<vmem>>, vector<1x64x256xbf16>
    %374 = vector.shape_cast %373 : vector<1x64x256xbf16> to vector<64x256xbf16>
    %c2_237 = arith.constant 2 : index
    %c0_238 = arith.constant 0 : index
    %c0_239 = arith.constant 0 : index
    %375 = vector.load %arg19[%c2_237, %c0_238, %c0_239] : memref<3x1x256xf32, #tpu.memory_space<vmem>>, vector<1x1x256xf32>
    %376 = vector.shape_cast %375 : vector<1x1x256xf32> to vector<1x256xf32>
    %c2_240 = arith.constant 2 : index
    %c0_241 = arith.constant 0 : index
    %c0_242 = arith.constant 0 : index
    %377 = vector.load %arg20[%c2_240, %c0_241, %c0_242] : memref<3x256x64xbf16, #tpu.memory_space<vmem>>, vector<1x256x64xbf16>
    %378 = vector.shape_cast %377 : vector<1x256x64xbf16> to vector<256x64xbf16>
    %c2_243 = arith.constant 2 : index
    %c0_244 = arith.constant 0 : index
    %c0_245 = arith.constant 0 : index
    %379 = vector.load %arg21[%c2_243, %c0_244, %c0_245] : memref<3x1x64xf32, #tpu.memory_space<vmem>>, vector<1x1x64xf32>
    %380 = vector.shape_cast %379 : vector<1x1x64xf32> to vector<1x64xf32>
    %c2_246 = arith.constant 2 : index
    %c0_247 = arith.constant 0 : index
    %c0_248 = arith.constant 0 : index
    %381 = vector.load %arg22[%c2_246, %c0_247, %c0_248] : memref<3x1x64xf32, #tpu.memory_space<vmem>>, vector<1x1x64xf32>
    %382 = vector.shape_cast %381 : vector<1x1x64xf32> to vector<1x64xf32>
    %c2_249 = arith.constant 2 : index
    %c0_250 = arith.constant 0 : index
    %c0_251 = arith.constant 0 : index
    %383 = vector.load %arg23[%c2_249, %c0_250, %c0_251] : memref<3x1x64xf32, #tpu.memory_space<vmem>>, vector<1x1x64xf32>
    %384 = vector.shape_cast %383 : vector<1x1x64xf32> to vector<1x64xf32>
    %385 = vector.extract_strided_slice %352 {offsets = [0, 0], sizes = [6, 64], strides = [1, 1]} : vector<12x64xf32> to vector<6x64xf32>
    %386 = arith.truncf %385 : vector<6x64xf32> to vector<6x64xbf16>
    %387 = vector.shape_cast %386 : vector<6x64xbf16> to vector<1x6x64xbf16>
    %388 = vector.shape_cast %387 : vector<1x6x64xbf16> to vector<1x6x64xbf16>
    %389 = vector.broadcast %388 : vector<1x6x64xbf16> to vector<8x6x64xbf16>
    "tpu.trace_start"() <{level = 10 : i32, message = "hsd,hde->hse"}> : () -> ()
    %cst_252 = arith.constant dense<0.000000e+00> : vector<8x6x8xf32>
    %390 = tpu.matmul %389, %354, %cst_252 {dimension_numbers = #tpu.dot_dimension_numbers<[2], [1], [1], [2], [0, 0, 0, 1, 1, 2], [0], [0]>} : vector<8x6x64xbf16>, vector<8x64x8xbf16>, vector<8x6x8xf32> -> vector<8x6x8xf32>
    "tpu.trace_stop"() : () -> ()
    %391 = vector.broadcast %360 : vector<8x1x8xf32> to vector<8x6x8xf32>
    %392 = arith.addf %390, %391 : vector<8x6x8xf32>
    "tpu.trace_start"() <{level = 10 : i32, message = "hsd,hde->hse"}> : () -> ()
    %cst_253 = arith.constant dense<0.000000e+00> : vector<8x6x8xf32>
    %393 = tpu.matmul %389, %356, %cst_253 {dimension_numbers = #tpu.dot_dimension_numbers<[2], [1], [1], [2], [0, 0, 0, 1, 1, 2], [0], [0]>} : vector<8x6x64xbf16>, vector<8x64x8xbf16>, vector<8x6x8xf32> -> vector<8x6x8xf32>
    "tpu.trace_stop"() : () -> ()
    %394 = vector.broadcast %362 : vector<8x1x8xf32> to vector<8x6x8xf32>
    %395 = arith.addf %393, %394 : vector<8x6x8xf32>
    "tpu.trace_start"() <{level = 10 : i32, message = "hsd,hde->hse"}> : () -> ()
    %cst_254 = arith.constant dense<0.000000e+00> : vector<8x6x8xf32>
    %396 = tpu.matmul %389, %358, %cst_254 {dimension_numbers = #tpu.dot_dimension_numbers<[2], [1], [1], [2], [0, 0, 0, 1, 1, 2], [0], [0]>} : vector<8x6x64xbf16>, vector<8x64x8xbf16>, vector<8x6x8xf32> -> vector<8x6x8xf32>
    "tpu.trace_stop"() : () -> ()
    %397 = vector.broadcast %364 : vector<8x1x8xf32> to vector<8x6x8xf32>
    %398 = arith.addf %396, %397 : vector<8x6x8xf32>
    %399 = arith.truncf %392 : vector<8x6x8xf32> to vector<8x6x8xbf16>
    %400 = arith.truncf %395 : vector<8x6x8xf32> to vector<8x6x8xbf16>
    "tpu.trace_start"() <{level = 10 : i32, message = "hqd,hkd->hqk"}> : () -> ()
    %cst_255 = arith.constant dense<0.000000e+00> : vector<8x6x6xf32>
    %401 = tpu.matmul %399, %400, %cst_255 {dimension_numbers = #tpu.dot_dimension_numbers<[2], [2], [1], [1], [0, 0, 0, 1, 1, 1], [0], [0]>} : vector<8x6x8xbf16>, vector<8x6x8xbf16>, vector<8x6x6xf32> -> vector<8x6x6xf32>
    "tpu.trace_stop"() : () -> ()
    %cst_256 = arith.constant 0.353553385 : f32
    %402 = vector.broadcast %cst_256 : f32 to vector<8x6x6xf32>
    %403 = arith.mulf %401, %402 : vector<8x6x6xf32>
    %cst_257 = arith.constant dense<0xFF800000> : vector<8x6xf32>
    %404 = vector.multi_reduction <maximumf>, %403, %cst_257 [2] : vector<8x6x6xf32> to vector<8x6xf32>
    %405 = vector.shape_cast %404 : vector<8x6xf32> to vector<8x6x1xf32>
    %406 = vector.broadcast %405 : vector<8x6x1xf32> to vector<8x6x6xf32>
    %407 = arith.subf %403, %406 : vector<8x6x6xf32>
    %408 = math.exp %407 : vector<8x6x6xf32>
    %cst_258 = arith.constant dense<0.000000e+00> : vector<8x6xf32>
    %409 = vector.multi_reduction <add>, %408, %cst_258 [2] : vector<8x6x6xf32> to vector<8x6xf32>
    %410 = vector.shape_cast %409 : vector<8x6xf32> to vector<8x6x1xf32>
    %411 = vector.broadcast %410 : vector<8x6x1xf32> to vector<8x6x6xf32>
    %412 = arith.divf %408, %411 : vector<8x6x6xf32>
    %413 = arith.truncf %412 : vector<8x6x6xf32> to vector<8x6x6xbf16>
    %414 = arith.truncf %398 : vector<8x6x8xf32> to vector<8x6x8xbf16>
    "tpu.trace_start"() <{level = 10 : i32, message = "hqk,hkd->hqd"}> : () -> ()
    %cst_259 = arith.constant dense<0.000000e+00> : vector<8x6x8xf32>
    %415 = tpu.matmul %413, %414, %cst_259 {dimension_numbers = #tpu.dot_dimension_numbers<[2], [1], [1], [2], [0, 0, 0, 1, 1, 2], [0], [0]>} : vector<8x6x6xbf16>, vector<8x6x8xbf16>, vector<8x6x8xf32> -> vector<8x6x8xf32>
    "tpu.trace_stop"() : () -> ()
    %416 = arith.truncf %415 : vector<8x6x8xf32> to vector<8x6x8xbf16>
    "tpu.trace_start"() <{level = 10 : i32, message = "hqd,hde->hqe"}> : () -> ()
    %cst_260 = arith.constant dense<0.000000e+00> : vector<8x6x64xf32>
    %417 = tpu.matmul %416, %366, %cst_260 {dimension_numbers = #tpu.dot_dimension_numbers<[2], [1], [1], [2], [0, 0, 0, 1, 1, 2], [0], [0]>} : vector<8x6x8xbf16>, vector<8x8x64xbf16>, vector<8x6x64xf32> -> vector<8x6x64xf32>
    "tpu.trace_stop"() : () -> ()
    %cst_261 = arith.constant dense<0.000000e+00> : vector<6x64xf32>
    %418 = vector.multi_reduction <add>, %417, %cst_261 [0] : vector<8x6x64xf32> to vector<6x64xf32>
    %419 = vector.broadcast %368 : vector<1x64xf32> to vector<6x64xf32>
    %420 = arith.addf %418, %419 : vector<6x64xf32>
    %421 = vector.extract_strided_slice %352 {offsets = [6, 0], sizes = [6, 64], strides = [1, 1]} : vector<12x64xf32> to vector<6x64xf32>
    %422 = arith.truncf %421 : vector<6x64xf32> to vector<6x64xbf16>
    %423 = vector.shape_cast %422 : vector<6x64xbf16> to vector<1x6x64xbf16>
    %424 = vector.shape_cast %423 : vector<1x6x64xbf16> to vector<1x6x64xbf16>
    %425 = vector.broadcast %424 : vector<1x6x64xbf16> to vector<8x6x64xbf16>
    "tpu.trace_start"() <{level = 10 : i32, message = "hsd,hde->hse"}> : () -> ()
    %cst_262 = arith.constant dense<0.000000e+00> : vector<8x6x8xf32>
    %426 = tpu.matmul %425, %354, %cst_262 {dimension_numbers = #tpu.dot_dimension_numbers<[2], [1], [1], [2], [0, 0, 0, 1, 1, 2], [0], [0]>} : vector<8x6x64xbf16>, vector<8x64x8xbf16>, vector<8x6x8xf32> -> vector<8x6x8xf32>
    "tpu.trace_stop"() : () -> ()
    %427 = vector.broadcast %360 : vector<8x1x8xf32> to vector<8x6x8xf32>
    %428 = arith.addf %426, %427 : vector<8x6x8xf32>
    "tpu.trace_start"() <{level = 10 : i32, message = "hsd,hde->hse"}> : () -> ()
    %cst_263 = arith.constant dense<0.000000e+00> : vector<8x6x8xf32>
    %429 = tpu.matmul %425, %356, %cst_263 {dimension_numbers = #tpu.dot_dimension_numbers<[2], [1], [1], [2], [0, 0, 0, 1, 1, 2], [0], [0]>} : vector<8x6x64xbf16>, vector<8x64x8xbf16>, vector<8x6x8xf32> -> vector<8x6x8xf32>
    "tpu.trace_stop"() : () -> ()
    %430 = vector.broadcast %362 : vector<8x1x8xf32> to vector<8x6x8xf32>
    %431 = arith.addf %429, %430 : vector<8x6x8xf32>
    "tpu.trace_start"() <{level = 10 : i32, message = "hsd,hde->hse"}> : () -> ()
    %cst_264 = arith.constant dense<0.000000e+00> : vector<8x6x8xf32>
    %432 = tpu.matmul %425, %358, %cst_264 {dimension_numbers = #tpu.dot_dimension_numbers<[2], [1], [1], [2], [0, 0, 0, 1, 1, 2], [0], [0]>} : vector<8x6x64xbf16>, vector<8x64x8xbf16>, vector<8x6x8xf32> -> vector<8x6x8xf32>
    "tpu.trace_stop"() : () -> ()
    %433 = vector.broadcast %364 : vector<8x1x8xf32> to vector<8x6x8xf32>
    %434 = arith.addf %432, %433 : vector<8x6x8xf32>
    %435 = arith.truncf %428 : vector<8x6x8xf32> to vector<8x6x8xbf16>
    %436 = arith.truncf %431 : vector<8x6x8xf32> to vector<8x6x8xbf16>
    "tpu.trace_start"() <{level = 10 : i32, message = "hqd,hkd->hqk"}> : () -> ()
    %cst_265 = arith.constant dense<0.000000e+00> : vector<8x6x6xf32>
    %437 = tpu.matmul %435, %436, %cst_265 {dimension_numbers = #tpu.dot_dimension_numbers<[2], [2], [1], [1], [0, 0, 0, 1, 1, 1], [0], [0]>} : vector<8x6x8xbf16>, vector<8x6x8xbf16>, vector<8x6x6xf32> -> vector<8x6x6xf32>
    "tpu.trace_stop"() : () -> ()
    %cst_266 = arith.constant 0.353553385 : f32
    %438 = vector.broadcast %cst_266 : f32 to vector<8x6x6xf32>
    %439 = arith.mulf %437, %438 : vector<8x6x6xf32>
    %cst_267 = arith.constant dense<0xFF800000> : vector<8x6xf32>
    %440 = vector.multi_reduction <maximumf>, %439, %cst_267 [2] : vector<8x6x6xf32> to vector<8x6xf32>
    %441 = vector.shape_cast %440 : vector<8x6xf32> to vector<8x6x1xf32>
    %442 = vector.broadcast %441 : vector<8x6x1xf32> to vector<8x6x6xf32>
    %443 = arith.subf %439, %442 : vector<8x6x6xf32>
    %444 = math.exp %443 : vector<8x6x6xf32>
    %cst_268 = arith.constant dense<0.000000e+00> : vector<8x6xf32>
    %445 = vector.multi_reduction <add>, %444, %cst_268 [2] : vector<8x6x6xf32> to vector<8x6xf32>
    %446 = vector.shape_cast %445 : vector<8x6xf32> to vector<8x6x1xf32>
    %447 = vector.broadcast %446 : vector<8x6x1xf32> to vector<8x6x6xf32>
    %448 = arith.divf %444, %447 : vector<8x6x6xf32>
    %449 = arith.truncf %448 : vector<8x6x6xf32> to vector<8x6x6xbf16>
    %450 = arith.truncf %434 : vector<8x6x8xf32> to vector<8x6x8xbf16>
    "tpu.trace_start"() <{level = 10 : i32, message = "hqk,hkd->hqd"}> : () -> ()
    %cst_269 = arith.constant dense<0.000000e+00> : vector<8x6x8xf32>
    %451 = tpu.matmul %449, %450, %cst_269 {dimension_numbers = #tpu.dot_dimension_numbers<[2], [1], [1], [2], [0, 0, 0, 1, 1, 2], [0], [0]>} : vector<8x6x6xbf16>, vector<8x6x8xbf16>, vector<8x6x8xf32> -> vector<8x6x8xf32>
    "tpu.trace_stop"() : () -> ()
    %452 = arith.truncf %451 : vector<8x6x8xf32> to vector<8x6x8xbf16>
    "tpu.trace_start"() <{level = 10 : i32, message = "hqd,hde->hqe"}> : () -> ()
    %cst_270 = arith.constant dense<0.000000e+00> : vector<8x6x64xf32>
    %453 = tpu.matmul %452, %366, %cst_270 {dimension_numbers = #tpu.dot_dimension_numbers<[2], [1], [1], [2], [0, 0, 0, 1, 1, 2], [0], [0]>} : vector<8x6x8xbf16>, vector<8x8x64xbf16>, vector<8x6x64xf32> -> vector<8x6x64xf32>
    "tpu.trace_stop"() : () -> ()
    %cst_271 = arith.constant dense<0.000000e+00> : vector<6x64xf32>
    %454 = vector.multi_reduction <add>, %453, %cst_271 [0] : vector<8x6x64xf32> to vector<6x64xf32>
    %455 = vector.broadcast %368 : vector<1x64xf32> to vector<6x64xf32>
    %456 = arith.addf %454, %455 : vector<6x64xf32>
    %457 = tpu.concatenate %420, %456 in 0 : vector<6x64xf32>, vector<6x64xf32> -> vector<12x64xf32>
    %458 = arith.addf %352, %457 : vector<12x64xf32>
    %cst_272 = arith.constant dense<0.000000e+00> : vector<12xf32>
    %459 = vector.multi_reduction <add>, %458, %cst_272 [1] : vector<12x64xf32> to vector<12xf32>
    %460 = vector.shape_cast %459 : vector<12xf32> to vector<12x1xf32>
    %cst_273 = arith.constant 6.400000e+01 : f32
    %461 = vector.broadcast %cst_273 : f32 to vector<12x1xf32>
    %462 = arith.divf %460, %461 : vector<12x1xf32>
    %463 = vector.broadcast %462 : vector<12x1xf32> to vector<12x64xf32>
    %464 = arith.subf %458, %463 : vector<12x64xf32>
    %465 = arith.mulf %464, %464 : vector<12x64xf32>
    %cst_274 = arith.constant dense<0.000000e+00> : vector<12xf32>
    %466 = vector.multi_reduction <add>, %465, %cst_274 [1] : vector<12x64xf32> to vector<12xf32>
    %467 = vector.shape_cast %466 : vector<12xf32> to vector<12x1xf32>
    %cst_275 = arith.constant 6.400000e+01 : f32
    %468 = vector.broadcast %cst_275 : f32 to vector<12x1xf32>
    %469 = arith.divf %467, %468 : vector<12x1xf32>
    %470 = vector.broadcast %462 : vector<12x1xf32> to vector<12x64xf32>
    %471 = arith.subf %458, %470 : vector<12x64xf32>
    %cst_276 = arith.constant 9.99999974E-6 : f32
    %472 = vector.broadcast %cst_276 : f32 to vector<12x1xf32>
    %473 = arith.addf %469, %472 : vector<12x1xf32>
    %474 = math.rsqrt %473 : vector<12x1xf32>
    %475 = vector.broadcast %474 : vector<12x1xf32> to vector<12x64xf32>
    %476 = arith.mulf %471, %475 : vector<12x64xf32>
    %477 = vector.broadcast %370 : vector<1x64xf32> to vector<12x64xf32>
    %478 = arith.mulf %476, %477 : vector<12x64xf32>
    %479 = vector.broadcast %372 : vector<1x64xf32> to vector<12x64xf32>
    %480 = arith.addf %478, %479 : vector<12x64xf32>
    %481 = arith.truncf %480 : vector<12x64xf32> to vector<12x64xbf16>
    %cst_277 = arith.constant dense<0.000000e+00> : vector<12x256xf32>
    %482 = tpu.matmul %481, %374, %cst_277 {dimension_numbers = #tpu.dot_dimension_numbers<[1], [0], [0], [1], [0, 0, 1, 1], [], []>} : vector<12x64xbf16>, vector<64x256xbf16>, vector<12x256xf32> -> vector<12x256xf32>
    %483 = vector.broadcast %376 : vector<1x256xf32> to vector<12x256xf32>
    %484 = arith.addf %482, %483 : vector<12x256xf32>
    %cst_278 = arith.constant 0.000000e+00 : f32
    %485 = vector.broadcast %cst_278 : f32 to vector<12x256xf32>
    %486 = arith.maximumf %484, %485 : vector<12x256xf32>
    %487 = arith.truncf %486 : vector<12x256xf32> to vector<12x256xbf16>
    %cst_279 = arith.constant dense<0.000000e+00> : vector<12x64xf32>
    %488 = tpu.matmul %487, %378, %cst_279 {dimension_numbers = #tpu.dot_dimension_numbers<[1], [0], [0], [1], [0, 0, 1, 1], [], []>} : vector<12x256xbf16>, vector<256x64xbf16>, vector<12x64xf32> -> vector<12x64xf32>
    %489 = vector.broadcast %380 : vector<1x64xf32> to vector<12x64xf32>
    %490 = arith.addf %488, %489 : vector<12x64xf32>
    %491 = arith.addf %480, %490 : vector<12x64xf32>
    %cst_280 = arith.constant dense<0.000000e+00> : vector<12xf32>
    %492 = vector.multi_reduction <add>, %491, %cst_280 [1] : vector<12x64xf32> to vector<12xf32>
    %493 = vector.shape_cast %492 : vector<12xf32> to vector<12x1xf32>
    %cst_281 = arith.constant 6.400000e+01 : f32
    %494 = vector.broadcast %cst_281 : f32 to vector<12x1xf32>
    %495 = arith.divf %493, %494 : vector<12x1xf32>
    %496 = vector.broadcast %495 : vector<12x1xf32> to vector<12x64xf32>
    %497 = arith.subf %491, %496 : vector<12x64xf32>
    %498 = arith.mulf %497, %497 : vector<12x64xf32>
    %cst_282 = arith.constant dense<0.000000e+00> : vector<12xf32>
    %499 = vector.multi_reduction <add>, %498, %cst_282 [1] : vector<12x64xf32> to vector<12xf32>
    %500 = vector.shape_cast %499 : vector<12xf32> to vector<12x1xf32>
    %cst_283 = arith.constant 6.400000e+01 : f32
    %501 = vector.broadcast %cst_283 : f32 to vector<12x1xf32>
    %502 = arith.divf %500, %501 : vector<12x1xf32>
    %503 = vector.broadcast %495 : vector<12x1xf32> to vector<12x64xf32>
    %504 = arith.subf %491, %503 : vector<12x64xf32>
    %cst_284 = arith.constant 9.99999974E-6 : f32
    %505 = vector.broadcast %cst_284 : f32 to vector<12x1xf32>
    %506 = arith.addf %502, %505 : vector<12x1xf32>
    %507 = math.rsqrt %506 : vector<12x1xf32>
    %508 = vector.broadcast %507 : vector<12x1xf32> to vector<12x64xf32>
    %509 = arith.mulf %504, %508 : vector<12x64xf32>
    %510 = vector.broadcast %382 : vector<1x64xf32> to vector<12x64xf32>
    %511 = arith.mulf %509, %510 : vector<12x64xf32>
    %512 = vector.broadcast %384 : vector<1x64xf32> to vector<12x64xf32>
    %513 = arith.addf %511, %512 : vector<12x64xf32>
    %514 = vector.extract_strided_slice %513 {offsets = [1, 0], sizes = [5, 64], strides = [1, 1]} : vector<12x64xf32> to vector<5x64xf32>
    %515 = vector.extract_strided_slice %513 {offsets = [7, 0], sizes = [5, 64], strides = [1, 1]} : vector<12x64xf32> to vector<5x64xf32>
    %516 = tpu.concatenate %514, %515 in 0 : vector<5x64xf32>, vector<5x64xf32> -> vector<10x64xf32>
    %c0_285 = arith.constant 0 : index
    %c0_286 = arith.constant 0 : index
    %517 = vector.load %arg24[%c0_285, %c0_286] : memref<64x64xbf16, #tpu.memory_space<vmem>>, vector<64x64xbf16>
    %518 = arith.truncf %516 : vector<10x64xf32> to vector<10x64xbf16>
    %cst_287 = arith.constant dense<0.000000e+00> : vector<10x64xf32>
    %519 = tpu.matmul %518, %517, %cst_287 {dimension_numbers = #tpu.dot_dimension_numbers<[1], [0], [0], [1], [0, 0, 1, 1], [], []>} : vector<10x64xbf16>, vector<64x64xbf16>, vector<10x64xf32> -> vector<10x64xf32>
    %c0_288 = arith.constant 0 : index
    %c0_289 = arith.constant 0 : index
    %520 = vector.load %arg25[%c0_288, %c0_289] : memref<1x64xf32, #tpu.memory_space<vmem>>, vector<1x64xf32>
    %521 = vector.broadcast %520 : vector<1x64xf32> to vector<10x64xf32>
    %522 = arith.addf %519, %521 : vector<10x64xf32>
    %cst_290 = arith.constant 0.000000e+00 : f32
    %523 = vector.broadcast %cst_290 : f32 to vector<10x64xf32>
    %524 = arith.maximumf %522, %523 : vector<10x64xf32>
    %c0_291 = arith.constant 0 : index
    %c0_292 = arith.constant 0 : index
    %525 = vector.load %arg26[%c0_291, %c0_292] : memref<64x2xbf16, #tpu.memory_space<vmem>>, vector<64x2xbf16>
    %526 = arith.truncf %524 : vector<10x64xf32> to vector<10x64xbf16>
    %cst_293 = arith.constant dense<0.000000e+00> : vector<10x2xf32>
    %527 = tpu.matmul %526, %525, %cst_293 {dimension_numbers = #tpu.dot_dimension_numbers<[1], [0], [0], [1], [0, 0, 1, 1], [], []>} : vector<10x64xbf16>, vector<64x2xbf16>, vector<10x2xf32> -> vector<10x2xf32>
    %c0_294 = arith.constant 0 : index
    %c0_295 = arith.constant 0 : index
    %528 = vector.load %arg27[%c0_294, %c0_295] : memref<1x2xf32, #tpu.memory_space<vmem>>, vector<1x2xf32>
    %529 = vector.broadcast %528 : vector<1x2xf32> to vector<10x2xf32>
    %530 = arith.addf %527, %529 : vector<10x2xf32>
    %531 = vector.extract_strided_slice %530 {offsets = [0, 1], sizes = [10, 1], strides = [1, 1]} : vector<10x2xf32> to vector<10x1xf32>
    %532 = arith.negf %531 : vector<10x1xf32>
    %533 = math.exp %532 : vector<10x1xf32>
    %cst_296 = arith.constant 1.000000e+00 : f32
    %534 = vector.broadcast %cst_296 : f32 to vector<10x1xf32>
    %535 = arith.addf %534, %533 : vector<10x1xf32>
    %536 = arith.divf %534, %535 : vector<10x1xf32>
    %537 = vector.extract_strided_slice %530 {offsets = [0, 0], sizes = [10, 1], strides = [1, 1]} : vector<10x2xf32> to vector<10x1xf32>
    %538 = vector.extract_strided_slice %537 {offsets = [0, 0], sizes = [5, 1], strides = [1, 1]} : vector<10x1xf32> to vector<5x1xf32>
    %cst_297 = arith.constant dense<0xFF800000> : vector<1xf32>
    %539 = vector.multi_reduction <maximumf>, %538, %cst_297 [0] : vector<5x1xf32> to vector<1xf32>
    %540 = vector.shape_cast %539 : vector<1xf32> to vector<1x1xf32>
    %541 = vector.broadcast %540 : vector<1x1xf32> to vector<5x1xf32>
    %542 = arith.subf %538, %541 : vector<5x1xf32>
    %543 = math.exp %542 : vector<5x1xf32>
    %cst_298 = arith.constant dense<0.000000e+00> : vector<1xf32>
    %544 = vector.multi_reduction <add>, %543, %cst_298 [0] : vector<5x1xf32> to vector<1xf32>
    %545 = vector.shape_cast %544 : vector<1xf32> to vector<1x1xf32>
    %546 = vector.broadcast %545 : vector<1x1xf32> to vector<5x1xf32>
    %547 = arith.divf %543, %546 : vector<5x1xf32>
    %548 = vector.extract_strided_slice %536 {offsets = [0, 0], sizes = [5, 1], strides = [1, 1]} : vector<10x1xf32> to vector<5x1xf32>
    %549 = tpu.concatenate %547, %548 in 1 : vector<5x1xf32>, vector<5x1xf32> -> vector<5x2xf32>
    %c0_299 = arith.constant 0 : index
    %c0_300 = arith.constant 0 : index
    %c0_301 = arith.constant 0 : index
    %550 = vector.load %arg28[%c0_299, %c0_300, %c0_301] : memref<2x5x2xf32, #tpu.memory_space<vmem>>, vector<1x5x2xf32>
    %551 = vector.shape_cast %550 : vector<1x5x2xf32> to vector<5x2xf32>
    %552 = vector.shape_cast %549 : vector<5x2xf32> to vector<1x5x2xf32>
    tpu.vector_store %arg28[%c0_299, %c0_300, %c0_301], %552 {strides = array<i32>} : memref<2x5x2xf32, #tpu.memory_space<vmem>>, vector<1x5x2xf32>,
    %553 = vector.extract_strided_slice %537 {offsets = [5, 0], sizes = [5, 1], strides = [1, 1]} : vector<10x1xf32> to vector<5x1xf32>
    %cst_302 = arith.constant dense<0xFF800000> : vector<1xf32>
    %554 = vector.multi_reduction <maximumf>, %553, %cst_302 [0] : vector<5x1xf32> to vector<1xf32>
    %555 = vector.shape_cast %554 : vector<1xf32> to vector<1x1xf32>
    %556 = vector.broadcast %555 : vector<1x1xf32> to vector<5x1xf32>
    %557 = arith.subf %553, %556 : vector<5x1xf32>
    %558 = math.exp %557 : vector<5x1xf32>
    %cst_303 = arith.constant dense<0.000000e+00> : vector<1xf32>
    %559 = vector.multi_reduction <add>, %558, %cst_303 [0] : vector<5x1xf32> to vector<1xf32>
    %560 = vector.shape_cast %559 : vector<1xf32> to vector<1x1xf32>
    %561 = vector.broadcast %560 : vector<1x1xf32> to vector<5x1xf32>
    %562 = arith.divf %558, %561 : vector<5x1xf32>
    %563 = vector.extract_strided_slice %536 {offsets = [5, 0], sizes = [5, 1], strides = [1, 1]} : vector<10x1xf32> to vector<5x1xf32>
    %564 = tpu.concatenate %562, %563 in 1 : vector<5x1xf32>, vector<5x1xf32> -> vector<5x2xf32>
    %c1_304 = arith.constant 1 : index
    %c0_305 = arith.constant 0 : index
    %c0_306 = arith.constant 0 : index
    %565 = vector.load %arg28[%c1_304, %c0_305, %c0_306] : memref<2x5x2xf32, #tpu.memory_space<vmem>>, vector<1x5x2xf32>
    %566 = vector.shape_cast %565 : vector<1x5x2xf32> to vector<5x2xf32>
    %567 = vector.shape_cast %564 : vector<5x2xf32> to vector<1x5x2xf32>
    tpu.vector_store %arg28[%c1_304, %c0_305, %c0_306], %567 {strides = array<i32>} : memref<2x5x2xf32, #tpu.memory_space<vmem>>, vector<1x5x2xf32>,
    return
  }
  func.func @transform_0(%arg0: i32) -> (i32, i32) {
    %c0_i32 = arith.constant 0 : i32
    %c0_i32_0 = arith.constant 0 : i32
    return %arg0, %c0_i32 : i32, i32
  }
  func.func @transform_1(%arg0: i32) -> (i32, i32, i32) {
    %c0_i32 = arith.constant 0 : i32
    %c0_i32_0 = arith.constant 0 : i32
    %c0_i32_1 = arith.constant 0 : i32
    return %arg0, %c0_i32, %c0_i32_0 : i32, i32, i32
  }
  func.func @transform_2(%arg0: i32) -> (i32, i32) {
    %c0_i32 = arith.constant 0 : i32
    %c0_i32_0 = arith.constant 0 : i32
    %c0_i32_1 = arith.constant 0 : i32
    return %c0_i32, %c0_i32_0 : i32, i32
  }
  func.func @transform_3(%arg0: i32) -> (i32, i32) {
    %c0_i32 = arith.constant 0 : i32
    %c0_i32_0 = arith.constant 0 : i32
    %c0_i32_1 = arith.constant 0 : i32
    return %c0_i32, %c0_i32_0 : i32, i32
  }
  func.func @transform_4(%arg0: i32) -> (i32, i32) {
    %c0_i32 = arith.constant 0 : i32
    %c0_i32_0 = arith.constant 0 : i32
    %c0_i32_1 = arith.constant 0 : i32
    return %c0_i32, %c0_i32_0 : i32, i32
  }
  func.func @transform_5(%arg0: i32) -> (i32, i32) {
    %c0_i32 = arith.constant 0 : i32
    %c0_i32_0 = arith.constant 0 : i32
    %c0_i32_1 = arith.constant 0 : i32
    return %c0_i32, %c0_i32_0 : i32, i32
  }
  func.func @transform_6(%arg0: i32) -> (i32, i32) {
    %c0_i32 = arith.constant 0 : i32
    %c0_i32_0 = arith.constant 0 : i32
    %c0_i32_1 = arith.constant 0 : i32
    return %c0_i32, %c0_i32_0 : i32, i32
  }
  func.func @transform_7(%arg0: i32) -> (i32, i32, i32, i32) {
    %c0_i32 = arith.constant 0 : i32
    %c0_i32_0 = arith.constant 0 : i32
    %c0_i32_1 = arith.constant 0 : i32
    %c0_i32_2 = arith.constant 0 : i32
    %c0_i32_3 = arith.constant 0 : i32
    return %c0_i32, %c0_i32_0, %c0_i32_1, %c0_i32_2 : i32, i32, i32, i32
  }
  func.func @transform_8(%arg0: i32) -> (i32, i32, i32, i32) {
    %c0_i32 = arith.constant 0 : i32
    %c0_i32_0 = arith.constant 0 : i32
    %c0_i32_1 = arith.constant 0 : i32
    %c0_i32_2 = arith.constant 0 : i32
    %c0_i32_3 = arith.constant 0 : i32
    return %c0_i32, %c0_i32_0, %c0_i32_1, %c0_i32_2 : i32, i32, i32, i32
  }
  func.func @transform_9(%arg0: i32) -> (i32, i32, i32, i32) {
    %c0_i32 = arith.constant 0 : i32
    %c0_i32_0 = arith.constant 0 : i32
    %c0_i32_1 = arith.constant 0 : i32
    %c0_i32_2 = arith.constant 0 : i32
    %c0_i32_3 = arith.constant 0 : i32
    return %c0_i32, %c0_i32_0, %c0_i32_1, %c0_i32_2 : i32, i32, i32, i32
  }
  func.func @transform_10(%arg0: i32) -> (i32, i32, i32, i32) {
    %c0_i32 = arith.constant 0 : i32
    %c0_i32_0 = arith.constant 0 : i32
    %c0_i32_1 = arith.constant 0 : i32
    %c0_i32_2 = arith.constant 0 : i32
    %c0_i32_3 = arith.constant 0 : i32
    return %c0_i32, %c0_i32_0, %c0_i32_1, %c0_i32_2 : i32, i32, i32, i32
  }
  func.func @transform_11(%arg0: i32) -> (i32, i32, i32, i32) {
    %c0_i32 = arith.constant 0 : i32
    %c0_i32_0 = arith.constant 0 : i32
    %c0_i32_1 = arith.constant 0 : i32
    %c0_i32_2 = arith.constant 0 : i32
    %c0_i32_3 = arith.constant 0 : i32
    return %c0_i32, %c0_i32_0, %c0_i32_1, %c0_i32_2 : i32, i32, i32, i32
  }
  func.func @transform_12(%arg0: i32) -> (i32, i32, i32, i32) {
    %c0_i32 = arith.constant 0 : i32
    %c0_i32_0 = arith.constant 0 : i32
    %c0_i32_1 = arith.constant 0 : i32
    %c0_i32_2 = arith.constant 0 : i32
    %c0_i32_3 = arith.constant 0 : i32
    return %c0_i32, %c0_i32_0, %c0_i32_1, %c0_i32_2 : i32, i32, i32, i32
  }
  func.func @transform_13(%arg0: i32) -> (i32, i32, i32, i32) {
    %c0_i32 = arith.constant 0 : i32
    %c0_i32_0 = arith.constant 0 : i32
    %c0_i32_1 = arith.constant 0 : i32
    %c0_i32_2 = arith.constant 0 : i32
    %c0_i32_3 = arith.constant 0 : i32
    return %c0_i32, %c0_i32_0, %c0_i32_1, %c0_i32_2 : i32, i32, i32, i32
  }
  func.func @transform_14(%arg0: i32) -> (i32, i32, i32) {
    %c0_i32 = arith.constant 0 : i32
    %c0_i32_0 = arith.constant 0 : i32
    %c0_i32_1 = arith.constant 0 : i32
    %c0_i32_2 = arith.constant 0 : i32
    return %c0_i32, %c0_i32_0, %c0_i32_1 : i32, i32, i32
  }
  func.func @transform_15(%arg0: i32) -> (i32, i32, i32) {
    %c0_i32 = arith.constant 0 : i32
    %c0_i32_0 = arith.constant 0 : i32
    %c0_i32_1 = arith.constant 0 : i32
    %c0_i32_2 = arith.constant 0 : i32
    return %c0_i32, %c0_i32_0, %c0_i32_1 : i32, i32, i32
  }
  func.func @transform_16(%arg0: i32) -> (i32, i32, i32) {
    %c0_i32 = arith.constant 0 : i32
    %c0_i32_0 = arith.constant 0 : i32
    %c0_i32_1 = arith.constant 0 : i32
    %c0_i32_2 = arith.constant 0 : i32
    return %c0_i32, %c0_i32_0, %c0_i32_1 : i32, i32, i32
  }
  func.func @transform_17(%arg0: i32) -> (i32, i32, i32) {
    %c0_i32 = arith.constant 0 : i32
    %c0_i32_0 = arith.constant 0 : i32
    %c0_i32_1 = arith.constant 0 : i32
    %c0_i32_2 = arith.constant 0 : i32
    return %c0_i32, %c0_i32_0, %c0_i32_1 : i32, i32, i32
  }
  func.func @transform_18(%arg0: i32) -> (i32, i32, i32) {
    %c0_i32 = arith.constant 0 : i32
    %c0_i32_0 = arith.constant 0 : i32
    %c0_i32_1 = arith.constant 0 : i32
    %c0_i32_2 = arith.constant 0 : i32
    return %c0_i32, %c0_i32_0, %c0_i32_1 : i32, i32, i32
  }
  func.func @transform_19(%arg0: i32) -> (i32, i32, i32) {
    %c0_i32 = arith.constant 0 : i32
    %c0_i32_0 = arith.constant 0 : i32
    %c0_i32_1 = arith.constant 0 : i32
    %c0_i32_2 = arith.constant 0 : i32
    return %c0_i32, %c0_i32_0, %c0_i32_1 : i32, i32, i32
  }
  func.func @transform_20(%arg0: i32) -> (i32, i32, i32) {
    %c0_i32 = arith.constant 0 : i32
    %c0_i32_0 = arith.constant 0 : i32
    %c0_i32_1 = arith.constant 0 : i32
    %c0_i32_2 = arith.constant 0 : i32
    return %c0_i32, %c0_i32_0, %c0_i32_1 : i32, i32, i32
  }
  func.func @transform_21(%arg0: i32) -> (i32, i32, i32) {
    %c0_i32 = arith.constant 0 : i32
    %c0_i32_0 = arith.constant 0 : i32
    %c0_i32_1 = arith.constant 0 : i32
    %c0_i32_2 = arith.constant 0 : i32
    return %c0_i32, %c0_i32_0, %c0_i32_1 : i32, i32, i32
  }
  func.func @transform_22(%arg0: i32) -> (i32, i32, i32) {
    %c0_i32 = arith.constant 0 : i32
    %c0_i32_0 = arith.constant 0 : i32
    %c0_i32_1 = arith.constant 0 : i32
    %c0_i32_2 = arith.constant 0 : i32
    return %c0_i32, %c0_i32_0, %c0_i32_1 : i32, i32, i32
  }
  func.func @transform_23(%arg0: i32) -> (i32, i32) {
    %c0_i32 = arith.constant 0 : i32
    %c0_i32_0 = arith.constant 0 : i32
    %c0_i32_1 = arith.constant 0 : i32
    return %c0_i32, %c0_i32_0 : i32, i32
  }
  func.func @transform_24(%arg0: i32) -> (i32, i32) {
    %c0_i32 = arith.constant 0 : i32
    %c0_i32_0 = arith.constant 0 : i32
    %c0_i32_1 = arith.constant 0 : i32
    return %c0_i32, %c0_i32_0 : i32, i32
  }
  func.func @transform_25(%arg0: i32) -> (i32, i32) {
    %c0_i32 = arith.constant 0 : i32
    %c0_i32_0 = arith.constant 0 : i32
    %c0_i32_1 = arith.constant 0 : i32
    return %c0_i32, %c0_i32_0 : i32, i32
  }
  func.func @transform_26(%arg0: i32) -> (i32, i32) {
    %c0_i32 = arith.constant 0 : i32
    %c0_i32_0 = arith.constant 0 : i32
    %c0_i32_1 = arith.constant 0 : i32
    return %c0_i32, %c0_i32_0 : i32, i32
  }
  func.func @transform_27(%arg0: i32) -> (i32, i32, i32) {
    %c0_i32 = arith.constant 0 : i32
    %c0_i32_0 = arith.constant 0 : i32
    %c0_i32_1 = arith.constant 0 : i32
    return %arg0, %c0_i32, %c0_i32_0 : i32, i32, i32
  }
}

</mosaic_0001>

<llo_original>
// kernel: attention_strategy_forward.1
$region0: #{attention_strategy_forward.1}
  #allocation0 [shape = 'u32[]', space=smem, size = 0x4, offset = 0x4, fixed_abs, tag = 'smem constant byte address 0x4 - core index']
  #allocation1 [shape = 'u32[72,128]{1,0:T(1,128)}', space=vmem, size = 0x9000, scoped, tag = 'internal scratch']
  %s0 = inlined_call_operand.vmem [shape: f32[2,19], index: 0, kind: input, shape index: {}]
  %s1 = inlined_call_operand.vmem [shape: f32[2,5,7], index: 1, kind: input, shape index: {}]
  %s2 = inlined_call_operand.vmem [shape: bf16[19,64], index: 2, kind: input, shape index: {}]
  %s3 = inlined_call_operand.vmem [shape: f32[1,64], index: 3, kind: input, shape index: {}]
  %s4 = inlined_call_operand.vmem [shape: bf16[7,64], index: 4, kind: input, shape index: {}]
  %s5 = inlined_call_operand.vmem [shape: f32[1,64], index: 5, kind: input, shape index: {}]
  %s6 = inlined_call_operand.vmem [shape: f32[6,64], index: 6, kind: input, shape index: {}]
  %s7 = inlined_call_operand.vmem [shape: bf16[3,8,64,8], index: 7, kind: input, shape index: {}]
  %s8 = inlined_call_operand.vmem [shape: f32[3,8,1,8], index: 8, kind: input, shape index: {}]
  %s9 = inlined_call_operand.vmem [shape: bf16[3,8,64,8], index: 9, kind: input, shape index: {}]
  %s10 = inlined_call_operand.vmem [shape: f32[3,8,1,8], index: 10, kind: input, shape index: {}]
  %s11 = inlined_call_operand.vmem [shape: bf16[3,8,64,8], index: 11, kind: input, shape index: {}]
  %s12 = inlined_call_operand.vmem [shape: f32[3,8,1,8], index: 12, kind: input, shape index: {}]
  %s13 = inlined_call_operand.vmem [shape: bf16[3,8,8,64], index: 13, kind: input, shape index: {}]
  %s14 = inlined_call_operand.vmem [shape: f32[3,1,64], index: 14, kind: input, shape index: {}]
  %s15 = inlined_call_operand.vmem [shape: f32[3,1,64], index: 15, kind: input, shape index: {}]
  %s16 = inlined_call_operand.vmem [shape: f32[3,1,64], index: 16, kind: input, shape index: {}]
  %s17 = inlined_call_operand.vmem [shape: bf16[3,64,256], index: 17, kind: input, shape index: {}]
  %s18 = inlined_call_operand.vmem [shape: f32[3,1,256], index: 18, kind: input, shape index: {}]
  %s19 = inlined_call_operand.vmem [shape: bf16[3,256,64], index: 19, kind: input, shape index: {}]
  %s20 = inlined_call_operand.vmem [shape: f32[3,1,64], index: 20, kind: input, shape index: {}]
  %s21 = inlined_call_operand.vmem [shape: f32[3,1,64], index: 21, kind: input, shape index: {}]
  %s22 = inlined_call_operand.vmem [shape: f32[3,1,64], index: 22, kind: input, shape index: {}]
  %s23 = inlined_call_operand.vmem [shape: bf16[64,64], index: 23, kind: input, shape index: {}]
  %s24 = inlined_call_operand.vmem [shape: f32[1,64], index: 24, kind: input, shape index: {}]
  %s25 = inlined_call_operand.vmem [shape: bf16[64,2], index: 25, kind: input, shape index: {}]
  %s26 = inlined_call_operand.vmem [shape: f32[1,2], index: 26, kind: input, shape index: {}]
  %s27 = inlined_call_operand.vmem [shape: f32[2,5,2], index: 27, kind: output, shape index: {}]
  %s28 = sld [smem:[#allocation0]]
  $region118: #{attention_strategy_forward.1} parent=0
    _
  %s30 = ssub.s32 1, %s28
  %s31 = scalar_select 0, %s30, %s28
  // Predicated region
  $region2: #{attention_strategy_forward.1} parent=0 // pred_check
    _
  $region3: #{attention_strategy_forward.1} parent=0 // pred_check_branch
    %33 = sbr.rel (0) target = $region5
  $region4: #{attention_strategy_forward.1} parent=0 // pred_region
    _
  $region5: #{attention_strategy_forward.1} parent=0 // pred_fallthru
    _
  // Predicated region
  $region6: #{attention_strategy_forward.1} parent=0 // pred_check
    _
  $region7: #{attention_strategy_forward.1} parent=0 // pred_check_branch
    %35 = sbr.rel (0) target = $region9
  $region8: #{attention_strategy_forward.1} parent=0 // pred_region
    _
  $region9: #{attention_strategy_forward.1} parent=0 // pred_fallthru
    _
  // Predicated region
  $region10: #{attention_strategy_forward.1} parent=0 // pred_check
    _
  $region11: #{attention_strategy_forward.1} parent=0 // pred_check_branch
    %37 = sbr.rel (0) target = $region13
  $region12: #{attention_strategy_forward.1} parent=0 // pred_region
    _
  $region13: #{attention_strategy_forward.1} parent=0 // pred_fallthru
    _
  // Predicated region
  $region14: #{attention_strategy_forward.1} parent=0 // pred_check
    _
  $region15: #{attention_strategy_forward.1} parent=0 // pred_check_branch
    %39 = sbr.rel (0) target = $region17
  $region16: #{attention_strategy_forward.1} parent=0 // pred_region
    _
  $region17: #{attention_strategy_forward.1} parent=0 // pred_fallthru
    _
  // Predicated region
  $region18: #{attention_strategy_forward.1} parent=0 // pred_check
    _
  $region19: #{attention_strategy_forward.1} parent=0 // pred_check_branch
    %41 = sbr.rel (0) target = $region21
  $region20: #{attention_strategy_forward.1} parent=0 // pred_region
    _
  $region21: #{attention_strategy_forward.1} parent=0 // pred_fallthru
    _
  // Predicated region
  $region22: #{attention_strategy_forward.1} parent=0 // pred_check
    _
  $region23: #{attention_strategy_forward.1} parent=0 // pred_check_branch
    %43 = sbr.rel (0) target = $region25
  $region24: #{attention_strategy_forward.1} parent=0 // pred_region
    _
  $region25: #{attention_strategy_forward.1} parent=0 // pred_fallthru
    _
  // Predicated region
  $region26: #{attention_strategy_forward.1} parent=0 // pred_check
    _
  $region27: #{attention_strategy_forward.1} parent=0 // pred_check_branch
    %45 = sbr.rel (0) target = $region29
  $region28: #{attention_strategy_forward.1} parent=0 // pred_region
    _
  $region29: #{attention_strategy_forward.1} parent=0 // pred_fallthru
    _
  // Predicated region
  $region30: #{attention_strategy_forward.1} parent=0 // pred_check
    _
  $region31: #{attention_strategy_forward.1} parent=0 // pred_check_branch
    %47 = sbr.rel (0) target = $region33
  $region32: #{attention_strategy_forward.1} parent=0 // pred_region
    _
  $region33: #{attention_strategy_forward.1} parent=0 // pred_fallthru
    _
  // Predicated region
  $region34: #{attention_strategy_forward.1} parent=0 // pred_check
    _
  $region35: #{attention_strategy_forward.1} parent=0 // pred_check_branch
    %49 = sbr.rel (0) target = $region37
  $region36: #{attention_strategy_forward.1} parent=0 // pred_region
    _
  $region37: #{attention_strategy_forward.1} parent=0 // pred_fallthru
    _
  // Predicated region
  $region38: #{attention_strategy_forward.1} parent=0 // pred_check
    _
  $region39: #{attention_strategy_forward.1} parent=0 // pred_check_branch
    %51 = sbr.rel (0) target = $region41
  $region40: #{attention_strategy_forward.1} parent=0 // pred_region
    _
  $region41: #{attention_strategy_forward.1} parent=0 // pred_fallthru
    _
  // Predicated region
  $region42: #{attention_strategy_forward.1} parent=0 // pred_check
    _
  $region43: #{attention_strategy_forward.1} parent=0 // pred_check_branch
    %53 = sbr.rel (0) target = $region45
  $region44: #{attention_strategy_forward.1} parent=0 // pred_region
    _
  $region45: #{attention_strategy_forward.1} parent=0 // pred_fallthru
    _
  // Predicated region
  $region46: #{attention_strategy_forward.1} parent=0 // pred_check
    _
  $region47: #{attention_strategy_forward.1} parent=0 // pred_check_branch
    %55 = sbr.rel (0) target = $region49
  $region48: #{attention_strategy_forward.1} parent=0 // pred_region
    _
  $region49: #{attention_strategy_forward.1} parent=0 // pred_fallthru
    _
  // Predicated region
  $region50: #{attention_strategy_forward.1} parent=0 // pred_check
    _
  $region51: #{attention_strategy_forward.1} parent=0 // pred_check_branch
    %57 = sbr.rel (0) target = $region53
  $region52: #{attention_strategy_forward.1} parent=0 // pred_region
    _
  $region53: #{attention_strategy_forward.1} parent=0 // pred_fallthru
    _
  // Predicated region
  $region54: #{attention_strategy_forward.1} parent=0 // pred_check
    _
  $region55: #{attention_strategy_forward.1} parent=0 // pred_check_branch
    %59 = sbr.rel (0) target = $region57
  $region56: #{attention_strategy_forward.1} parent=0 // pred_region
    _
  $region57: #{attention_strategy_forward.1} parent=0 // pred_fallthru
    _
  // Predicated region
  $region58: #{attention_strategy_forward.1} parent=0 // pred_check
    _
  $region59: #{attention_strategy_forward.1} parent=0 // pred_check_branch
    %61 = sbr.rel (0) target = $region61
  $region60: #{attention_strategy_forward.1} parent=0 // pred_region
    _
  $region61: #{attention_strategy_forward.1} parent=0 // pred_fallthru
    _
  // Predicated region
  $region62: #{attention_strategy_forward.1} parent=0 // pred_check
    _
  $region63: #{attention_strategy_forward.1} parent=0 // pred_check_branch
    %63 = sbr.rel (0) target = $region65
  $region64: #{attention_strategy_forward.1} parent=0 // pred_region
    _
  $region65: #{attention_strategy_forward.1} parent=0 // pred_fallthru
    _
  // Predicated region
  $region66: #{attention_strategy_forward.1} parent=0 // pred_check
    _
  $region67: #{attention_strategy_forward.1} parent=0 // pred_check_branch
    %65 = sbr.rel (0) target = $region69
  $region68: #{attention_strategy_forward.1} parent=0 // pred_region
    _
  $region69: #{attention_strategy_forward.1} parent=0 // pred_fallthru
    _
  // Predicated region
  $region70: #{attention_strategy_forward.1} parent=0 // pred_check
    _
  $region71: #{attention_strategy_forward.1} parent=0 // pred_check_branch
    %67 = sbr.rel (0) target = $region73
  $region72: #{attention_strategy_forward.1} parent=0 // pred_region
    _
  $region73: #{attention_strategy_forward.1} parent=0 // pred_fallthru
    _
  // Predicated region
  $region74: #{attention_strategy_forward.1} parent=0 // pred_check
    _
  $region75: #{attention_strategy_forward.1} parent=0 // pred_check_branch
    %69 = sbr.rel (0) target = $region77
  $region76: #{attention_strategy_forward.1} parent=0 // pred_region
    _
  $region77: #{attention_strategy_forward.1} parent=0 // pred_fallthru
    _
  // Predicated region
  $region78: #{attention_strategy_forward.1} parent=0 // pred_check
    _
  $region79: #{attention_strategy_forward.1} parent=0 // pred_check_branch
    %71 = sbr.rel (0) target = $region81
  $region80: #{attention_strategy_forward.1} parent=0 // pred_region
    _
  $region81: #{attention_strategy_forward.1} parent=0 // pred_fallthru
    _
  // Predicated region
  $region82: #{attention_strategy_forward.1} parent=0 // pred_check
    _
  $region83: #{attention_strategy_forward.1} parent=0 // pred_check_branch
    %73 = sbr.rel (0) target = $region85
  $region84: #{attention_strategy_forward.1} parent=0 // pred_region
    _
  $region85: #{attention_strategy_forward.1} parent=0 // pred_fallthru
    _
  // Predicated region
  $region86: #{attention_strategy_forward.1} parent=0 // pred_check
    _
  $region87: #{attention_strategy_forward.1} parent=0 // pred_check_branch
    %75 = sbr.rel (0) target = $region89
  $region88: #{attention_strategy_forward.1} parent=0 // pred_region
    _
  $region89: #{attention_strategy_forward.1} parent=0 // pred_fallthru
    _
  // Predicated region
  $region90: #{attention_strategy_forward.1} parent=0 // pred_check
    _
  $region91: #{attention_strategy_forward.1} parent=0 // pred_check_branch
    %77 = sbr.rel (0) target = $region93
  $region92: #{attention_strategy_forward.1} parent=0 // pred_region
    _
  $region93: #{attention_strategy_forward.1} parent=0 // pred_fallthru
    _
  // Predicated region
  $region94: #{attention_strategy_forward.1} parent=0 // pred_check
    _
  $region95: #{attention_strategy_forward.1} parent=0 // pred_check_branch
    %79 = sbr.rel (0) target = $region97
  $region96: #{attention_strategy_forward.1} parent=0 // pred_region
    _
  $region97: #{attention_strategy_forward.1} parent=0 // pred_fallthru
    _
  // Predicated region
  $region98: #{attention_strategy_forward.1} parent=0 // pred_check
    _
  $region99: #{attention_strategy_forward.1} parent=0 // pred_check_branch
    %81 = sbr.rel (0) target = $region101
  $region100: #{attention_strategy_forward.1} parent=0 // pred_region
    _
  $region101: #{attention_strategy_forward.1} parent=0 // pred_fallthru
    _
  // Predicated region
  $region102: #{attention_strategy_forward.1} parent=0 // pred_check
    _
  $region103: #{attention_strategy_forward.1} parent=0 // pred_check_branch
    %83 = sbr.rel (0) target = $region105
  $region104: #{attention_strategy_forward.1} parent=0 // pred_region
    _
  $region105: #{attention_strategy_forward.1} parent=0 // pred_fallthru
    _
  // Predicated region
  $region106: #{attention_strategy_forward.1} parent=0 // pred_check
    _
  $region107: #{attention_strategy_forward.1} parent=0 // pred_check_branch
    %85 = sbr.rel (0) target = $region109
  $region108: #{attention_strategy_forward.1} parent=0 // pred_region
    _
  $region109: #{attention_strategy_forward.1} parent=0 // pred_fallthru
    _
  %v87 = vld [vmem:[%s6] sm:$0x3f]
  %v88 = vld [vmem:[%s0] sm:$0x3]
  %v89 = vld [vmem:[%s2] sm:$0xf]
  %v90 = vld [vmem:[%s2 + $0x4] sm:$0xf]
  %v91 = vld [vmem:[%s2 + $0x8] sm:$0x3]
  %v92 = vpack.c.bf16 %v88, %v88
  %v93 = vld [vmem:[%s3] sm:$0x1]
  %v95 = vperm.slane %v93, 0
  %v100 = vunpack.c.l.b16 %v89
  %v101 = vunpack.c.l.b16 %v90
  %v102 = vunpack.c.l.b16 %v91
  %v103 = vpack.c.b16 %v101, %v100
  %v104 = vpack.c.b16 %v102, %v102
  %vm106 = vcmask 154624
  %v108 = vsel %vm106, %v92, 0
  %vm110 = vcmask 1040384
  %vm111 = vcmask 1041408
  %v112 = vsel %vm110, 4294967295, 65535
  %v113 = vsel %vm111, %v112, 0
  %v115 = vand.u32 %v104, %v113
  %117 = vmatpush.bf16.msra.mxu0 0
  %118 = vmatpush.bf16.msra.mxu0 0
  %119 = vmatpush.bf16.msra.mxu0 0
  %120 = vmatpush.bf16.msra.mxu0 0
  %121 = vmatpush.bf16.msra.mxu0 0
  %122 = vmatpush.bf16.msra.mxu0 0
  %123 = vmatpush.bf16.msra.mxu0 %v115
  %124 = vmatpush.bf16.msra.mxu0 %v103
  %125 = vmatmul.bf16.gmra.mxu0 %v108
  %v126 = vpop.f32.mrf.mxu0
  %v127 = vadd.f32 %v95, %v126
  %v128 = vpop.f32.mrf.mxu0
  %129 = vdwg.mxu0
  %v130 = vld [vmem:[%s1] sm:$0x1f]
  %v131 = vld [vmem:[%s4] sm:$0xf]
  %v132 = vpack.c.bf16 %v130, %v130
  %v133 = vld [vmem:[%s5] sm:$0x1]
  %v135 = vperm.slane %v133, 0
  %vm137 = vcmask 56320
  %v139 = vsel %vm137, %v132, 0
  %vm141 = vcmask 1042432
  %vm142 = vcmask 1043456
  %v143 = vsel %vm141, 4294967295, 65535
  %v144 = vsel %vm142, %v143, 0
  %v146 = vand.u32 %v131, %v144
  %148 = vmatpush.bf16.msra.mxu0 0
  %149 = vmatpush.bf16.msra.mxu0 0
  %150 = vmatpush.bf16.msra.mxu0 0
  %151 = vmatpush.bf16.msra.mxu0 0
  %152 = vmatpush.bf16.msra.mxu0 0
  %153 = vmatpush.bf16.msra.mxu0 0
  %154 = vmatpush.bf16.msra.mxu0 0
  %155 = vmatpush.bf16.msra.mxu0 %v146
  %156 = vmatmul.bf16.gmra.mxu0 %v139
  %v157 = vpop.f32.mrf.mxu0
  %v158 = vadd.f32 %v135, %v157
  %v159 = vpop.f32.mrf.mxu0
  %160 = vdwg.mxu0
  %v162 = vrot.slane %v158, 7
  %v164 = vsel %vm110, %v127, %v162
  %v165 = vadd.f32 %v164, %v87
  %s166 = scalar_lea.vmem %s1, 8
  %v167 = vld [vmem:[%s166] sm:$0x1f]
  %v168 = vpack.c.bf16 %v167, %v167
  %v170 = vsel %vm137, %v168, 0
  %172 = vmatpush.bf16.msra.mxu0 0
  %173 = vmatpush.bf16.msra.mxu0 0
  %174 = vmatpush.bf16.msra.mxu0 0
  %175 = vmatpush.bf16.msra.mxu0 0
  %176 = vmatpush.bf16.msra.mxu0 0
  %177 = vmatpush.bf16.msra.mxu0 0
  %178 = vmatpush.bf16.msra.mxu0 0
  %179 = vmatpush.bf16.msra.mxu0 %v146
  %180 = vmatmul.bf16.gmra.mxu0 %v170
  %v181 = vpop.f32.mrf.mxu0
  %v182 = vadd.f32 %v135, %v181
  %v183 = vpop.f32.mrf.mxu0
  %184 = vdwg.mxu0
  %v186 = vrot.slane %v127, 1
  %v189 = vrot.slane %v182, 7
  %v191 = vsel %vm110, %v186, %v189
  %v192 = vadd.f32 %v191, %v87
  %v194 = vrot.slane %v192, 2
  %vm196 = vcmask 1045504
  %v197 = vsel %vm196, %v165, %v194
  %v198 = vld [vmem:[%s7] sm:$0xf]
  %v199 = vld [vmem:[%s7 + $0x4] sm:$0xf]
  %v200 = vld [vmem:[%s7 + $0x8] sm:$0xf]
  %v201 = vld [vmem:[%s7 + $0xc] sm:$0xf]
  %v202 = vld [vmem:[%s7 + $0x10] sm:$0xf]
  %v203 = vld [vmem:[%s7 + $0x14] sm:$0xf]
  %v204 = vld [vmem:[%s7 + $0x18] sm:$0xf]
  %v205 = vld [vmem:[%s7 + $0x1c] sm:$0xf]
  %v206 = vld [vmem:[%s7 + $0x20] sm:$0xf]
  %v207 = vld [vmem:[%s7 + $0x24] sm:$0xf]
  %v208 = vld [vmem:[%s7 + $0x28] sm:$0xf]
  %v209 = vld [vmem:[%s7 + $0x2c] sm:$0xf]
  %v210 = vld [vmem:[%s7 + $0x30] sm:$0xf]
  %v211 = vld [vmem:[%s7 + $0x34] sm:$0xf]
  %v212 = vld [vmem:[%s7 + $0x38] sm:$0xf]
  %v213 = vld [vmem:[%s7 + $0x3c] sm:$0xf]
  %v214 = vld [vmem:[%s7 + $0x40] sm:$0xf]
  %v215 = vld [vmem:[%s7 + $0x44] sm:$0xf]
  %v216 = vld [vmem:[%s7 + $0x48] sm:$0xf]
  %v217 = vld [vmem:[%s7 + $0x4c] sm:$0xf]
  %v218 = vld [vmem:[%s7 + $0x50] sm:$0xf]
  %v219 = vld [vmem:[%s7 + $0x54] sm:$0xf]
  %v220 = vld [vmem:[%s7 + $0x58] sm:$0xf]
  %v221 = vld [vmem:[%s7 + $0x5c] sm:$0xf]
  %v222 = vld [vmem:[%s7 + $0x60] sm:$0xf]
  %v223 = vld [vmem:[%s7 + $0x64] sm:$0xf]
  %v224 = vld [vmem:[%s7 + $0x68] sm:$0xf]
  %v225 = vld [vmem:[%s7 + $0x6c] sm:$0xf]
  %v226 = vld [vmem:[%s7 + $0x70] sm:$0xf]
  %v227 = vld [vmem:[%s7 + $0x74] sm:$0xf]
  %v228 = vld [vmem:[%s7 + $0x78] sm:$0xf]
  %v229 = vld [vmem:[%s7 + $0x7c] sm:$0xf]
  %v230 = vld [vmem:[%s7 + $0x80] sm:$0xf]
  %v231 = vld [vmem:[%s7 + $0x84] sm:$0xf]
  %v232 = vld [vmem:[%s7 + $0x88] sm:$0xf]
  %v233 = vld [vmem:[%s7 + $0x8c] sm:$0xf]
  %v234 = vld [vmem:[%s7 + $0x90] sm:$0xf]
  %v235 = vld [vmem:[%s7 + $0x94] sm:$0xf]
  %v236 = vld [vmem:[%s7 + $0x98] sm:$0xf]
  %v237 = vld [vmem:[%s7 + $0x9c] sm:$0xf]
  %v238 = vld [vmem:[%s7 + $0xa0] sm:$0xf]
  %v239 = vld [vmem:[%s7 + $0xa4] sm:$0xf]
  %v240 = vld [vmem:[%s7 + $0xa8] sm:$0xf]
  %v241 = vld [vmem:[%s7 + $0xac] sm:$0xf]
  %v242 = vld [vmem:[%s7 + $0xb0] sm:$0xf]
  %v243 = vld [vmem:[%s7 + $0xb4] sm:$0xf]
  %v244 = vld [vmem:[%s7 + $0xb8] sm:$0xf]
  %v245 = vld [vmem:[%s7 + $0xbc] sm:$0xf]
  %v246 = vld [vmem:[%s7 + $0xc0] sm:$0xf]
  %v247 = vld [vmem:[%s7 + $0xc4] sm:$0xf]
  %v248 = vld [vmem:[%s7 + $0xc8] sm:$0xf]
  %v249 = vld [vmem:[%s7 + $0xcc] sm:$0xf]
  %v250 = vld [vmem:[%s7 + $0xd0] sm:$0xf]
  %v251 = vld [vmem:[%s7 + $0xd4] sm:$0xf]
  %v252 = vld [vmem:[%s7 + $0xd8] sm:$0xf]
  %v253 = vld [vmem:[%s7 + $0xdc] sm:$0xf]
  %v254 = vld [vmem:[%s7 + $0xe0] sm:$0xf]
  %v255 = vld [vmem:[%s7 + $0xe4] sm:$0xf]
  %v256 = vld [vmem:[%s7 + $0xe8] sm:$0xf]
  %v257 = vld [vmem:[%s7 + $0xec] sm:$0xf]
  %v258 = vld [vmem:[%s7 + $0xf0] sm:$0xf]
  %v259 = vld [vmem:[%s7 + $0xf4] sm:$0xf]
  %v260 = vld [vmem:[%s7 + $0xf8] sm:$0xf]
  %v261 = vld [vmem:[%s7 + $0xfc] sm:$0xf]
  %v262 = vld [vmem:[%s9] sm:$0xf]
  %v263 = vld [vmem:[%s9 + $0x4] sm:$0xf]
  %v264 = vld [vmem:[%s9 + $0x8] sm:$0xf]
  %v265 = vld [vmem:[%s9 + $0xc] sm:$0xf]
  %v266 = vld [vmem:[%s9 + $0x10] sm:$0xf]
  %v267 = vld [vmem:[%s9 + $0x14] sm:$0xf]
  %v268 = vld [vmem:[%s9 + $0x18] sm:$0xf]
  %v269 = vld [vmem:[%s9 + $0x1c] sm:$0xf]
  %v270 = vld [vmem:[%s9 + $0x20] sm:$0xf]
  %v271 = vld [vmem:[%s9 + $0x24] sm:$0xf]
  %v272 = vld [vmem:[%s9 + $0x28] sm:$0xf]
  %v273 = vld [vmem:[%s9 + $0x2c] sm:$0xf]
  %v274 = vld [vmem:[%s9 + $0x30] sm:$0xf]
  %v275 = vld [vmem:[%s9 + $0x34] sm:$0xf]
  %v276 = vld [vmem:[%s9 + $0x38] sm:$0xf]
  %v277 = vld [vmem:[%s9 + $0x3c] sm:$0xf]
  %v278 = vld [vmem:[%s9 + $0x40] sm:$0xf]
  %v279 = vld [vmem:[%s9 + $0x44] sm:$0xf]
  %v280 = vld [vmem:[%s9 + $0x48] sm:$0xf]
  %v281 = vld [vmem:[%s9 + $0x4c] sm:$0xf]
  %v282 = vld [vmem:[%s9 + $0x50] sm:$0xf]
  %v283 = vld [vmem:[%s9 + $0x54] sm:$0xf]
  %v284 = vld [vmem:[%s9 + $0x58] sm:$0xf]
  %v285 = vld [vmem:[%s9 + $0x5c] sm:$0xf]
  %v286 = vld [vmem:[%s9 + $0x60] sm:$0xf]
  %v287 = vld [vmem:[%s9 + $0x64] sm:$0xf]
  %v288 = vld [vmem:[%s9 + $0x68] sm:$0xf]
  %v289 = vld [vmem:[%s9 + $0x6c] sm:$0xf]
  %v290 = vld [vmem:[%s9 + $0x70] sm:$0xf]
  %v291 = vld [vmem:[%s9 + $0x74] sm:$0xf]
  %v292 = vld [vmem:[%s9 + $0x78] sm:$0xf]
  %v293 = vld [vmem:[%s9 + $0x7c] sm:$0xf]
  %v294 = vld [vmem:[%s9 + $0x80] sm:$0xf]
  %v295 = vld [vmem:[%s9 + $0x84] sm:$0xf]
  %v296 = vld [vmem:[%s9 + $0x88] sm:$0xf]
  %v297 = vld [vmem:[%s9 + $0x8c] sm:$0xf]
  %v298 = vld [vmem:[%s9 + $0x90] sm:$0xf]
  %v299 = vld [vmem:[%s9 + $0x94] sm:$0xf]
  %v300 = vld [vmem:[%s9 + $0x98] sm:$0xf]
  %v301 = vld [vmem:[%s9 + $0x9c] sm:$0xf]
  %v302 = vld [vmem:[%s9 + $0xa0] sm:$0xf]
  %v303 = vld [vmem:[%s9 + $0xa4] sm:$0xf]
  %v304 = vld [vmem:[%s9 + $0xa8] sm:$0xf]
  %v305 = vld [vmem:[%s9 + $0xac] sm:$0xf]
  %v306 = vld [vmem:[%s9 + $0xb0] sm:$0xf]
  %v307 = vld [vmem:[%s9 + $0xb4] sm:$0xf]
  %v308 = vld [vmem:[%s9 + $0xb8] sm:$0xf]
  %v309 = vld [vmem:[%s9 + $0xbc] sm:$0xf]
  %v310 = vld [vmem:[%s9 + $0xc0] sm:$0xf]
  %v311 = vld [vmem:[%s9 + $0xc4] sm:$0xf]
  %v312 = vld [vmem:[%s9 + $0xc8] sm:$0xf]
  %v313 = vld [vmem:[%s9 + $0xcc] sm:$0xf]
  %v314 = vld [vmem:[%s9 + $0xd0] sm:$0xf]
  %v315 = vld [vmem:[%s9 + $0xd4] sm:$0xf]
  %v316 = vld [vmem:[%s9 + $0xd8] sm:$0xf]
  %v317 = vld [vmem:[%s9 + $0xdc] sm:$0xf]
  %v318 = vld [vmem:[%s9 + $0xe0] sm:$0xf]
  %v319 = vld [vmem:[%s9 + $0xe4] sm:$0xf]
  %v320 = vld [vmem:[%s9 + $0xe8] sm:$0xf]
  %v321 = vld [vmem:[%s9 + $0xec] sm:$0xf]
  %v322 = vld [vmem:[%s9 + $0xf0] sm:$0xf]
  %v323 = vld [vmem:[%s9 + $0xf4] sm:$0xf]
  %v324 = vld [vmem:[%s9 + $0xf8] sm:$0xf]
  %v325 = vld [vmem:[%s9 + $0xfc] sm:$0xf]
  %v326 = vld [vmem:[%s11] sm:$0xf]
  %v327 = vld [vmem:[%s11 + $0x4] sm:$0xf]
  %v328 = vld [vmem:[%s11 + $0x8] sm:$0xf]
  %v329 = vld [vmem:[%s11 + $0xc] sm:$0xf]
  %v330 = vld [vmem:[%s11 + $0x10] sm:$0xf]
  %v331 = vld [vmem:[%s11 + $0x14] sm:$0xf]
  %v332 = vld [vmem:[%s11 + $0x18] sm:$0xf]
  %v333 = vld [vmem:[%s11 + $0x1c] sm:$0xf]
  %v334 = vld [vmem:[%s11 + $0x20] sm:$0xf]
  %v335 = vld [vmem:[%s11 + $0x24] sm:$0xf]
  %v336 = vld [vmem:[%s11 + $0x28] sm:$0xf]
  %v337 = vld [vmem:[%s11 + $0x2c] sm:$0xf]
  %v338 = vld [vmem:[%s11 + $0x30] sm:$0xf]
  %v339 = vld [vmem:[%s11 + $0x34] sm:$0xf]
  %v340 = vld [vmem:[%s11 + $0x38] sm:$0xf]
  %v341 = vld [vmem:[%s11 + $0x3c] sm:$0xf]
  %v342 = vld [vmem:[%s11 + $0x40] sm:$0xf]
  %v343 = vld [vmem:[%s11 + $0x44] sm:$0xf]
  %v344 = vld [vmem:[%s11 + $0x48] sm:$0xf]
  %v345 = vld [vmem:[%s11 + $0x4c] sm:$0xf]
  %v346 = vld [vmem:[%s11 + $0x50] sm:$0xf]
  %v347 = vld [vmem:[%s11 + $0x54] sm:$0xf]
  %v348 = vld [vmem:[%s11 + $0x58] sm:$0xf]
  %v349 = vld [vmem:[%s11 + $0x5c] sm:$0xf]
  %v350 = vld [vmem:[%s11 + $0x60] sm:$0xf]
  %v351 = vld [vmem:[%s11 + $0x64] sm:$0xf]
  %v352 = vld [vmem:[%s11 + $0x68] sm:$0xf]
  %v353 = vld [vmem:[%s11 + $0x6c] sm:$0xf]
  %v354 = vld [vmem:[%s11 + $0x70] sm:$0xf]
  %v355 = vld [vmem:[%s11 + $0x74] sm:$0xf]
  %v356 = vld [vmem:[%s11 + $0x78] sm:$0xf]
  %v357 = vld [vmem:[%s11 + $0x7c] sm:$0xf]
  %v358 = vld [vmem:[%s11 + $0x80] sm:$0xf]
  %v359 = vld [vmem:[%s11 + $0x84] sm:$0xf]
  %v360 = vld [vmem:[%s11 + $0x88] sm:$0xf]
  %v361 = vld [vmem:[%s11 + $0x8c] sm:$0xf]
  %v362 = vld [vmem:[%s11 + $0x90] sm:$0xf]
  %v363 = vld [vmem:[%s11 + $0x94] sm:$0xf]
  %v364 = vld [vmem:[%s11 + $0x98] sm:$0xf]
  %v365 = vld [vmem:[%s11 + $0x9c] sm:$0xf]
  %v366 = vld [vmem:[%s11 + $0xa0] sm:$0xf]
  %v367 = vld [vmem:[%s11 + $0xa4] sm:$0xf]
  %v368 = vld [vmem:[%s11 + $0xa8] sm:$0xf]
  %v369 = vld [vmem:[%s11 + $0xac] sm:$0xf]
  %v370 = vld [vmem:[%s11 + $0xb0] sm:$0xf]
  %v371 = vld [vmem:[%s11 + $0xb4] sm:$0xf]
  %v372 = vld [vmem:[%s11 + $0xb8] sm:$0xf]
  %v373 = vld [vmem:[%s11 + $0xbc] sm:$0xf]
  %v374 = vld [vmem:[%s11 + $0xc0] sm:$0xf]
  %v375 = vld [vmem:[%s11 + $0xc4] sm:$0xf]
  %v376 = vld [vmem:[%s11 + $0xc8] sm:$0xf]
  %v377 = vld [vmem:[%s11 + $0xcc] sm:$0xf]
  %v378 = vld [vmem:[%s11 + $0xd0] sm:$0xf]
  %v379 = vld [vmem:[%s11 + $0xd4] sm:$0xf]
  %v380 = vld [vmem:[%s11 + $0xd8] sm:$0xf]
  %v381 = vld [vmem:[%s11 + $0xdc] sm:$0xf]
  %v382 = vld [vmem:[%s11 + $0xe0] sm:$0xf]
  %v383 = vld [vmem:[%s11 + $0xe4] sm:$0xf]
  %v384 = vld [vmem:[%s11 + $0xe8] sm:$0xf]
  %v385 = vld [vmem:[%s11 + $0xec] sm:$0xf]
  %v386 = vld [vmem:[%s11 + $0xf0] sm:$0xf]
  %v387 = vld [vmem:[%s11 + $0xf4] sm:$0xf]
  %v388 = vld [vmem:[%s11 + $0xf8] sm:$0xf]
  %v389 = vld [vmem:[%s11 + $0xfc] sm:$0xf]
  %v390 = vld [vmem:[%s8] sm:$0x1]
  %v391 = vld [vmem:[%s8 + $0x1] sm:$0x1]
  %v392 = vld [vmem:[%s8 + $0x2] sm:$0x1]
  %v393 = vld [vmem:[%s8 + $0x3] sm:$0x1]
  %v394 = vld [vmem:[%s8 + $0x4] sm:$0x1]
  %v395 = vld [vmem:[%s8 + $0x5] sm:$0x1]
  %v396 = vld [vmem:[%s8 + $0x6] sm:$0x1]
  %v397 = vld [vmem:[%s8 + $0x7] sm:$0x1]
  %v398 = vld [vmem:[%s10] sm:$0x1]
  %v399 = vld [vmem:[%s10 + $0x1] sm:$0x1]
  %v400 = vld [vmem:[%s10 + $0x2] sm:$0x1]
  %v401 = vld [vmem:[%s10 + $0x3] sm:$0x1]
  %v402 = vld [vmem:[%s10 + $0x4] sm:$0x1]
  %v403 = vld [vmem:[%s10 + $0x5] sm:$0x1]
  %v404 = vld [vmem:[%s10 + $0x6] sm:$0x1]
  %v405 = vld [vmem:[%s10 + $0x7] sm:$0x1]
  %v406 = vld [vmem:[%s12] sm:$0x1]
  %v407 = vld [vmem:[%s12 + $0x1] sm:$0x1]
  %v408 = vld [vmem:[%s12 + $0x2] sm:$0x1]
  %v409 = vld [vmem:[%s12 + $0x3] sm:$0x1]
  %v410 = vld [vmem:[%s12 + $0x4] sm:$0x1]
  %v411 = vld [vmem:[%s12 + $0x5] sm:$0x1]
  %v412 = vld [vmem:[%s12 + $0x6] sm:$0x1]
  %v413 = vld [vmem:[%s12 + $0x7] sm:$0x1]
  %v414 = vld [vmem:[%s13] sm:$0xf]
  %v415 = vld [vmem:[%s13 + $0x4] sm:$0xf]
  %v416 = vld [vmem:[%s13 + $0x8] sm:$0xf]
  %v417 = vld [vmem:[%s13 + $0xc] sm:$0xf]
  %v418 = vld [vmem:[%s13 + $0x10] sm:$0xf]
  %v419 = vld [vmem:[%s13 + $0x14] sm:$0xf]
  %v420 = vld [vmem:[%s13 + $0x18] sm:$0xf]
  %v421 = vld [vmem:[%s13 + $0x1c] sm:$0xf]
  %v422 = vld [vmem:[%s14] sm:$0x1]
  %v423 = vld [vmem:[%s15] sm:$0x1]
  %v424 = vld [vmem:[%s16] sm:$0x1]
  %v425 = vld [vmem:[%s17] sm:$0xff]
  %v426 = vld [vmem:[%s17 + $0x8] sm:$0xff]
  %v427 = vld [vmem:[%s17 + $0x10] sm:$0xff]
  %v428 = vld [vmem:[%s17 + $0x18] sm:$0xff]
  %v429 = vld [vmem:[%s17 + $0x20] sm:$0xff]
  %v430 = vld [vmem:[%s17 + $0x28] sm:$0xff]
  %v431 = vld [vmem:[%s17 + $0x30] sm:$0xff]
  %v432 = vld [vmem:[%s17 + $0x38] sm:$0xff]
  %v433 = vld [vmem:[%s18] sm:$0x3]
  %v434 = vld [vmem:[%s19] sm:$0xf]
  %v435 = vld [vmem:[%s19 + $0x4] sm:$0xf]
  %v436 = vld [vmem:[%s19 + $0x8] sm:$0xf]
  %v437 = vld [vmem:[%s19 + $0xc] sm:$0xf]
  %v438 = vld [vmem:[%s19 + $0x10] sm:$0xf]
  %v439 = vld [vmem:[%s19 + $0x14] sm:$0xf]
  %v440 = vld [vmem:[%s19 + $0x18] sm:$0xf]
  %v441 = vld [vmem:[%s19 + $0x1c] sm:$0xf]
  %v442 = vld [vmem:[%s19 + $0x20] sm:$0xf]
  %v443 = vld [vmem:[%s19 + $0x24] sm:$0xf]
  %v444 = vld [vmem:[%s19 + $0x28] sm:$0xf]
  %v445 = vld [vmem:[%s19 + $0x2c] sm:$0xf]
  %v446 = vld [vmem:[%s19 + $0x30] sm:$0xf]
  %v447 = vld [vmem:[%s19 + $0x34] sm:$0xf]
  %v448 = vld [vmem:[%s19 + $0x38] sm:$0xf]
  %v449 = vld [vmem:[%s19 + $0x3c] sm:$0xf]
  %v450 = vld [vmem:[%s19 + $0x40] sm:$0xf]
  %v451 = vld [vmem:[%s19 + $0x44] sm:$0xf]
  %v452 = vld [vmem:[%s19 + $0x48] sm:$0xf]
  %v453 = vld [vmem:[%s19 + $0x4c] sm:$0xf]
  %v454 = vld [vmem:[%s19 + $0x50] sm:$0xf]
  %v455 = vld [vmem:[%s19 + $0x54] sm:$0xf]
  %v456 = vld [vmem:[%s19 + $0x58] sm:$0xf]
  %v457 = vld [vmem:[%s19 + $0x5c] sm:$0xf]
  %v458 = vld [vmem:[%s19 + $0x60] sm:$0xf]
  %v459 = vld [vmem:[%s19 + $0x64] sm:$0xf]
  %v460 = vld [vmem:[%s19 + $0x68] sm:$0xf]
  %v461 = vld [vmem:[%s19 + $0x6c] sm:$0xf]
  %v462 = vld [vmem:[%s19 + $0x70] sm:$0xf]
  %v463 = vld [vmem:[%s19 + $0x74] sm:$0xf]
  %v464 = vld [vmem:[%s19 + $0x78] sm:$0xf]
  %v465 = vld [vmem:[%s19 + $0x7c] sm:$0xf]
  %v466 = vld [vmem:[%s20] sm:$0x1]
  %v467 = vld [vmem:[%s21] sm:$0x1]
  %v468 = vld [vmem:[%s22] sm:$0x1]
  %v469 = vpack.c.bf16 %v197, %v197
  %v478 = vperm.slane %v390, 0
  %v479 = vperm.slane %v391, 0
  %v480 = vperm.slane %v392, 0
  %v481 = vperm.slane %v393, 0
  %v482 = vperm.slane %v394, 0
  %v483 = vperm.slane %v395, 0
  %v484 = vperm.slane %v396, 0
  %v485 = vperm.slane %v397, 0
  %v502 = vunpack.c.l.b16 %v198
  %v503 = vunpack.c.l.b16 %v199
  %v504 = vunpack.c.l.b16 %v200
  %v505 = vunpack.c.l.b16 %v201
  %v506 = vunpack.c.l.b16 %v202
  %v507 = vunpack.c.l.b16 %v203
  %v508 = vunpack.c.l.b16 %v204
  %v509 = vunpack.c.l.b16 %v205
  %v510 = vpack.c.b16 %v503, %v502
  %v511 = vpack.c.b16 %v505, %v504
  %v512 = vpack.c.b16 %v507, %v506
  %v513 = vpack.c.b16 %v509, %v508
  %vm518 = vcmask 523264
  %v520 = vsel %vm518, %v469, 0
  %522 = vmatpush.bf16.msra.mxu0 0
  %523 = vmatpush.bf16.msra.mxu0 0
  %524 = vmatpush.bf16.msra.mxu0 0
  %525 = vmatpush.bf16.msra.mxu0 0
  %526 = vmatpush.bf16.msra.mxu0 %v513
  %527 = vmatpush.bf16.msra.mxu0 %v512
  %528 = vmatpush.bf16.msra.mxu0 %v511
  %529 = vmatpush.bf16.msra.mxu0 %v510
  %530 = vmatmul.bf16.gmra.mxu0 %v520
  %v531 = vpop.f32.mrf.mxu0
  %v532 = vadd.f32 %v478, %v531
  %v533 = vpop.f32.mrf.mxu0
  %534 = vdwg.mxu0
  %v543 = vunpack.c.l.b16 %v206
  %v544 = vunpack.c.l.b16 %v207
  %v545 = vunpack.c.l.b16 %v208
  %v546 = vunpack.c.l.b16 %v209
  %v547 = vunpack.c.l.b16 %v210
  %v548 = vunpack.c.l.b16 %v211
  %v549 = vunpack.c.l.b16 %v212
  %v550 = vunpack.c.l.b16 %v213
  %v551 = vpack.c.b16 %v544, %v543
  %v552 = vpack.c.b16 %v546, %v545
  %v553 = vpack.c.b16 %v548, %v547
  %v554 = vpack.c.b16 %v550, %v549
  %559 = vmatpush.bf16.msra.mxu0 0
  %560 = vmatpush.bf16.msra.mxu0 0
  %561 = vmatpush.bf16.msra.mxu0 0
  %562 = vmatpush.bf16.msra.mxu0 0
  %563 = vmatpush.bf16.msra.mxu0 %v554
  %564 = vmatpush.bf16.msra.mxu0 %v553
  %565 = vmatpush.bf16.msra.mxu0 %v552
  %566 = vmatpush.bf16.msra.mxu0 %v551
  %567 = vmatmul.bf16.gmra.mxu0 %v520
  %v568 = vpop.f32.mrf.mxu0
  %v569 = vadd.f32 %v479, %v568
  %v570 = vpop.f32.mrf.mxu0
  %571 = vdwg.mxu0
  %v580 = vunpack.c.l.b16 %v214
  %v581 = vunpack.c.l.b16 %v215
  %v582 = vunpack.c.l.b16 %v216
  %v583 = vunpack.c.l.b16 %v217
  %v584 = vunpack.c.l.b16 %v218
  %v585 = vunpack.c.l.b16 %v219
  %v586 = vunpack.c.l.b16 %v220
  %v587 = vunpack.c.l.b16 %v221
  %v588 = vpack.c.b16 %v581, %v580
  %v589 = vpack.c.b16 %v583, %v582
  %v590 = vpack.c.b16 %v585, %v584
  %v591 = vpack.c.b16 %v587, %v586
  %596 = vmatpush.bf16.msra.mxu0 0
  %597 = vmatpush.bf16.msra.mxu0 0
  %598 = vmatpush.bf16.msra.mxu0 0
  %599 = vmatpush.bf16.msra.mxu0 0
  %600 = vmatpush.bf16.msra.mxu0 %v591
  %601 = vmatpush.bf16.msra.mxu0 %v590
  %602 = vmatpush.bf16.msra.mxu0 %v589
  %603 = vmatpush.bf16.msra.mxu0 %v588
  %604 = vmatmul.bf16.gmra.mxu0 %v520
  %v605 = vpop.f32.mrf.mxu0
  %v606 = vadd.f32 %v480, %v605
  %v607 = vpop.f32.mrf.mxu0
  %608 = vdwg.mxu0
  %v617 = vunpack.c.l.b16 %v222
  %v618 = vunpack.c.l.b16 %v223
  %v619 = vunpack.c.l.b16 %v224
  %v620 = vunpack.c.l.b16 %v225
  %v621 = vunpack.c.l.b16 %v226
  %v622 = vunpack.c.l.b16 %v227
  %v623 = vunpack.c.l.b16 %v228
  %v624 = vunpack.c.l.b16 %v229
  %v625 = vpack.c.b16 %v618, %v617
  %v626 = vpack.c.b16 %v620, %v619
  %v627 = vpack.c.b16 %v622, %v621
  %v628 = vpack.c.b16 %v624, %v623
  %633 = vmatpush.bf16.msra.mxu0 0
  %634 = vmatpush.bf16.msra.mxu0 0
  %635 = vmatpush.bf16.msra.mxu0 0
  %636 = vmatpush.bf16.msra.mxu0 0
  %637 = vmatpush.bf16.msra.mxu0 %v628
  %638 = vmatpush.bf16.msra.mxu0 %v627
  %639 = vmatpush.bf16.msra.mxu0 %v626
  %640 = vmatpush.bf16.msra.mxu0 %v625
  %641 = vmatmul.bf16.gmra.mxu0 %v520
  %v642 = vpop.f32.mrf.mxu0
  %v643 = vadd.f32 %v481, %v642
  %v644 = vpop.f32.mrf.mxu0
  %645 = vdwg.mxu0
  %v654 = vunpack.c.l.b16 %v230
  %v655 = vunpack.c.l.b16 %v231
  %v656 = vunpack.c.l.b16 %v232
  %v657 = vunpack.c.l.b16 %v233
  %v658 = vunpack.c.l.b16 %v234
  %v659 = vunpack.c.l.b16 %v235
  %v660 = vunpack.c.l.b16 %v236
  %v661 = vunpack.c.l.b16 %v237
  %v662 = vpack.c.b16 %v655, %v654
  %v663 = vpack.c.b16 %v657, %v656
  %v664 = vpack.c.b16 %v659, %v658
  %v665 = vpack.c.b16 %v661, %v660
  %670 = vmatpush.bf16.msra.mxu0 0
  %671 = vmatpush.bf16.msra.mxu0 0
  %672 = vmatpush.bf16.msra.mxu0 0
  %673 = vmatpush.bf16.msra.mxu0 0
  %674 = vmatpush.bf16.msra.mxu0 %v665
  %675 = vmatpush.bf16.msra.mxu0 %v664
  %676 = vmatpush.bf16.msra.mxu0 %v663
  %677 = vmatpush.bf16.msra.mxu0 %v662
  %678 = vmatmul.bf16.gmra.mxu0 %v520
  %v679 = vpop.f32.mrf.mxu0
  %v680 = vadd.f32 %v482, %v679
  %v681 = vpop.f32.mrf.mxu0
  %682 = vdwg.mxu0
  %v691 = vunpack.c.l.b16 %v238
  %v692 = vunpack.c.l.b16 %v239
  %v693 = vunpack.c.l.b16 %v240
  %v694 = vunpack.c.l.b16 %v241
  %v695 = vunpack.c.l.b16 %v242
  %v696 = vunpack.c.l.b16 %v243
  %v697 = vunpack.c.l.b16 %v244
  %v698 = vunpack.c.l.b16 %v245
  %v699 = vpack.c.b16 %v692, %v691
  %v700 = vpack.c.b16 %v694, %v693
  %v701 = vpack.c.b16 %v696, %v695
  %v702 = vpack.c.b16 %v698, %v697
  %707 = vmatpush.bf16.msra.mxu0 0
  %708 = vmatpush.bf16.msra.mxu0 0
  %709 = vmatpush.bf16.msra.mxu0 0
  %710 = vmatpush.bf16.msra.mxu0 0
  %711 = vmatpush.bf16.msra.mxu0 %v702
  %712 = vmatpush.bf16.msra.mxu0 %v701
  %713 = vmatpush.bf16.msra.mxu0 %v700
  %714 = vmatpush.bf16.msra.mxu0 %v699
  %715 = vmatmul.bf16.gmra.mxu0 %v520
  %v716 = vpop.f32.mrf.mxu0
  %v717 = vadd.f32 %v483, %v716
  %v718 = vpop.f32.mrf.mxu0
  %719 = vdwg.mxu0
  %v728 = vunpack.c.l.b16 %v246
  %v729 = vunpack.c.l.b16 %v247
  %v730 = vunpack.c.l.b16 %v248
  %v731 = vunpack.c.l.b16 %v249
  %v732 = vunpack.c.l.b16 %v250
  %v733 = vunpack.c.l.b16 %v251
  %v734 = vunpack.c.l.b16 %v252
  %v735 = vunpack.c.l.b16 %v253
  %v736 = vpack.c.b16 %v729, %v728
  %v737 = vpack.c.b16 %v731, %v730
  %v738 = vpack.c.b16 %v733, %v732
  %v739 = vpack.c.b16 %v735, %v734
  %744 = vmatpush.bf16.msra.mxu0 0
  %745 = vmatpush.bf16.msra.mxu0 0
  %746 = vmatpush.bf16.msra.mxu0 0
  %747 = vmatpush.bf16.msra.mxu0 0
  %748 = vmatpush.bf16.msra.mxu0 %v739
  %749 = vmatpush.bf16.msra.mxu0 %v738
  %750 = vmatpush.bf16.msra.mxu0 %v737
  %751 = vmatpush.bf16.msra.mxu0 %v736
  %752 = vmatmul.bf16.gmra.mxu0 %v520
  %v753 = vpop.f32.mrf.mxu0
  %v754 = vadd.f32 %v484, %v753
  %v755 = vpop.f32.mrf.mxu0
  %756 = vdwg.mxu0
  %v765 = vunpack.c.l.b16 %v254
  %v766 = vunpack.c.l.b16 %v255
  %v767 = vunpack.c.l.b16 %v256
  %v768 = vunpack.c.l.b16 %v257
  %v769 = vunpack.c.l.b16 %v258
  %v770 = vunpack.c.l.b16 %v259
  %v771 = vunpack.c.l.b16 %v260
  %v772 = vunpack.c.l.b16 %v261
  %v773 = vpack.c.b16 %v766, %v765
  %v774 = vpack.c.b16 %v768, %v767
  %v775 = vpack.c.b16 %v770, %v769
  %v776 = vpack.c.b16 %v772, %v771
  %781 = vmatpush.bf16.msra.mxu0 0
  %782 = vmatpush.bf16.msra.mxu0 0
  %783 = vmatpush.bf16.msra.mxu0 0
  %784 = vmatpush.bf16.msra.mxu0 0
  %785 = vmatpush.bf16.msra.mxu0 %v776
  %786 = vmatpush.bf16.msra.mxu0 %v775
  %787 = vmatpush.bf16.msra.mxu0 %v774
  %788 = vmatpush.bf16.msra.mxu0 %v773
  %789 = vmatmul.bf16.gmra.mxu0 %v520
  %v790 = vpop.f32.mrf.mxu0
  %v791 = vadd.f32 %v485, %v790
  %v792 = vpop.f32.mrf.mxu0
  %793 = vdwg.mxu0
  %v802 = vperm.slane %v398, 0
  %v803 = vperm.slane %v399, 0
  %v804 = vperm.slane %v400, 0
  %v805 = vperm.slane %v401, 0
  %v806 = vperm.slane %v402, 0
  %v807 = vperm.slane %v403, 0
  %v808 = vperm.slane %v404, 0
  %v809 = vperm.slane %v405, 0
  %v826 = vunpack.c.l.b16 %v262
  %v827 = vunpack.c.l.b16 %v263
  %v828 = vunpack.c.l.b16 %v264
  %v829 = vunpack.c.l.b16 %v265
  %v830 = vunpack.c.l.b16 %v266
  %v831 = vunpack.c.l.b16 %v267
  %v832 = vunpack.c.l.b16 %v268
  %v833 = vunpack.c.l.b16 %v269
  %v834 = vpack.c.b16 %v827, %v826
  %v835 = vpack.c.b16 %v829, %v828
  %v836 = vpack.c.b16 %v831, %v830
  %v837 = vpack.c.b16 %v833, %v832
  %842 = vmatpush.bf16.msra.mxu0 0
  %843 = vmatpush.bf16.msra.mxu0 0
  %844 = vmatpush.bf16.msra.mxu0 0
  %845 = vmatpush.bf16.msra.mxu0 0
  %846 = vmatpush.bf16.msra.mxu0 %v837
  %847 = vmatpush.bf16.msra.mxu0 %v836
  %848 = vmatpush.bf16.msra.mxu0 %v835
  %849 = vmatpush.bf16.msra.mxu0 %v834
  %850 = vmatmul.bf16.gmra.mxu0 %v520
  %v851 = vpop.f32.mrf.mxu0
  %v852 = vadd.f32 %v802, %v851
  %v853 = vpop.f32.mrf.mxu0
  %854 = vdwg.mxu0
  %v863 = vunpack.c.l.b16 %v270
  %v864 = vunpack.c.l.b16 %v271
  %v865 = vunpack.c.l.b16 %v272
  %v866 = vunpack.c.l.b16 %v273
  %v867 = vunpack.c.l.b16 %v274
  %v868 = vunpack.c.l.b16 %v275
  %v869 = vunpack.c.l.b16 %v276
  %v870 = vunpack.c.l.b16 %v277
  %v871 = vpack.c.b16 %v864, %v863
  %v872 = vpack.c.b16 %v866, %v865
  %v873 = vpack.c.b16 %v868, %v867
  %v874 = vpack.c.b16 %v870, %v869
  %879 = vmatpush.bf16.msra.mxu0 0
  %880 = vmatpush.bf16.msra.mxu0 0
  %881 = vmatpush.bf16.msra.mxu0 0
  %882 = vmatpush.bf16.msra.mxu0 0
  %883 = vmatpush.bf16.msra.mxu0 %v874
  %884 = vmatpush.bf16.msra.mxu0 %v873
  %885 = vmatpush.bf16.msra.mxu0 %v872
  %886 = vmatpush.bf16.msra.mxu0 %v871
  %887 = vmatmul.bf16.gmra.mxu0 %v520
  %v888 = vpop.f32.mrf.mxu0
  %v889 = vadd.f32 %v803, %v888
  %v890 = vpop.f32.mrf.mxu0
  %891 = vdwg.mxu0
  %v900 = vunpack.c.l.b16 %v278
  %v901 = vunpack.c.l.b16 %v279
  %v902 = vunpack.c.l.b16 %v280
  %v903 = vunpack.c.l.b16 %v281
  %v904 = vunpack.c.l.b16 %v282
  %v905 = vunpack.c.l.b16 %v283
  %v906 = vunpack.c.l.b16 %v284
  %v907 = vunpack.c.l.b16 %v285
  %v908 = vpack.c.b16 %v901, %v900
  %v909 = vpack.c.b16 %v903, %v902
  %v910 = vpack.c.b16 %v905, %v904
  %v911 = vpack.c.b16 %v907, %v906
  %916 = vmatpush.bf16.msra.mxu0 0
  %917 = vmatpush.bf16.msra.mxu0 0
  %918 = vmatpush.bf16.msra.mxu0 0
  %919 = vmatpush.bf16.msra.mxu0 0
  %920 = vmatpush.bf16.msra.mxu0 %v911
  %921 = vmatpush.bf16.msra.mxu0 %v910
  %922 = vmatpush.bf16.msra.mxu0 %v909
  %923 = vmatpush.bf16.msra.mxu0 %v908
  %924 = vmatmul.bf16.gmra.mxu0 %v520
  %v925 = vpop.f32.mrf.mxu0
  %v926 = vadd.f32 %v804, %v925
  %v927 = vpop.f32.mrf.mxu0
  %928 = vdwg.mxu0
  %v937 = vunpack.c.l.b16 %v286
  %v938 = vunpack.c.l.b16 %v287
  %v939 = vunpack.c.l.b16 %v288
  %v940 = vunpack.c.l.b16 %v289
  %v941 = vunpack.c.l.b16 %v290
  %v942 = vunpack.c.l.b16 %v291
  %v943 = vunpack.c.l.b16 %v292
  %v944 = vunpack.c.l.b16 %v293
  %v945 = vpack.c.b16 %v938, %v937
  %v946 = vpack.c.b16 %v940, %v939
  %v947 = vpack.c.b16 %v942, %v941
  %v948 = vpack.c.b16 %v944, %v943
  %953 = vmatpush.bf16.msra.mxu0 0
  %954 = vmatpush.bf16.msra.mxu0 0
  %955 = vmatpush.bf16.msra.mxu0 0
  %956 = vmatpush.bf16.msra.mxu0 0
  %957 = vmatpush.bf16.msra.mxu0 %v948
  %958 = vmatpush.bf16.msra.mxu0 %v947
  %959 = vmatpush.bf16.msra.mxu0 %v946
  %960 = vmatpush.bf16.msra.mxu0 %v945
  %961 = vmatmul.bf16.gmra.mxu0 %v520
  %v962 = vpop.f32.mrf.mxu0
  %v963 = vadd.f32 %v805, %v962
  %v964 = vpop.f32.mrf.mxu0
  %965 = vdwg.mxu0
  %v974 = vunpack.c.l.b16 %v294
  %v975 = vunpack.c.l.b16 %v295
  %v976 = vunpack.c.l.b16 %v296
  %v977 = vunpack.c.l.b16 %v297
  %v978 = vunpack.c.l.b16 %v298
  %v979 = vunpack.c.l.b16 %v299
  %v980 = vunpack.c.l.b16 %v300
  %v981 = vunpack.c.l.b16 %v301
  %v982 = vpack.c.b16 %v975, %v974
  %v983 = vpack.c.b16 %v977, %v976
  %v984 = vpack.c.b16 %v979, %v978
  %v985 = vpack.c.b16 %v981, %v980
  %990 = vmatpush.bf16.msra.mxu0 0
  %991 = vmatpush.bf16.msra.mxu0 0
  %992 = vmatpush.bf16.msra.mxu0 0
  %993 = vmatpush.bf16.msra.mxu0 0
  %994 = vmatpush.bf16.msra.mxu0 %v985
  %995 = vmatpush.bf16.msra.mxu0 %v984
  %996 = vmatpush.bf16.msra.mxu0 %v983
  %997 = vmatpush.bf16.msra.mxu0 %v982
  %998 = vmatmul.bf16.gmra.mxu0 %v520
  %v999 = vpop.f32.mrf.mxu0
  %v1000 = vadd.f32 %v806, %v999
  %v1001 = vpop.f32.mrf.mxu0
  %1002 = vdwg.mxu0
  %v1011 = vunpack.c.l.b16 %v302
  %v1012 = vunpack.c.l.b16 %v303
  %v1013 = vunpack.c.l.b16 %v304
  %v1014 = vunpack.c.l.b16 %v305
  %v1015 = vunpack.c.l.b16 %v306
  %v1016 = vunpack.c.l.b16 %v307
  %v1017 = vunpack.c.l.b16 %v308
  %v1018 = vunpack.c.l.b16 %v309
  %v1019 = vpack.c.b16 %v1012, %v1011
  %v1020 = vpack.c.b16 %v1014, %v1013
  %v1021 = vpack.c.b16 %v1016, %v1015
  %v1022 = vpack.c.b16 %v1018, %v1017
  %1027 = vmatpush.bf16.msra.mxu0 0
  %1028 = vmatpush.bf16.msra.mxu0 0
  %1029 = vmatpush.bf16.msra.mxu0 0
  %1030 = vmatpush.bf16.msra.mxu0 0
  %1031 = vmatpush.bf16.msra.mxu0 %v1022
  %1032 = vmatpush.bf16.msra.mxu0 %v1021
  %1033 = vmatpush.bf16.msra.mxu0 %v1020
  %1034 = vmatpush.bf16.msra.mxu0 %v1019
  %1035 = vmatmul.bf16.gmra.mxu0 %v520
  %v1036 = vpop.f32.mrf.mxu0
  %v1037 = vadd.f32 %v807, %v1036
  %v1038 = vpop.f32.mrf.mxu0
  %1039 = vdwg.mxu0
  %v1048 = vunpack.c.l.b16 %v310
  %v1049 = vunpack.c.l.b16 %v311
  %v1050 = vunpack.c.l.b16 %v312
  %v1051 = vunpack.c.l.b16 %v313
  %v1052 = vunpack.c.l.b16 %v314
  %v1053 = vunpack.c.l.b16 %v315
  %v1054 = vunpack.c.l.b16 %v316
  %v1055 = vunpack.c.l.b16 %v317
  %v1056 = vpack.c.b16 %v1049, %v1048
  %v1057 = vpack.c.b16 %v1051, %v1050
  %v1058 = vpack.c.b16 %v1053, %v1052
  %v1059 = vpack.c.b16 %v1055, %v1054
  %1064 = vmatpush.bf16.msra.mxu0 0
  %1065 = vmatpush.bf16.msra.mxu0 0
  %1066 = vmatpush.bf16.msra.mxu0 0
  %1067 = vmatpush.bf16.msra.mxu0 0
  %1068 = vmatpush.bf16.msra.mxu0 %v1059
  %1069 = vmatpush.bf16.msra.mxu0 %v1058
  %1070 = vmatpush.bf16.msra.mxu0 %v1057
  %1071 = vmatpush.bf16.msra.mxu0 %v1056
  %1072 = vmatmul.bf16.gmra.mxu0 %v520
  %v1073 = vpop.f32.mrf.mxu0
  %v1074 = vadd.f32 %v808, %v1073
  %v1075 = vpop.f32.mrf.mxu0
  %1076 = vdwg.mxu0
  %v1085 = vunpack.c.l.b16 %v318
  %v1086 = vunpack.c.l.b16 %v319
  %v1087 = vunpack.c.l.b16 %v320
  %v1088 = vunpack.c.l.b16 %v321
  %v1089 = vunpack.c.l.b16 %v322
  %v1090 = vunpack.c.l.b16 %v323
  %v1091 = vunpack.c.l.b16 %v324
  %v1092 = vunpack.c.l.b16 %v325
  %v1093 = vpack.c.b16 %v1086, %v1085
  %v1094 = vpack.c.b16 %v1088, %v1087
  %v1095 = vpack.c.b16 %v1090, %v1089
  %v1096 = vpack.c.b16 %v1092, %v1091
  %1101 = vmatpush.bf16.msra.mxu0 0
  %1102 = vmatpush.bf16.msra.mxu0 0
  %1103 = vmatpush.bf16.msra.mxu0 0
  %1104 = vmatpush.bf16.msra.mxu0 0
  %1105 = vmatpush.bf16.msra.mxu0 %v1096
  %1106 = vmatpush.bf16.msra.mxu0 %v1095
  %1107 = vmatpush.bf16.msra.mxu0 %v1094
  %1108 = vmatpush.bf16.msra.mxu0 %v1093
  %1109 = vmatmul.bf16.gmra.mxu0 %v520
  %v1110 = vpop.f32.mrf.mxu0
  %v1111 = vadd.f32 %v809, %v1110
  %v1112 = vpop.f32.mrf.mxu0
  %1113 = vdwg.mxu0
  %v1122 = vperm.slane %v406, 0
  %v1123 = vperm.slane %v407, 0
  %v1124 = vperm.slane %v408, 0
  %v1125 = vperm.slane %v409, 0
  %v1126 = vperm.slane %v410, 0
  %v1127 = vperm.slane %v411, 0
  %v1128 = vperm.slane %v412, 0
  %v1129 = vperm.slane %v413, 0
  %v1146 = vunpack.c.l.b16 %v326
  %v1147 = vunpack.c.l.b16 %v327
  %v1148 = vunpack.c.l.b16 %v328
  %v1149 = vunpack.c.l.b16 %v329
  %v1150 = vunpack.c.l.b16 %v330
  %v1151 = vunpack.c.l.b16 %v331
  %v1152 = vunpack.c.l.b16 %v332
  %v1153 = vunpack.c.l.b16 %v333
  %v1154 = vpack.c.b16 %v1147, %v1146
  %v1155 = vpack.c.b16 %v1149, %v1148
  %v1156 = vpack.c.b16 %v1151, %v1150
  %v1157 = vpack.c.b16 %v1153, %v1152
  %1162 = vmatpush.bf16.msra.mxu0 0
  %1163 = vmatpush.bf16.msra.mxu0 0
  %1164 = vmatpush.bf16.msra.mxu0 0
  %1165 = vmatpush.bf16.msra.mxu0 0
  %1166 = vmatpush.bf16.msra.mxu0 %v1157
  %1167 = vmatpush.bf16.msra.mxu0 %v1156
  %1168 = vmatpush.bf16.msra.mxu0 %v1155
  %1169 = vmatpush.bf16.msra.mxu0 %v1154
  %1170 = vmatmul.bf16.gmra.mxu0 %v520
  %v1171 = vpop.f32.mrf.mxu0
  %v1172 = vadd.f32 %v1122, %v1171
  %v1173 = vpop.f32.mrf.mxu0
  %1174 = vdwg.mxu0
  %v1183 = vunpack.c.l.b16 %v334
  %v1184 = vunpack.c.l.b16 %v335
  %v1185 = vunpack.c.l.b16 %v336
  %v1186 = vunpack.c.l.b16 %v337
  %v1187 = vunpack.c.l.b16 %v338
  %v1188 = vunpack.c.l.b16 %v339
  %v1189 = vunpack.c.l.b16 %v340
  %v1190 = vunpack.c.l.b16 %v341
  %v1191 = vpack.c.b16 %v1184, %v1183
  %v1192 = vpack.c.b16 %v1186, %v1185
  %v1193 = vpack.c.b16 %v1188, %v1187
  %v1194 = vpack.c.b16 %v1190, %v1189
  %1199 = vmatpush.bf16.msra.mxu0 0
  %1200 = vmatpush.bf16.msra.mxu0 0
  %1201 = vmatpush.bf16.msra.mxu0 0
  %1202 = vmatpush.bf16.msra.mxu0 0
  %1203 = vmatpush.bf16.msra.mxu0 %v1194
  %1204 = vmatpush.bf16.msra.mxu0 %v1193
  %1205 = vmatpush.bf16.msra.mxu0 %v1192
  %1206 = vmatpush.bf16.msra.mxu0 %v1191
  %1207 = vmatmul.bf16.gmra.mxu0 %v520
  %v1208 = vpop.f32.mrf.mxu0
  %v1209 = vadd.f32 %v1123, %v1208
  %v1210 = vpop.f32.mrf.mxu0
  %1211 = vdwg.mxu0
  %v1220 = vunpack.c.l.b16 %v342
  %v1221 = vunpack.c.l.b16 %v343
  %v1222 = vunpack.c.l.b16 %v344
  %v1223 = vunpack.c.l.b16 %v345
  %v1224 = vunpack.c.l.b16 %v346
  %v1225 = vunpack.c.l.b16 %v347
  %v1226 = vunpack.c.l.b16 %v348
  %v1227 = vunpack.c.l.b16 %v349
  %v1228 = vpack.c.b16 %v1221, %v1220
  %v1229 = vpack.c.b16 %v1223, %v1222
  %v1230 = vpack.c.b16 %v1225, %v1224
  %v1231 = vpack.c.b16 %v1227, %v1226
  %1236 = vmatpush.bf16.msra.mxu0 0
  %1237 = vmatpush.bf16.msra.mxu0 0
  %1238 = vmatpush.bf16.msra.mxu0 0
  %1239 = vmatpush.bf16.msra.mxu0 0
  %1240 = vmatpush.bf16.msra.mxu0 %v1231
  %1241 = vmatpush.bf16.msra.mxu0 %v1230
  %1242 = vmatpush.bf16.msra.mxu0 %v1229
  %1243 = vmatpush.bf16.msra.mxu0 %v1228
  %1244 = vmatmul.bf16.gmra.mxu0 %v520
  %v1245 = vpop.f32.mrf.mxu0
  %v1246 = vadd.f32 %v1124, %v1245
  %v1247 = vpop.f32.mrf.mxu0
  %1248 = vdwg.mxu0
  %v1257 = vunpack.c.l.b16 %v350
  %v1258 = vunpack.c.l.b16 %v351
  %v1259 = vunpack.c.l.b16 %v352
  %v1260 = vunpack.c.l.b16 %v353
  %v1261 = vunpack.c.l.b16 %v354
  %v1262 = vunpack.c.l.b16 %v355
  %v1263 = vunpack.c.l.b16 %v356
  %v1264 = vunpack.c.l.b16 %v357
  %v1265 = vpack.c.b16 %v1258, %v1257
  %v1266 = vpack.c.b16 %v1260, %v1259
  %v1267 = vpack.c.b16 %v1262, %v1261
  %v1268 = vpack.c.b16 %v1264, %v1263
  %1273 = vmatpush.bf16.msra.mxu0 0
  %1274 = vmatpush.bf16.msra.mxu0 0
  %1275 = vmatpush.bf16.msra.mxu0 0
  %1276 = vmatpush.bf16.msra.mxu0 0
  %1277 = vmatpush.bf16.msra.mxu0 %v1268
  %1278 = vmatpush.bf16.msra.mxu0 %v1267
  %1279 = vmatpush.bf16.msra.mxu0 %v1266
  %1280 = vmatpush.bf16.msra.mxu0 %v1265
  %1281 = vmatmul.bf16.gmra.mxu0 %v520
  %v1282 = vpop.f32.mrf.mxu0
  %v1283 = vadd.f32 %v1125, %v1282
  %v1284 = vpop.f32.mrf.mxu0
  %1285 = vdwg.mxu0
  %v1294 = vunpack.c.l.b16 %v358
  %v1295 = vunpack.c.l.b16 %v359
  %v1296 = vunpack.c.l.b16 %v360
  %v1297 = vunpack.c.l.b16 %v361
  %v1298 = vunpack.c.l.b16 %v362
  %v1299 = vunpack.c.l.b16 %v363
  %v1300 = vunpack.c.l.b16 %v364
  %v1301 = vunpack.c.l.b16 %v365
  %v1302 = vpack.c.b16 %v1295, %v1294
  %v1303 = vpack.c.b16 %v1297, %v1296
  %v1304 = vpack.c.b16 %v1299, %v1298
  %v1305 = vpack.c.b16 %v1301, %v1300
  %1310 = vmatpush.bf16.msra.mxu0 0
  %1311 = vmatpush.bf16.msra.mxu0 0
  %1312 = vmatpush.bf16.msra.mxu0 0
  %1313 = vmatpush.bf16.msra.mxu0 0
  %1314 = vmatpush.bf16.msra.mxu0 %v1305
  %1315 = vmatpush.bf16.msra.mxu0 %v1304
  %1316 = vmatpush.bf16.msra.mxu0 %v1303
  %1317 = vmatpush.bf16.msra.mxu0 %v1302
  %1318 = vmatmul.bf16.gmra.mxu0 %v520
  %v1319 = vpop.f32.mrf.mxu0
  %v1320 = vadd.f32 %v1126, %v1319
  %v1321 = vpop.f32.mrf.mxu0
  %1322 = vdwg.mxu0
  %v1331 = vunpack.c.l.b16 %v366
  %v1332 = vunpack.c.l.b16 %v367
  %v1333 = vunpack.c.l.b16 %v368
  %v1334 = vunpack.c.l.b16 %v369
  %v1335 = vunpack.c.l.b16 %v370
  %v1336 = vunpack.c.l.b16 %v371
  %v1337 = vunpack.c.l.b16 %v372
  %v1338 = vunpack.c.l.b16 %v373
  %v1339 = vpack.c.b16 %v1332, %v1331
  %v1340 = vpack.c.b16 %v1334, %v1333
  %v1341 = vpack.c.b16 %v1336, %v1335
  %v1342 = vpack.c.b16 %v1338, %v1337
  %1347 = vmatpush.bf16.msra.mxu0 0
  %1348 = vmatpush.bf16.msra.mxu0 0
  %1349 = vmatpush.bf16.msra.mxu0 0
  %1350 = vmatpush.bf16.msra.mxu0 0
  %1351 = vmatpush.bf16.msra.mxu0 %v1342
  %1352 = vmatpush.bf16.msra.mxu0 %v1341
  %1353 = vmatpush.bf16.msra.mxu0 %v1340
  %1354 = vmatpush.bf16.msra.mxu0 %v1339
  %1355 = vmatmul.bf16.gmra.mxu0 %v520
  %v1356 = vpop.f32.mrf.mxu0
  %v1357 = vadd.f32 %v1127, %v1356
  %v1358 = vpop.f32.mrf.mxu0
  %1359 = vdwg.mxu0
  %v1368 = vunpack.c.l.b16 %v374
  %v1369 = vunpack.c.l.b16 %v375
  %v1370 = vunpack.c.l.b16 %v376
  %v1371 = vunpack.c.l.b16 %v377
  %v1372 = vunpack.c.l.b16 %v378
  %v1373 = vunpack.c.l.b16 %v379
  %v1374 = vunpack.c.l.b16 %v380
  %v1375 = vunpack.c.l.b16 %v381
  %v1376 = vpack.c.b16 %v1369, %v1368
  %v1377 = vpack.c.b16 %v1371, %v1370
  %v1378 = vpack.c.b16 %v1373, %v1372
  %v1379 = vpack.c.b16 %v1375, %v1374
  %1384 = vmatpush.bf16.msra.mxu0 0
  %1385 = vmatpush.bf16.msra.mxu0 0
  %1386 = vmatpush.bf16.msra.mxu0 0
  %1387 = vmatpush.bf16.msra.mxu0 0
  %1388 = vmatpush.bf16.msra.mxu0 %v1379
  %1389 = vmatpush.bf16.msra.mxu0 %v1378
  %1390 = vmatpush.bf16.msra.mxu0 %v1377
  %1391 = vmatpush.bf16.msra.mxu0 %v1376
  %1392 = vmatmul.bf16.gmra.mxu0 %v520
  %v1393 = vpop.f32.mrf.mxu0
  %v1394 = vadd.f32 %v1128, %v1393
  %v1395 = vpop.f32.mrf.mxu0
  %1396 = vdwg.mxu0
  %v1405 = vunpack.c.l.b16 %v382
  %v1406 = vunpack.c.l.b16 %v383
  %v1407 = vunpack.c.l.b16 %v384
  %v1408 = vunpack.c.l.b16 %v385
  %v1409 = vunpack.c.l.b16 %v386
  %v1410 = vunpack.c.l.b16 %v387
  %v1411 = vunpack.c.l.b16 %v388
  %v1412 = vunpack.c.l.b16 %v389
  %v1413 = vpack.c.b16 %v1406, %v1405
  %v1414 = vpack.c.b16 %v1408, %v1407
  %v1415 = vpack.c.b16 %v1410, %v1409
  %v1416 = vpack.c.b16 %v1412, %v1411
  %1421 = vmatpush.bf16.msra.mxu0 0
  %1422 = vmatpush.bf16.msra.mxu0 0
  %1423 = vmatpush.bf16.msra.mxu0 0
  %1424 = vmatpush.bf16.msra.mxu0 0
  %1425 = vmatpush.bf16.msra.mxu0 %v1416
  %1426 = vmatpush.bf16.msra.mxu0 %v1415
  %1427 = vmatpush.bf16.msra.mxu0 %v1414
  %1428 = vmatpush.bf16.msra.mxu0 %v1413
  %1429 = vmatmul.bf16.gmra.mxu0 %v520
  %v1430 = vpop.f32.mrf.mxu0
  %v1431 = vadd.f32 %v1129, %v1430
  %v1432 = vpop.f32.mrf.mxu0
  %1433 = vdwg.mxu0
  %v1434 = vpack.c.bf16 %v532, %v532
  %v1435 = vpack.c.bf16 %v569, %v569
  %v1436 = vpack.c.bf16 %v606, %v606
  %v1437 = vpack.c.bf16 %v643, %v643
  %v1438 = vpack.c.bf16 %v680, %v680
  %v1439 = vpack.c.bf16 %v717, %v717
  %v1440 = vpack.c.bf16 %v754, %v754
  %v1441 = vpack.c.bf16 %v791, %v791
  %v1442 = vpack.c.bf16 %v852, %v852
  %v1443 = vpack.c.bf16 %v889, %v889
  %v1444 = vpack.c.bf16 %v926, %v926
  %v1445 = vpack.c.bf16 %v963, %v963
  %v1446 = vpack.c.bf16 %v1000, %v1000
  %v1447 = vpack.c.bf16 %v1037, %v1037
  %v1448 = vpack.c.bf16 %v1074, %v1074
  %v1449 = vpack.c.bf16 %v1111, %v1111
  %vm1450 = vcmask 64512
  %v1452 = vsel %vm1450, %v1434, 0
  %v1455 = vsel %vm1450, %v1442, 0
  %1457 = vmatpush.bf16.xpose.msra.mxu0 0
  %1458 = vmatpush.bf16.xpose.msra.mxu0 0
  %1459 = vmatpush.bf16.xpose.msra.mxu0 0
  %1460 = vmatpush.bf16.xpose.msra.mxu0 0
  %1461 = vmatpush.bf16.xpose.msra.mxu0 0
  %1462 = vmatpush.bf16.xpose.msra.mxu0 0
  %1463 = vmatpush.bf16.xpose.msra.mxu0 0
  %1464 = vmatpush.bf16.xpose.msra.mxu0 %v1455
  %1465 = vmatmul.bf16.gmra.mxu0 %v1452
  %v1466 = vpop.f32.mrf.mxu0
  %v1467 = vadd.f32 0.0, %v1466
  %v1468 = vpop.f32.mrf.mxu0
  %1469 = vdwg.mxu0
  %v1471 = vsel %vm1450, %v1435, 0
  %v1474 = vsel %vm1450, %v1443, 0
  %1476 = vmatpush.bf16.xpose.msra.mxu0 0
  %1477 = vmatpush.bf16.xpose.msra.mxu0 0
  %1478 = vmatpush.bf16.xpose.msra.mxu0 0
  %1479 = vmatpush.bf16.xpose.msra.mxu0 0
  %1480 = vmatpush.bf16.xpose.msra.mxu0 0
  %1481 = vmatpush.bf16.xpose.msra.mxu0 0
  %1482 = vmatpush.bf16.xpose.msra.mxu0 0
  %1483 = vmatpush.bf16.xpose.msra.mxu0 %v1474
  %1484 = vmatmul.bf16.gmra.mxu0 %v1471
  %v1485 = vpop.f32.mrf.mxu0
  %v1486 = vadd.f32 0.0, %v1485
  %v1487 = vpop.f32.mrf.mxu0
  %1488 = vdwg.mxu0
  %v1490 = vsel %vm1450, %v1436, 0
  %v1493 = vsel %vm1450, %v1444, 0
  %1495 = vmatpush.bf16.xpose.msra.mxu0 0
  %1496 = vmatpush.bf16.xpose.msra.mxu0 0
  %1497 = vmatpush.bf16.xpose.msra.mxu0 0
  %1498 = vmatpush.bf16.xpose.msra.mxu0 0
  %1499 = vmatpush.bf16.xpose.msra.mxu0 0
  %1500 = vmatpush.bf16.xpose.msra.mxu0 0
  %1501 = vmatpush.bf16.xpose.msra.mxu0 0
  %1502 = vmatpush.bf16.xpose.msra.mxu0 %v1493
  %1503 = vmatmul.bf16.gmra.mxu0 %v1490
  %v1504 = vpop.f32.mrf.mxu0
  %v1505 = vadd.f32 0.0, %v1504
  %v1506 = vpop.f32.mrf.mxu0
  %1507 = vdwg.mxu0
  %v1509 = vsel %vm1450, %v1437, 0
  %v1512 = vsel %vm1450, %v1445, 0
  %1514 = vmatpush.bf16.xpose.msra.mxu0 0
  %1515 = vmatpush.bf16.xpose.msra.mxu0 0
  %1516 = vmatpush.bf16.xpose.msra.mxu0 0
  %1517 = vmatpush.bf16.xpose.msra.mxu0 0
  %1518 = vmatpush.bf16.xpose.msra.mxu0 0
  %1519 = vmatpush.bf16.xpose.msra.mxu0 0
  %1520 = vmatpush.bf16.xpose.msra.mxu0 0
  %1521 = vmatpush.bf16.xpose.msra.mxu0 %v1512
  %1522 = vmatmul.bf16.gmra.mxu0 %v1509
  %v1523 = vpop.f32.mrf.mxu0
  %v1524 = vadd.f32 0.0, %v1523
  %v1525 = vpop.f32.mrf.mxu0
  %1526 = vdwg.mxu0
  %v1528 = vsel %vm1450, %v1438, 0
  %v1531 = vsel %vm1450, %v1446, 0
  %1533 = vmatpush.bf16.xpose.msra.mxu0 0
  %1534 = vmatpush.bf16.xpose.msra.mxu0 0
  %1535 = vmatpush.bf16.xpose.msra.mxu0 0
  %1536 = vmatpush.bf16.xpose.msra.mxu0 0
  %1537 = vmatpush.bf16.xpose.msra.mxu0 0
  %1538 = vmatpush.bf16.xpose.msra.mxu0 0
  %1539 = vmatpush.bf16.xpose.msra.mxu0 0
  %1540 = vmatpush.bf16.xpose.msra.mxu0 %v1531
  %1541 = vmatmul.bf16.gmra.mxu0 %v1528
  %v1542 = vpop.f32.mrf.mxu0
  %v1543 = vadd.f32 0.0, %v1542
  %v1544 = vpop.f32.mrf.mxu0
  %1545 = vdwg.mxu0
  %v1547 = vsel %vm1450, %v1439, 0
  %v1550 = vsel %vm1450, %v1447, 0
  %1552 = vmatpush.bf16.xpose.msra.mxu0 0
  %1553 = vmatpush.bf16.xpose.msra.mxu0 0
  %1554 = vmatpush.bf16.xpose.msra.mxu0 0
  %1555 = vmatpush.bf16.xpose.msra.mxu0 0
  %1556 = vmatpush.bf16.xpose.msra.mxu0 0
  %1557 = vmatpush.bf16.xpose.msra.mxu0 0
  %1558 = vmatpush.bf16.xpose.msra.mxu0 0
  %1559 = vmatpush.bf16.xpose.msra.mxu0 %v1550
  %1560 = vmatmul.bf16.gmra.mxu0 %v1547
  %v1561 = vpop.f32.mrf.mxu0
  %v1562 = vadd.f32 0.0, %v1561
  %v1563 = vpop.f32.mrf.mxu0
  %1564 = vdwg.mxu0
  %v1566 = vsel %vm1450, %v1440, 0
  %v1569 = vsel %vm1450, %v1448, 0
  %1571 = vmatpush.bf16.xpose.msra.mxu0 0
  %1572 = vmatpush.bf16.xpose.msra.mxu0 0
  %1573 = vmatpush.bf16.xpose.msra.mxu0 0
  %1574 = vmatpush.bf16.xpose.msra.mxu0 0
  %1575 = vmatpush.bf16.xpose.msra.mxu0 0
  %1576 = vmatpush.bf16.xpose.msra.mxu0 0
  %1577 = vmatpush.bf16.xpose.msra.mxu0 0
  %1578 = vmatpush.bf16.xpose.msra.mxu0 %v1569
  %1579 = vmatmul.bf16.gmra.mxu0 %v1566
  %v1580 = vpop.f32.mrf.mxu0
  %v1581 = vadd.f32 0.0, %v1580
  %v1582 = vpop.f32.mrf.mxu0
  %1583 = vdwg.mxu0
  %v1585 = vsel %vm1450, %v1441, 0
  %v1588 = vsel %vm1450, %v1449, 0
  %1590 = vmatpush.bf16.xpose.msra.mxu0 0
  %1591 = vmatpush.bf16.xpose.msra.mxu0 0
  %1592 = vmatpush.bf16.xpose.msra.mxu0 0
  %1593 = vmatpush.bf16.xpose.msra.mxu0 0
  %1594 = vmatpush.bf16.xpose.msra.mxu0 0
  %1595 = vmatpush.bf16.xpose.msra.mxu0 0
  %1596 = vmatpush.bf16.xpose.msra.mxu0 0
  %1597 = vmatpush.bf16.xpose.msra.mxu0 %v1588
  %1598 = vmatmul.bf16.gmra.mxu0 %v1585
  %v1599 = vpop.f32.mrf.mxu0
  %v1600 = vadd.f32 0.0, %v1599
  %v1601 = vpop.f32.mrf.mxu0
  %1602 = vdwg.mxu0
  %v1603 = vmul.f32 %v1467, 0.35355338
  %v1604 = vmul.f32 %v1486, 0.35355338
  %v1605 = vmul.f32 %v1505, 0.35355338
  %v1606 = vmul.f32 %v1524, 0.35355338
  %v1607 = vmul.f32 %v1543, 0.35355338
  %v1608 = vmul.f32 %v1562, 0.35355338
  %v1609 = vmul.f32 %v1581, 0.35355338
  %v1610 = vmul.f32 %v1600, 0.35355338
  %vm1611 = vcmask 46080
  %v1612 = vsel %vm1611, %v1603, -inf
  %1613 = vmax.xlane.f32.xlu0 %v1612
  %v1614 = vpop.xlane.xlu0 %1613
  %v1615 = vsel %vm1611, %v1604, -inf
  %1616 = vmax.xlane.f32.xlu0 %v1615
  %v1617 = vpop.xlane.xlu0 %1616
  %v1618 = vsel %vm1611, %v1605, -inf
  %1619 = vmax.xlane.f32.xlu0 %v1618
  %v1620 = vpop.xlane.xlu0 %1619
  %v1621 = vsel %vm1611, %v1606, -inf
  %1622 = vmax.xlane.f32.xlu0 %v1621
  %v1623 = vpop.xlane.xlu0 %1622
  %v1624 = vsel %vm1611, %v1607, -inf
  %1625 = vmax.xlane.f32.xlu0 %v1624
  %v1626 = vpop.xlane.xlu0 %1625
  %v1627 = vsel %vm1611, %v1608, -inf
  %1628 = vmax.xlane.f32.xlu0 %v1627
  %v1629 = vpop.xlane.xlu0 %1628
  %v1630 = vsel %vm1611, %v1609, -inf
  %1631 = vmax.xlane.f32.xlu0 %v1630
  %v1632 = vpop.xlane.xlu0 %1631
  %v1633 = vsel %vm1611, %v1610, -inf
  %1634 = vmax.xlane.f32.xlu0 %v1633
  %v1635 = vpop.xlane.xlu0 %1634
  %v1636 = vsub.f32 %v1603, %v1614
  %v1637 = vsub.f32 %v1604, %v1617
  %v1638 = vsub.f32 %v1605, %v1620
  %v1639 = vsub.f32 %v1606, %v1623
  %v1640 = vsub.f32 %v1607, %v1626
  %v1641 = vsub.f32 %v1608, %v1629
  %v1642 = vsub.f32 %v1609, %v1632
  %v1643 = vsub.f32 %v1610, %v1635
  %v1644 = vmul.f32 %v1636, 1.442695
  %v1645 = vpow.pop %v1644
  %v1646 = vmul.f32 %v1637, 1.442695
  %v1647 = vpow.pop %v1646
  %v1648 = vmul.f32 %v1638, 1.442695
  %v1649 = vpow.pop %v1648
  %v1650 = vmul.f32 %v1639, 1.442695
  %v1651 = vpow.pop %v1650
  %v1652 = vmul.f32 %v1640, 1.442695
  %v1653 = vpow.pop %v1652
  %v1654 = vmul.f32 %v1641, 1.442695
  %v1655 = vpow.pop %v1654
  %v1656 = vmul.f32 %v1642, 1.442695
  %v1657 = vpow.pop %v1656
  %v1658 = vmul.f32 %v1643, 1.442695
  %v1659 = vpow.pop %v1658
  %v1660 = vsel %vm1611, %v1645, 0.0
  %1661 = vadd.xlane.f32.xlu0 %v1660
  %v1662 = vpop.xlane.xlu0 %1661
  %v1663 = vsel %vm1611, %v1647, 0.0
  %1664 = vadd.xlane.f32.xlu0 %v1663
  %v1665 = vpop.xlane.xlu0 %1664
  %v1666 = vsel %vm1611, %v1649, 0.0
  %1667 = vadd.xlane.f32.xlu0 %v1666
  %v1668 = vpop.xlane.xlu0 %1667
  %v1669 = vsel %vm1611, %v1651, 0.0
  %1670 = vadd.xlane.f32.xlu0 %v1669
  %v1671 = vpop.xlane.xlu0 %1670
  %v1672 = vsel %vm1611, %v1653, 0.0
  %1673 = vadd.xlane.f32.xlu0 %v1672
  %v1674 = vpop.xlane.xlu0 %1673
  %v1675 = vsel %vm1611, %v1655, 0.0
  %1676 = vadd.xlane.f32.xlu0 %v1675
  %v1677 = vpop.xlane.xlu0 %1676
  %v1678 = vsel %vm1611, %v1657, 0.0
  %1679 = vadd.xlane.f32.xlu0 %v1678
  %v1680 = vpop.xlane.xlu0 %1679
  %v1681 = vsel %vm1611, %v1659, 0.0
  %1682 = vadd.xlane.f32.xlu0 %v1681
  %v1683 = vpop.xlane.xlu0 %1682
  %v1684 = vrcp.pop %v1662
  %v1685 = vmul.f32 %v1662, %v1684
  %v1686 = vsub.f32 1.0, %v1685
  %v1687 = vmul.f32 %v1684, %v1686
  %v1688 = vadd.f32 %v1684, %v1687
  %vm1689 = vweird.f32 %v1662
  %vm1690 = vweird.f32 %v1684
  %vm1691 = vmor %vm1689, %vm1690
  %v1692 = vsel %vm1691, %v1684, %v1688
  %v1693 = vand.u32 2147483647, %v1662
  %vm1694 = vcmp.eq.f32.partialorder %v1693, 8.507059e+37
  %v1695 = vand.u32 %v1662, 2147483648
  %v1696 = vor.u32 1.1754944e-38, %v1695
  %v1697 = vsel %vm1694, %v1696, %v1692
  %v1698 = vmul.f32 %v1645, %v1697
  %v1699 = vrcp.pop %v1665
  %v1700 = vmul.f32 %v1665, %v1699
  %v1701 = vsub.f32 1.0, %v1700
  %v1702 = vmul.f32 %v1699, %v1701
  %v1703 = vadd.f32 %v1699, %v1702
  %vm1704 = vweird.f32 %v1665
  %vm1705 = vweird.f32 %v1699
  %vm1706 = vmor %vm1704, %vm1705
  %v1707 = vsel %vm1706, %v1699, %v1703
  %v1708 = vand.u32 2147483647, %v1665
  %vm1709 = vcmp.eq.f32.partialorder %v1708, 8.507059e+37
  %v1710 = vand.u32 %v1665, 2147483648
  %v1711 = vor.u32 1.1754944e-38, %v1710
  %v1712 = vsel %vm1709, %v1711, %v1707
  %v1713 = vmul.f32 %v1647, %v1712
  %v1714 = vrcp.pop %v1668
  %v1715 = vmul.f32 %v1668, %v1714
  %v1716 = vsub.f32 1.0, %v1715
  %v1717 = vmul.f32 %v1714, %v1716
  %v1718 = vadd.f32 %v1714, %v1717
  %vm1719 = vweird.f32 %v1668
  %vm1720 = vweird.f32 %v1714
  %vm1721 = vmor %vm1719, %vm1720
  %v1722 = vsel %vm1721, %v1714, %v1718
  %v1723 = vand.u32 2147483647, %v1668
  %vm1724 = vcmp.eq.f32.partialorder %v1723, 8.507059e+37
  %v1725 = vand.u32 %v1668, 2147483648
  %v1726 = vor.u32 1.1754944e-38, %v1725
  %v1727 = vsel %vm1724, %v1726, %v1722
  %v1728 = vmul.f32 %v1649, %v1727
  %v1729 = vrcp.pop %v1671
  %v1730 = vmul.f32 %v1671, %v1729
  %v1731 = vsub.f32 1.0, %v1730
  %v1732 = vmul.f32 %v1729, %v1731
  %v1733 = vadd.f32 %v1729, %v1732
  %vm1734 = vweird.f32 %v1671
  %vm1735 = vweird.f32 %v1729
  %vm1736 = vmor %vm1734, %vm1735
  %v1737 = vsel %vm1736, %v1729, %v1733
  %v1738 = vand.u32 2147483647, %v1671
  %vm1739 = vcmp.eq.f32.partialorder %v1738, 8.507059e+37
  %v1740 = vand.u32 %v1671, 2147483648
  %v1741 = vor.u32 1.1754944e-38, %v1740
  %v1742 = vsel %vm1739, %v1741, %v1737
  %v1743 = vmul.f32 %v1651, %v1742
  %v1744 = vrcp.pop %v1674
  %v1745 = vmul.f32 %v1674, %v1744
  %v1746 = vsub.f32 1.0, %v1745
  %v1747 = vmul.f32 %v1744, %v1746
  %v1748 = vadd.f32 %v1744, %v1747
  %vm1749 = vweird.f32 %v1674
  %vm1750 = vweird.f32 %v1744
  %vm1751 = vmor %vm1749, %vm1750
  %v1752 = vsel %vm1751, %v1744, %v1748
  %v1753 = vand.u32 2147483647, %v1674
  %vm1754 = vcmp.eq.f32.partialorder %v1753, 8.507059e+37
  %v1755 = vand.u32 %v1674, 2147483648
  %v1756 = vor.u32 1.1754944e-38, %v1755
  %v1757 = vsel %vm1754, %v1756, %v1752
  %v1758 = vmul.f32 %v1653, %v1757
  %v1759 = vrcp.pop %v1677
  %v1760 = vmul.f32 %v1677, %v1759
  %v1761 = vsub.f32 1.0, %v1760
  %v1762 = vmul.f32 %v1759, %v1761
  %v1763 = vadd.f32 %v1759, %v1762
  %vm1764 = vweird.f32 %v1677
  %vm1765 = vweird.f32 %v1759
  %vm1766 = vmor %vm1764, %vm1765
  %v1767 = vsel %vm1766, %v1759, %v1763
  %v1768 = vand.u32 2147483647, %v1677
  %vm1769 = vcmp.eq.f32.partialorder %v1768, 8.507059e+37
  %v1770 = vand.u32 %v1677, 2147483648
  %v1771 = vor.u32 1.1754944e-38, %v1770
  %v1772 = vsel %vm1769, %v1771, %v1767
  %v1773 = vmul.f32 %v1655, %v1772
  %v1774 = vrcp.pop %v1680
  %v1775 = vmul.f32 %v1680, %v1774
  %v1776 = vsub.f32 1.0, %v1775
  %v1777 = vmul.f32 %v1774, %v1776
  %v1778 = vadd.f32 %v1774, %v1777
  %vm1779 = vweird.f32 %v1680
  %vm1780 = vweird.f32 %v1774
  %vm1781 = vmor %vm1779, %vm1780
  %v1782 = vsel %vm1781, %v1774, %v1778
  %v1783 = vand.u32 2147483647, %v1680
  %vm1784 = vcmp.eq.f32.partialorder %v1783, 8.507059e+37
  %v1785 = vand.u32 %v1680, 2147483648
  %v1786 = vor.u32 1.1754944e-38, %v1785
  %v1787 = vsel %vm1784, %v1786, %v1782
  %v1788 = vmul.f32 %v1657, %v1787
  %v1789 = vrcp.pop %v1683
  %v1790 = vmul.f32 %v1683, %v1789
  %v1791 = vsub.f32 1.0, %v1790
  %v1792 = vmul.f32 %v1789, %v1791
  %v1793 = vadd.f32 %v1789, %v1792
  %vm1794 = vweird.f32 %v1683
  %vm1795 = vweird.f32 %v1789
  %vm1796 = vmor %vm1794, %vm1795
  %v1797 = vsel %vm1796, %v1789, %v1793
  %v1798 = vand.u32 2147483647, %v1683
  %vm1799 = vcmp.eq.f32.partialorder %v1798, 8.507059e+37
  %v1800 = vand.u32 %v1683, 2147483648
  %v1801 = vor.u32 1.1754944e-38, %v1800
  %v1802 = vsel %vm1799, %v1801, %v1797
  %v1803 = vmul.f32 %v1659, %v1802
  %v1804 = vpack.c.bf16 %v1698, %v1698
  %v1805 = vpack.c.bf16 %v1713, %v1713
  %v1806 = vpack.c.bf16 %v1728, %v1728
  %v1807 = vpack.c.bf16 %v1743, %v1743
  %v1808 = vpack.c.bf16 %v1758, %v1758
  %v1809 = vpack.c.bf16 %v1773, %v1773
  %v1810 = vpack.c.bf16 %v1788, %v1788
  %v1811 = vpack.c.bf16 %v1803, %v1803
  %v1812 = vpack.c.bf16 %v1172, %v1172
  %v1813 = vpack.c.bf16 %v1209, %v1209
  %v1814 = vpack.c.bf16 %v1246, %v1246
  %v1815 = vpack.c.bf16 %v1283, %v1283
  %v1816 = vpack.c.bf16 %v1320, %v1320
  %v1817 = vpack.c.bf16 %v1357, %v1357
  %v1818 = vpack.c.bf16 %v1394, %v1394
  %v1819 = vpack.c.bf16 %v1431, %v1431
  %vm1820 = vcmask 48128
  %v1822 = vsel %vm1820, %v1804, 0
  %v1825 = vsel %vm141, %v1812, 0
  %1827 = vmatpush.bf16.msra.mxu0 0
  %1828 = vmatpush.bf16.msra.mxu0 0
  %1829 = vmatpush.bf16.msra.mxu0 0
  %1830 = vmatpush.bf16.msra.mxu0 0
  %1831 = vmatpush.bf16.msra.mxu0 0
  %1832 = vmatpush.bf16.msra.mxu0 0
  %1833 = vmatpush.bf16.msra.mxu0 0
  %1834 = vmatpush.bf16.msra.mxu0 %v1825
  %1835 = vmatmul.bf16.gmra.mxu0 %v1822
  %v1836 = vpop.f32.mrf.mxu0
  %v1837 = vadd.f32 0.0, %v1836
  %v1838 = vpop.f32.mrf.mxu0
  %1839 = vdwg.mxu0
  %v1841 = vsel %vm1820, %v1805, 0
  %v1844 = vsel %vm141, %v1813, 0
  %1846 = vmatpush.bf16.msra.mxu0 0
  %1847 = vmatpush.bf16.msra.mxu0 0
  %1848 = vmatpush.bf16.msra.mxu0 0
  %1849 = vmatpush.bf16.msra.mxu0 0
  %1850 = vmatpush.bf16.msra.mxu0 0
  %1851 = vmatpush.bf16.msra.mxu0 0
  %1852 = vmatpush.bf16.msra.mxu0 0
  %1853 = vmatpush.bf16.msra.mxu0 %v1844
  %1854 = vmatmul.bf16.gmra.mxu0 %v1841
  %v1855 = vpop.f32.mrf.mxu0
  %v1856 = vadd.f32 0.0, %v1855
  %v1857 = vpop.f32.mrf.mxu0
  %1858 = vdwg.mxu0
  %v1860 = vsel %vm1820, %v1806, 0
  %v1863 = vsel %vm141, %v1814, 0
  %1865 = vmatpush.bf16.msra.mxu0 0
  %1866 = vmatpush.bf16.msra.mxu0 0
  %1867 = vmatpush.bf16.msra.mxu0 0
  %1868 = vmatpush.bf16.msra.mxu0 0
  %1869 = vmatpush.bf16.msra.mxu0 0
  %1870 = vmatpush.bf16.msra.mxu0 0
  %1871 = vmatpush.bf16.msra.mxu0 0
  %1872 = vmatpush.bf16.msra.mxu0 %v1863
  %1873 = vmatmul.bf16.gmra.mxu0 %v1860
  %v1874 = vpop.f32.mrf.mxu0
  %v1875 = vadd.f32 0.0, %v1874
  %v1876 = vpop.f32.mrf.mxu0
  %1877 = vdwg.mxu0
  %v1879 = vsel %vm1820, %v1807, 0
  %v1882 = vsel %vm141, %v1815, 0
  %1884 = vmatpush.bf16.msra.mxu0 0
  %1885 = vmatpush.bf16.msra.mxu0 0
  %1886 = vmatpush.bf16.msra.mxu0 0
  %1887 = vmatpush.bf16.msra.mxu0 0
  %1888 = vmatpush.bf16.msra.mxu0 0
  %1889 = vmatpush.bf16.msra.mxu0 0
  %1890 = vmatpush.bf16.msra.mxu0 0
  %1891 = vmatpush.bf16.msra.mxu0 %v1882
  %1892 = vmatmul.bf16.gmra.mxu0 %v1879
  %v1893 = vpop.f32.mrf.mxu0
  %v1894 = vadd.f32 0.0, %v1893
  %v1895 = vpop.f32.mrf.mxu0
  %1896 = vdwg.mxu0
  %v1898 = vsel %vm1820, %v1808, 0
  %v1901 = vsel %vm141, %v1816, 0
  %1903 = vmatpush.bf16.msra.mxu0 0
  %1904 = vmatpush.bf16.msra.mxu0 0
  %1905 = vmatpush.bf16.msra.mxu0 0
  %1906 = vmatpush.bf16.msra.mxu0 0
  %1907 = vmatpush.bf16.msra.mxu0 0
  %1908 = vmatpush.bf16.msra.mxu0 0
  %1909 = vmatpush.bf16.msra.mxu0 0
  %1910 = vmatpush.bf16.msra.mxu0 %v1901
  %1911 = vmatmul.bf16.gmra.mxu0 %v1898
  %v1912 = vpop.f32.mrf.mxu0
  %v1913 = vadd.f32 0.0, %v1912
  %v1914 = vpop.f32.mrf.mxu0
  %1915 = vdwg.mxu0
  %v1917 = vsel %vm1820, %v1809, 0
  %v1920 = vsel %vm141, %v1817, 0
  %1922 = vmatpush.bf16.msra.mxu0 0
  %1923 = vmatpush.bf16.msra.mxu0 0
  %1924 = vmatpush.bf16.msra.mxu0 0
  %1925 = vmatpush.bf16.msra.mxu0 0
  %1926 = vmatpush.bf16.msra.mxu0 0
  %1927 = vmatpush.bf16.msra.mxu0 0
  %1928 = vmatpush.bf16.msra.mxu0 0
  %1929 = vmatpush.bf16.msra.mxu0 %v1920
  %1930 = vmatmul.bf16.gmra.mxu0 %v1917
  %v1931 = vpop.f32.mrf.mxu0
  %v1932 = vadd.f32 0.0, %v1931
  %v1933 = vpop.f32.mrf.mxu0
  %1934 = vdwg.mxu0
  %v1936 = vsel %vm1820, %v1810, 0
  %v1939 = vsel %vm141, %v1818, 0
  %1941 = vmatpush.bf16.msra.mxu0 0
  %1942 = vmatpush.bf16.msra.mxu0 0
  %1943 = vmatpush.bf16.msra.mxu0 0
  %1944 = vmatpush.bf16.msra.mxu0 0
  %1945 = vmatpush.bf16.msra.mxu0 0
  %1946 = vmatpush.bf16.msra.mxu0 0
  %1947 = vmatpush.bf16.msra.mxu0 0
  %1948 = vmatpush.bf16.msra.mxu0 %v1939
  %1949 = vmatmul.bf16.gmra.mxu0 %v1936
  %v1950 = vpop.f32.mrf.mxu0
  %v1951 = vadd.f32 0.0, %v1950
  %v1952 = vpop.f32.mrf.mxu0
  %1953 = vdwg.mxu0
  %v1955 = vsel %vm1820, %v1811, 0
  %v1958 = vsel %vm141, %v1819, 0
  %1960 = vmatpush.bf16.msra.mxu0 0
  %1961 = vmatpush.bf16.msra.mxu0 0
  %1962 = vmatpush.bf16.msra.mxu0 0
  %1963 = vmatpush.bf16.msra.mxu0 0
  %1964 = vmatpush.bf16.msra.mxu0 0
  %1965 = vmatpush.bf16.msra.mxu0 0
  %1966 = vmatpush.bf16.msra.mxu0 0
  %1967 = vmatpush.bf16.msra.mxu0 %v1958
  %1968 = vmatmul.bf16.gmra.mxu0 %v1955
  %v1969 = vpop.f32.mrf.mxu0
  %v1970 = vadd.f32 0.0, %v1969
  %v1971 = vpop.f32.mrf.mxu0
  %1972 = vdwg.mxu0
  %v1973 = vpack.c.bf16 %v1837, %v1837
  %v1974 = vpack.c.bf16 %v1856, %v1856
  %v1975 = vpack.c.bf16 %v1875, %v1875
  %v1976 = vpack.c.bf16 %v1894, %v1894
  %v1977 = vpack.c.bf16 %v1913, %v1913
  %v1978 = vpack.c.bf16 %v1932, %v1932
  %v1979 = vpack.c.bf16 %v1951, %v1951
  %v1980 = vpack.c.bf16 %v1970, %v1970
  %v1982 = vsel %vm1450, %v1973, 0
  %v1985 = vsel %vm142, %v414, 0
  %1987 = vmatpush.bf16.msra.mxu0 0
  %1988 = vmatpush.bf16.msra.mxu0 0
  %1989 = vmatpush.bf16.msra.mxu0 0
  %1990 = vmatpush.bf16.msra.mxu0 0
  %1991 = vmatpush.bf16.msra.mxu0 0
  %1992 = vmatpush.bf16.msra.mxu0 0
  %1993 = vmatpush.bf16.msra.mxu0 0
  %1994 = vmatpush.bf16.msra.mxu0 %v1985
  %1995 = vmatmul.bf16.gmra.mxu0 %v1982
  %v1996 = vpop.f32.mrf.mxu0
  %v1997 = vadd.f32 0.0, %v1996
  %v1998 = vpop.f32.mrf.mxu0
  %1999 = vdwg.mxu0
  %v2001 = vsel %vm1450, %v1974, 0
  %v2004 = vsel %vm142, %v415, 0
  %2006 = vmatpush.bf16.msra.mxu0 0
  %2007 = vmatpush.bf16.msra.mxu0 0
  %2008 = vmatpush.bf16.msra.mxu0 0
  %2009 = vmatpush.bf16.msra.mxu0 0
  %2010 = vmatpush.bf16.msra.mxu0 0
  %2011 = vmatpush.bf16.msra.mxu0 0
  %2012 = vmatpush.bf16.msra.mxu0 0
  %2013 = vmatpush.bf16.msra.mxu0 %v2004
  %2014 = vmatmul.bf16.gmra.mxu0 %v2001
  %v2015 = vpop.f32.mrf.mxu0
  %v2016 = vadd.f32 0.0, %v2015
  %v2017 = vpop.f32.mrf.mxu0
  %2018 = vdwg.mxu0
  %v2020 = vsel %vm1450, %v1975, 0
  %v2023 = vsel %vm142, %v416, 0
  %2025 = vmatpush.bf16.msra.mxu0 0
  %2026 = vmatpush.bf16.msra.mxu0 0
  %2027 = vmatpush.bf16.msra.mxu0 0
  %2028 = vmatpush.bf16.msra.mxu0 0
  %2029 = vmatpush.bf16.msra.mxu0 0
  %2030 = vmatpush.bf16.msra.mxu0 0
  %2031 = vmatpush.bf16.msra.mxu0 0
  %2032 = vmatpush.bf16.msra.mxu0 %v2023
  %2033 = vmatmul.bf16.gmra.mxu0 %v2020
  %v2034 = vpop.f32.mrf.mxu0
  %v2035 = vadd.f32 0.0, %v2034
  %v2036 = vpop.f32.mrf.mxu0
  %2037 = vdwg.mxu0
  %v2039 = vsel %vm1450, %v1976, 0
  %v2042 = vsel %vm142, %v417, 0
  %2044 = vmatpush.bf16.msra.mxu0 0
  %2045 = vmatpush.bf16.msra.mxu0 0
  %2046 = vmatpush.bf16.msra.mxu0 0
  %2047 = vmatpush.bf16.msra.mxu0 0
  %2048 = vmatpush.bf16.msra.mxu0 0
  %2049 = vmatpush.bf16.msra.mxu0 0
  %2050 = vmatpush.bf16.msra.mxu0 0
  %2051 = vmatpush.bf16.msra.mxu0 %v2042
  %2052 = vmatmul.bf16.gmra.mxu0 %v2039
  %v2053 = vpop.f32.mrf.mxu0
  %v2054 = vadd.f32 0.0, %v2053
  %v2055 = vpop.f32.mrf.mxu0
  %2056 = vdwg.mxu0
  %v2058 = vsel %vm1450, %v1977, 0
  %v2061 = vsel %vm142, %v418, 0
  %2063 = vmatpush.bf16.msra.mxu0 0
  %2064 = vmatpush.bf16.msra.mxu0 0
  %2065 = vmatpush.bf16.msra.mxu0 0
  %2066 = vmatpush.bf16.msra.mxu0 0
  %2067 = vmatpush.bf16.msra.mxu0 0
  %2068 = vmatpush.bf16.msra.mxu0 0
  %2069 = vmatpush.bf16.msra.mxu0 0
  %2070 = vmatpush.bf16.msra.mxu0 %v2061
  %2071 = vmatmul.bf16.gmra.mxu0 %v2058
  %v2072 = vpop.f32.mrf.mxu0
  %v2073 = vadd.f32 0.0, %v2072
  %v2074 = vpop.f32.mrf.mxu0
  %2075 = vdwg.mxu0
  %v2077 = vsel %vm1450, %v1978, 0
  %v2080 = vsel %vm142, %v419, 0
  %2082 = vmatpush.bf16.msra.mxu0 0
  %2083 = vmatpush.bf16.msra.mxu0 0
  %2084 = vmatpush.bf16.msra.mxu0 0
  %2085 = vmatpush.bf16.msra.mxu0 0
  %2086 = vmatpush.bf16.msra.mxu0 0
  %2087 = vmatpush.bf16.msra.mxu0 0
  %2088 = vmatpush.bf16.msra.mxu0 0
  %2089 = vmatpush.bf16.msra.mxu0 %v2080
  %2090 = vmatmul.bf16.gmra.mxu0 %v2077
  %v2091 = vpop.f32.mrf.mxu0
  %v2092 = vadd.f32 0.0, %v2091
  %v2093 = vpop.f32.mrf.mxu0
  %2094 = vdwg.mxu0
  %v2096 = vsel %vm1450, %v1979, 0
  %v2099 = vsel %vm142, %v420, 0
  %2101 = vmatpush.bf16.msra.mxu0 0
  %2102 = vmatpush.bf16.msra.mxu0 0
  %2103 = vmatpush.bf16.msra.mxu0 0
  %2104 = vmatpush.bf16.msra.mxu0 0
  %2105 = vmatpush.bf16.msra.mxu0 0
  %2106 = vmatpush.bf16.msra.mxu0 0
  %2107 = vmatpush.bf16.msra.mxu0 0
  %2108 = vmatpush.bf16.msra.mxu0 %v2099
  %2109 = vmatmul.bf16.gmra.mxu0 %v2096
  %v2110 = vpop.f32.mrf.mxu0
  %v2111 = vadd.f32 0.0, %v2110
  %v2112 = vpop.f32.mrf.mxu0
  %2113 = vdwg.mxu0
  %v2115 = vsel %vm1450, %v1980, 0
  %v2118 = vsel %vm142, %v421, 0
  %2120 = vmatpush.bf16.msra.mxu0 0
  %2121 = vmatpush.bf16.msra.mxu0 0
  %2122 = vmatpush.bf16.msra.mxu0 0
  %2123 = vmatpush.bf16.msra.mxu0 0
  %2124 = vmatpush.bf16.msra.mxu0 0
  %2125 = vmatpush.bf16.msra.mxu0 0
  %2126 = vmatpush.bf16.msra.mxu0 0
  %2127 = vmatpush.bf16.msra.mxu0 %v2118
  %2128 = vmatmul.bf16.gmra.mxu0 %v2115
  %v2129 = vpop.f32.mrf.mxu0
  %v2130 = vadd.f32 0.0, %v2129
  %v2131 = vpop.f32.mrf.mxu0
  %2132 = vdwg.mxu0
  %vm2133 = vcmask 521216
  %v2134 = vsel %vm2133, %v1997, 0.0
  %v2135 = vsel %vm2133, %v2016, 0.0
  %v2136 = vadd.f32 %v2134, %v2135
  %v2137 = vsel %vm2133, %v2035, 0.0
  %v2138 = vadd.f32 %v2136, %v2137
  %v2139 = vsel %vm2133, %v2054, 0.0
  %v2140 = vadd.f32 %v2138, %v2139
  %v2141 = vsel %vm2133, %v2073, 0.0
  %v2142 = vadd.f32 %v2140, %v2141
  %v2143 = vsel %vm2133, %v2092, 0.0
  %v2144 = vadd.f32 %v2142, %v2143
  %v2145 = vsel %vm2133, %v2111, 0.0
  %v2146 = vadd.f32 %v2144, %v2145
  %v2147 = vsel %vm2133, %v2130, 0.0
  %v2148 = vadd.f32 %v2146, %v2147
  %v2150 = vperm.slane %v422, 0
  %v2152 = vadd.f32 %v2148, %v2150
  %v2153 = vpack.c.bf16 %v194, %v194
  %v2156 = vunpack.c.l.b16 %v469
  %v2157 = vunpack.c.l.b16 %v2153
  %v2158 = vpack.c.b16 %v2157, %v2156
  %v2159 = vrot.slane %v2158, 3
  %v2161 = vsel %vm518, %v2159, 0
  %2163 = vmatpush.bf16.msra.mxu0 0
  %2164 = vmatpush.bf16.msra.mxu0 0
  %2165 = vmatpush.bf16.msra.mxu0 0
  %2166 = vmatpush.bf16.msra.mxu0 0
  %2167 = vmatpush.bf16.msra.mxu0 %v513
  %2168 = vmatpush.bf16.msra.mxu0 %v512
  %2169 = vmatpush.bf16.msra.mxu0 %v511
  %2170 = vmatpush.bf16.msra.mxu0 %v510
  %2171 = vmatmul.bf16.gmra.mxu0 %v2161
  %v2172 = vpop.f32.mrf.mxu0
  %v2173 = vadd.f32 %v478, %v2172
  %v2174 = vpop.f32.mrf.mxu0
  %2175 = vdwg.mxu0
  %2176 = vmatpush.bf16.msra.mxu0 0
  %2177 = vmatpush.bf16.msra.mxu0 0
  %2178 = vmatpush.bf16.msra.mxu0 0
  %2179 = vmatpush.bf16.msra.mxu0 0
  %2180 = vmatpush.bf16.msra.mxu0 %v554
  %2181 = vmatpush.bf16.msra.mxu0 %v553
  %2182 = vmatpush.bf16.msra.mxu0 %v552
  %2183 = vmatpush.bf16.msra.mxu0 %v551
  %2184 = vmatmul.bf16.gmra.mxu0 %v2161
  %v2185 = vpop.f32.mrf.mxu0
  %v2186 = vadd.f32 %v479, %v2185
  %v2187 = vpop.f32.mrf.mxu0
  %2188 = vdwg.mxu0
  %2189 = vmatpush.bf16.msra.mxu0 0
  %2190 = vmatpush.bf16.msra.mxu0 0
  %2191 = vmatpush.bf16.msra.mxu0 0
  %2192 = vmatpush.bf16.msra.mxu0 0
  %2193 = vmatpush.bf16.msra.mxu0 %v591
  %2194 = vmatpush.bf16.msra.mxu0 %v590
  %2195 = vmatpush.bf16.msra.mxu0 %v589
  %2196 = vmatpush.bf16.msra.mxu0 %v588
  %2197 = vmatmul.bf16.gmra.mxu0 %v2161
  %v2198 = vpop.f32.mrf.mxu0
  %v2199 = vadd.f32 %v480, %v2198
  %v2200 = vpop.f32.mrf.mxu0
  %2201 = vdwg.mxu0
  %2202 = vmatpush.bf16.msra.mxu0 0
  %2203 = vmatpush.bf16.msra.mxu0 0
  %2204 = vmatpush.bf16.msra.mxu0 0
  %2205 = vmatpush.bf16.msra.mxu0 0
  %2206 = vmatpush.bf16.msra.mxu0 %v628
  %2207 = vmatpush.bf16.msra.mxu0 %v627
  %2208 = vmatpush.bf16.msra.mxu0 %v626
  %2209 = vmatpush.bf16.msra.mxu0 %v625
  %2210 = vmatmul.bf16.gmra.mxu0 %v2161
  %v2211 = vpop.f32.mrf.mxu0
  %v2212 = vadd.f32 %v481, %v2211
  %v2213 = vpop.f32.mrf.mxu0
  %2214 = vdwg.mxu0
  %2215 = vmatpush.bf16.msra.mxu0 0
  %2216 = vmatpush.bf16.msra.mxu0 0
  %2217 = vmatpush.bf16.msra.mxu0 0
  %2218 = vmatpush.bf16.msra.mxu0 0
  %2219 = vmatpush.bf16.msra.mxu0 %v665
  %2220 = vmatpush.bf16.msra.mxu0 %v664
  %2221 = vmatpush.bf16.msra.mxu0 %v663
  %2222 = vmatpush.bf16.msra.mxu0 %v662
  %2223 = vmatmul.bf16.gmra.mxu0 %v2161
  %v2224 = vpop.f32.mrf.mxu0
  %v2225 = vadd.f32 %v482, %v2224
  %v2226 = vpop.f32.mrf.mxu0
  %2227 = vdwg.mxu0
  %2228 = vmatpush.bf16.msra.mxu0 0
  %2229 = vmatpush.bf16.msra.mxu0 0
  %2230 = vmatpush.bf16.msra.mxu0 0
  %2231 = vmatpush.bf16.msra.mxu0 0
  %2232 = vmatpush.bf16.msra.mxu0 %v702
  %2233 = vmatpush.bf16.msra.mxu0 %v701
  %2234 = vmatpush.bf16.msra.mxu0 %v700
  %2235 = vmatpush.bf16.msra.mxu0 %v699
  %2236 = vmatmul.bf16.gmra.mxu0 %v2161
  %v2237 = vpop.f32.mrf.mxu0
  %v2238 = vadd.f32 %v483, %v2237
  %v2239 = vpop.f32.mrf.mxu0
  %2240 = vdwg.mxu0
  %2241 = vmatpush.bf16.msra.mxu0 0
  %2242 = vmatpush.bf16.msra.mxu0 0
  %2243 = vmatpush.bf16.msra.mxu0 0
  %2244 = vmatpush.bf16.msra.mxu0 0
  %2245 = vmatpush.bf16.msra.mxu0 %v739
  %2246 = vmatpush.bf16.msra.mxu0 %v738
  %2247 = vmatpush.bf16.msra.mxu0 %v737
  %2248 = vmatpush.bf16.msra.mxu0 %v736
  %2249 = vmatmul.bf16.gmra.mxu0 %v2161
  %v2250 = vpop.f32.mrf.mxu0
  %v2251 = vadd.f32 %v484, %v2250
  %v2252 = vpop.f32.mrf.mxu0
  %2253 = vdwg.mxu0
  %2254 = vmatpush.bf16.msra.mxu0 0
  %2255 = vmatpush.bf16.msra.mxu0 0
  %2256 = vmatpush.bf16.msra.mxu0 0
  %2257 = vmatpush.bf16.msra.mxu0 0
  %2258 = vmatpush.bf16.msra.mxu0 %v776
  %2259 = vmatpush.bf16.msra.mxu0 %v775
  %2260 = vmatpush.bf16.msra.mxu0 %v774
  %2261 = vmatpush.bf16.msra.mxu0 %v773
  %2262 = vmatmul.bf16.gmra.mxu0 %v2161
  %v2263 = vpop.f32.mrf.mxu0
  %v2264 = vadd.f32 %v485, %v2263
  %v2265 = vpop.f32.mrf.mxu0
  %2266 = vdwg.mxu0
  %2267 = vmatpush.bf16.msra.mxu0 0
  %2268 = vmatpush.bf16.msra.mxu0 0
  %2269 = vmatpush.bf16.msra.mxu0 0
  %2270 = vmatpush.bf16.msra.mxu0 0
  %2271 = vmatpush.bf16.msra.mxu0 %v837
  %2272 = vmatpush.bf16.msra.mxu0 %v836
  %2273 = vmatpush.bf16.msra.mxu0 %v835
  %2274 = vmatpush.bf16.msra.mxu0 %v834
  %2275 = vmatmul.bf16.gmra.mxu0 %v2161
  %v2276 = vpop.f32.mrf.mxu0
  %v2277 = vadd.f32 %v802, %v2276
  %v2278 = vpop.f32.mrf.mxu0
  %2279 = vdwg.mxu0
  %2280 = vmatpush.bf16.msra.mxu0 0
  %2281 = vmatpush.bf16.msra.mxu0 0
  %2282 = vmatpush.bf16.msra.mxu0 0
  %2283 = vmatpush.bf16.msra.mxu0 0
  %2284 = vmatpush.bf16.msra.mxu0 %v874
  %2285 = vmatpush.bf16.msra.mxu0 %v873
  %2286 = vmatpush.bf16.msra.mxu0 %v872
  %2287 = vmatpush.bf16.msra.mxu0 %v871
  %2288 = vmatmul.bf16.gmra.mxu0 %v2161
  %v2289 = vpop.f32.mrf.mxu0
  %v2290 = vadd.f32 %v803, %v2289
  %v2291 = vpop.f32.mrf.mxu0
  %2292 = vdwg.mxu0
  %2293 = vmatpush.bf16.msra.mxu0 0
  %2294 = vmatpush.bf16.msra.mxu0 0
  %2295 = vmatpush.bf16.msra.mxu0 0
  %2296 = vmatpush.bf16.msra.mxu0 0
  %2297 = vmatpush.bf16.msra.mxu0 %v911
  %2298 = vmatpush.bf16.msra.mxu0 %v910
  %2299 = vmatpush.bf16.msra.mxu0 %v909
  %2300 = vmatpush.bf16.msra.mxu0 %v908
  %2301 = vmatmul.bf16.gmra.mxu0 %v2161
  %v2302 = vpop.f32.mrf.mxu0
  %v2303 = vadd.f32 %v804, %v2302
  %v2304 = vpop.f32.mrf.mxu0
  %2305 = vdwg.mxu0
  %2306 = vmatpush.bf16.msra.mxu0 0
  %2307 = vmatpush.bf16.msra.mxu0 0
  %2308 = vmatpush.bf16.msra.mxu0 0
  %2309 = vmatpush.bf16.msra.mxu0 0
  %2310 = vmatpush.bf16.msra.mxu0 %v948
  %2311 = vmatpush.bf16.msra.mxu0 %v947
  %2312 = vmatpush.bf16.msra.mxu0 %v946
  %2313 = vmatpush.bf16.msra.mxu0 %v945
  %2314 = vmatmul.bf16.gmra.mxu0 %v2161
  %v2315 = vpop.f32.mrf.mxu0
  %v2316 = vadd.f32 %v805, %v2315
  %v2317 = vpop.f32.mrf.mxu0
  %2318 = vdwg.mxu0
  %2319 = vmatpush.bf16.msra.mxu0 0
  %2320 = vmatpush.bf16.msra.mxu0 0
  %2321 = vmatpush.bf16.msra.mxu0 0
  %2322 = vmatpush.bf16.msra.mxu0 0
  %2323 = vmatpush.bf16.msra.mxu0 %v985
  %2324 = vmatpush.bf16.msra.mxu0 %v984
  %2325 = vmatpush.bf16.msra.mxu0 %v983
  %2326 = vmatpush.bf16.msra.mxu0 %v982
  %2327 = vmatmul.bf16.gmra.mxu0 %v2161
  %v2328 = vpop.f32.mrf.mxu0
  %v2329 = vadd.f32 %v806, %v2328
  %v2330 = vpop.f32.mrf.mxu0
  %2331 = vdwg.mxu0
  %2332 = vmatpush.bf16.msra.mxu0 0
  %2333 = vmatpush.bf16.msra.mxu0 0
  %2334 = vmatpush.bf16.msra.mxu0 0
  %2335 = vmatpush.bf16.msra.mxu0 0
  %2336 = vmatpush.bf16.msra.mxu0 %v1022
  %2337 = vmatpush.bf16.msra.mxu0 %v1021
  %2338 = vmatpush.bf16.msra.mxu0 %v1020
  %2339 = vmatpush.bf16.msra.mxu0 %v1019
  %2340 = vmatmul.bf16.gmra.mxu0 %v2161
  %v2341 = vpop.f32.mrf.mxu0
  %v2342 = vadd.f32 %v807, %v2341
  %v2343 = vpop.f32.mrf.mxu0
  %2344 = vdwg.mxu0
  %2345 = vmatpush.bf16.msra.mxu0 0
  %2346 = vmatpush.bf16.msra.mxu0 0
  %2347 = vmatpush.bf16.msra.mxu0 0
  %2348 = vmatpush.bf16.msra.mxu0 0
  %2349 = vmatpush.bf16.msra.mxu0 %v1059
  %2350 = vmatpush.bf16.msra.mxu0 %v1058
  %2351 = vmatpush.bf16.msra.mxu0 %v1057
  %2352 = vmatpush.bf16.msra.mxu0 %v1056
  %2353 = vmatmul.bf16.gmra.mxu0 %v2161
  %v2354 = vpop.f32.mrf.mxu0
  %v2355 = vadd.f32 %v808, %v2354
  %v2356 = vpop.f32.mrf.mxu0
  %2357 = vdwg.mxu0
  %2358 = vmatpush.bf16.msra.mxu0 0
  %2359 = vmatpush.bf16.msra.mxu0 0
  %2360 = vmatpush.bf16.msra.mxu0 0
  %2361 = vmatpush.bf16.msra.mxu0 0
  %2362 = vmatpush.bf16.msra.mxu0 %v1096
  %2363 = vmatpush.bf16.msra.mxu0 %v1095
  %2364 = vmatpush.bf16.msra.mxu0 %v1094
  %2365 = vmatpush.bf16.msra.mxu0 %v1093
  %2366 = vmatmul.bf16.gmra.mxu0 %v2161
  %v2367 = vpop.f32.mrf.mxu0
  %v2368 = vadd.f32 %v809, %v2367
  %v2369 = vpop.f32.mrf.mxu0
  %2370 = vdwg.mxu0
  %2371 = vmatpush.bf16.msra.mxu0 0
  %2372 = vmatpush.bf16.msra.mxu0 0
  %2373 = vmatpush.bf16.msra.mxu0 0
  %2374 = vmatpush.bf16.msra.mxu0 0
  %2375 = vmatpush.bf16.msra.mxu0 %v1157
  %2376 = vmatpush.bf16.msra.mxu0 %v1156
  %2377 = vmatpush.bf16.msra.mxu0 %v1155
  %2378 = vmatpush.bf16.msra.mxu0 %v1154
  %2379 = vmatmul.bf16.gmra.mxu0 %v2161
  %v2380 = vpop.f32.mrf.mxu0
  %v2381 = vadd.f32 %v1122, %v2380
  %v2382 = vpop.f32.mrf.mxu0
  %2383 = vdwg.mxu0
  %2384 = vmatpush.bf16.msra.mxu0 0
  %2385 = vmatpush.bf16.msra.mxu0 0
  %2386 = vmatpush.bf16.msra.mxu0 0
  %2387 = vmatpush.bf16.msra.mxu0 0
  %2388 = vmatpush.bf16.msra.mxu0 %v1194
  %2389 = vmatpush.bf16.msra.mxu0 %v1193
  %2390 = vmatpush.bf16.msra.mxu0 %v1192
  %2391 = vmatpush.bf16.msra.mxu0 %v1191
  %2392 = vmatmul.bf16.gmra.mxu0 %v2161
  %v2393 = vpop.f32.mrf.mxu0
  %v2394 = vadd.f32 %v1123, %v2393
  %v2395 = vpop.f32.mrf.mxu0
  %2396 = vdwg.mxu0
  %2397 = vmatpush.bf16.msra.mxu0 0
  %2398 = vmatpush.bf16.msra.mxu0 0
  %2399 = vmatpush.bf16.msra.mxu0 0
  %2400 = vmatpush.bf16.msra.mxu0 0
  %2401 = vmatpush.bf16.msra.mxu0 %v1231
  %2402 = vmatpush.bf16.msra.mxu0 %v1230
  %2403 = vmatpush.bf16.msra.mxu0 %v1229
  %2404 = vmatpush.bf16.msra.mxu0 %v1228
  %2405 = vmatmul.bf16.gmra.mxu0 %v2161
  %v2406 = vpop.f32.mrf.mxu0
  %v2407 = vadd.f32 %v1124, %v2406
  %v2408 = vpop.f32.mrf.mxu0
  %2409 = vdwg.mxu0
  %2410 = vmatpush.bf16.msra.mxu0 0
  %2411 = vmatpush.bf16.msra.mxu0 0
  %2412 = vmatpush.bf16.msra.mxu0 0
  %2413 = vmatpush.bf16.msra.mxu0 0
  %2414 = vmatpush.bf16.msra.mxu0 %v1268
  %2415 = vmatpush.bf16.msra.mxu0 %v1267
  %2416 = vmatpush.bf16.msra.mxu0 %v1266
  %2417 = vmatpush.bf16.msra.mxu0 %v1265
  %2418 = vmatmul.bf16.gmra.mxu0 %v2161
  %v2419 = vpop.f32.mrf.mxu0
  %v2420 = vadd.f32 %v1125, %v2419
  %v2421 = vpop.f32.mrf.mxu0
  %2422 = vdwg.mxu0
  %2423 = vmatpush.bf16.msra.mxu0 0
  %2424 = vmatpush.bf16.msra.mxu0 0
  %2425 = vmatpush.bf16.msra.mxu0 0
  %2426 = vmatpush.bf16.msra.mxu0 0
  %2427 = vmatpush.bf16.msra.mxu0 %v1305
  %2428 = vmatpush.bf16.msra.mxu0 %v1304
  %2429 = vmatpush.bf16.msra.mxu0 %v1303
  %2430 = vmatpush.bf16.msra.mxu0 %v1302
  %2431 = vmatmul.bf16.gmra.mxu0 %v2161
  %v2432 = vpop.f32.mrf.mxu0
  %v2433 = vadd.f32 %v1126, %v2432
  %v2434 = vpop.f32.mrf.mxu0
  %2435 = vdwg.mxu0
  %2436 = vmatpush.bf16.msra.mxu0 0
  %2437 = vmatpush.bf16.msra.mxu0 0
  %2438 = vmatpush.bf16.msra.mxu0 0
  %2439 = vmatpush.bf16.msra.mxu0 0
  %2440 = vmatpush.bf16.msra.mxu0 %v1342
  %2441 = vmatpush.bf16.msra.mxu0 %v1341
  %2442 = vmatpush.bf16.msra.mxu0 %v1340
  %2443 = vmatpush.bf16.msra.mxu0 %v1339
  %2444 = vmatmul.bf16.gmra.mxu0 %v2161
  %v2445 = vpop.f32.mrf.mxu0
  %v2446 = vadd.f32 %v1127, %v2445
  %v2447 = vpop.f32.mrf.mxu0
  %2448 = vdwg.mxu0
  %2449 = vmatpush.bf16.msra.mxu0 0
  %2450 = vmatpush.bf16.msra.mxu0 0
  %2451 = vmatpush.bf16.msra.mxu0 0
  %2452 = vmatpush.bf16.msra.mxu0 0
  %2453 = vmatpush.bf16.msra.mxu0 %v1379
  %2454 = vmatpush.bf16.msra.mxu0 %v1378
  %2455 = vmatpush.bf16.msra.mxu0 %v1377
  %2456 = vmatpush.bf16.msra.mxu0 %v1376
  %2457 = vmatmul.bf16.gmra.mxu0 %v2161
  %v2458 = vpop.f32.mrf.mxu0
  %v2459 = vadd.f32 %v1128, %v2458
  %v2460 = vpop.f32.mrf.mxu0
  %2461 = vdwg.mxu0
  %2462 = vmatpush.bf16.msra.mxu0 0
  %2463 = vmatpush.bf16.msra.mxu0 0
  %2464 = vmatpush.bf16.msra.mxu0 0
  %2465 = vmatpush.bf16.msra.mxu0 0
  %2466 = vmatpush.bf16.msra.mxu0 %v1416
  %2467 = vmatpush.bf16.msra.mxu0 %v1415
  %2468 = vmatpush.bf16.msra.mxu0 %v1414
  %2469 = vmatpush.bf16.msra.mxu0 %v1413
  %2470 = vmatmul.bf16.gmra.mxu0 %v2161
  %v2471 = vpop.f32.mrf.mxu0
  %v2472 = vadd.f32 %v1129, %v2471
  %v2473 = vpop.f32.mrf.mxu0
  %2474 = vdwg.mxu0
  %v2475 = vpack.c.bf16 %v2173, %v2173
  %v2476 = vpack.c.bf16 %v2186, %v2186
  %v2477 = vpack.c.bf16 %v2199, %v2199
  %v2478 = vpack.c.bf16 %v2212, %v2212
  %v2479 = vpack.c.bf16 %v2225, %v2225
  %v2480 = vpack.c.bf16 %v2238, %v2238
  %v2481 = vpack.c.bf16 %v2251, %v2251
  %v2482 = vpack.c.bf16 %v2264, %v2264
  %v2483 = vpack.c.bf16 %v2277, %v2277
  %v2484 = vpack.c.bf16 %v2290, %v2290
  %v2485 = vpack.c.bf16 %v2303, %v2303
  %v2486 = vpack.c.bf16 %v2316, %v2316
  %v2487 = vpack.c.bf16 %v2329, %v2329
  %v2488 = vpack.c.bf16 %v2342, %v2342
  %v2489 = vpack.c.bf16 %v2355, %v2355
  %v2490 = vpack.c.bf16 %v2368, %v2368
  %v2492 = vsel %vm1450, %v2475, 0
  %v2495 = vsel %vm1450, %v2483, 0
  %2497 = vmatpush.bf16.xpose.msra.mxu0 0
  %2498 = vmatpush.bf16.xpose.msra.mxu0 0
  %2499 = vmatpush.bf16.xpose.msra.mxu0 0
  %2500 = vmatpush.bf16.xpose.msra.mxu0 0
  %2501 = vmatpush.bf16.xpose.msra.mxu0 0
  %2502 = vmatpush.bf16.xpose.msra.mxu0 0
  %2503 = vmatpush.bf16.xpose.msra.mxu0 0
  %2504 = vmatpush.bf16.xpose.msra.mxu0 %v2495
  %2505 = vmatmul.bf16.gmra.mxu0 %v2492
  %v2506 = vpop.f32.mrf.mxu0
  %v2507 = vadd.f32 0.0, %v2506
  %v2508 = vpop.f32.mrf.mxu0
  %2509 = vdwg.mxu0
  %v2511 = vsel %vm1450, %v2476, 0
  %v2514 = vsel %vm1450, %v2484, 0
  %2516 = vmatpush.bf16.xpose.msra.mxu0 0
  %2517 = vmatpush.bf16.xpose.msra.mxu0 0
  %2518 = vmatpush.bf16.xpose.msra.mxu0 0
  %2519 = vmatpush.bf16.xpose.msra.mxu0 0
  %2520 = vmatpush.bf16.xpose.msra.mxu0 0
  %2521 = vmatpush.bf16.xpose.msra.mxu0 0
  %2522 = vmatpush.bf16.xpose.msra.mxu0 0
  %2523 = vmatpush.bf16.xpose.msra.mxu0 %v2514
  %2524 = vmatmul.bf16.gmra.mxu0 %v2511
  %v2525 = vpop.f32.mrf.mxu0
  %v2526 = vadd.f32 0.0, %v2525
  %v2527 = vpop.f32.mrf.mxu0
  %2528 = vdwg.mxu0
  %v2530 = vsel %vm1450, %v2477, 0
  %v2533 = vsel %vm1450, %v2485, 0
  %2535 = vmatpush.bf16.xpose.msra.mxu0 0
  %2536 = vmatpush.bf16.xpose.msra.mxu0 0
  %2537 = vmatpush.bf16.xpose.msra.mxu0 0
  %2538 = vmatpush.bf16.xpose.msra.mxu0 0
  %2539 = vmatpush.bf16.xpose.msra.mxu0 0
  %2540 = vmatpush.bf16.xpose.msra.mxu0 0
  %2541 = vmatpush.bf16.xpose.msra.mxu0 0
  %2542 = vmatpush.bf16.xpose.msra.mxu0 %v2533
  %2543 = vmatmul.bf16.gmra.mxu0 %v2530
  %v2544 = vpop.f32.mrf.mxu0
  %v2545 = vadd.f32 0.0, %v2544
  %v2546 = vpop.f32.mrf.mxu0
  %2547 = vdwg.mxu0
  %v2549 = vsel %vm1450, %v2478, 0
  %v2552 = vsel %vm1450, %v2486, 0
  %2554 = vmatpush.bf16.xpose.msra.mxu0 0
  %2555 = vmatpush.bf16.xpose.msra.mxu0 0
  %2556 = vmatpush.bf16.xpose.msra.mxu0 0
  %2557 = vmatpush.bf16.xpose.msra.mxu0 0
  %2558 = vmatpush.bf16.xpose.msra.mxu0 0
  %2559 = vmatpush.bf16.xpose.msra.mxu0 0
  %2560 = vmatpush.bf16.xpose.msra.mxu0 0
  %2561 = vmatpush.bf16.xpose.msra.mxu0 %v2552
  %2562 = vmatmul.bf16.gmra.mxu0 %v2549
  %v2563 = vpop.f32.mrf.mxu0
  %v2564 = vadd.f32 0.0, %v2563
  %v2565 = vpop.f32.mrf.mxu0
  %2566 = vdwg.mxu0
  %v2568 = vsel %vm1450, %v2479, 0
  %v2571 = vsel %vm1450, %v2487, 0
  %2573 = vmatpush.bf16.xpose.msra.mxu0 0
  %2574 = vmatpush.bf16.xpose.msra.mxu0 0
  %2575 = vmatpush.bf16.xpose.msra.mxu0 0
  %2576 = vmatpush.bf16.xpose.msra.mxu0 0
  %2577 = vmatpush.bf16.xpose.msra.mxu0 0
  %2578 = vmatpush.bf16.xpose.msra.mxu0 0
  %2579 = vmatpush.bf16.xpose.msra.mxu0 0
  %2580 = vmatpush.bf16.xpose.msra.mxu0 %v2571
  %2581 = vmatmul.bf16.gmra.mxu0 %v2568
  %v2582 = vpop.f32.mrf.mxu0
  %v2583 = vadd.f32 0.0, %v2582
  %v2584 = vpop.f32.mrf.mxu0
  %2585 = vdwg.mxu0
  %v2587 = vsel %vm1450, %v2480, 0
  %v2590 = vsel %vm1450, %v2488, 0
  %2592 = vmatpush.bf16.xpose.msra.mxu0 0
  %2593 = vmatpush.bf16.xpose.msra.mxu0 0
  %2594 = vmatpush.bf16.xpose.msra.mxu0 0
  %2595 = vmatpush.bf16.xpose.msra.mxu0 0
  %2596 = vmatpush.bf16.xpose.msra.mxu0 0
  %2597 = vmatpush.bf16.xpose.msra.mxu0 0
  %2598 = vmatpush.bf16.xpose.msra.mxu0 0
  %2599 = vmatpush.bf16.xpose.msra.mxu0 %v2590
  %2600 = vmatmul.bf16.gmra.mxu0 %v2587
  %v2601 = vpop.f32.mrf.mxu0
  %v2602 = vadd.f32 0.0, %v2601
  %v2603 = vpop.f32.mrf.mxu0
  %2604 = vdwg.mxu0
  %v2606 = vsel %vm1450, %v2481, 0
  %v2609 = vsel %vm1450, %v2489, 0
  %2611 = vmatpush.bf16.xpose.msra.mxu0 0
  %2612 = vmatpush.bf16.xpose.msra.mxu0 0
  %2613 = vmatpush.bf16.xpose.msra.mxu0 0
  %2614 = vmatpush.bf16.xpose.msra.mxu0 0
  %2615 = vmatpush.bf16.xpose.msra.mxu0 0
  %2616 = vmatpush.bf16.xpose.msra.mxu0 0
  %2617 = vmatpush.bf16.xpose.msra.mxu0 0
  %2618 = vmatpush.bf16.xpose.msra.mxu0 %v2609
  %2619 = vmatmul.bf16.gmra.mxu0 %v2606
  %v2620 = vpop.f32.mrf.mxu0
  %v2621 = vadd.f32 0.0, %v2620
  %v2622 = vpop.f32.mrf.mxu0
  %2623 = vdwg.mxu0
  %v2625 = vsel %vm1450, %v2482, 0
  %v2628 = vsel %vm1450, %v2490, 0
  %2630 = vmatpush.bf16.xpose.msra.mxu0 0
  %2631 = vmatpush.bf16.xpose.msra.mxu0 0
  %2632 = vmatpush.bf16.xpose.msra.mxu0 0
  %2633 = vmatpush.bf16.xpose.msra.mxu0 0
  %2634 = vmatpush.bf16.xpose.msra.mxu0 0
  %2635 = vmatpush.bf16.xpose.msra.mxu0 0
  %2636 = vmatpush.bf16.xpose.msra.mxu0 0
  %2637 = vmatpush.bf16.xpose.msra.mxu0 %v2628
  %2638 = vmatmul.bf16.gmra.mxu0 %v2625
  %v2639 = vpop.f32.mrf.mxu0
  %v2640 = vadd.f32 0.0, %v2639
  %v2641 = vpop.f32.mrf.mxu0
  %2642 = vdwg.mxu0
  %v2643 = vmul.f32 %v2507, 0.35355338
  %v2644 = vmul.f32 %v2526, 0.35355338
  %v2645 = vmul.f32 %v2545, 0.35355338
  %v2646 = vmul.f32 %v2564, 0.35355338
  %v2647 = vmul.f32 %v2583, 0.35355338
  %v2648 = vmul.f32 %v2602, 0.35355338
  %v2649 = vmul.f32 %v2621, 0.35355338
  %v2650 = vmul.f32 %v2640, 0.35355338
  %v2651 = vsel %vm1611, %v2643, -inf
  %2652 = vmax.xlane.f32.xlu0 %v2651
  %v2653 = vpop.xlane.xlu0 %2652
  %v2654 = vsel %vm1611, %v2644, -inf
  %2655 = vmax.xlane.f32.xlu0 %v2654
  %v2656 = vpop.xlane.xlu0 %2655
  %v2657 = vsel %vm1611, %v2645, -inf
  %2658 = vmax.xlane.f32.xlu0 %v2657
  %v2659 = vpop.xlane.xlu0 %2658
  %v2660 = vsel %vm1611, %v2646, -inf
  %2661 = vmax.xlane.f32.xlu0 %v2660
  %v2662 = vpop.xlane.xlu0 %2661
  %v2663 = vsel %vm1611, %v2647, -inf
  %2664 = vmax.xlane.f32.xlu0 %v2663
  %v2665 = vpop.xlane.xlu0 %2664
  %v2666 = vsel %vm1611, %v2648, -inf
  %2667 = vmax.xlane.f32.xlu0 %v2666
  %v2668 = vpop.xlane.xlu0 %2667
  %v2669 = vsel %vm1611, %v2649, -inf
  %2670 = vmax.xlane.f32.xlu0 %v2669
  %v2671 = vpop.xlane.xlu0 %2670
  %v2672 = vsel %vm1611, %v2650, -inf
  %2673 = vmax.xlane.f32.xlu0 %v2672
  %v2674 = vpop.xlane.xlu0 %2673
  %v2675 = vsub.f32 %v2643, %v2653
  %v2676 = vsub.f32 %v2644, %v2656
  %v2677 = vsub.f32 %v2645, %v2659
  %v2678 = vsub.f32 %v2646, %v2662
  %v2679 = vsub.f32 %v2647, %v2665
  %v2680 = vsub.f32 %v2648, %v2668
  %v2681 = vsub.f32 %v2649, %v2671
  %v2682 = vsub.f32 %v2650, %v2674
  %v2683 = vmul.f32 %v2675, 1.442695
  %v2684 = vpow.pop %v2683
  %v2685 = vmul.f32 %v2676, 1.442695
  %v2686 = vpow.pop %v2685
  %v2687 = vmul.f32 %v2677, 1.442695
  %v2688 = vpow.pop %v2687
  %v2689 = vmul.f32 %v2678, 1.442695
  %v2690 = vpow.pop %v2689
  %v2691 = vmul.f32 %v2679, 1.442695
  %v2692 = vpow.pop %v2691
  %v2693 = vmul.f32 %v2680, 1.442695
  %v2694 = vpow.pop %v2693
  %v2695 = vmul.f32 %v2681, 1.442695
  %v2696 = vpow.pop %v2695
  %v2697 = vmul.f32 %v2682, 1.442695
  %v2698 = vpow.pop %v2697
  %v2699 = vsel %vm1611, %v2684, 0.0
  %2700 = vadd.xlane.f32.xlu0 %v2699
  %v2701 = vpop.xlane.xlu0 %2700
  %v2702 = vsel %vm1611, %v2686, 0.0
  %2703 = vadd.xlane.f32.xlu0 %v2702
  %v2704 = vpop.xlane.xlu0 %2703
  %v2705 = vsel %vm1611, %v2688, 0.0
  %2706 = vadd.xlane.f32.xlu0 %v2705
  %v2707 = vpop.xlane.xlu0 %2706
  %v2708 = vsel %vm1611, %v2690, 0.0
  %2709 = vadd.xlane.f32.xlu0 %v2708
  %v2710 = vpop.xlane.xlu0 %2709
  %v2711 = vsel %vm1611, %v2692, 0.0
  %2712 = vadd.xlane.f32.xlu0 %v2711
  %v2713 = vpop.xlane.xlu0 %2712
  %v2714 = vsel %vm1611, %v2694, 0.0
  %2715 = vadd.xlane.f32.xlu0 %v2714
  %v2716 = vpop.xlane.xlu0 %2715
  %v2717 = vsel %vm1611, %v2696, 0.0
  %2718 = vadd.xlane.f32.xlu0 %v2717
  %v2719 = vpop.xlane.xlu0 %2718
  %v2720 = vsel %vm1611, %v2698, 0.0
  %2721 = vadd.xlane.f32.xlu0 %v2720
  %v2722 = vpop.xlane.xlu0 %2721
  %v2723 = vrcp.pop %v2701
  %v2724 = vmul.f32 %v2701, %v2723
  %v2725 = vsub.f32 1.0, %v2724
  %v2726 = vmul.f32 %v2723, %v2725
  %v2727 = vadd.f32 %v2723, %v2726
  %vm2728 = vweird.f32 %v2701
  %vm2729 = vweird.f32 %v2723
  %vm2730 = vmor %vm2728, %vm2729
  %v2731 = vsel %vm2730, %v2723, %v2727
  %v2732 = vand.u32 2147483647, %v2701
  %vm2733 = vcmp.eq.f32.partialorder %v2732, 8.507059e+37
  %v2734 = vand.u32 %v2701, 2147483648
  %v2735 = vor.u32 1.1754944e-38, %v2734
  %v2736 = vsel %vm2733, %v2735, %v2731
  %v2737 = vmul.f32 %v2684, %v2736
  %v2738 = vrcp.pop %v2704
  %v2739 = vmul.f32 %v2704, %v2738
  %v2740 = vsub.f32 1.0, %v2739
  %v2741 = vmul.f32 %v2738, %v2740
  %v2742 = vadd.f32 %v2738, %v2741
  %vm2743 = vweird.f32 %v2704
  %vm2744 = vweird.f32 %v2738
  %vm2745 = vmor %vm2743, %vm2744
  %v2746 = vsel %vm2745, %v2738, %v2742
  %v2747 = vand.u32 2147483647, %v2704
  %vm2748 = vcmp.eq.f32.partialorder %v2747, 8.507059e+37
  %v2749 = vand.u32 %v2704, 2147483648
  %v2750 = vor.u32 1.1754944e-38, %v2749
  %v2751 = vsel %vm2748, %v2750, %v2746
  %v2752 = vmul.f32 %v2686, %v2751
  %v2753 = vrcp.pop %v2707
  %v2754 = vmul.f32 %v2707, %v2753
  %v2755 = vsub.f32 1.0, %v2754
  %v2756 = vmul.f32 %v2753, %v2755
  %v2757 = vadd.f32 %v2753, %v2756
  %vm2758 = vweird.f32 %v2707
  %vm2759 = vweird.f32 %v2753
  %vm2760 = vmor %vm2758, %vm2759
  %v2761 = vsel %vm2760, %v2753, %v2757
  %v2762 = vand.u32 2147483647, %v2707
  %vm2763 = vcmp.eq.f32.partialorder %v2762, 8.507059e+37
  %v2764 = vand.u32 %v2707, 2147483648
  %v2765 = vor.u32 1.1754944e-38, %v2764
  %v2766 = vsel %vm2763, %v2765, %v2761
  %v2767 = vmul.f32 %v2688, %v2766
  %v2768 = vrcp.pop %v2710
  %v2769 = vmul.f32 %v2710, %v2768
  %v2770 = vsub.f32 1.0, %v2769
  %v2771 = vmul.f32 %v2768, %v2770
  %v2772 = vadd.f32 %v2768, %v2771
  %vm2773 = vweird.f32 %v2710
  %vm2774 = vweird.f32 %v2768
  %vm2775 = vmor %vm2773, %vm2774
  %v2776 = vsel %vm2775, %v2768, %v2772
  %v2777 = vand.u32 2147483647, %v2710
  %vm2778 = vcmp.eq.f32.partialorder %v2777, 8.507059e+37
  %v2779 = vand.u32 %v2710, 2147483648
  %v2780 = vor.u32 1.1754944e-38, %v2779
  %v2781 = vsel %vm2778, %v2780, %v2776
  %v2782 = vmul.f32 %v2690, %v2781
  %v2783 = vrcp.pop %v2713
  %v2784 = vmul.f32 %v2713, %v2783
  %v2785 = vsub.f32 1.0, %v2784
  %v2786 = vmul.f32 %v2783, %v2785
  %v2787 = vadd.f32 %v2783, %v2786
  %vm2788 = vweird.f32 %v2713
  %vm2789 = vweird.f32 %v2783
  %vm2790 = vmor %vm2788, %vm2789
  %v2791 = vsel %vm2790, %v2783, %v2787
  %v2792 = vand.u32 2147483647, %v2713
  %vm2793 = vcmp.eq.f32.partialorder %v2792, 8.507059e+37
  %v2794 = vand.u32 %v2713, 2147483648
  %v2795 = vor.u32 1.1754944e-38, %v2794
  %v2796 = vsel %vm2793, %v2795, %v2791
  %v2797 = vmul.f32 %v2692, %v2796
  %v2798 = vrcp.pop %v2716
  %v2799 = vmul.f32 %v2716, %v2798
  %v2800 = vsub.f32 1.0, %v2799
  %v2801 = vmul.f32 %v2798, %v2800
  %v2802 = vadd.f32 %v2798, %v2801
  %vm2803 = vweird.f32 %v2716
  %vm2804 = vweird.f32 %v2798
  %vm2805 = vmor %vm2803, %vm2804
  %v2806 = vsel %vm2805, %v2798, %v2802
  %v2807 = vand.u32 2147483647, %v2716
  %vm2808 = vcmp.eq.f32.partialorder %v2807, 8.507059e+37
  %v2809 = vand.u32 %v2716, 2147483648
  %v2810 = vor.u32 1.1754944e-38, %v2809
  %v2811 = vsel %vm2808, %v2810, %v2806
  %v2812 = vmul.f32 %v2694, %v2811
  %v2813 = vrcp.pop %v2719
  %v2814 = vmul.f32 %v2719, %v2813
  %v2815 = vsub.f32 1.0, %v2814
  %v2816 = vmul.f32 %v2813, %v2815
  %v2817 = vadd.f32 %v2813, %v2816
  %vm2818 = vweird.f32 %v2719
  %vm2819 = vweird.f32 %v2813
  %vm2820 = vmor %vm2818, %vm2819
  %v2821 = vsel %vm2820, %v2813, %v2817
  %v2822 = vand.u32 2147483647, %v2719
  %vm2823 = vcmp.eq.f32.partialorder %v2822, 8.507059e+37
  %v2824 = vand.u32 %v2719, 2147483648
  %v2825 = vor.u32 1.1754944e-38, %v2824
  %v2826 = vsel %vm2823, %v2825, %v2821
  %v2827 = vmul.f32 %v2696, %v2826
  %v2828 = vrcp.pop %v2722
  %v2829 = vmul.f32 %v2722, %v2828
  %v2830 = vsub.f32 1.0, %v2829
  %v2831 = vmul.f32 %v2828, %v2830
  %v2832 = vadd.f32 %v2828, %v2831
  %vm2833 = vweird.f32 %v2722
  %vm2834 = vweird.f32 %v2828
  %vm2835 = vmor %vm2833, %vm2834
  %v2836 = vsel %vm2835, %v2828, %v2832
  %v2837 = vand.u32 2147483647, %v2722
  %vm2838 = vcmp.eq.f32.partialorder %v2837, 8.507059e+37
  %v2839 = vand.u32 %v2722, 2147483648
  %v2840 = vor.u32 1.1754944e-38, %v2839
  %v2841 = vsel %vm2838, %v2840, %v2836
  %v2842 = vmul.f32 %v2698, %v2841
  %v2843 = vpack.c.bf16 %v2737, %v2737
  %v2844 = vpack.c.bf16 %v2752, %v2752
  %v2845 = vpack.c.bf16 %v2767, %v2767
  %v2846 = vpack.c.bf16 %v2782, %v2782
  %v2847 = vpack.c.bf16 %v2797, %v2797
  %v2848 = vpack.c.bf16 %v2812, %v2812
  %v2849 = vpack.c.bf16 %v2827, %v2827
  %v2850 = vpack.c.bf16 %v2842, %v2842
  %v2851 = vpack.c.bf16 %v2381, %v2381
  %v2852 = vpack.c.bf16 %v2394, %v2394
  %v2853 = vpack.c.bf16 %v2407, %v2407
  %v2854 = vpack.c.bf16 %v2420, %v2420
  %v2855 = vpack.c.bf16 %v2433, %v2433
  %v2856 = vpack.c.bf16 %v2446, %v2446
  %v2857 = vpack.c.bf16 %v2459, %v2459
  %v2858 = vpack.c.bf16 %v2472, %v2472
  %v2860 = vsel %vm1820, %v2843, 0
  %v2863 = vsel %vm141, %v2851, 0
  %2865 = vmatpush.bf16.msra.mxu0 0
  %2866 = vmatpush.bf16.msra.mxu0 0
  %2867 = vmatpush.bf16.msra.mxu0 0
  %2868 = vmatpush.bf16.msra.mxu0 0
  %2869 = vmatpush.bf16.msra.mxu0 0
  %2870 = vmatpush.bf16.msra.mxu0 0
  %2871 = vmatpush.bf16.msra.mxu0 0
  %2872 = vmatpush.bf16.msra.mxu0 %v2863
  %2873 = vmatmul.bf16.gmra.mxu0 %v2860
  %v2874 = vpop.f32.mrf.mxu0
  %v2875 = vadd.f32 0.0, %v2874
  %v2876 = vpop.f32.mrf.mxu0
  %2877 = vdwg.mxu0
  %v2879 = vsel %vm1820, %v2844, 0
  %v2882 = vsel %vm141, %v2852, 0
  %2884 = vmatpush.bf16.msra.mxu0 0
  %2885 = vmatpush.bf16.msra.mxu0 0
  %2886 = vmatpush.bf16.msra.mxu0 0
  %2887 = vmatpush.bf16.msra.mxu0 0
  %2888 = vmatpush.bf16.msra.mxu0 0
  %2889 = vmatpush.bf16.msra.mxu0 0
  %2890 = vmatpush.bf16.msra.mxu0 0
  %2891 = vmatpush.bf16.msra.mxu0 %v2882
  %2892 = vmatmul.bf16.gmra.mxu0 %v2879
  %v2893 = vpop.f32.mrf.mxu0
  %v2894 = vadd.f32 0.0, %v2893
  %v2895 = vpop.f32.mrf.mxu0
  %2896 = vdwg.mxu0
  %v2898 = vsel %vm1820, %v2845, 0
  %v2901 = vsel %vm141, %v2853, 0
  %2903 = vmatpush.bf16.msra.mxu0 0
  %2904 = vmatpush.bf16.msra.mxu0 0
  %2905 = vmatpush.bf16.msra.mxu0 0
  %2906 = vmatpush.bf16.msra.mxu0 0
  %2907 = vmatpush.bf16.msra.mxu0 0
  %2908 = vmatpush.bf16.msra.mxu0 0
  %2909 = vmatpush.bf16.msra.mxu0 0
  %2910 = vmatpush.bf16.msra.mxu0 %v2901
  %2911 = vmatmul.bf16.gmra.mxu0 %v2898
  %v2912 = vpop.f32.mrf.mxu0
  %v2913 = vadd.f32 0.0, %v2912
  %v2914 = vpop.f32.mrf.mxu0
  %2915 = vdwg.mxu0
  %v2917 = vsel %vm1820, %v2846, 0
  %v2920 = vsel %vm141, %v2854, 0
  %2922 = vmatpush.bf16.msra.mxu0 0
  %2923 = vmatpush.bf16.msra.mxu0 0
  %2924 = vmatpush.bf16.msra.mxu0 0
  %2925 = vmatpush.bf16.msra.mxu0 0
  %2926 = vmatpush.bf16.msra.mxu0 0
  %2927 = vmatpush.bf16.msra.mxu0 0
  %2928 = vmatpush.bf16.msra.mxu0 0
  %2929 = vmatpush.bf16.msra.mxu0 %v2920
  %2930 = vmatmul.bf16.gmra.mxu0 %v2917
  %v2931 = vpop.f32.mrf.mxu0
  %v2932 = vadd.f32 0.0, %v2931
  %v2933 = vpop.f32.mrf.mxu0
  %2934 = vdwg.mxu0
  %v2936 = vsel %vm1820, %v2847, 0
  %v2939 = vsel %vm141, %v2855, 0
  %2941 = vmatpush.bf16.msra.mxu0 0
  %2942 = vmatpush.bf16.msra.mxu0 0
  %2943 = vmatpush.bf16.msra.mxu0 0
  %2944 = vmatpush.bf16.msra.mxu0 0
  %2945 = vmatpush.bf16.msra.mxu0 0
  %2946 = vmatpush.bf16.msra.mxu0 0
  %2947 = vmatpush.bf16.msra.mxu0 0
  %2948 = vmatpush.bf16.msra.mxu0 %v2939
  %2949 = vmatmul.bf16.gmra.mxu0 %v2936
  %v2950 = vpop.f32.mrf.mxu0
  %v2951 = vadd.f32 0.0, %v2950
  %v2952 = vpop.f32.mrf.mxu0
  %2953 = vdwg.mxu0
  %v2955 = vsel %vm1820, %v2848, 0
  %v2958 = vsel %vm141, %v2856, 0
  %2960 = vmatpush.bf16.msra.mxu0 0
  %2961 = vmatpush.bf16.msra.mxu0 0
  %2962 = vmatpush.bf16.msra.mxu0 0
  %2963 = vmatpush.bf16.msra.mxu0 0
  %2964 = vmatpush.bf16.msra.mxu0 0
  %2965 = vmatpush.bf16.msra.mxu0 0
  %2966 = vmatpush.bf16.msra.mxu0 0
  %2967 = vmatpush.bf16.msra.mxu0 %v2958
  %2968 = vmatmul.bf16.gmra.mxu0 %v2955
  %v2969 = vpop.f32.mrf.mxu0
  %v2970 = vadd.f32 0.0, %v2969
  %v2971 = vpop.f32.mrf.mxu0
  %2972 = vdwg.mxu0
  %v2974 = vsel %vm1820, %v2849, 0
  %v2977 = vsel %vm141, %v2857, 0
  %2979 = vmatpush.bf16.msra.mxu0 0
  %2980 = vmatpush.bf16.msra.mxu0 0
  %2981 = vmatpush.bf16.msra.mxu0 0
  %2982 = vmatpush.bf16.msra.mxu0 0
  %2983 = vmatpush.bf16.msra.mxu0 0
  %2984 = vmatpush.bf16.msra.mxu0 0
  %2985 = vmatpush.bf16.msra.mxu0 0
  %2986 = vmatpush.bf16.msra.mxu0 %v2977
  %2987 = vmatmul.bf16.gmra.mxu0 %v2974
  %v2988 = vpop.f32.mrf.mxu0
  %v2989 = vadd.f32 0.0, %v2988
  %v2990 = vpop.f32.mrf.mxu0
  %2991 = vdwg.mxu0
  %v2993 = vsel %vm1820, %v2850, 0
  %v2996 = vsel %vm141, %v2858, 0
  %2998 = vmatpush.bf16.msra.mxu0 0
  %2999 = vmatpush.bf16.msra.mxu0 0
  %3000 = vmatpush.bf16.msra.mxu0 0
  %3001 = vmatpush.bf16.msra.mxu0 0
  %3002 = vmatpush.bf16.msra.mxu0 0
  %3003 = vmatpush.bf16.msra.mxu0 0
  %3004 = vmatpush.bf16.msra.mxu0 0
  %3005 = vmatpush.bf16.msra.mxu0 %v2996
  %3006 = vmatmul.bf16.gmra.mxu0 %v2993
  %v3007 = vpop.f32.mrf.mxu0
  %v3008 = vadd.f32 0.0, %v3007
  %v3009 = vpop.f32.mrf.mxu0
  %3010 = vdwg.mxu0
  %v3011 = vpack.c.bf16 %v2875, %v2875
  %v3012 = vpack.c.bf16 %v2894, %v2894
  %v3013 = vpack.c.bf16 %v2913, %v2913
  %v3014 = vpack.c.bf16 %v2932, %v2932
  %v3015 = vpack.c.bf16 %v2951, %v2951
  %v3016 = vpack.c.bf16 %v2970, %v2970
  %v3017 = vpack.c.bf16 %v2989, %v2989
  %v3018 = vpack.c.bf16 %v3008, %v3008
  %v3020 = vsel %vm1450, %v3011, 0
  %3022 = vmatpush.bf16.msra.mxu0 0
  %3023 = vmatpush.bf16.msra.mxu0 0
  %3024 = vmatpush.bf16.msra.mxu0 0
  %3025 = vmatpush.bf16.msra.mxu0 0
  %3026 = vmatpush.bf16.msra.mxu0 0
  %3027 = vmatpush.bf16.msra.mxu0 0
  %3028 = vmatpush.bf16.msra.mxu0 0
  %3029 = vmatpush.bf16.msra.mxu0 %v1985
  %3030 = vmatmul.bf16.gmra.mxu0 %v3020
  %v3031 = vpop.f32.mrf.mxu0
  %v3032 = vadd.f32 0.0, %v3031
  %v3033 = vpop.f32.mrf.mxu0
  %3034 = vdwg.mxu0
  %v3036 = vsel %vm1450, %v3012, 0
  %3038 = vmatpush.bf16.msra.mxu0 0
  %3039 = vmatpush.bf16.msra.mxu0 0
  %3040 = vmatpush.bf16.msra.mxu0 0
  %3041 = vmatpush.bf16.msra.mxu0 0
  %3042 = vmatpush.bf16.msra.mxu0 0
  %3043 = vmatpush.bf16.msra.mxu0 0
  %3044 = vmatpush.bf16.msra.mxu0 0
  %3045 = vmatpush.bf16.msra.mxu0 %v2004
  %3046 = vmatmul.bf16.gmra.mxu0 %v3036
  %v3047 = vpop.f32.mrf.mxu0
  %v3048 = vadd.f32 0.0, %v3047
  %v3049 = vpop.f32.mrf.mxu0
  %3050 = vdwg.mxu0
  %v3052 = vsel %vm1450, %v3013, 0
  %3054 = vmatpush.bf16.msra.mxu0 0
  %3055 = vmatpush.bf16.msra.mxu0 0
  %3056 = vmatpush.bf16.msra.mxu0 0
  %3057 = vmatpush.bf16.msra.mxu0 0
  %3058 = vmatpush.bf16.msra.mxu0 0
  %3059 = vmatpush.bf16.msra.mxu0 0
  %3060 = vmatpush.bf16.msra.mxu0 0
  %3061 = vmatpush.bf16.msra.mxu0 %v2023
  %3062 = vmatmul.bf16.gmra.mxu0 %v3052
  %v3063 = vpop.f32.mrf.mxu0
  %v3064 = vadd.f32 0.0, %v3063
  %v3065 = vpop.f32.mrf.mxu0
  %3066 = vdwg.mxu0
  %v3068 = vsel %vm1450, %v3014, 0
  %3070 = vmatpush.bf16.msra.mxu0 0
  %3071 = vmatpush.bf16.msra.mxu0 0
  %3072 = vmatpush.bf16.msra.mxu0 0
  %3073 = vmatpush.bf16.msra.mxu0 0
  %3074 = vmatpush.bf16.msra.mxu0 0
  %3075 = vmatpush.bf16.msra.mxu0 0
  %3076 = vmatpush.bf16.msra.mxu0 0
  %3077 = vmatpush.bf16.msra.mxu0 %v2042
  %3078 = vmatmul.bf16.gmra.mxu0 %v3068
  %v3079 = vpop.f32.mrf.mxu0
  %v3080 = vadd.f32 0.0, %v3079
  %v3081 = vpop.f32.mrf.mxu0
  %3082 = vdwg.mxu0
  %v3084 = vsel %vm1450, %v3015, 0
  %3086 = vmatpush.bf16.msra.mxu0 0
  %3087 = vmatpush.bf16.msra.mxu0 0
  %3088 = vmatpush.bf16.msra.mxu0 0
  %3089 = vmatpush.bf16.msra.mxu0 0
  %3090 = vmatpush.bf16.msra.mxu0 0
  %3091 = vmatpush.bf16.msra.mxu0 0
  %3092 = vmatpush.bf16.msra.mxu0 0
  %3093 = vmatpush.bf16.msra.mxu0 %v2061
  %3094 = vmatmul.bf16.gmra.mxu0 %v3084
  %v3095 = vpop.f32.mrf.mxu0
  %v3096 = vadd.f32 0.0, %v3095
  %v3097 = vpop.f32.mrf.mxu0
  %3098 = vdwg.mxu0
  %v3100 = vsel %vm1450, %v3016, 0
  %3102 = vmatpush.bf16.msra.mxu0 0
  %3103 = vmatpush.bf16.msra.mxu0 0
  %3104 = vmatpush.bf16.msra.mxu0 0
  %3105 = vmatpush.bf16.msra.mxu0 0
  %3106 = vmatpush.bf16.msra.mxu0 0
  %3107 = vmatpush.bf16.msra.mxu0 0
  %3108 = vmatpush.bf16.msra.mxu0 0
  %3109 = vmatpush.bf16.msra.mxu0 %v2080
  %3110 = vmatmul.bf16.gmra.mxu0 %v3100
  %v3111 = vpop.f32.mrf.mxu0
  %v3112 = vadd.f32 0.0, %v3111
  %v3113 = vpop.f32.mrf.mxu0
  %3114 = vdwg.mxu0
  %v3116 = vsel %vm1450, %v3017, 0
  %3118 = vmatpush.bf16.msra.mxu0 0
  %3119 = vmatpush.bf16.msra.mxu0 0
  %3120 = vmatpush.bf16.msra.mxu0 0
  %3121 = vmatpush.bf16.msra.mxu0 0
  %3122 = vmatpush.bf16.msra.mxu0 0
  %3123 = vmatpush.bf16.msra.mxu0 0
  %3124 = vmatpush.bf16.msra.mxu0 0
  %3125 = vmatpush.bf16.msra.mxu0 %v2099
  %3126 = vmatmul.bf16.gmra.mxu0 %v3116
  %v3127 = vpop.f32.mrf.mxu0
  %v3128 = vadd.f32 0.0, %v3127
  %v3129 = vpop.f32.mrf.mxu0
  %3130 = vdwg.mxu0
  %v3132 = vsel %vm1450, %v3018, 0
  %3134 = vmatpush.bf16.msra.mxu0 0
  %3135 = vmatpush.bf16.msra.mxu0 0
  %3136 = vmatpush.bf16.msra.mxu0 0
  %3137 = vmatpush.bf16.msra.mxu0 0
  %3138 = vmatpush.bf16.msra.mxu0 0
  %3139 = vmatpush.bf16.msra.mxu0 0
  %3140 = vmatpush.bf16.msra.mxu0 0
  %3141 = vmatpush.bf16.msra.mxu0 %v2118
  %3142 = vmatmul.bf16.gmra.mxu0 %v3132
  %v3143 = vpop.f32.mrf.mxu0
  %v3144 = vadd.f32 0.0, %v3143
  %v3145 = vpop.f32.mrf.mxu0
  %3146 = vdwg.mxu0
  %v3147 = vsel %vm2133, %v3032, 0.0
  %v3148 = vsel %vm2133, %v3048, 0.0
  %v3149 = vadd.f32 %v3147, %v3148
  %v3150 = vsel %vm2133, %v3064, 0.0
  %v3151 = vadd.f32 %v3149, %v3150
  %v3152 = vsel %vm2133, %v3080, 0.0
  %v3153 = vadd.f32 %v3151, %v3152
  %v3154 = vsel %vm2133, %v3096, 0.0
  %v3155 = vadd.f32 %v3153, %v3154
  %v3156 = vsel %vm2133, %v3112, 0.0
  %v3157 = vadd.f32 %v3155, %v3156
  %v3158 = vsel %vm2133, %v3128, 0.0
  %v3159 = vadd.f32 %v3157, %v3158
  %v3160 = vsel %vm2133, %v3144, 0.0
  %v3161 = vadd.f32 %v3159, %v3160
  %v3162 = vadd.f32 %v3161, %v2150
  %v3164 = vrot.slane %v3162, 2
  %v3166 = vsel %vm196, %v2152, %v3164
  %v3167 = vadd.f32 %v197, %v3166
  %v3168 = vadd.f32 %v194, %v3164
  %v3169 = vsel %vm518, %v3167, 0.0
  %3170 = vadd.xlane.f32.xlu0 %v3169
  %v3171 = vpop.xlane.xlu0 %3170
  %vm3172 = vcmask 519168
  %v3173 = vsel %vm3172, %v3168, 0.0
  %3174 = vadd.xlane.f32.xlu0 %v3173
  %v3175 = vpop.xlane.xlu0 %3174
  %v3176 = vrcp.pop 64.0
  %v3177 = vmul.f32 64.0, %v3176
  %v3178 = vsub.f32 1.0, %v3177
  %v3179 = vmul.f32 %v3176, %v3178
  %v3180 = vadd.f32 %v3176, %v3179
  %vm3181 = vweird.f32 %v3176
  %v3182 = vsel %vm3181, %v3176, %v3180
  %v3183 = vmul.f32 %v3171, %v3182
  %v3184 = vmul.f32 %v3175, %v3182
  %v3185 = vsub.f32 %v3167, %v3183
  %v3186 = vsub.f32 %v3168, %v3184
  %v3187 = vmul.f32 %v3185, %v3185
  %v3188 = vmul.f32 %v3186, %v3186
  %v3189 = vsel %vm518, %v3187, 0.0
  %3190 = vadd.xlane.f32.xlu0 %v3189
  %v3191 = vpop.xlane.xlu0 %3190
  %v3192 = vsel %vm3172, %v3188, 0.0
  %3193 = vadd.xlane.f32.xlu0 %v3192
  %v3194 = vpop.xlane.xlu0 %3193
  %v3195 = vmul.f32 %v3191, %v3182
  %v3196 = vmul.f32 %v3194, %v3182
  %v3197 = vadd.f32 %v3195, 1e-05
  %v3198 = vadd.f32 %v3196, 1e-05
  %v3199 = vrsqrt.pop %v3197
  %v3200 = vmul.f32 %v3199, %v3197
  %v3201 = vmul.f32 %v3200, %v3199
  %v3202 = vmul.f32 0.5, %v3201
  %v3203 = vsub.f32 1.5, %v3202
  %v3204 = vmul.f32 %v3199, %v3203
  %vm3205 = vweird.f32 %v3197
  %vm3206 = vweird.f32 %v3199
  %vm3207 = vmor %vm3205, %vm3206
  %v3208 = vsel %vm3207, %v3199, %v3204
  %v3209 = vrsqrt.pop %v3198
  %v3210 = vmul.f32 %v3209, %v3198
  %v3211 = vmul.f32 %v3210, %v3209
  %v3212 = vmul.f32 0.5, %v3211
  %v3213 = vsub.f32 1.5, %v3212
  %v3214 = vmul.f32 %v3209, %v3213
  %vm3215 = vweird.f32 %v3198
  %vm3216 = vweird.f32 %v3209
  %vm3217 = vmor %vm3215, %vm3216
  %v3218 = vsel %vm3217, %v3209, %v3214
  %v3219 = vmul.f32 %v3185, %v3208
  %v3220 = vmul.f32 %v3186, %v3218
  %v3222 = vperm.slane %v423, 0
  %v3224 = vmul.f32 %v3219, %v3222
  %v3225 = vmul.f32 %v3220, %v3222
  %v3227 = vperm.slane %v424, 0
  %v3229 = vadd.f32 %v3224, %v3227
  %v3230 = vadd.f32 %v3225, %v3227
  %v3231 = vpack.c.bf16 %v3230, %v3229
  %v3233 = vperm.slane %v433, 0
  %v3234 = vperm.slane %v433, 1
  %v3245 = vunpack.c.l.b16 %v425
  %v3246 = vunpack.c.h.b16 %v425
  %v3247 = vunpack.c.l.b16 %v426
  %v3248 = vunpack.c.h.b16 %v426
  %v3249 = vunpack.c.l.b16 %v427
  %v3250 = vunpack.c.h.b16 %v427
  %v3251 = vunpack.c.l.b16 %v428
  %v3252 = vunpack.c.h.b16 %v428
  %v3253 = vunpack.c.l.b16 %v429
  %v3254 = vunpack.c.h.b16 %v429
  %v3255 = vunpack.c.l.b16 %v430
  %v3256 = vunpack.c.h.b16 %v430
  %v3257 = vunpack.c.l.b16 %v431
  %v3258 = vunpack.c.h.b16 %v431
  %v3259 = vunpack.c.l.b16 %v432
  %v3260 = vunpack.c.h.b16 %v432
  %v3261 = vpack.c.b16 %v3247, %v3245
  %v3262 = vpack.c.b16 %v3248, %v3246
  %v3263 = vpack.c.b16 %v3251, %v3249
  %v3264 = vpack.c.b16 %v3252, %v3250
  %v3265 = vpack.c.b16 %v3255, %v3253
  %v3266 = vpack.c.b16 %v3256, %v3254
  %v3267 = vpack.c.b16 %v3259, %v3257
  %v3268 = vpack.c.b16 %v3260, %v3258
  %v3278 = vsel %vm518, %v3231, 0
  %3280 = vmatpush.bf16.msra.mxu0 0
  %3281 = vmatpush.bf16.msra.mxu0 0
  %3282 = vmatpush.bf16.msra.mxu0 0
  %3283 = vmatpush.bf16.msra.mxu0 0
  %3284 = vmatpush.bf16.msra.mxu0 %v3267
  %3285 = vmatpush.bf16.msra.mxu0 %v3265
  %3286 = vmatpush.bf16.msra.mxu0 %v3263
  %3287 = vmatpush.bf16.msra.mxu0 %v3261
  %3288 = vmatmul.bf16.gmra.mxu0 %v3278
  %v3289 = vpop.f32.mrf.mxu0
  %v3290 = vadd.f32 %v3233, %v3289
  %v3291 = vpop.f32.mrf.mxu0
  %v3292 = vadd.f32 %v3233, %v3291
  %3293 = vdwg.mxu0
  %3294 = vmatpush.bf16.msra.mxu0 0
  %3295 = vmatpush.bf16.msra.mxu0 0
  %3296 = vmatpush.bf16.msra.mxu0 0
  %3297 = vmatpush.bf16.msra.mxu0 0
  %3298 = vmatpush.bf16.msra.mxu0 %v3268
  %3299 = vmatpush.bf16.msra.mxu0 %v3266
  %3300 = vmatpush.bf16.msra.mxu0 %v3264
  %3301 = vmatpush.bf16.msra.mxu0 %v3262
  %3302 = vmatmul.bf16.gmra.mxu0 %v3278
  %v3303 = vpop.f32.mrf.mxu0
  %v3304 = vadd.f32 %v3234, %v3303
  %v3305 = vpop.f32.mrf.mxu0
  %v3306 = vadd.f32 %v3234, %v3305
  %3307 = vdwg.mxu0
  %v3308 = vmax.f32 %v3290, 0.0
  %v3309 = vmax.f32 %v3304, 0.0
  %v3310 = vmax.f32 %v3292, 0.0
  %v3311 = vmax.f32 %v3306, 0.0
  %v3312 = vpack.c.bf16 %v3310, %v3308
  %v3313 = vpack.c.bf16 %v3311, %v3309
  %v3315 = vperm.slane %v466, 0
  %v3349 = vunpack.c.l.b16 %v434
  %v3350 = vunpack.c.l.b16 %v435
  %v3351 = vunpack.c.l.b16 %v436
  %v3352 = vunpack.c.l.b16 %v437
  %v3353 = vunpack.c.l.b16 %v438
  %v3354 = vunpack.c.l.b16 %v439
  %v3355 = vunpack.c.l.b16 %v440
  %v3356 = vunpack.c.l.b16 %v441
  %v3357 = vunpack.c.l.b16 %v442
  %v3358 = vunpack.c.l.b16 %v443
  %v3359 = vunpack.c.l.b16 %v444
  %v3360 = vunpack.c.l.b16 %v445
  %v3361 = vunpack.c.l.b16 %v446
  %v3362 = vunpack.c.l.b16 %v447
  %v3363 = vunpack.c.l.b16 %v448
  %v3364 = vunpack.c.l.b16 %v449
  %v3365 = vunpack.c.l.b16 %v450
  %v3366 = vunpack.c.l.b16 %v451
  %v3367 = vunpack.c.l.b16 %v452
  %v3368 = vunpack.c.l.b16 %v453
  %v3369 = vunpack.c.l.b16 %v454
  %v3370 = vunpack.c.l.b16 %v455
  %v3371 = vunpack.c.l.b16 %v456
  %v3372 = vunpack.c.l.b16 %v457
  %v3373 = vunpack.c.l.b16 %v458
  %v3374 = vunpack.c.l.b16 %v459
  %v3375 = vunpack.c.l.b16 %v460
  %v3376 = vunpack.c.l.b16 %v461
  %v3377 = vunpack.c.l.b16 %v462
  %v3378 = vunpack.c.l.b16 %v463
  %v3379 = vunpack.c.l.b16 %v464
  %v3380 = vunpack.c.l.b16 %v465
  %v3381 = vpack.c.b16 %v3350, %v3349
  %v3382 = vpack.c.b16 %v3352, %v3351
  %v3383 = vpack.c.b16 %v3354, %v3353
  %v3384 = vpack.c.b16 %v3356, %v3355
  %v3385 = vpack.c.b16 %v3358, %v3357
  %v3386 = vpack.c.b16 %v3360, %v3359
  %v3387 = vpack.c.b16 %v3362, %v3361
  %v3388 = vpack.c.b16 %v3364, %v3363
  %v3389 = vpack.c.b16 %v3366, %v3365
  %v3390 = vpack.c.b16 %v3368, %v3367
  %v3391 = vpack.c.b16 %v3370, %v3369
  %v3392 = vpack.c.b16 %v3372, %v3371
  %v3393 = vpack.c.b16 %v3374, %v3373
  %v3394 = vpack.c.b16 %v3376, %v3375
  %v3395 = vpack.c.b16 %v3378, %v3377
  %v3396 = vpack.c.b16 %v3380, %v3379
  %3413 = vmatpush.bf16.msra.mxu0 %v3388
  %3414 = vmatpush.bf16.msra.mxu0 %v3387
  %3415 = vmatpush.bf16.msra.mxu0 %v3386
  %3416 = vmatpush.bf16.msra.mxu0 %v3385
  %3417 = vmatpush.bf16.msra.mxu0 %v3384
  %3418 = vmatpush.bf16.msra.mxu0 %v3383
  %3419 = vmatpush.bf16.msra.mxu0 %v3382
  %3420 = vmatpush.bf16.msra.mxu0 %v3381
  %3421 = vmatmul.bf16.gmra.mxu0 %v3312
  %v3422 = vpop.f32.mrf.mxu0
  %v3423 = vadd.f32 %v3315, %v3422
  %v3424 = vpop.f32.mrf.mxu0
  %v3425 = vadd.f32 %v3315, %v3424
  %3426 = vdwg.mxu0
  %3427 = vmatpush.bf16.msra.mxu0 %v3396
  %3428 = vmatpush.bf16.msra.mxu0 %v3395
  %3429 = vmatpush.bf16.msra.mxu0 %v3394
  %3430 = vmatpush.bf16.msra.mxu0 %v3393
  %3431 = vmatpush.bf16.msra.mxu0 %v3392
  %3432 = vmatpush.bf16.msra.mxu0 %v3391
  %3433 = vmatpush.bf16.msra.mxu0 %v3390
  %3434 = vmatpush.bf16.msra.mxu0 %v3389
  %3435 = vmatmul.bf16.gmra.mxu0 %v3313
  %v3436 = vpop.f32.mrf.mxu0
  %v3437 = vadd.f32 %v3423, %v3436
  %v3438 = vpop.f32.mrf.mxu0
  %v3439 = vadd.f32 %v3425, %v3438
  %3440 = vdwg.mxu0
  %v3441 = vadd.f32 %v3229, %v3437
  %v3442 = vadd.f32 %v3230, %v3439
  %v3443 = vsel %vm518, %v3441, 0.0
  %3444 = vadd.xlane.f32.xlu0 %v3443
  %v3445 = vpop.xlane.xlu0 %3444
  %v3446 = vsel %vm3172, %v3442, 0.0
  %3447 = vadd.xlane.f32.xlu0 %v3446
  %v3448 = vpop.xlane.xlu0 %3447
  %v3449 = vmul.f32 %v3445, %v3182
  %v3450 = vmul.f32 %v3448, %v3182
  %v3451 = vsub.f32 %v3441, %v3449
  %v3452 = vsub.f32 %v3442, %v3450
  %v3453 = vmul.f32 %v3451, %v3451
  %v3454 = vmul.f32 %v3452, %v3452
  %v3455 = vsel %vm518, %v3453, 0.0
  %3456 = vadd.xlane.f32.xlu0 %v3455
  %v3457 = vpop.xlane.xlu0 %3456
  %v3458 = vsel %vm3172, %v3454, 0.0
  %3459 = vadd.xlane.f32.xlu0 %v3458
  %v3460 = vpop.xlane.xlu0 %3459
  %v3461 = vmul.f32 %v3457, %v3182
  %v3462 = vmul.f32 %v3460, %v3182
  %v3463 = vadd.f32 %v3461, 1e-05
  %v3464 = vadd.f32 %v3462, 1e-05
  %v3465 = vrsqrt.pop %v3463
  %v3466 = vmul.f32 %v3465, %v3463
  %v3467 = vmul.f32 %v3466, %v3465
  %v3468 = vmul.f32 0.5, %v3467
  %v3469 = vsub.f32 1.5, %v3468
  %v3470 = vmul.f32 %v3465, %v3469
  %vm3471 = vweird.f32 %v3463
  %vm3472 = vweird.f32 %v3465
  %vm3473 = vmor %vm3471, %vm3472
  %v3474 = vsel %vm3473, %v3465, %v3470
  %v3475 = vrsqrt.pop %v3464
  %v3476 = vmul.f32 %v3475, %v3464
  %v3477 = vmul.f32 %v3476, %v3475
  %v3478 = vmul.f32 0.5, %v3477
  %v3479 = vsub.f32 1.5, %v3478
  %v3480 = vmul.f32 %v3475, %v3479
  %vm3481 = vweird.f32 %v3464
  %vm3482 = vweird.f32 %v3475
  %vm3483 = vmor %vm3481, %vm3482
  %v3484 = vsel %vm3483, %v3475, %v3480
  %v3485 = vmul.f32 %v3451, %v3474
  %v3486 = vmul.f32 %v3452, %v3484
  %v3488 = vperm.slane %v467, 0
  %v3490 = vmul.f32 %v3485, %v3488
  %v3491 = vmul.f32 %v3486, %v3488
  %v3493 = vperm.slane %v468, 0
  %v3495 = vadd.f32 %v3490, %v3493
  %v3496 = vadd.f32 %v3491, %v3493
  %s3497 = scalar_lea.vmem %s7, 256
  %v3498 = vld [vmem:[%s3497] sm:$0xf]
  %v3499 = vld [vmem:[%s3497 + $0x4] sm:$0xf]
  %v3500 = vld [vmem:[%s3497 + $0x8] sm:$0xf]
  %v3501 = vld [vmem:[%s3497 + $0xc] sm:$0xf]
  %v3502 = vld [vmem:[%s3497 + $0x10] sm:$0xf]
  %v3503 = vld [vmem:[%s3497 + $0x14] sm:$0xf]
  %v3504 = vld [vmem:[%s3497 + $0x18] sm:$0xf]
  %v3505 = vld [vmem:[%s3497 + $0x1c] sm:$0xf]
  %v3506 = vld [vmem:[%s3497 + $0x20] sm:$0xf]
  %v3507 = vld [vmem:[%s3497 + $0x24] sm:$0xf]
  %v3508 = vld [vmem:[%s3497 + $0x28] sm:$0xf]
  %v3509 = vld [vmem:[%s3497 + $0x2c] sm:$0xf]
  %v3510 = vld [vmem:[%s3497 + $0x30] sm:$0xf]
  %v3511 = vld [vmem:[%s3497 + $0x34] sm:$0xf]
  %v3512 = vld [vmem:[%s3497 + $0x38] sm:$0xf]
  %v3513 = vld [vmem:[%s3497 + $0x3c] sm:$0xf]
  %v3514 = vld [vmem:[%s3497 + $0x40] sm:$0xf]
  %v3515 = vld [vmem:[%s3497 + $0x44] sm:$0xf]
  %v3516 = vld [vmem:[%s3497 + $0x48] sm:$0xf]
  %v3517 = vld [vmem:[%s3497 + $0x4c] sm:$0xf]
  %v3518 = vld [vmem:[%s3497 + $0x50] sm:$0xf]
  %v3519 = vld [vmem:[%s3497 + $0x54] sm:$0xf]
  %v3520 = vld [vmem:[%s3497 + $0x58] sm:$0xf]
  %v3521 = vld [vmem:[%s3497 + $0x5c] sm:$0xf]
  %v3522 = vld [vmem:[%s3497 + $0x60] sm:$0xf]
  %v3523 = vld [vmem:[%s3497 + $0x64] sm:$0xf]
  %v3524 = vld [vmem:[%s3497 + $0x68] sm:$0xf]
  %v3525 = vld [vmem:[%s3497 + $0x6c] sm:$0xf]
  %v3526 = vld [vmem:[%s3497 + $0x70] sm:$0xf]
  %v3527 = vld [vmem:[%s3497 + $0x74] sm:$0xf]
  %v3528 = vld [vmem:[%s3497 + $0x78] sm:$0xf]
  %v3529 = vld [vmem:[%s3497 + $0x7c] sm:$0xf]
  %v3530 = vld [vmem:[%s3497 + $0x80] sm:$0xf]
  %v3531 = vld [vmem:[%s3497 + $0x84] sm:$0xf]
  %v3532 = vld [vmem:[%s3497 + $0x88] sm:$0xf]
  %v3533 = vld [vmem:[%s3497 + $0x8c] sm:$0xf]
  %v3534 = vld [vmem:[%s3497 + $0x90] sm:$0xf]
  %v3535 = vld [vmem:[%s3497 + $0x94] sm:$0xf]
  %v3536 = vld [vmem:[%s3497 + $0x98] sm:$0xf]
  %v3537 = vld [vmem:[%s3497 + $0x9c] sm:$0xf]
  %v3538 = vld [vmem:[%s3497 + $0xa0] sm:$0xf]
  %v3539 = vld [vmem:[%s3497 + $0xa4] sm:$0xf]
  %v3540 = vld [vmem:[%s3497 + $0xa8] sm:$0xf]
  %v3541 = vld [vmem:[%s3497 + $0xac] sm:$0xf]
  %v3542 = vld [vmem:[%s3497 + $0xb0] sm:$0xf]
  %v3543 = vld [vmem:[%s3497 + $0xb4] sm:$0xf]
  %v3544 = vld [vmem:[%s3497 + $0xb8] sm:$0xf]
  %v3545 = vld [vmem:[%s3497 + $0xbc] sm:$0xf]
  %v3546 = vld [vmem:[%s3497 + $0xc0] sm:$0xf]
  %v3547 = vld [vmem:[%s3497 + $0xc4] sm:$0xf]
  %v3548 = vld [vmem:[%s3497 + $0xc8] sm:$0xf]
  %v3549 = vld [vmem:[%s3497 + $0xcc] sm:$0xf]
  %v3550 = vld [vmem:[%s3497 + $0xd0] sm:$0xf]
  %v3551 = vld [vmem:[%s3497 + $0xd4] sm:$0xf]
  %v3552 = vld [vmem:[%s3497 + $0xd8] sm:$0xf]
  %v3553 = vld [vmem:[%s3497 + $0xdc] sm:$0xf]
  %v3554 = vld [vmem:[%s3497 + $0xe0] sm:$0xf]
  %v3555 = vld [vmem:[%s3497 + $0xe4] sm:$0xf]
  %v3556 = vld [vmem:[%s3497 + $0xe8] sm:$0xf]
  %v3557 = vld [vmem:[%s3497 + $0xec] sm:$0xf]
  %v3558 = vld [vmem:[%s3497 + $0xf0] sm:$0xf]
  %v3559 = vld [vmem:[%s3497 + $0xf4] sm:$0xf]
  %v3560 = vld [vmem:[%s3497 + $0xf8] sm:$0xf]
  %v3561 = vld [vmem:[%s3497 + $0xfc] sm:$0xf]
  %s3562 = scalar_lea.vmem %s9, 256
  %v3563 = vld [vmem:[%s3562] sm:$0xf]
  %v3564 = vld [vmem:[%s3562 + $0x4] sm:$0xf]
  %v3565 = vld [vmem:[%s3562 + $0x8] sm:$0xf]
  %v3566 = vld [vmem:[%s3562 + $0xc] sm:$0xf]
  %v3567 = vld [vmem:[%s3562 + $0x10] sm:$0xf]
  %v3568 = vld [vmem:[%s3562 + $0x14] sm:$0xf]
  %v3569 = vld [vmem:[%s3562 + $0x18] sm:$0xf]
  %v3570 = vld [vmem:[%s3562 + $0x1c] sm:$0xf]
  %v3571 = vld [vmem:[%s3562 + $0x20] sm:$0xf]
  %v3572 = vld [vmem:[%s3562 + $0x24] sm:$0xf]
  %v3573 = vld [vmem:[%s3562 + $0x28] sm:$0xf]
  %v3574 = vld [vmem:[%s3562 + $0x2c] sm:$0xf]
  %v3575 = vld [vmem:[%s3562 + $0x30] sm:$0xf]
  %v3576 = vld [vmem:[%s3562 + $0x34] sm:$0xf]
  %v3577 = vld [vmem:[%s3562 + $0x38] sm:$0xf]
  %v3578 = vld [vmem:[%s3562 + $0x3c] sm:$0xf]
  %v3579 = vld [vmem:[%s3562 + $0x40] sm:$0xf]
  %v3580 = vld [vmem:[%s3562 + $0x44] sm:$0xf]
  %v3581 = vld [vmem:[%s3562 + $0x48] sm:$0xf]
  %v3582 = vld [vmem:[%s3562 + $0x4c] sm:$0xf]
  %v3583 = vld [vmem:[%s3562 + $0x50] sm:$0xf]
  %v3584 = vld [vmem:[%s3562 + $0x54] sm:$0xf]
  %v3585 = vld [vmem:[%s3562 + $0x58] sm:$0xf]
  %v3586 = vld [vmem:[%s3562 + $0x5c] sm:$0xf]
  %v3587 = vld [vmem:[%s3562 + $0x60] sm:$0xf]
  %v3588 = vld [vmem:[%s3562 + $0x64] sm:$0xf]
  %v3589 = vld [vmem:[%s3562 + $0x68] sm:$0xf]
  %v3590 = vld [vmem:[%s3562 + $0x6c] sm:$0xf]
  %v3591 = vld [vmem:[%s3562 + $0x70] sm:$0xf]
  %v3592 = vld [vmem:[%s3562 + $0x74] sm:$0xf]
  %v3593 = vld [vmem:[%s3562 + $0x78] sm:$0xf]
  %v3594 = vld [vmem:[%s3562 + $0x7c] sm:$0xf]
  %v3595 = vld [vmem:[%s3562 + $0x80] sm:$0xf]
  %v3596 = vld [vmem:[%s3562 + $0x84] sm:$0xf]
  %v3597 = vld [vmem:[%s3562 + $0x88] sm:$0xf]
  %v3598 = vld [vmem:[%s3562 + $0x8c] sm:$0xf]
  %v3599 = vld [vmem:[%s3562 + $0x90] sm:$0xf]
  %v3600 = vld [vmem:[%s3562 + $0x94] sm:$0xf]
  %v3601 = vld [vmem:[%s3562 + $0x98] sm:$0xf]
  %v3602 = vld [vmem:[%s3562 + $0x9c] sm:$0xf]
  %v3603 = vld [vmem:[%s3562 + $0xa0] sm:$0xf]
  %v3604 = vld [vmem:[%s3562 + $0xa4] sm:$0xf]
  %v3605 = vld [vmem:[%s3562 + $0xa8] sm:$0xf]
  %v3606 = vld [vmem:[%s3562 + $0xac] sm:$0xf]
  %v3607 = vld [vmem:[%s3562 + $0xb0] sm:$0xf]
  %v3608 = vld [vmem:[%s3562 + $0xb4] sm:$0xf]
  %v3609 = vld [vmem:[%s3562 + $0xb8] sm:$0xf]
  %v3610 = vld [vmem:[%s3562 + $0xbc] sm:$0xf]
  %v3611 = vld [vmem:[%s3562 + $0xc0] sm:$0xf]
  %v3612 = vld [vmem:[%s3562 + $0xc4] sm:$0xf]
  %v3613 = vld [vmem:[%s3562 + $0xc8] sm:$0xf]
  %v3614 = vld [vmem:[%s3562 + $0xcc] sm:$0xf]
  %v3615 = vld [vmem:[%s3562 + $0xd0] sm:$0xf]
  %v3616 = vld [vmem:[%s3562 + $0xd4] sm:$0xf]
  %v3617 = vld [vmem:[%s3562 + $0xd8] sm:$0xf]
  %v3618 = vld [vmem:[%s3562 + $0xdc] sm:$0xf]
  %v3619 = vld [vmem:[%s3562 + $0xe0] sm:$0xf]
  %v3620 = vld [vmem:[%s3562 + $0xe4] sm:$0xf]
  %v3621 = vld [vmem:[%s3562 + $0xe8] sm:$0xf]
  %v3622 = vld [vmem:[%s3562 + $0xec] sm:$0xf]
  %v3623 = vld [vmem:[%s3562 + $0xf0] sm:$0xf]
  %v3624 = vld [vmem:[%s3562 + $0xf4] sm:$0xf]
  %v3625 = vld [vmem:[%s3562 + $0xf8] sm:$0xf]
  %v3626 = vld [vmem:[%s3562 + $0xfc] sm:$0xf]
  %s3627 = scalar_lea.vmem %s11, 256
  %v3628 = vld [vmem:[%s3627] sm:$0xf]
  %v3629 = vld [vmem:[%s3627 + $0x4] sm:$0xf]
  %v3630 = vld [vmem:[%s3627 + $0x8] sm:$0xf]
  %v3631 = vld [vmem:[%s3627 + $0xc] sm:$0xf]
  %v3632 = vld [vmem:[%s3627 + $0x10] sm:$0xf]
  %v3633 = vld [vmem:[%s3627 + $0x14] sm:$0xf]
  %v3634 = vld [vmem:[%s3627 + $0x18] sm:$0xf]
  %v3635 = vld [vmem:[%s3627 + $0x1c] sm:$0xf]
  %v3636 = vld [vmem:[%s3627 + $0x20] sm:$0xf]
  %v3637 = vld [vmem:[%s3627 + $0x24] sm:$0xf]
  %v3638 = vld [vmem:[%s3627 + $0x28] sm:$0xf]
  %v3639 = vld [vmem:[%s3627 + $0x2c] sm:$0xf]
  %v3640 = vld [vmem:[%s3627 + $0x30] sm:$0xf]
  %v3641 = vld [vmem:[%s3627 + $0x34] sm:$0xf]
  %v3642 = vld [vmem:[%s3627 + $0x38] sm:$0xf]
  %v3643 = vld [vmem:[%s3627 + $0x3c] sm:$0xf]
  %v3644 = vld [vmem:[%s3627 + $0x40] sm:$0xf]
  %v3645 = vld [vmem:[%s3627 + $0x44] sm:$0xf]
  %v3646 = vld [vmem:[%s3627 + $0x48] sm:$0xf]
  %v3647 = vld [vmem:[%s3627 + $0x4c] sm:$0xf]
  %v3648 = vld [vmem:[%s3627 + $0x50] sm:$0xf]
  %v3649 = vld [vmem:[%s3627 + $0x54] sm:$0xf]
  %v3650 = vld [vmem:[%s3627 + $0x58] sm:$0xf]
  %v3651 = vld [vmem:[%s3627 + $0x5c] sm:$0xf]
  %v3652 = vld [vmem:[%s3627 + $0x60] sm:$0xf]
  %v3653 = vld [vmem:[%s3627 + $0x64] sm:$0xf]
  %v3654 = vld [vmem:[%s3627 + $0x68] sm:$0xf]
  %v3655 = vld [vmem:[%s3627 + $0x6c] sm:$0xf]
  %v3656 = vld [vmem:[%s3627 + $0x70] sm:$0xf]
  %v3657 = vld [vmem:[%s3627 + $0x74] sm:$0xf]
  %v3658 = vld [vmem:[%s3627 + $0x78] sm:$0xf]
  %v3659 = vld [vmem:[%s3627 + $0x7c] sm:$0xf]
  %v3660 = vld [vmem:[%s3627 + $0x80] sm:$0xf]
  %v3661 = vld [vmem:[%s3627 + $0x84] sm:$0xf]
  %v3662 = vld [vmem:[%s3627 + $0x88] sm:$0xf]
  %v3663 = vld [vmem:[%s3627 + $0x8c] sm:$0xf]
  %v3664 = vld [vmem:[%s3627 + $0x90] sm:$0xf]
  %v3665 = vld [vmem:[%s3627 + $0x94] sm:$0xf]
  %v3666 = vld [vmem:[%s3627 + $0x98] sm:$0xf]
  %v3667 = vld [vmem:[%s3627 + $0x9c] sm:$0xf]
  %v3668 = vld [vmem:[%s3627 + $0xa0] sm:$0xf]
  %v3669 = vld [vmem:[%s3627 + $0xa4] sm:$0xf]
  %v3670 = vld [vmem:[%s3627 + $0xa8] sm:$0xf]
  %v3671 = vld [vmem:[%s3627 + $0xac] sm:$0xf]
  %v3672 = vld [vmem:[%s3627 + $0xb0] sm:$0xf]
  %v3673 = vld [vmem:[%s3627 + $0xb4] sm:$0xf]
  %v3674 = vld [vmem:[%s3627 + $0xb8] sm:$0xf]
  %v3675 = vld [vmem:[%s3627 + $0xbc] sm:$0xf]
  %v3676 = vld [vmem:[%s3627 + $0xc0] sm:$0xf]
  %v3677 = vld [vmem:[%s3627 + $0xc4] sm:$0xf]
  %v3678 = vld [vmem:[%s3627 + $0xc8] sm:$0xf]
  %v3679 = vld [vmem:[%s3627 + $0xcc] sm:$0xf]
  %v3680 = vld [vmem:[%s3627 + $0xd0] sm:$0xf]
  %v3681 = vld [vmem:[%s3627 + $0xd4] sm:$0xf]
  %v3682 = vld [vmem:[%s3627 + $0xd8] sm:$0xf]
  %v3683 = vld [vmem:[%s3627 + $0xdc] sm:$0xf]
  %v3684 = vld [vmem:[%s3627 + $0xe0] sm:$0xf]
  %v3685 = vld [vmem:[%s3627 + $0xe4] sm:$0xf]
  %v3686 = vld [vmem:[%s3627 + $0xe8] sm:$0xf]
  %v3687 = vld [vmem:[%s3627 + $0xec] sm:$0xf]
  %v3688 = vld [vmem:[%s3627 + $0xf0] sm:$0xf]
  %v3689 = vld [vmem:[%s3627 + $0xf4] sm:$0xf]
  %v3690 = vld [vmem:[%s3627 + $0xf8] sm:$0xf]
  %v3691 = vld [vmem:[%s3627 + $0xfc] sm:$0xf]
  %s3692 = scalar_lea.vmem %s8, 8
  %v3693 = vld [vmem:[%s3692] sm:$0x1]
  %v3694 = vld [vmem:[%s3692 + $0x1] sm:$0x1]
  %v3695 = vld [vmem:[%s3692 + $0x2] sm:$0x1]
  %v3696 = vld [vmem:[%s3692 + $0x3] sm:$0x1]
  %v3697 = vld [vmem:[%s3692 + $0x4] sm:$0x1]
  %v3698 = vld [vmem:[%s3692 + $0x5] sm:$0x1]
  %v3699 = vld [vmem:[%s3692 + $0x6] sm:$0x1]
  %v3700 = vld [vmem:[%s3692 + $0x7] sm:$0x1]
  %s3701 = scalar_lea.vmem %s10, 8
  %v3702 = vld [vmem:[%s3701] sm:$0x1]
  %v3703 = vld [vmem:[%s3701 + $0x1] sm:$0x1]
  %v3704 = vld [vmem:[%s3701 + $0x2] sm:$0x1]
  %v3705 = vld [vmem:[%s3701 + $0x3] sm:$0x1]
  %v3706 = vld [vmem:[%s3701 + $0x4] sm:$0x1]
  %v3707 = vld [vmem:[%s3701 + $0x5] sm:$0x1]
  %v3708 = vld [vmem:[%s3701 + $0x6] sm:$0x1]
  %v3709 = vld [vmem:[%s3701 + $0x7] sm:$0x1]
  %s3710 = scalar_lea.vmem %s12, 8
  %v3711 = vld [vmem:[%s3710] sm:$0x1]
  %v3712 = vld [vmem:[%s3710 + $0x1] sm:$0x1]
  %v3713 = vld [vmem:[%s3710 + $0x2] sm:$0x1]
  %v3714 = vld [vmem:[%s3710 + $0x3] sm:$0x1]
  %v3715 = vld [vmem:[%s3710 + $0x4] sm:$0x1]
  %v3716 = vld [vmem:[%s3710 + $0x5] sm:$0x1]
  %v3717 = vld [vmem:[%s3710 + $0x6] sm:$0x1]
  %v3718 = vld [vmem:[%s3710 + $0x7] sm:$0x1]
  %s3719 = scalar_lea.vmem %s13, 32
  %v3720 = vld [vmem:[%s3719] sm:$0xf]
  %v3721 = vld [vmem:[%s3719 + $0x4] sm:$0xf]
  %v3722 = vld [vmem:[%s3719 + $0x8] sm:$0xf]
  %v3723 = vld [vmem:[%s3719 + $0xc] sm:$0xf]
  %v3724 = vld [vmem:[%s3719 + $0x10] sm:$0xf]
  %v3725 = vld [vmem:[%s3719 + $0x14] sm:$0xf]
  %v3726 = vld [vmem:[%s3719 + $0x18] sm:$0xf]
  %v3727 = vld [vmem:[%s3719 + $0x1c] sm:$0xf]
  %s3728 = scalar_lea.vmem %s14, 1
  %v3729 = vld [vmem:[%s3728] sm:$0x1]
  %s3730 = scalar_lea.vmem %s15, 1
  %v3731 = vld [vmem:[%s3730] sm:$0x1]
  %s3732 = scalar_lea.vmem %s16, 1
  %v3733 = vld [vmem:[%s3732] sm:$0x1]
  %s3734 = scalar_lea.vmem %s17, 64
  %v3735 = vld [vmem:[%s3734] sm:$0xff]
  %v3736 = vld [vmem:[%s3734 + $0x8] sm:$0xff]
  %v3737 = vld [vmem:[%s3734 + $0x10] sm:$0xff]
  %v3738 = vld [vmem:[%s3734 + $0x18] sm:$0xff]
  %v3739 = vld [vmem:[%s3734 + $0x20] sm:$0xff]
  %v3740 = vld [vmem:[%s3734 + $0x28] sm:$0xff]
  %v3741 = vld [vmem:[%s3734 + $0x30] sm:$0xff]
  %v3742 = vld [vmem:[%s3734 + $0x38] sm:$0xff]
  %s3743 = scalar_lea.vmem %s18, 2
  %v3744 = vld [vmem:[%s3743] sm:$0x3]
  %s3745 = scalar_lea.vmem %s19, 128
  %v3746 = vld [vmem:[%s3745] sm:$0xf]
  %v3747 = vld [vmem:[%s3745 + $0x4] sm:$0xf]
  %v3748 = vld [vmem:[%s3745 + $0x8] sm:$0xf]
  %v3749 = vld [vmem:[%s3745 + $0xc] sm:$0xf]
  %v3750 = vld [vmem:[%s3745 + $0x10] sm:$0xf]
  %v3751 = vld [vmem:[%s3745 + $0x14] sm:$0xf]
  %v3752 = vld [vmem:[%s3745 + $0x18] sm:$0xf]
  %v3753 = vld [vmem:[%s3745 + $0x1c] sm:$0xf]
  %v3754 = vld [vmem:[%s3745 + $0x20] sm:$0xf]
  %v3755 = vld [vmem:[%s3745 + $0x24] sm:$0xf]
  %v3756 = vld [vmem:[%s3745 + $0x28] sm:$0xf]
  %v3757 = vld [vmem:[%s3745 + $0x2c] sm:$0xf]
  %v3758 = vld [vmem:[%s3745 + $0x30] sm:$0xf]
  %v3759 = vld [vmem:[%s3745 + $0x34] sm:$0xf]
  %v3760 = vld [vmem:[%s3745 + $0x38] sm:$0xf]
  %v3761 = vld [vmem:[%s3745 + $0x3c] sm:$0xf]
  %v3762 = vld [vmem:[%s3745 + $0x40] sm:$0xf]
  %v3763 = vld [vmem:[%s3745 + $0x44] sm:$0xf]
  %v3764 = vld [vmem:[%s3745 + $0x48] sm:$0xf]
  %v3765 = vld [vmem:[%s3745 + $0x4c] sm:$0xf]
  %v3766 = vld [vmem:[%s3745 + $0x50] sm:$0xf]
  %v3767 = vld [vmem:[%s3745 + $0x54] sm:$0xf]
  %v3768 = vld [vmem:[%s3745 + $0x58] sm:$0xf]
  %v3769 = vld [vmem:[%s3745 + $0x5c] sm:$0xf]
  %v3770 = vld [vmem:[%s3745 + $0x60] sm:$0xf]
  %v3771 = vld [vmem:[%s3745 + $0x64] sm:$0xf]
  %v3772 = vld [vmem:[%s3745 + $0x68] sm:$0xf]
  %v3773 = vld [vmem:[%s3745 + $0x6c] sm:$0xf]
  %v3774 = vld [vmem:[%s3745 + $0x70] sm:$0xf]
  %v3775 = vld [vmem:[%s3745 + $0x74] sm:$0xf]
  %v3776 = vld [vmem:[%s3745 + $0x78] sm:$0xf]
  %v3777 = vld [vmem:[%s3745 + $0x7c] sm:$0xf]
  %s3778 = scalar_lea.vmem %s20, 1
  %v3779 = vld [vmem:[%s3778] sm:$0x1]
  %s3780 = scalar_lea.vmem %s21, 1
  %v3781 = vld [vmem:[%s3780] sm:$0x1]
  %s3782 = scalar_lea.vmem %s22, 1
  %v3783 = vld [vmem:[%s3782] sm:$0x1]
  %v3784 = vpack.c.bf16 %v3495, %v3495
  %v3793 = vperm.slane %v3693, 0
  %v3794 = vperm.slane %v3694, 0
  %v3795 = vperm.slane %v3695, 0
  %v3796 = vperm.slane %v3696, 0
  %v3797 = vperm.slane %v3697, 0
  %v3798 = vperm.slane %v3698, 0
  %v3799 = vperm.slane %v3699, 0
  %v3800 = vperm.slane %v3700, 0
  %v3817 = vunpack.c.l.b16 %v3498
  %v3818 = vunpack.c.l.b16 %v3499
  %v3819 = vunpack.c.l.b16 %v3500
  %v3820 = vunpack.c.l.b16 %v3501
  %v3821 = vunpack.c.l.b16 %v3502
  %v3822 = vunpack.c.l.b16 %v3503
  %v3823 = vunpack.c.l.b16 %v3504
  %v3824 = vunpack.c.l.b16 %v3505
  %v3825 = vpack.c.b16 %v3818, %v3817
  %v3826 = vpack.c.b16 %v3820, %v3819
  %v3827 = vpack.c.b16 %v3822, %v3821
  %v3828 = vpack.c.b16 %v3824, %v3823
  %v3834 = vsel %vm518, %v3784, 0
  %3836 = vmatpush.bf16.msra.mxu0 0
  %3837 = vmatpush.bf16.msra.mxu0 0
  %3838 = vmatpush.bf16.msra.mxu0 0
  %3839 = vmatpush.bf16.msra.mxu0 0
  %3840 = vmatpush.bf16.msra.mxu0 %v3828
  %3841 = vmatpush.bf16.msra.mxu0 %v3827
  %3842 = vmatpush.bf16.msra.mxu0 %v3826
  %3843 = vmatpush.bf16.msra.mxu0 %v3825
  %3844 = vmatmul.bf16.gmra.mxu0 %v3834
  %v3845 = vpop.f32.mrf.mxu0
  %v3846 = vadd.f32 %v3793, %v3845
  %v3847 = vpop.f32.mrf.mxu0
  %3848 = vdwg.mxu0
  %v3857 = vunpack.c.l.b16 %v3506
  %v3858 = vunpack.c.l.b16 %v3507
  %v3859 = vunpack.c.l.b16 %v3508
  %v3860 = vunpack.c.l.b16 %v3509
  %v3861 = vunpack.c.l.b16 %v3510
  %v3862 = vunpack.c.l.b16 %v3511
  %v3863 = vunpack.c.l.b16 %v3512
  %v3864 = vunpack.c.l.b16 %v3513
  %v3865 = vpack.c.b16 %v3858, %v3857
  %v3866 = vpack.c.b16 %v3860, %v3859
  %v3867 = vpack.c.b16 %v3862, %v3861
  %v3868 = vpack.c.b16 %v3864, %v3863
  %3873 = vmatpush.bf16.msra.mxu0 0
  %3874 = vmatpush.bf16.msra.mxu0 0
  %3875 = vmatpush.bf16.msra.mxu0 0
  %3876 = vmatpush.bf16.msra.mxu0 0
  %3877 = vmatpush.bf16.msra.mxu0 %v3868
  %3878 = vmatpush.bf16.msra.mxu0 %v3867
  %3879 = vmatpush.bf16.msra.mxu0 %v3866
  %3880 = vmatpush.bf16.msra.mxu0 %v3865
  %3881 = vmatmul.bf16.gmra.mxu0 %v3834
  %v3882 = vpop.f32.mrf.mxu0
  %v3883 = vadd.f32 %v3794, %v3882
  %v3884 = vpop.f32.mrf.mxu0
  %3885 = vdwg.mxu0
  %v3894 = vunpack.c.l.b16 %v3514
  %v3895 = vunpack.c.l.b16 %v3515
  %v3896 = vunpack.c.l.b16 %v3516
  %v3897 = vunpack.c.l.b16 %v3517
  %v3898 = vunpack.c.l.b16 %v3518
  %v3899 = vunpack.c.l.b16 %v3519
  %v3900 = vunpack.c.l.b16 %v3520
  %v3901 = vunpack.c.l.b16 %v3521
  %v3902 = vpack.c.b16 %v3895, %v3894
  %v3903 = vpack.c.b16 %v3897, %v3896
  %v3904 = vpack.c.b16 %v3899, %v3898
  %v3905 = vpack.c.b16 %v3901, %v3900
  %3910 = vmatpush.bf16.msra.mxu0 0
  %3911 = vmatpush.bf16.msra.mxu0 0
  %3912 = vmatpush.bf16.msra.mxu0 0
  %3913 = vmatpush.bf16.msra.mxu0 0
  %3914 = vmatpush.bf16.msra.mxu0 %v3905
  %3915 = vmatpush.bf16.msra.mxu0 %v3904
  %3916 = vmatpush.bf16.msra.mxu0 %v3903
  %3917 = vmatpush.bf16.msra.mxu0 %v3902
  %3918 = vmatmul.bf16.gmra.mxu0 %v3834
  %v3919 = vpop.f32.mrf.mxu0
  %v3920 = vadd.f32 %v3795, %v3919
  %v3921 = vpop.f32.mrf.mxu0
  %3922 = vdwg.mxu0
  %v3931 = vunpack.c.l.b16 %v3522
  %v3932 = vunpack.c.l.b16 %v3523
  %v3933 = vunpack.c.l.b16 %v3524
  %v3934 = vunpack.c.l.b16 %v3525
  %v3935 = vunpack.c.l.b16 %v3526
  %v3936 = vunpack.c.l.b16 %v3527
  %v3937 = vunpack.c.l.b16 %v3528
  %v3938 = vunpack.c.l.b16 %v3529
  %v3939 = vpack.c.b16 %v3932, %v3931
  %v3940 = vpack.c.b16 %v3934, %v3933
  %v3941 = vpack.c.b16 %v3936, %v3935
  %v3942 = vpack.c.b16 %v3938, %v3937
  %3947 = vmatpush.bf16.msra.mxu0 0
  %3948 = vmatpush.bf16.msra.mxu0 0
  %3949 = vmatpush.bf16.msra.mxu0 0
  %3950 = vmatpush.bf16.msra.mxu0 0
  %3951 = vmatpush.bf16.msra.mxu0 %v3942
  %3952 = vmatpush.bf16.msra.mxu0 %v3941
  %3953 = vmatpush.bf16.msra.mxu0 %v3940
  %3954 = vmatpush.bf16.msra.mxu0 %v3939
  %3955 = vmatmul.bf16.gmra.mxu0 %v3834
  %v3956 = vpop.f32.mrf.mxu0
  %v3957 = vadd.f32 %v3796, %v3956
  %v3958 = vpop.f32.mrf.mxu0
  %3959 = vdwg.mxu0
  %v3968 = vunpack.c.l.b16 %v3530
  %v3969 = vunpack.c.l.b16 %v3531
  %v3970 = vunpack.c.l.b16 %v3532
  %v3971 = vunpack.c.l.b16 %v3533
  %v3972 = vunpack.c.l.b16 %v3534
  %v3973 = vunpack.c.l.b16 %v3535
  %v3974 = vunpack.c.l.b16 %v3536
  %v3975 = vunpack.c.l.b16 %v3537
  %v3976 = vpack.c.b16 %v3969, %v3968
  %v3977 = vpack.c.b16 %v3971, %v3970
  %v3978 = vpack.c.b16 %v3973, %v3972
  %v3979 = vpack.c.b16 %v3975, %v3974
  %3984 = vmatpush.bf16.msra.mxu0 0
  %3985 = vmatpush.bf16.msra.mxu0 0
  %3986 = vmatpush.bf16.msra.mxu0 0
  %3987 = vmatpush.bf16.msra.mxu0 0
  %3988 = vmatpush.bf16.msra.mxu0 %v3979
  %3989 = vmatpush.bf16.msra.mxu0 %v3978
  %3990 = vmatpush.bf16.msra.mxu0 %v3977
  %3991 = vmatpush.bf16.msra.mxu0 %v3976
  %3992 = vmatmul.bf16.gmra.mxu0 %v3834
  %v3993 = vpop.f32.mrf.mxu0
  %v3994 = vadd.f32 %v3797, %v3993
  %v3995 = vpop.f32.mrf.mxu0
  %3996 = vdwg.mxu0
  %v4005 = vunpack.c.l.b16 %v3538
  %v4006 = vunpack.c.l.b16 %v3539
  %v4007 = vunpack.c.l.b16 %v3540
  %v4008 = vunpack.c.l.b16 %v3541
  %v4009 = vunpack.c.l.b16 %v3542
  %v4010 = vunpack.c.l.b16 %v3543
  %v4011 = vunpack.c.l.b16 %v3544
  %v4012 = vunpack.c.l.b16 %v3545
  %v4013 = vpack.c.b16 %v4006, %v4005
  %v4014 = vpack.c.b16 %v4008, %v4007
  %v4015 = vpack.c.b16 %v4010, %v4009
  %v4016 = vpack.c.b16 %v4012, %v4011
  %4021 = vmatpush.bf16.msra.mxu0 0
  %4022 = vmatpush.bf16.msra.mxu0 0
  %4023 = vmatpush.bf16.msra.mxu0 0
  %4024 = vmatpush.bf16.msra.mxu0 0
  %4025 = vmatpush.bf16.msra.mxu0 %v4016
  %4026 = vmatpush.bf16.msra.mxu0 %v4015
  %4027 = vmatpush.bf16.msra.mxu0 %v4014
  %4028 = vmatpush.bf16.msra.mxu0 %v4013
  %4029 = vmatmul.bf16.gmra.mxu0 %v3834
  %v4030 = vpop.f32.mrf.mxu0
  %v4031 = vadd.f32 %v3798, %v4030
  %v4032 = vpop.f32.mrf.mxu0
  %4033 = vdwg.mxu0
  %v4042 = vunpack.c.l.b16 %v3546
  %v4043 = vunpack.c.l.b16 %v3547
  %v4044 = vunpack.c.l.b16 %v3548
  %v4045 = vunpack.c.l.b16 %v3549
  %v4046 = vunpack.c.l.b16 %v3550
  %v4047 = vunpack.c.l.b16 %v3551
  %v4048 = vunpack.c.l.b16 %v3552
  %v4049 = vunpack.c.l.b16 %v3553
  %v4050 = vpack.c.b16 %v4043, %v4042
  %v4051 = vpack.c.b16 %v4045, %v4044
  %v4052 = vpack.c.b16 %v4047, %v4046
  %v4053 = vpack.c.b16 %v4049, %v4048
  %4058 = vmatpush.bf16.msra.mxu0 0
  %4059 = vmatpush.bf16.msra.mxu0 0
  %4060 = vmatpush.bf16.msra.mxu0 0
  %4061 = vmatpush.bf16.msra.mxu0 0
  %4062 = vmatpush.bf16.msra.mxu0 %v4053
  %4063 = vmatpush.bf16.msra.mxu0 %v4052
  %4064 = vmatpush.bf16.msra.mxu0 %v4051
  %4065 = vmatpush.bf16.msra.mxu0 %v4050
  %4066 = vmatmul.bf16.gmra.mxu0 %v3834
  %v4067 = vpop.f32.mrf.mxu0
  %v4068 = vadd.f32 %v3799, %v4067
  %v4069 = vpop.f32.mrf.mxu0
  %4070 = vdwg.mxu0
  %v4079 = vunpack.c.l.b16 %v3554
  %v4080 = vunpack.c.l.b16 %v3555
  %v4081 = vunpack.c.l.b16 %v3556
  %v4082 = vunpack.c.l.b16 %v3557
  %v4083 = vunpack.c.l.b16 %v3558
  %v4084 = vunpack.c.l.b16 %v3559
  %v4085 = vunpack.c.l.b16 %v3560
  %v4086 = vunpack.c.l.b16 %v3561
  %v4087 = vpack.c.b16 %v4080, %v4079
  %v4088 = vpack.c.b16 %v4082, %v4081
  %v4089 = vpack.c.b16 %v4084, %v4083
  %v4090 = vpack.c.b16 %v4086, %v4085
  %4095 = vmatpush.bf16.msra.mxu0 0
  %4096 = vmatpush.bf16.msra.mxu0 0
  %4097 = vmatpush.bf16.msra.mxu0 0
  %4098 = vmatpush.bf16.msra.mxu0 0
  %4099 = vmatpush.bf16.msra.mxu0 %v4090
  %4100 = vmatpush.bf16.msra.mxu0 %v4089
  %4101 = vmatpush.bf16.msra.mxu0 %v4088
  %4102 = vmatpush.bf16.msra.mxu0 %v4087
  %4103 = vmatmul.bf16.gmra.mxu0 %v3834
  %v4104 = vpop.f32.mrf.mxu0
  %v4105 = vadd.f32 %v3800, %v4104
  %v4106 = vpop.f32.mrf.mxu0
  %4107 = vdwg.mxu0
  %v4116 = vperm.slane %v3702, 0
  %v4117 = vperm.slane %v3703, 0
  %v4118 = vperm.slane %v3704, 0
  %v4119 = vperm.slane %v3705, 0
  %v4120 = vperm.slane %v3706, 0
  %v4121 = vperm.slane %v3707, 0
  %v4122 = vperm.slane %v3708, 0
  %v4123 = vperm.slane %v3709, 0
  %v4140 = vunpack.c.l.b16 %v3563
  %v4141 = vunpack.c.l.b16 %v3564
  %v4142 = vunpack.c.l.b16 %v3565
  %v4143 = vunpack.c.l.b16 %v3566
  %v4144 = vunpack.c.l.b16 %v3567
  %v4145 = vunpack.c.l.b16 %v3568
  %v4146 = vunpack.c.l.b16 %v3569
  %v4147 = vunpack.c.l.b16 %v3570
  %v4148 = vpack.c.b16 %v4141, %v4140
  %v4149 = vpack.c.b16 %v4143, %v4142
  %v4150 = vpack.c.b16 %v4145, %v4144
  %v4151 = vpack.c.b16 %v4147, %v4146
  %4156 = vmatpush.bf16.msra.mxu0 0
  %4157 = vmatpush.bf16.msra.mxu0 0
  %4158 = vmatpush.bf16.msra.mxu0 0
  %4159 = vmatpush.bf16.msra.mxu0 0
  %4160 = vmatpush.bf16.msra.mxu0 %v4151
  %4161 = vmatpush.bf16.msra.mxu0 %v4150
  %4162 = vmatpush.bf16.msra.mxu0 %v4149
  %4163 = vmatpush.bf16.msra.mxu0 %v4148
  %4164 = vmatmul.bf16.gmra.mxu0 %v3834
  %v4165 = vpop.f32.mrf.mxu0
  %v4166 = vadd.f32 %v4116, %v4165
  %v4167 = vpop.f32.mrf.mxu0
  %4168 = vdwg.mxu0
  %v4177 = vunpack.c.l.b16 %v3571
  %v4178 = vunpack.c.l.b16 %v3572
  %v4179 = vunpack.c.l.b16 %v3573
  %v4180 = vunpack.c.l.b16 %v3574
  %v4181 = vunpack.c.l.b16 %v3575
  %v4182 = vunpack.c.l.b16 %v3576
  %v4183 = vunpack.c.l.b16 %v3577
  %v4184 = vunpack.c.l.b16 %v3578
  %v4185 = vpack.c.b16 %v4178, %v4177
  %v4186 = vpack.c.b16 %v4180, %v4179
  %v4187 = vpack.c.b16 %v4182, %v4181
  %v4188 = vpack.c.b16 %v4184, %v4183
  %4193 = vmatpush.bf16.msra.mxu0 0
  %4194 = vmatpush.bf16.msra.mxu0 0
  %4195 = vmatpush.bf16.msra.mxu0 0
  %4196 = vmatpush.bf16.msra.mxu0 0
  %4197 = vmatpush.bf16.msra.mxu0 %v4188
  %4198 = vmatpush.bf16.msra.mxu0 %v4187
  %4199 = vmatpush.bf16.msra.mxu0 %v4186
  %4200 = vmatpush.bf16.msra.mxu0 %v4185
  %4201 = vmatmul.bf16.gmra.mxu0 %v3834
  %v4202 = vpop.f32.mrf.mxu0
  %v4203 = vadd.f32 %v4117, %v4202
  %v4204 = vpop.f32.mrf.mxu0
  %4205 = vdwg.mxu0
  %v4214 = vunpack.c.l.b16 %v3579
  %v4215 = vunpack.c.l.b16 %v3580
  %v4216 = vunpack.c.l.b16 %v3581
  %v4217 = vunpack.c.l.b16 %v3582
  %v4218 = vunpack.c.l.b16 %v3583
  %v4219 = vunpack.c.l.b16 %v3584
  %v4220 = vunpack.c.l.b16 %v3585
  %v4221 = vunpack.c.l.b16 %v3586
  %v4222 = vpack.c.b16 %v4215, %v4214
  %v4223 = vpack.c.b16 %v4217, %v4216
  %v4224 = vpack.c.b16 %v4219, %v4218
  %v4225 = vpack.c.b16 %v4221, %v4220
  %4230 = vmatpush.bf16.msra.mxu0 0
  %4231 = vmatpush.bf16.msra.mxu0 0
  %4232 = vmatpush.bf16.msra.mxu0 0
  %4233 = vmatpush.bf16.msra.mxu0 0
  %4234 = vmatpush.bf16.msra.mxu0 %v4225
  %4235 = vmatpush.bf16.msra.mxu0 %v4224
  %4236 = vmatpush.bf16.msra.mxu0 %v4223
  %4237 = vmatpush.bf16.msra.mxu0 %v4222
  %4238 = vmatmul.bf16.gmra.mxu0 %v3834
  %v4239 = vpop.f32.mrf.mxu0
  %v4240 = vadd.f32 %v4118, %v4239
  %v4241 = vpop.f32.mrf.mxu0
  %4242 = vdwg.mxu0
  %v4251 = vunpack.c.l.b16 %v3587
  %v4252 = vunpack.c.l.b16 %v3588
  %v4253 = vunpack.c.l.b16 %v3589
  %v4254 = vunpack.c.l.b16 %v3590
  %v4255 = vunpack.c.l.b16 %v3591
  %v4256 = vunpack.c.l.b16 %v3592
  %v4257 = vunpack.c.l.b16 %v3593
  %v4258 = vunpack.c.l.b16 %v3594
  %v4259 = vpack.c.b16 %v4252, %v4251
  %v4260 = vpack.c.b16 %v4254, %v4253
  %v4261 = vpack.c.b16 %v4256, %v4255
  %v4262 = vpack.c.b16 %v4258, %v4257
  %4267 = vmatpush.bf16.msra.mxu0 0
  %4268 = vmatpush.bf16.msra.mxu0 0
  %4269 = vmatpush.bf16.msra.mxu0 0
  %4270 = vmatpush.bf16.msra.mxu0 0
  %4271 = vmatpush.bf16.msra.mxu0 %v4262
  %4272 = vmatpush.bf16.msra.mxu0 %v4261
  %4273 = vmatpush.bf16.msra.mxu0 %v4260
  %4274 = vmatpush.bf16.msra.mxu0 %v4259
  %4275 = vmatmul.bf16.gmra.mxu0 %v3834
  %v4276 = vpop.f32.mrf.mxu0
  %v4277 = vadd.f32 %v4119, %v4276
  %v4278 = vpop.f32.mrf.mxu0
  %4279 = vdwg.mxu0
  %v4288 = vunpack.c.l.b16 %v3595
  %v4289 = vunpack.c.l.b16 %v3596
  %v4290 = vunpack.c.l.b16 %v3597
  %v4291 = vunpack.c.l.b16 %v3598
  %v4292 = vunpack.c.l.b16 %v3599
  %v4293 = vunpack.c.l.b16 %v3600
  %v4294 = vunpack.c.l.b16 %v3601
  %v4295 = vunpack.c.l.b16 %v3602
  %v4296 = vpack.c.b16 %v4289, %v4288
  %v4297 = vpack.c.b16 %v4291, %v4290
  %v4298 = vpack.c.b16 %v4293, %v4292
  %v4299 = vpack.c.b16 %v4295, %v4294
  %4304 = vmatpush.bf16.msra.mxu0 0
  %4305 = vmatpush.bf16.msra.mxu0 0
  %4306 = vmatpush.bf16.msra.mxu0 0
  %4307 = vmatpush.bf16.msra.mxu0 0
  %4308 = vmatpush.bf16.msra.mxu0 %v4299
  %4309 = vmatpush.bf16.msra.mxu0 %v4298
  %4310 = vmatpush.bf16.msra.mxu0 %v4297
  %4311 = vmatpush.bf16.msra.mxu0 %v4296
  %4312 = vmatmul.bf16.gmra.mxu0 %v3834
  %v4313 = vpop.f32.mrf.mxu0
  %v4314 = vadd.f32 %v4120, %v4313
  %v4315 = vpop.f32.mrf.mxu0
  %4316 = vdwg.mxu0
  %v4325 = vunpack.c.l.b16 %v3603
  %v4326 = vunpack.c.l.b16 %v3604
  %v4327 = vunpack.c.l.b16 %v3605
  %v4328 = vunpack.c.l.b16 %v3606
  %v4329 = vunpack.c.l.b16 %v3607
  %v4330 = vunpack.c.l.b16 %v3608
  %v4331 = vunpack.c.l.b16 %v3609
  %v4332 = vunpack.c.l.b16 %v3610
  %v4333 = vpack.c.b16 %v4326, %v4325
  %v4334 = vpack.c.b16 %v4328, %v4327
  %v4335 = vpack.c.b16 %v4330, %v4329
  %v4336 = vpack.c.b16 %v4332, %v4331
  %4341 = vmatpush.bf16.msra.mxu0 0
  %4342 = vmatpush.bf16.msra.mxu0 0
  %4343 = vmatpush.bf16.msra.mxu0 0
  %4344 = vmatpush.bf16.msra.mxu0 0
  %4345 = vmatpush.bf16.msra.mxu0 %v4336
  %4346 = vmatpush.bf16.msra.mxu0 %v4335
  %4347 = vmatpush.bf16.msra.mxu0 %v4334
  %4348 = vmatpush.bf16.msra.mxu0 %v4333
  %4349 = vmatmul.bf16.gmra.mxu0 %v3834
  %v4350 = vpop.f32.mrf.mxu0
  %v4351 = vadd.f32 %v4121, %v4350
  %v4352 = vpop.f32.mrf.mxu0
  %4353 = vdwg.mxu0
  %v4362 = vunpack.c.l.b16 %v3611
  %v4363 = vunpack.c.l.b16 %v3612
  %v4364 = vunpack.c.l.b16 %v3613
  %v4365 = vunpack.c.l.b16 %v3614
  %v4366 = vunpack.c.l.b16 %v3615
  %v4367 = vunpack.c.l.b16 %v3616
  %v4368 = vunpack.c.l.b16 %v3617
  %v4369 = vunpack.c.l.b16 %v3618
  %v4370 = vpack.c.b16 %v4363, %v4362
  %v4371 = vpack.c.b16 %v4365, %v4364
  %v4372 = vpack.c.b16 %v4367, %v4366
  %v4373 = vpack.c.b16 %v4369, %v4368
  %4378 = vmatpush.bf16.msra.mxu0 0
  %4379 = vmatpush.bf16.msra.mxu0 0
  %4380 = vmatpush.bf16.msra.mxu0 0
  %4381 = vmatpush.bf16.msra.mxu0 0
  %4382 = vmatpush.bf16.msra.mxu0 %v4373
  %4383 = vmatpush.bf16.msra.mxu0 %v4372
  %4384 = vmatpush.bf16.msra.mxu0 %v4371
  %4385 = vmatpush.bf16.msra.mxu0 %v4370
  %4386 = vmatmul.bf16.gmra.mxu0 %v3834
  %v4387 = vpop.f32.mrf.mxu0
  %v4388 = vadd.f32 %v4122, %v4387
  %v4389 = vpop.f32.mrf.mxu0
  %4390 = vdwg.mxu0
  %v4399 = vunpack.c.l.b16 %v3619
  %v4400 = vunpack.c.l.b16 %v3620
  %v4401 = vunpack.c.l.b16 %v3621
  %v4402 = vunpack.c.l.b16 %v3622
  %v4403 = vunpack.c.l.b16 %v3623
  %v4404 = vunpack.c.l.b16 %v3624
  %v4405 = vunpack.c.l.b16 %v3625
  %v4406 = vunpack.c.l.b16 %v3626
  %v4407 = vpack.c.b16 %v4400, %v4399
  %v4408 = vpack.c.b16 %v4402, %v4401
  %v4409 = vpack.c.b16 %v4404, %v4403
  %v4410 = vpack.c.b16 %v4406, %v4405
  %4415 = vmatpush.bf16.msra.mxu0 0
  %4416 = vmatpush.bf16.msra.mxu0 0
  %4417 = vmatpush.bf16.msra.mxu0 0
  %4418 = vmatpush.bf16.msra.mxu0 0
  %4419 = vmatpush.bf16.msra.mxu0 %v4410
  %4420 = vmatpush.bf16.msra.mxu0 %v4409
  %4421 = vmatpush.bf16.msra.mxu0 %v4408
  %4422 = vmatpush.bf16.msra.mxu0 %v4407
  %4423 = vmatmul.bf16.gmra.mxu0 %v3834
  %v4424 = vpop.f32.mrf.mxu0
  %v4425 = vadd.f32 %v4123, %v4424
  %v4426 = vpop.f32.mrf.mxu0
  %4427 = vdwg.mxu0
  %v4436 = vperm.slane %v3711, 0
  %v4437 = vperm.slane %v3712, 0
  %v4438 = vperm.slane %v3713, 0
  %v4439 = vperm.slane %v3714, 0
  %v4440 = vperm.slane %v3715, 0
  %v4441 = vperm.slane %v3716, 0
  %v4442 = vperm.slane %v3717, 0
  %v4443 = vperm.slane %v3718, 0
  %v4460 = vunpack.c.l.b16 %v3628
  %v4461 = vunpack.c.l.b16 %v3629
  %v4462 = vunpack.c.l.b16 %v3630
  %v4463 = vunpack.c.l.b16 %v3631
  %v4464 = vunpack.c.l.b16 %v3632
  %v4465 = vunpack.c.l.b16 %v3633
  %v4466 = vunpack.c.l.b16 %v3634
  %v4467 = vunpack.c.l.b16 %v3635
  %v4468 = vpack.c.b16 %v4461, %v4460
  %v4469 = vpack.c.b16 %v4463, %v4462
  %v4470 = vpack.c.b16 %v4465, %v4464
  %v4471 = vpack.c.b16 %v4467, %v4466
  %4476 = vmatpush.bf16.msra.mxu0 0
  %4477 = vmatpush.bf16.msra.mxu0 0
  %4478 = vmatpush.bf16.msra.mxu0 0
  %4479 = vmatpush.bf16.msra.mxu0 0
  %4480 = vmatpush.bf16.msra.mxu0 %v4471
  %4481 = vmatpush.bf16.msra.mxu0 %v4470
  %4482 = vmatpush.bf16.msra.mxu0 %v4469
  %4483 = vmatpush.bf16.msra.mxu0 %v4468
  %4484 = vmatmul.bf16.gmra.mxu0 %v3834
  %v4485 = vpop.f32.mrf.mxu0
  %v4486 = vadd.f32 %v4436, %v4485
  %v4487 = vpop.f32.mrf.mxu0
  %4488 = vdwg.mxu0
  %v4497 = vunpack.c.l.b16 %v3636
  %v4498 = vunpack.c.l.b16 %v3637
  %v4499 = vunpack.c.l.b16 %v3638
  %v4500 = vunpack.c.l.b16 %v3639
  %v4501 = vunpack.c.l.b16 %v3640
  %v4502 = vunpack.c.l.b16 %v3641
  %v4503 = vunpack.c.l.b16 %v3642
  %v4504 = vunpack.c.l.b16 %v3643
  %v4505 = vpack.c.b16 %v4498, %v4497
  %v4506 = vpack.c.b16 %v4500, %v4499
  %v4507 = vpack.c.b16 %v4502, %v4501
  %v4508 = vpack.c.b16 %v4504, %v4503
  %4513 = vmatpush.bf16.msra.mxu0 0
  %4514 = vmatpush.bf16.msra.mxu0 0
  %4515 = vmatpush.bf16.msra.mxu0 0
  %4516 = vmatpush.bf16.msra.mxu0 0
  %4517 = vmatpush.bf16.msra.mxu0 %v4508
  %4518 = vmatpush.bf16.msra.mxu0 %v4507
  %4519 = vmatpush.bf16.msra.mxu0 %v4506
  %4520 = vmatpush.bf16.msra.mxu0 %v4505
  %4521 = vmatmul.bf16.gmra.mxu0 %v3834
  %v4522 = vpop.f32.mrf.mxu0
  %v4523 = vadd.f32 %v4437, %v4522
  %v4524 = vpop.f32.mrf.mxu0
  %4525 = vdwg.mxu0
  %v4534 = vunpack.c.l.b16 %v3644
  %v4535 = vunpack.c.l.b16 %v3645
  %v4536 = vunpack.c.l.b16 %v3646
  %v4537 = vunpack.c.l.b16 %v3647
  %v4538 = vunpack.c.l.b16 %v3648
  %v4539 = vunpack.c.l.b16 %v3649
  %v4540 = vunpack.c.l.b16 %v3650
  %v4541 = vunpack.c.l.b16 %v3651
  %v4542 = vpack.c.b16 %v4535, %v4534
  %v4543 = vpack.c.b16 %v4537, %v4536
  %v4544 = vpack.c.b16 %v4539, %v4538
  %v4545 = vpack.c.b16 %v4541, %v4540
  %4550 = vmatpush.bf16.msra.mxu0 0
  %4551 = vmatpush.bf16.msra.mxu0 0
  %4552 = vmatpush.bf16.msra.mxu0 0
  %4553 = vmatpush.bf16.msra.mxu0 0
  %4554 = vmatpush.bf16.msra.mxu0 %v4545
  %4555 = vmatpush.bf16.msra.mxu0 %v4544
  %4556 = vmatpush.bf16.msra.mxu0 %v4543
  %4557 = vmatpush.bf16.msra.mxu0 %v4542
  %4558 = vmatmul.bf16.gmra.mxu0 %v3834
  %v4559 = vpop.f32.mrf.mxu0
  %v4560 = vadd.f32 %v4438, %v4559
  %v4561 = vpop.f32.mrf.mxu0
  %4562 = vdwg.mxu0
  %v4571 = vunpack.c.l.b16 %v3652
  %v4572 = vunpack.c.l.b16 %v3653
  %v4573 = vunpack.c.l.b16 %v3654
  %v4574 = vunpack.c.l.b16 %v3655
  %v4575 = vunpack.c.l.b16 %v3656
  %v4576 = vunpack.c.l.b16 %v3657
  %v4577 = vunpack.c.l.b16 %v3658
  %v4578 = vunpack.c.l.b16 %v3659
  %v4579 = vpack.c.b16 %v4572, %v4571
  %v4580 = vpack.c.b16 %v4574, %v4573
  %v4581 = vpack.c.b16 %v4576, %v4575
  %v4582 = vpack.c.b16 %v4578, %v4577
  %4587 = vmatpush.bf16.msra.mxu0 0
  %4588 = vmatpush.bf16.msra.mxu0 0
  %4589 = vmatpush.bf16.msra.mxu0 0
  %4590 = vmatpush.bf16.msra.mxu0 0
  %4591 = vmatpush.bf16.msra.mxu0 %v4582
  %4592 = vmatpush.bf16.msra.mxu0 %v4581
  %4593 = vmatpush.bf16.msra.mxu0 %v4580
  %4594 = vmatpush.bf16.msra.mxu0 %v4579
  %4595 = vmatmul.bf16.gmra.mxu0 %v3834
  %v4596 = vpop.f32.mrf.mxu0
  %v4597 = vadd.f32 %v4439, %v4596
  %v4598 = vpop.f32.mrf.mxu0
  %4599 = vdwg.mxu0
  %v4608 = vunpack.c.l.b16 %v3660
  %v4609 = vunpack.c.l.b16 %v3661
  %v4610 = vunpack.c.l.b16 %v3662
  %v4611 = vunpack.c.l.b16 %v3663
  %v4612 = vunpack.c.l.b16 %v3664
  %v4613 = vunpack.c.l.b16 %v3665
  %v4614 = vunpack.c.l.b16 %v3666
  %v4615 = vunpack.c.l.b16 %v3667
  %v4616 = vpack.c.b16 %v4609, %v4608
  %v4617 = vpack.c.b16 %v4611, %v4610
  %v4618 = vpack.c.b16 %v4613, %v4612
  %v4619 = vpack.c.b16 %v4615, %v4614
  %4624 = vmatpush.bf16.msra.mxu0 0
  %4625 = vmatpush.bf16.msra.mxu0 0
  %4626 = vmatpush.bf16.msra.mxu0 0
  %4627 = vmatpush.bf16.msra.mxu0 0
  %4628 = vmatpush.bf16.msra.mxu0 %v4619
  %4629 = vmatpush.bf16.msra.mxu0 %v4618
  %4630 = vmatpush.bf16.msra.mxu0 %v4617
  %4631 = vmatpush.bf16.msra.mxu0 %v4616
  %4632 = vmatmul.bf16.gmra.mxu0 %v3834
  %v4633 = vpop.f32.mrf.mxu0
  %v4634 = vadd.f32 %v4440, %v4633
  %v4635 = vpop.f32.mrf.mxu0
  %4636 = vdwg.mxu0
  %v4645 = vunpack.c.l.b16 %v3668
  %v4646 = vunpack.c.l.b16 %v3669
  %v4647 = vunpack.c.l.b16 %v3670
  %v4648 = vunpack.c.l.b16 %v3671
  %v4649 = vunpack.c.l.b16 %v3672
  %v4650 = vunpack.c.l.b16 %v3673
  %v4651 = vunpack.c.l.b16 %v3674
  %v4652 = vunpack.c.l.b16 %v3675
  %v4653 = vpack.c.b16 %v4646, %v4645
  %v4654 = vpack.c.b16 %v4648, %v4647
  %v4655 = vpack.c.b16 %v4650, %v4649
  %v4656 = vpack.c.b16 %v4652, %v4651
  %4661 = vmatpush.bf16.msra.mxu0 0
  %4662 = vmatpush.bf16.msra.mxu0 0
  %4663 = vmatpush.bf16.msra.mxu0 0
  %4664 = vmatpush.bf16.msra.mxu0 0
  %4665 = vmatpush.bf16.msra.mxu0 %v4656
  %4666 = vmatpush.bf16.msra.mxu0 %v4655
  %4667 = vmatpush.bf16.msra.mxu0 %v4654
  %4668 = vmatpush.bf16.msra.mxu0 %v4653
  %4669 = vmatmul.bf16.gmra.mxu0 %v3834
  %v4670 = vpop.f32.mrf.mxu0
  %v4671 = vadd.f32 %v4441, %v4670
  %v4672 = vpop.f32.mrf.mxu0
  %4673 = vdwg.mxu0
  %v4682 = vunpack.c.l.b16 %v3676
  %v4683 = vunpack.c.l.b16 %v3677
  %v4684 = vunpack.c.l.b16 %v3678
  %v4685 = vunpack.c.l.b16 %v3679
  %v4686 = vunpack.c.l.b16 %v3680
  %v4687 = vunpack.c.l.b16 %v3681
  %v4688 = vunpack.c.l.b16 %v3682
  %v4689 = vunpack.c.l.b16 %v3683
  %v4690 = vpack.c.b16 %v4683, %v4682
  %v4691 = vpack.c.b16 %v4685, %v4684
  %v4692 = vpack.c.b16 %v4687, %v4686
  %v4693 = vpack.c.b16 %v4689, %v4688
  %4698 = vmatpush.bf16.msra.mxu0 0
  %4699 = vmatpush.bf16.msra.mxu0 0
  %4700 = vmatpush.bf16.msra.mxu0 0
  %4701 = vmatpush.bf16.msra.mxu0 0
  %4702 = vmatpush.bf16.msra.mxu0 %v4693
  %4703 = vmatpush.bf16.msra.mxu0 %v4692
  %4704 = vmatpush.bf16.msra.mxu0 %v4691
  %4705 = vmatpush.bf16.msra.mxu0 %v4690
  %4706 = vmatmul.bf16.gmra.mxu0 %v3834
  %v4707 = vpop.f32.mrf.mxu0
  %v4708 = vadd.f32 %v4442, %v4707
  %v4709 = vpop.f32.mrf.mxu0
  %4710 = vdwg.mxu0
  %v4719 = vunpack.c.l.b16 %v3684
  %v4720 = vunpack.c.l.b16 %v3685
  %v4721 = vunpack.c.l.b16 %v3686
  %v4722 = vunpack.c.l.b16 %v3687
  %v4723 = vunpack.c.l.b16 %v3688
  %v4724 = vunpack.c.l.b16 %v3689
  %v4725 = vunpack.c.l.b16 %v3690
  %v4726 = vunpack.c.l.b16 %v3691
  %v4727 = vpack.c.b16 %v4720, %v4719
  %v4728 = vpack.c.b16 %v4722, %v4721
  %v4729 = vpack.c.b16 %v4724, %v4723
  %v4730 = vpack.c.b16 %v4726, %v4725
  %4735 = vmatpush.bf16.msra.mxu0 0
  %4736 = vmatpush.bf16.msra.mxu0 0
  %4737 = vmatpush.bf16.msra.mxu0 0
  %4738 = vmatpush.bf16.msra.mxu0 0
  %4739 = vmatpush.bf16.msra.mxu0 %v4730
  %4740 = vmatpush.bf16.msra.mxu0 %v4729
  %4741 = vmatpush.bf16.msra.mxu0 %v4728
  %4742 = vmatpush.bf16.msra.mxu0 %v4727
  %4743 = vmatmul.bf16.gmra.mxu0 %v3834
  %v4744 = vpop.f32.mrf.mxu0
  %v4745 = vadd.f32 %v4443, %v4744
  %v4746 = vpop.f32.mrf.mxu0
  %4747 = vdwg.mxu0
  %v4748 = vpack.c.bf16 %v3846, %v3846
  %v4749 = vpack.c.bf16 %v3883, %v3883
  %v4750 = vpack.c.bf16 %v3920, %v3920
  %v4751 = vpack.c.bf16 %v3957, %v3957
  %v4752 = vpack.c.bf16 %v3994, %v3994
  %v4753 = vpack.c.bf16 %v4031, %v4031
  %v4754 = vpack.c.bf16 %v4068, %v4068
  %v4755 = vpack.c.bf16 %v4105, %v4105
  %v4756 = vpack.c.bf16 %v4166, %v4166
  %v4757 = vpack.c.bf16 %v4203, %v4203
  %v4758 = vpack.c.bf16 %v4240, %v4240
  %v4759 = vpack.c.bf16 %v4277, %v4277
  %v4760 = vpack.c.bf16 %v4314, %v4314
  %v4761 = vpack.c.bf16 %v4351, %v4351
  %v4762 = vpack.c.bf16 %v4388, %v4388
  %v4763 = vpack.c.bf16 %v4425, %v4425
  %v4765 = vsel %vm1450, %v4748, 0
  %v4768 = vsel %vm1450, %v4756, 0
  %4770 = vmatpush.bf16.xpose.msra.mxu0 0
  %4771 = vmatpush.bf16.xpose.msra.mxu0 0
  %4772 = vmatpush.bf16.xpose.msra.mxu0 0
  %4773 = vmatpush.bf16.xpose.msra.mxu0 0
  %4774 = vmatpush.bf16.xpose.msra.mxu0 0
  %4775 = vmatpush.bf16.xpose.msra.mxu0 0
  %4776 = vmatpush.bf16.xpose.msra.mxu0 0
  %4777 = vmatpush.bf16.xpose.msra.mxu0 %v4768
  %4778 = vmatmul.bf16.gmra.mxu0 %v4765
  %v4779 = vpop.f32.mrf.mxu0
  %v4780 = vadd.f32 0.0, %v4779
  %v4781 = vpop.f32.mrf.mxu0
  %4782 = vdwg.mxu0
  %v4784 = vsel %vm1450, %v4749, 0
  %v4787 = vsel %vm1450, %v4757, 0
  %4789 = vmatpush.bf16.xpose.msra.mxu0 0
  %4790 = vmatpush.bf16.xpose.msra.mxu0 0
  %4791 = vmatpush.bf16.xpose.msra.mxu0 0
  %4792 = vmatpush.bf16.xpose.msra.mxu0 0
  %4793 = vmatpush.bf16.xpose.msra.mxu0 0
  %4794 = vmatpush.bf16.xpose.msra.mxu0 0
  %4795 = vmatpush.bf16.xpose.msra.mxu0 0
  %4796 = vmatpush.bf16.xpose.msra.mxu0 %v4787
  %4797 = vmatmul.bf16.gmra.mxu0 %v4784
  %v4798 = vpop.f32.mrf.mxu0
  %v4799 = vadd.f32 0.0, %v4798
  %v4800 = vpop.f32.mrf.mxu0
  %4801 = vdwg.mxu0
  %v4803 = vsel %vm1450, %v4750, 0
  %v4806 = vsel %vm1450, %v4758, 0
  %4808 = vmatpush.bf16.xpose.msra.mxu0 0
  %4809 = vmatpush.bf16.xpose.msra.mxu0 0
  %4810 = vmatpush.bf16.xpose.msra.mxu0 0
  %4811 = vmatpush.bf16.xpose.msra.mxu0 0
  %4812 = vmatpush.bf16.xpose.msra.mxu0 0
  %4813 = vmatpush.bf16.xpose.msra.mxu0 0
  %4814 = vmatpush.bf16.xpose.msra.mxu0 0
  %4815 = vmatpush.bf16.xpose.msra.mxu0 %v4806
  %4816 = vmatmul.bf16.gmra.mxu0 %v4803
  %v4817 = vpop.f32.mrf.mxu0
  %v4818 = vadd.f32 0.0, %v4817
  %v4819 = vpop.f32.mrf.mxu0
  %4820 = vdwg.mxu0
  %v4822 = vsel %vm1450, %v4751, 0
  %v4825 = vsel %vm1450, %v4759, 0
  %4827 = vmatpush.bf16.xpose.msra.mxu0 0
  %4828 = vmatpush.bf16.xpose.msra.mxu0 0
  %4829 = vmatpush.bf16.xpose.msra.mxu0 0
  %4830 = vmatpush.bf16.xpose.msra.mxu0 0
  %4831 = vmatpush.bf16.xpose.msra.mxu0 0
  %4832 = vmatpush.bf16.xpose.msra.mxu0 0
  %4833 = vmatpush.bf16.xpose.msra.mxu0 0
  %4834 = vmatpush.bf16.xpose.msra.mxu0 %v4825
  %4835 = vmatmul.bf16.gmra.mxu0 %v4822
  %v4836 = vpop.f32.mrf.mxu0
  %v4837 = vadd.f32 0.0, %v4836
  %v4838 = vpop.f32.mrf.mxu0
  %4839 = vdwg.mxu0
  %v4841 = vsel %vm1450, %v4752, 0
  %v4844 = vsel %vm1450, %v4760, 0
  %4846 = vmatpush.bf16.xpose.msra.mxu0 0
  %4847 = vmatpush.bf16.xpose.msra.mxu0 0
  %4848 = vmatpush.bf16.xpose.msra.mxu0 0
  %4849 = vmatpush.bf16.xpose.msra.mxu0 0
  %4850 = vmatpush.bf16.xpose.msra.mxu0 0
  %4851 = vmatpush.bf16.xpose.msra.mxu0 0
  %4852 = vmatpush.bf16.xpose.msra.mxu0 0
  %4853 = vmatpush.bf16.xpose.msra.mxu0 %v4844
  %4854 = vmatmul.bf16.gmra.mxu0 %v4841
  %v4855 = vpop.f32.mrf.mxu0
  %v4856 = vadd.f32 0.0, %v4855
  %v4857 = vpop.f32.mrf.mxu0
  %4858 = vdwg.mxu0
  %v4860 = vsel %vm1450, %v4753, 0
  %v4863 = vsel %vm1450, %v4761, 0
  %4865 = vmatpush.bf16.xpose.msra.mxu0 0
  %4866 = vmatpush.bf16.xpose.msra.mxu0 0
  %4867 = vmatpush.bf16.xpose.msra.mxu0 0
  %4868 = vmatpush.bf16.xpose.msra.mxu0 0
  %4869 = vmatpush.bf16.xpose.msra.mxu0 0
  %4870 = vmatpush.bf16.xpose.msra.mxu0 0
  %4871 = vmatpush.bf16.xpose.msra.mxu0 0
  %4872 = vmatpush.bf16.xpose.msra.mxu0 %v4863
  %4873 = vmatmul.bf16.gmra.mxu0 %v4860
  %v4874 = vpop.f32.mrf.mxu0
  %v4875 = vadd.f32 0.0, %v4874
  %v4876 = vpop.f32.mrf.mxu0
  %4877 = vdwg.mxu0
  %v4879 = vsel %vm1450, %v4754, 0
  %v4882 = vsel %vm1450, %v4762, 0
  %4884 = vmatpush.bf16.xpose.msra.mxu0 0
  %4885 = vmatpush.bf16.xpose.msra.mxu0 0
  %4886 = vmatpush.bf16.xpose.msra.mxu0 0
  %4887 = vmatpush.bf16.xpose.msra.mxu0 0
  %4888 = vmatpush.bf16.xpose.msra.mxu0 0
  %4889 = vmatpush.bf16.xpose.msra.mxu0 0
  %4890 = vmatpush.bf16.xpose.msra.mxu0 0
  %4891 = vmatpush.bf16.xpose.msra.mxu0 %v4882
  %4892 = vmatmul.bf16.gmra.mxu0 %v4879
  %v4893 = vpop.f32.mrf.mxu0
  %v4894 = vadd.f32 0.0, %v4893
  %v4895 = vpop.f32.mrf.mxu0
  %4896 = vdwg.mxu0
  %v4898 = vsel %vm1450, %v4755, 0
  %v4901 = vsel %vm1450, %v4763, 0
  %4903 = vmatpush.bf16.xpose.msra.mxu0 0
  %4904 = vmatpush.bf16.xpose.msra.mxu0 0
  %4905 = vmatpush.bf16.xpose.msra.mxu0 0
  %4906 = vmatpush.bf16.xpose.msra.mxu0 0
  %4907 = vmatpush.bf16.xpose.msra.mxu0 0
  %4908 = vmatpush.bf16.xpose.msra.mxu0 0
  %4909 = vmatpush.bf16.xpose.msra.mxu0 0
  %4910 = vmatpush.bf16.xpose.msra.mxu0 %v4901
  %4911 = vmatmul.bf16.gmra.mxu0 %v4898
  %v4912 = vpop.f32.mrf.mxu0
  %v4913 = vadd.f32 0.0, %v4912
  %v4914 = vpop.f32.mrf.mxu0
  %4915 = vdwg.mxu0
  %v4916 = vmul.f32 %v4780, 0.35355338
  %v4917 = vmul.f32 %v4799, 0.35355338
  %v4918 = vmul.f32 %v4818, 0.35355338
  %v4919 = vmul.f32 %v4837, 0.35355338
  %v4920 = vmul.f32 %v4856, 0.35355338
  %v4921 = vmul.f32 %v4875, 0.35355338
  %v4922 = vmul.f32 %v4894, 0.35355338
  %v4923 = vmul.f32 %v4913, 0.35355338
  %v4924 = vsel %vm1611, %v4916, -inf
  %4925 = vmax.xlane.f32.xlu0 %v4924
  %v4926 = vpop.xlane.xlu0 %4925
  %v4927 = vsel %vm1611, %v4917, -inf
  %4928 = vmax.xlane.f32.xlu0 %v4927
  %v4929 = vpop.xlane.xlu0 %4928
  %v4930 = vsel %vm1611, %v4918, -inf
  %4931 = vmax.xlane.f32.xlu0 %v4930
  %v4932 = vpop.xlane.xlu0 %4931
  %v4933 = vsel %vm1611, %v4919, -inf
  %4934 = vmax.xlane.f32.xlu0 %v4933
  %v4935 = vpop.xlane.xlu0 %4934
  %v4936 = vsel %vm1611, %v4920, -inf
  %4937 = vmax.xlane.f32.xlu0 %v4936
  %v4938 = vpop.xlane.xlu0 %4937
  %v4939 = vsel %vm1611, %v4921, -inf
  %4940 = vmax.xlane.f32.xlu0 %v4939
  %v4941 = vpop.xlane.xlu0 %4940
  %v4942 = vsel %vm1611, %v4922, -inf
  %4943 = vmax.xlane.f32.xlu0 %v4942
  %v4944 = vpop.xlane.xlu0 %4943
  %v4945 = vsel %vm1611, %v4923, -inf
  %4946 = vmax.xlane.f32.xlu0 %v4945
  %v4947 = vpop.xlane.xlu0 %4946
  %v4948 = vsub.f32 %v4916, %v4926
  %v4949 = vsub.f32 %v4917, %v4929
  %v4950 = vsub.f32 %v4918, %v4932
  %v4951 = vsub.f32 %v4919, %v4935
  %v4952 = vsub.f32 %v4920, %v4938
  %v4953 = vsub.f32 %v4921, %v4941
  %v4954 = vsub.f32 %v4922, %v4944
  %v4955 = vsub.f32 %v4923, %v4947
  %v4956 = vmul.f32 %v4948, 1.442695
  %v4957 = vpow.pop %v4956
  %v4958 = vmul.f32 %v4949, 1.442695
  %v4959 = vpow.pop %v4958
  %v4960 = vmul.f32 %v4950, 1.442695
  %v4961 = vpow.pop %v4960
  %v4962 = vmul.f32 %v4951, 1.442695
  %v4963 = vpow.pop %v4962
  %v4964 = vmul.f32 %v4952, 1.442695
  %v4965 = vpow.pop %v4964
  %v4966 = vmul.f32 %v4953, 1.442695
  %v4967 = vpow.pop %v4966
  %v4968 = vmul.f32 %v4954, 1.442695
  %v4969 = vpow.pop %v4968
  %v4970 = vmul.f32 %v4955, 1.442695
  %v4971 = vpow.pop %v4970
  %v4972 = vsel %vm1611, %v4957, 0.0
  %4973 = vadd.xlane.f32.xlu0 %v4972
  %v4974 = vpop.xlane.xlu0 %4973
  %v4975 = vsel %vm1611, %v4959, 0.0
  %4976 = vadd.xlane.f32.xlu0 %v4975
  %v4977 = vpop.xlane.xlu0 %4976
  %v4978 = vsel %vm1611, %v4961, 0.0
  %4979 = vadd.xlane.f32.xlu0 %v4978
  %v4980 = vpop.xlane.xlu0 %4979
  %v4981 = vsel %vm1611, %v4963, 0.0
  %4982 = vadd.xlane.f32.xlu0 %v4981
  %v4983 = vpop.xlane.xlu0 %4982
  %v4984 = vsel %vm1611, %v4965, 0.0
  %4985 = vadd.xlane.f32.xlu0 %v4984
  %v4986 = vpop.xlane.xlu0 %4985
  %v4987 = vsel %vm1611, %v4967, 0.0
  %4988 = vadd.xlane.f32.xlu0 %v4987
  %v4989 = vpop.xlane.xlu0 %4988
  %v4990 = vsel %vm1611, %v4969, 0.0
  %4991 = vadd.xlane.f32.xlu0 %v4990
  %v4992 = vpop.xlane.xlu0 %4991
  %v4993 = vsel %vm1611, %v4971, 0.0
  %4994 = vadd.xlane.f32.xlu0 %v4993
  %v4995 = vpop.xlane.xlu0 %4994
  %v4996 = vrcp.pop %v4974
  %v4997 = vmul.f32 %v4974, %v4996
  %v4998 = vsub.f32 1.0, %v4997
  %v4999 = vmul.f32 %v4996, %v4998
  %v5000 = vadd.f32 %v4996, %v4999
  %vm5001 = vweird.f32 %v4974
  %vm5002 = vweird.f32 %v4996
  %vm5003 = vmor %vm5001, %vm5002
  %v5004 = vsel %vm5003, %v4996, %v5000
  %v5005 = vand.u32 2147483647, %v4974
  %vm5006 = vcmp.eq.f32.partialorder %v5005, 8.507059e+37
  %v5007 = vand.u32 %v4974, 2147483648
  %v5008 = vor.u32 1.1754944e-38, %v5007
  %v5009 = vsel %vm5006, %v5008, %v5004
  %v5010 = vmul.f32 %v4957, %v5009
  %v5011 = vrcp.pop %v4977
  %v5012 = vmul.f32 %v4977, %v5011
  %v5013 = vsub.f32 1.0, %v5012
  %v5014 = vmul.f32 %v5011, %v5013
  %v5015 = vadd.f32 %v5011, %v5014
  %vm5016 = vweird.f32 %v4977
  %vm5017 = vweird.f32 %v5011
  %vm5018 = vmor %vm5016, %vm5017
  %v5019 = vsel %vm5018, %v5011, %v5015
  %v5020 = vand.u32 2147483647, %v4977
  %vm5021 = vcmp.eq.f32.partialorder %v5020, 8.507059e+37
  %v5022 = vand.u32 %v4977, 2147483648
  %v5023 = vor.u32 1.1754944e-38, %v5022
  %v5024 = vsel %vm5021, %v5023, %v5019
  %v5025 = vmul.f32 %v4959, %v5024
  %v5026 = vrcp.pop %v4980
  %v5027 = vmul.f32 %v4980, %v5026
  %v5028 = vsub.f32 1.0, %v5027
  %v5029 = vmul.f32 %v5026, %v5028
  %v5030 = vadd.f32 %v5026, %v5029
  %vm5031 = vweird.f32 %v4980
  %vm5032 = vweird.f32 %v5026
  %vm5033 = vmor %vm5031, %vm5032
  %v5034 = vsel %vm5033, %v5026, %v5030
  %v5035 = vand.u32 2147483647, %v4980
  %vm5036 = vcmp.eq.f32.partialorder %v5035, 8.507059e+37
  %v5037 = vand.u32 %v4980, 2147483648
  %v5038 = vor.u32 1.1754944e-38, %v5037
  %v5039 = vsel %vm5036, %v5038, %v5034
  %v5040 = vmul.f32 %v4961, %v5039
  %v5041 = vrcp.pop %v4983
  %v5042 = vmul.f32 %v4983, %v5041
  %v5043 = vsub.f32 1.0, %v5042
  %v5044 = vmul.f32 %v5041, %v5043
  %v5045 = vadd.f32 %v5041, %v5044
  %vm5046 = vweird.f32 %v4983
  %vm5047 = vweird.f32 %v5041
  %vm5048 = vmor %vm5046, %vm5047
  %v5049 = vsel %vm5048, %v5041, %v5045
  %v5050 = vand.u32 2147483647, %v4983
  %vm5051 = vcmp.eq.f32.partialorder %v5050, 8.507059e+37
  %v5052 = vand.u32 %v4983, 2147483648
  %v5053 = vor.u32 1.1754944e-38, %v5052
  %v5054 = vsel %vm5051, %v5053, %v5049
  %v5055 = vmul.f32 %v4963, %v5054
  %v5056 = vrcp.pop %v4986
  %v5057 = vmul.f32 %v4986, %v5056
  %v5058 = vsub.f32 1.0, %v5057
  %v5059 = vmul.f32 %v5056, %v5058
  %v5060 = vadd.f32 %v5056, %v5059
  %vm5061 = vweird.f32 %v4986
  %vm5062 = vweird.f32 %v5056
  %vm5063 = vmor %vm5061, %vm5062
  %v5064 = vsel %vm5063, %v5056, %v5060
  %v5065 = vand.u32 2147483647, %v4986
  %vm5066 = vcmp.eq.f32.partialorder %v5065, 8.507059e+37
  %v5067 = vand.u32 %v4986, 2147483648
  %v5068 = vor.u32 1.1754944e-38, %v5067
  %v5069 = vsel %vm5066, %v5068, %v5064
  %v5070 = vmul.f32 %v4965, %v5069
  %v5071 = vrcp.pop %v4989
  %v5072 = vmul.f32 %v4989, %v5071
  %v5073 = vsub.f32 1.0, %v5072
  %v5074 = vmul.f32 %v5071, %v5073
  %v5075 = vadd.f32 %v5071, %v5074
  %vm5076 = vweird.f32 %v4989
  %vm5077 = vweird.f32 %v5071
  %vm5078 = vmor %vm5076, %vm5077
  %v5079 = vsel %vm5078, %v5071, %v5075
  %v5080 = vand.u32 2147483647, %v4989
  %vm5081 = vcmp.eq.f32.partialorder %v5080, 8.507059e+37
  %v5082 = vand.u32 %v4989, 2147483648
  %v5083 = vor.u32 1.1754944e-38, %v5082
  %v5084 = vsel %vm5081, %v5083, %v5079
  %v5085 = vmul.f32 %v4967, %v5084
  %v5086 = vrcp.pop %v4992
  %v5087 = vmul.f32 %v4992, %v5086
  %v5088 = vsub.f32 1.0, %v5087
  %v5089 = vmul.f32 %v5086, %v5088
  %v5090 = vadd.f32 %v5086, %v5089
  %vm5091 = vweird.f32 %v4992
  %vm5092 = vweird.f32 %v5086
  %vm5093 = vmor %vm5091, %vm5092
  %v5094 = vsel %vm5093, %v5086, %v5090
  %v5095 = vand.u32 2147483647, %v4992
  %vm5096 = vcmp.eq.f32.partialorder %v5095, 8.507059e+37
  %v5097 = vand.u32 %v4992, 2147483648
  %v5098 = vor.u32 1.1754944e-38, %v5097
  %v5099 = vsel %vm5096, %v5098, %v5094
  %v5100 = vmul.f32 %v4969, %v5099
  %v5101 = vrcp.pop %v4995
  %v5102 = vmul.f32 %v4995, %v5101
  %v5103 = vsub.f32 1.0, %v5102
  %v5104 = vmul.f32 %v5101, %v5103
  %v5105 = vadd.f32 %v5101, %v5104
  %vm5106 = vweird.f32 %v4995
  %vm5107 = vweird.f32 %v5101
  %vm5108 = vmor %vm5106, %vm5107
  %v5109 = vsel %vm5108, %v5101, %v5105
  %v5110 = vand.u32 2147483647, %v4995
  %vm5111 = vcmp.eq.f32.partialorder %v5110, 8.507059e+37
  %v5112 = vand.u32 %v4995, 2147483648
  %v5113 = vor.u32 1.1754944e-38, %v5112
  %v5114 = vsel %vm5111, %v5113, %v5109
  %v5115 = vmul.f32 %v4971, %v5114
  %v5116 = vpack.c.bf16 %v5010, %v5010
  %v5117 = vpack.c.bf16 %v5025, %v5025
  %v5118 = vpack.c.bf16 %v5040, %v5040
  %v5119 = vpack.c.bf16 %v5055, %v5055
  %v5120 = vpack.c.bf16 %v5070, %v5070
  %v5121 = vpack.c.bf16 %v5085, %v5085
  %v5122 = vpack.c.bf16 %v5100, %v5100
  %v5123 = vpack.c.bf16 %v5115, %v5115
  %v5124 = vpack.c.bf16 %v4486, %v4486
  %v5125 = vpack.c.bf16 %v4523, %v4523
  %v5126 = vpack.c.bf16 %v4560, %v4560
  %v5127 = vpack.c.bf16 %v4597, %v4597
  %v5128 = vpack.c.bf16 %v4634, %v4634
  %v5129 = vpack.c.bf16 %v4671, %v4671
  %v5130 = vpack.c.bf16 %v4708, %v4708
  %v5131 = vpack.c.bf16 %v4745, %v4745
  %v5133 = vsel %vm1820, %v5116, 0
  %v5136 = vsel %vm141, %v5124, 0
  %5138 = vmatpush.bf16.msra.mxu0 0
  %5139 = vmatpush.bf16.msra.mxu0 0
  %5140 = vmatpush.bf16.msra.mxu0 0
  %5141 = vmatpush.bf16.msra.mxu0 0
  %5142 = vmatpush.bf16.msra.mxu0 0
  %5143 = vmatpush.bf16.msra.mxu0 0
  %5144 = vmatpush.bf16.msra.mxu0 0
  %5145 = vmatpush.bf16.msra.mxu0 %v5136
  %5146 = vmatmul.bf16.gmra.mxu0 %v5133
  %v5147 = vpop.f32.mrf.mxu0
  %v5148 = vadd.f32 0.0, %v5147
  %v5149 = vpop.f32.mrf.mxu0
  %5150 = vdwg.mxu0
  %v5152 = vsel %vm1820, %v5117, 0
  %v5155 = vsel %vm141, %v5125, 0
  %5157 = vmatpush.bf16.msra.mxu0 0
  %5158 = vmatpush.bf16.msra.mxu0 0
  %5159 = vmatpush.bf16.msra.mxu0 0
  %5160 = vmatpush.bf16.msra.mxu0 0
  %5161 = vmatpush.bf16.msra.mxu0 0
  %5162 = vmatpush.bf16.msra.mxu0 0
  %5163 = vmatpush.bf16.msra.mxu0 0
  %5164 = vmatpush.bf16.msra.mxu0 %v5155
  %5165 = vmatmul.bf16.gmra.mxu0 %v5152
  %v5166 = vpop.f32.mrf.mxu0
  %v5167 = vadd.f32 0.0, %v5166
  %v5168 = vpop.f32.mrf.mxu0
  %5169 = vdwg.mxu0
  %v5171 = vsel %vm1820, %v5118, 0
  %v5174 = vsel %vm141, %v5126, 0
  %5176 = vmatpush.bf16.msra.mxu0 0
  %5177 = vmatpush.bf16.msra.mxu0 0
  %5178 = vmatpush.bf16.msra.mxu0 0
  %5179 = vmatpush.bf16.msra.mxu0 0
  %5180 = vmatpush.bf16.msra.mxu0 0
  %5181 = vmatpush.bf16.msra.mxu0 0
  %5182 = vmatpush.bf16.msra.mxu0 0
  %5183 = vmatpush.bf16.msra.mxu0 %v5174
  %5184 = vmatmul.bf16.gmra.mxu0 %v5171
  %v5185 = vpop.f32.mrf.mxu0
  %v5186 = vadd.f32 0.0, %v5185
  %v5187 = vpop.f32.mrf.mxu0
  %5188 = vdwg.mxu0
  %v5190 = vsel %vm1820, %v5119, 0
  %v5193 = vsel %vm141, %v5127, 0
  %5195 = vmatpush.bf16.msra.mxu0 0
  %5196 = vmatpush.bf16.msra.mxu0 0
  %5197 = vmatpush.bf16.msra.mxu0 0
  %5198 = vmatpush.bf16.msra.mxu0 0
  %5199 = vmatpush.bf16.msra.mxu0 0
  %5200 = vmatpush.bf16.msra.mxu0 0
  %5201 = vmatpush.bf16.msra.mxu0 0
  %5202 = vmatpush.bf16.msra.mxu0 %v5193
  %5203 = vmatmul.bf16.gmra.mxu0 %v5190
  %v5204 = vpop.f32.mrf.mxu0
  %v5205 = vadd.f32 0.0, %v5204
  %v5206 = vpop.f32.mrf.mxu0
  %5207 = vdwg.mxu0
  %v5209 = vsel %vm1820, %v5120, 0
  %v5212 = vsel %vm141, %v5128, 0
  %5214 = vmatpush.bf16.msra.mxu0 0
  %5215 = vmatpush.bf16.msra.mxu0 0
  %5216 = vmatpush.bf16.msra.mxu0 0
  %5217 = vmatpush.bf16.msra.mxu0 0
  %5218 = vmatpush.bf16.msra.mxu0 0
  %5219 = vmatpush.bf16.msra.mxu0 0
  %5220 = vmatpush.bf16.msra.mxu0 0
  %5221 = vmatpush.bf16.msra.mxu0 %v5212
  %5222 = vmatmul.bf16.gmra.mxu0 %v5209
  %v5223 = vpop.f32.mrf.mxu0
  %v5224 = vadd.f32 0.0, %v5223
  %v5225 = vpop.f32.mrf.mxu0
  %5226 = vdwg.mxu0
  %v5228 = vsel %vm1820, %v5121, 0
  %v5231 = vsel %vm141, %v5129, 0
  %5233 = vmatpush.bf16.msra.mxu0 0
  %5234 = vmatpush.bf16.msra.mxu0 0
  %5235 = vmatpush.bf16.msra.mxu0 0
  %5236 = vmatpush.bf16.msra.mxu0 0
  %5237 = vmatpush.bf16.msra.mxu0 0
  %5238 = vmatpush.bf16.msra.mxu0 0
  %5239 = vmatpush.bf16.msra.mxu0 0
  %5240 = vmatpush.bf16.msra.mxu0 %v5231
  %5241 = vmatmul.bf16.gmra.mxu0 %v5228
  %v5242 = vpop.f32.mrf.mxu0
  %v5243 = vadd.f32 0.0, %v5242
  %v5244 = vpop.f32.mrf.mxu0
  %5245 = vdwg.mxu0
  %v5247 = vsel %vm1820, %v5122, 0
  %v5250 = vsel %vm141, %v5130, 0
  %5252 = vmatpush.bf16.msra.mxu0 0
  %5253 = vmatpush.bf16.msra.mxu0 0
  %5254 = vmatpush.bf16.msra.mxu0 0
  %5255 = vmatpush.bf16.msra.mxu0 0
  %5256 = vmatpush.bf16.msra.mxu0 0
  %5257 = vmatpush.bf16.msra.mxu0 0
  %5258 = vmatpush.bf16.msra.mxu0 0
  %5259 = vmatpush.bf16.msra.mxu0 %v5250
  %5260 = vmatmul.bf16.gmra.mxu0 %v5247
  %v5261 = vpop.f32.mrf.mxu0
  %v5262 = vadd.f32 0.0, %v5261
  %v5263 = vpop.f32.mrf.mxu0
  %5264 = vdwg.mxu0
  %v5266 = vsel %vm1820, %v5123, 0
  %v5269 = vsel %vm141, %v5131, 0
  %5271 = vmatpush.bf16.msra.mxu0 0
  %5272 = vmatpush.bf16.msra.mxu0 0
  %5273 = vmatpush.bf16.msra.mxu0 0
  %5274 = vmatpush.bf16.msra.mxu0 0
  %5275 = vmatpush.bf16.msra.mxu0 0
  %5276 = vmatpush.bf16.msra.mxu0 0
  %5277 = vmatpush.bf16.msra.mxu0 0
  %5278 = vmatpush.bf16.msra.mxu0 %v5269
  %5279 = vmatmul.bf16.gmra.mxu0 %v5266
  %v5280 = vpop.f32.mrf.mxu0
  %v5281 = vadd.f32 0.0, %v5280
  %v5282 = vpop.f32.mrf.mxu0
  %5283 = vdwg.mxu0
  %v5284 = vpack.c.bf16 %v5148, %v5148
  %v5285 = vpack.c.bf16 %v5167, %v5167
  %v5286 = vpack.c.bf16 %v5186, %v5186
  %v5287 = vpack.c.bf16 %v5205, %v5205
  %v5288 = vpack.c.bf16 %v5224, %v5224
  %v5289 = vpack.c.bf16 %v5243, %v5243
  %v5290 = vpack.c.bf16 %v5262, %v5262
  %v5291 = vpack.c.bf16 %v5281, %v5281
  %v5293 = vsel %vm1450, %v5284, 0
  %v5296 = vsel %vm142, %v3720, 0
  %5298 = vmatpush.bf16.msra.mxu0 0
  %5299 = vmatpush.bf16.msra.mxu0 0
  %5300 = vmatpush.bf16.msra.mxu0 0
  %5301 = vmatpush.bf16.msra.mxu0 0
  %5302 = vmatpush.bf16.msra.mxu0 0
  %5303 = vmatpush.bf16.msra.mxu0 0
  %5304 = vmatpush.bf16.msra.mxu0 0
  %5305 = vmatpush.bf16.msra.mxu0 %v5296
  %5306 = vmatmul.bf16.gmra.mxu0 %v5293
  %v5307 = vpop.f32.mrf.mxu0
  %v5308 = vadd.f32 0.0, %v5307
  %v5309 = vpop.f32.mrf.mxu0
  %5310 = vdwg.mxu0
  %v5312 = vsel %vm1450, %v5285, 0
  %v5315 = vsel %vm142, %v3721, 0
  %5317 = vmatpush.bf16.msra.mxu0 0
  %5318 = vmatpush.bf16.msra.mxu0 0
  %5319 = vmatpush.bf16.msra.mxu0 0
  %5320 = vmatpush.bf16.msra.mxu0 0
  %5321 = vmatpush.bf16.msra.mxu0 0
  %5322 = vmatpush.bf16.msra.mxu0 0
  %5323 = vmatpush.bf16.msra.mxu0 0
  %5324 = vmatpush.bf16.msra.mxu0 %v5315
  %5325 = vmatmul.bf16.gmra.mxu0 %v5312
  %v5326 = vpop.f32.mrf.mxu0
  %v5327 = vadd.f32 0.0, %v5326
  %v5328 = vpop.f32.mrf.mxu0
  %5329 = vdwg.mxu0
  %v5331 = vsel %vm1450, %v5286, 0
  %v5334 = vsel %vm142, %v3722, 0
  %5336 = vmatpush.bf16.msra.mxu0 0
  %5337 = vmatpush.bf16.msra.mxu0 0
  %5338 = vmatpush.bf16.msra.mxu0 0
  %5339 = vmatpush.bf16.msra.mxu0 0
  %5340 = vmatpush.bf16.msra.mxu0 0
  %5341 = vmatpush.bf16.msra.mxu0 0
  %5342 = vmatpush.bf16.msra.mxu0 0
  %5343 = vmatpush.bf16.msra.mxu0 %v5334
  %5344 = vmatmul.bf16.gmra.mxu0 %v5331
  %v5345 = vpop.f32.mrf.mxu0
  %v5346 = vadd.f32 0.0, %v5345
  %v5347 = vpop.f32.mrf.mxu0
  %5348 = vdwg.mxu0
  %v5350 = vsel %vm1450, %v5287, 0
  %v5353 = vsel %vm142, %v3723, 0
  %5355 = vmatpush.bf16.msra.mxu0 0
  %5356 = vmatpush.bf16.msra.mxu0 0
  %5357 = vmatpush.bf16.msra.mxu0 0
  %5358 = vmatpush.bf16.msra.mxu0 0
  %5359 = vmatpush.bf16.msra.mxu0 0
  %5360 = vmatpush.bf16.msra.mxu0 0
  %5361 = vmatpush.bf16.msra.mxu0 0
  %5362 = vmatpush.bf16.msra.mxu0 %v5353
  %5363 = vmatmul.bf16.gmra.mxu0 %v5350
  %v5364 = vpop.f32.mrf.mxu0
  %v5365 = vadd.f32 0.0, %v5364
  %v5366 = vpop.f32.mrf.mxu0
  %5367 = vdwg.mxu0
  %v5369 = vsel %vm1450, %v5288, 0
  %v5372 = vsel %vm142, %v3724, 0
  %5374 = vmatpush.bf16.msra.mxu0 0
  %5375 = vmatpush.bf16.msra.mxu0 0
  %5376 = vmatpush.bf16.msra.mxu0 0
  %5377 = vmatpush.bf16.msra.mxu0 0
  %5378 = vmatpush.bf16.msra.mxu0 0
  %5379 = vmatpush.bf16.msra.mxu0 0
  %5380 = vmatpush.bf16.msra.mxu0 0
  %5381 = vmatpush.bf16.msra.mxu0 %v5372
  %5382 = vmatmul.bf16.gmra.mxu0 %v5369
  %v5383 = vpop.f32.mrf.mxu0
  %v5384 = vadd.f32 0.0, %v5383
  %v5385 = vpop.f32.mrf.mxu0
  %5386 = vdwg.mxu0
  %v5388 = vsel %vm1450, %v5289, 0
  %v5391 = vsel %vm142, %v3725, 0
  %5393 = vmatpush.bf16.msra.mxu0 0
  %5394 = vmatpush.bf16.msra.mxu0 0
  %5395 = vmatpush.bf16.msra.mxu0 0
  %5396 = vmatpush.bf16.msra.mxu0 0
  %5397 = vmatpush.bf16.msra.mxu0 0
  %5398 = vmatpush.bf16.msra.mxu0 0
  %5399 = vmatpush.bf16.msra.mxu0 0
  %5400 = vmatpush.bf16.msra.mxu0 %v5391
  %5401 = vmatmul.bf16.gmra.mxu0 %v5388
  %v5402 = vpop.f32.mrf.mxu0
  %v5403 = vadd.f32 0.0, %v5402
  %v5404 = vpop.f32.mrf.mxu0
  %5405 = vdwg.mxu0
  %v5407 = vsel %vm1450, %v5290, 0
  %v5410 = vsel %vm142, %v3726, 0
  %5412 = vmatpush.bf16.msra.mxu0 0
  %5413 = vmatpush.bf16.msra.mxu0 0
  %5414 = vmatpush.bf16.msra.mxu0 0
  %5415 = vmatpush.bf16.msra.mxu0 0
  %5416 = vmatpush.bf16.msra.mxu0 0
  %5417 = vmatpush.bf16.msra.mxu0 0
  %5418 = vmatpush.bf16.msra.mxu0 0
  %5419 = vmatpush.bf16.msra.mxu0 %v5410
  %5420 = vmatmul.bf16.gmra.mxu0 %v5407
  %v5421 = vpop.f32.mrf.mxu0
  %v5422 = vadd.f32 0.0, %v5421
  %v5423 = vpop.f32.mrf.mxu0
  %5424 = vdwg.mxu0
  %v5426 = vsel %vm1450, %v5291, 0
  %v5429 = vsel %vm142, %v3727, 0
  %5431 = vmatpush.bf16.msra.mxu0 0
  %5432 = vmatpush.bf16.msra.mxu0 0
  %5433 = vmatpush.bf16.msra.mxu0 0
  %5434 = vmatpush.bf16.msra.mxu0 0
  %5435 = vmatpush.bf16.msra.mxu0 0
  %5436 = vmatpush.bf16.msra.mxu0 0
  %5437 = vmatpush.bf16.msra.mxu0 0
  %5438 = vmatpush.bf16.msra.mxu0 %v5429
  %5439 = vmatmul.bf16.gmra.mxu0 %v5426
  %v5440 = vpop.f32.mrf.mxu0
  %v5441 = vadd.f32 0.0, %v5440
  %v5442 = vpop.f32.mrf.mxu0
  %5443 = vdwg.mxu0
  %v5444 = vsel %vm2133, %v5308, 0.0
  %v5445 = vsel %vm2133, %v5327, 0.0
  %v5446 = vadd.f32 %v5444, %v5445
  %v5447 = vsel %vm2133, %v5346, 0.0
  %v5448 = vadd.f32 %v5446, %v5447
  %v5449 = vsel %vm2133, %v5365, 0.0
  %v5450 = vadd.f32 %v5448, %v5449
  %v5451 = vsel %vm2133, %v5384, 0.0
  %v5452 = vadd.f32 %v5450, %v5451
  %v5453 = vsel %vm2133, %v5403, 0.0
  %v5454 = vadd.f32 %v5452, %v5453
  %v5455 = vsel %vm2133, %v5422, 0.0
  %v5456 = vadd.f32 %v5454, %v5455
  %v5457 = vsel %vm2133, %v5441, 0.0
  %v5458 = vadd.f32 %v5456, %v5457
  %v5460 = vperm.slane %v3729, 0
  %v5462 = vadd.f32 %v5458, %v5460
  %v5463 = vpack.c.bf16 %v3496, %v3496
  %v5466 = vunpack.c.l.b16 %v3784
  %v5467 = vunpack.c.l.b16 %v5463
  %v5468 = vpack.c.b16 %v5467, %v5466
  %v5469 = vrot.slane %v5468, 3
  %v5471 = vsel %vm518, %v5469, 0
  %5473 = vmatpush.bf16.msra.mxu0 0
  %5474 = vmatpush.bf16.msra.mxu0 0
  %5475 = vmatpush.bf16.msra.mxu0 0
  %5476 = vmatpush.bf16.msra.mxu0 0
  %5477 = vmatpush.bf16.msra.mxu0 %v3828
  %5478 = vmatpush.bf16.msra.mxu0 %v3827
  %5479 = vmatpush.bf16.msra.mxu0 %v3826
  %5480 = vmatpush.bf16.msra.mxu0 %v3825
  %5481 = vmatmul.bf16.gmra.mxu0 %v5471
  %v5482 = vpop.f32.mrf.mxu0
  %v5483 = vadd.f32 %v3793, %v5482
  %v5484 = vpop.f32.mrf.mxu0
  %5485 = vdwg.mxu0
  %5486 = vmatpush.bf16.msra.mxu0 0
  %5487 = vmatpush.bf16.msra.mxu0 0
  %5488 = vmatpush.bf16.msra.mxu0 0
  %5489 = vmatpush.bf16.msra.mxu0 0
  %5490 = vmatpush.bf16.msra.mxu0 %v3868
  %5491 = vmatpush.bf16.msra.mxu0 %v3867
  %5492 = vmatpush.bf16.msra.mxu0 %v3866
  %5493 = vmatpush.bf16.msra.mxu0 %v3865
  %5494 = vmatmul.bf16.gmra.mxu0 %v5471
  %v5495 = vpop.f32.mrf.mxu0
  %v5496 = vadd.f32 %v3794, %v5495
  %v5497 = vpop.f32.mrf.mxu0
  %5498 = vdwg.mxu0
  %5499 = vmatpush.bf16.msra.mxu0 0
  %5500 = vmatpush.bf16.msra.mxu0 0
  %5501 = vmatpush.bf16.msra.mxu0 0
  %5502 = vmatpush.bf16.msra.mxu0 0
  %5503 = vmatpush.bf16.msra.mxu0 %v3905
  %5504 = vmatpush.bf16.msra.mxu0 %v3904
  %5505 = vmatpush.bf16.msra.mxu0 %v3903
  %5506 = vmatpush.bf16.msra.mxu0 %v3902
  %5507 = vmatmul.bf16.gmra.mxu0 %v5471
  %v5508 = vpop.f32.mrf.mxu0
  %v5509 = vadd.f32 %v3795, %v5508
  %v5510 = vpop.f32.mrf.mxu0
  %5511 = vdwg.mxu0
  %5512 = vmatpush.bf16.msra.mxu0 0
  %5513 = vmatpush.bf16.msra.mxu0 0
  %5514 = vmatpush.bf16.msra.mxu0 0
  %5515 = vmatpush.bf16.msra.mxu0 0
  %5516 = vmatpush.bf16.msra.mxu0 %v3942
  %5517 = vmatpush.bf16.msra.mxu0 %v3941
  %5518 = vmatpush.bf16.msra.mxu0 %v3940
  %5519 = vmatpush.bf16.msra.mxu0 %v3939
  %5520 = vmatmul.bf16.gmra.mxu0 %v5471
  %v5521 = vpop.f32.mrf.mxu0
  %v5522 = vadd.f32 %v3796, %v5521
  %v5523 = vpop.f32.mrf.mxu0
  %5524 = vdwg.mxu0
  %5525 = vmatpush.bf16.msra.mxu0 0
  %5526 = vmatpush.bf16.msra.mxu0 0
  %5527 = vmatpush.bf16.msra.mxu0 0
  %5528 = vmatpush.bf16.msra.mxu0 0
  %5529 = vmatpush.bf16.msra.mxu0 %v3979
  %5530 = vmatpush.bf16.msra.mxu0 %v3978
  %5531 = vmatpush.bf16.msra.mxu0 %v3977
  %5532 = vmatpush.bf16.msra.mxu0 %v3976
  %5533 = vmatmul.bf16.gmra.mxu0 %v5471
  %v5534 = vpop.f32.mrf.mxu0
  %v5535 = vadd.f32 %v3797, %v5534
  %v5536 = vpop.f32.mrf.mxu0
  %5537 = vdwg.mxu0
  %5538 = vmatpush.bf16.msra.mxu0 0
  %5539 = vmatpush.bf16.msra.mxu0 0
  %5540 = vmatpush.bf16.msra.mxu0 0
  %5541 = vmatpush.bf16.msra.mxu0 0
  %5542 = vmatpush.bf16.msra.mxu0 %v4016
  %5543 = vmatpush.bf16.msra.mxu0 %v4015
  %5544 = vmatpush.bf16.msra.mxu0 %v4014
  %5545 = vmatpush.bf16.msra.mxu0 %v4013
  %5546 = vmatmul.bf16.gmra.mxu0 %v5471
  %v5547 = vpop.f32.mrf.mxu0
  %v5548 = vadd.f32 %v3798, %v5547
  %v5549 = vpop.f32.mrf.mxu0
  %5550 = vdwg.mxu0
  %5551 = vmatpush.bf16.msra.mxu0 0
  %5552 = vmatpush.bf16.msra.mxu0 0
  %5553 = vmatpush.bf16.msra.mxu0 0
  %5554 = vmatpush.bf16.msra.mxu0 0
  %5555 = vmatpush.bf16.msra.mxu0 %v4053
  %5556 = vmatpush.bf16.msra.mxu0 %v4052
  %5557 = vmatpush.bf16.msra.mxu0 %v4051
  %5558 = vmatpush.bf16.msra.mxu0 %v4050
  %5559 = vmatmul.bf16.gmra.mxu0 %v5471
  %v5560 = vpop.f32.mrf.mxu0
  %v5561 = vadd.f32 %v3799, %v5560
  %v5562 = vpop.f32.mrf.mxu0
  %5563 = vdwg.mxu0
  %5564 = vmatpush.bf16.msra.mxu0 0
  %5565 = vmatpush.bf16.msra.mxu0 0
  %5566 = vmatpush.bf16.msra.mxu0 0
  %5567 = vmatpush.bf16.msra.mxu0 0
  %5568 = vmatpush.bf16.msra.mxu0 %v4090
  %5569 = vmatpush.bf16.msra.mxu0 %v4089
  %5570 = vmatpush.bf16.msra.mxu0 %v4088
  %5571 = vmatpush.bf16.msra.mxu0 %v4087
  %5572 = vmatmul.bf16.gmra.mxu0 %v5471
  %v5573 = vpop.f32.mrf.mxu0
  %v5574 = vadd.f32 %v3800, %v5573
  %v5575 = vpop.f32.mrf.mxu0
  %5576 = vdwg.mxu0
  %5577 = vmatpush.bf16.msra.mxu0 0
  %5578 = vmatpush.bf16.msra.mxu0 0
  %5579 = vmatpush.bf16.msra.mxu0 0
  %5580 = vmatpush.bf16.msra.mxu0 0
  %5581 = vmatpush.bf16.msra.mxu0 %v4151
  %5582 = vmatpush.bf16.msra.mxu0 %v4150
  %5583 = vmatpush.bf16.msra.mxu0 %v4149
  %5584 = vmatpush.bf16.msra.mxu0 %v4148
  %5585 = vmatmul.bf16.gmra.mxu0 %v5471
  %v5586 = vpop.f32.mrf.mxu0
  %v5587 = vadd.f32 %v4116, %v5586
  %v5588 = vpop.f32.mrf.mxu0
  %5589 = vdwg.mxu0
  %5590 = vmatpush.bf16.msra.mxu0 0
  %5591 = vmatpush.bf16.msra.mxu0 0
  %5592 = vmatpush.bf16.msra.mxu0 0
  %5593 = vmatpush.bf16.msra.mxu0 0
  %5594 = vmatpush.bf16.msra.mxu0 %v4188
  %5595 = vmatpush.bf16.msra.mxu0 %v4187
  %5596 = vmatpush.bf16.msra.mxu0 %v4186
  %5597 = vmatpush.bf16.msra.mxu0 %v4185
  %5598 = vmatmul.bf16.gmra.mxu0 %v5471
  %v5599 = vpop.f32.mrf.mxu0
  %v5600 = vadd.f32 %v4117, %v5599
  %v5601 = vpop.f32.mrf.mxu0
  %5602 = vdwg.mxu0
  %5603 = vmatpush.bf16.msra.mxu0 0
  %5604 = vmatpush.bf16.msra.mxu0 0
  %5605 = vmatpush.bf16.msra.mxu0 0
  %5606 = vmatpush.bf16.msra.mxu0 0
  %5607 = vmatpush.bf16.msra.mxu0 %v4225
  %5608 = vmatpush.bf16.msra.mxu0 %v4224
  %5609 = vmatpush.bf16.msra.mxu0 %v4223
  %5610 = vmatpush.bf16.msra.mxu0 %v4222
  %5611 = vmatmul.bf16.gmra.mxu0 %v5471
  %v5612 = vpop.f32.mrf.mxu0
  %v5613 = vadd.f32 %v4118, %v5612
  %v5614 = vpop.f32.mrf.mxu0
  %5615 = vdwg.mxu0
  %5616 = vmatpush.bf16.msra.mxu0 0
  %5617 = vmatpush.bf16.msra.mxu0 0
  %5618 = vmatpush.bf16.msra.mxu0 0
  %5619 = vmatpush.bf16.msra.mxu0 0
  %5620 = vmatpush.bf16.msra.mxu0 %v4262
  %5621 = vmatpush.bf16.msra.mxu0 %v4261
  %5622 = vmatpush.bf16.msra.mxu0 %v4260
  %5623 = vmatpush.bf16.msra.mxu0 %v4259
  %5624 = vmatmul.bf16.gmra.mxu0 %v5471
  %v5625 = vpop.f32.mrf.mxu0
  %v5626 = vadd.f32 %v4119, %v5625
  %v5627 = vpop.f32.mrf.mxu0
  %5628 = vdwg.mxu0
  %5629 = vmatpush.bf16.msra.mxu0 0
  %5630 = vmatpush.bf16.msra.mxu0 0
  %5631 = vmatpush.bf16.msra.mxu0 0
  %5632 = vmatpush.bf16.msra.mxu0 0
  %5633 = vmatpush.bf16.msra.mxu0 %v4299
  %5634 = vmatpush.bf16.msra.mxu0 %v4298
  %5635 = vmatpush.bf16.msra.mxu0 %v4297
  %5636 = vmatpush.bf16.msra.mxu0 %v4296
  %5637 = vmatmul.bf16.gmra.mxu0 %v5471
  %v5638 = vpop.f32.mrf.mxu0
  %v5639 = vadd.f32 %v4120, %v5638
  %v5640 = vpop.f32.mrf.mxu0
  %5641 = vdwg.mxu0
  %5642 = vmatpush.bf16.msra.mxu0 0
  %5643 = vmatpush.bf16.msra.mxu0 0
  %5644 = vmatpush.bf16.msra.mxu0 0
  %5645 = vmatpush.bf16.msra.mxu0 0
  %5646 = vmatpush.bf16.msra.mxu0 %v4336
  %5647 = vmatpush.bf16.msra.mxu0 %v4335
  %5648 = vmatpush.bf16.msra.mxu0 %v4334
  %5649 = vmatpush.bf16.msra.mxu0 %v4333
  %5650 = vmatmul.bf16.gmra.mxu0 %v5471
  %v5651 = vpop.f32.mrf.mxu0
  %v5652 = vadd.f32 %v4121, %v5651
  %v5653 = vpop.f32.mrf.mxu0
  %5654 = vdwg.mxu0
  %5655 = vmatpush.bf16.msra.mxu0 0
  %5656 = vmatpush.bf16.msra.mxu0 0
  %5657 = vmatpush.bf16.msra.mxu0 0
  %5658 = vmatpush.bf16.msra.mxu0 0
  %5659 = vmatpush.bf16.msra.mxu0 %v4373
  %5660 = vmatpush.bf16.msra.mxu0 %v4372
  %5661 = vmatpush.bf16.msra.mxu0 %v4371
  %5662 = vmatpush.bf16.msra.mxu0 %v4370
  %5663 = vmatmul.bf16.gmra.mxu0 %v5471
  %v5664 = vpop.f32.mrf.mxu0
  %v5665 = vadd.f32 %v4122, %v5664
  %v5666 = vpop.f32.mrf.mxu0
  %5667 = vdwg.mxu0
  %5668 = vmatpush.bf16.msra.mxu0 0
  %5669 = vmatpush.bf16.msra.mxu0 0
  %5670 = vmatpush.bf16.msra.mxu0 0
  %5671 = vmatpush.bf16.msra.mxu0 0
  %5672 = vmatpush.bf16.msra.mxu0 %v4410
  %5673 = vmatpush.bf16.msra.mxu0 %v4409
  %5674 = vmatpush.bf16.msra.mxu0 %v4408
  %5675 = vmatpush.bf16.msra.mxu0 %v4407
  %5676 = vmatmul.bf16.gmra.mxu0 %v5471
  %v5677 = vpop.f32.mrf.mxu0
  %v5678 = vadd.f32 %v4123, %v5677
  %v5679 = vpop.f32.mrf.mxu0
  %5680 = vdwg.mxu0
  %5681 = vmatpush.bf16.msra.mxu0 0
  %5682 = vmatpush.bf16.msra.mxu0 0
  %5683 = vmatpush.bf16.msra.mxu0 0
  %5684 = vmatpush.bf16.msra.mxu0 0
  %5685 = vmatpush.bf16.msra.mxu0 %v4471
  %5686 = vmatpush.bf16.msra.mxu0 %v4470
  %5687 = vmatpush.bf16.msra.mxu0 %v4469
  %5688 = vmatpush.bf16.msra.mxu0 %v4468
  %5689 = vmatmul.bf16.gmra.mxu0 %v5471
  %v5690 = vpop.f32.mrf.mxu0
  %v5691 = vadd.f32 %v4436, %v5690
  %v5692 = vpop.f32.mrf.mxu0
  %5693 = vdwg.mxu0
  %5694 = vmatpush.bf16.msra.mxu0 0
  %5695 = vmatpush.bf16.msra.mxu0 0
  %5696 = vmatpush.bf16.msra.mxu0 0
  %5697 = vmatpush.bf16.msra.mxu0 0
  %5698 = vmatpush.bf16.msra.mxu0 %v4508
  %5699 = vmatpush.bf16.msra.mxu0 %v4507
  %5700 = vmatpush.bf16.msra.mxu0 %v4506
  %5701 = vmatpush.bf16.msra.mxu0 %v4505
  %5702 = vmatmul.bf16.gmra.mxu0 %v5471
  %v5703 = vpop.f32.mrf.mxu0
  %v5704 = vadd.f32 %v4437, %v5703
  %v5705 = vpop.f32.mrf.mxu0
  %5706 = vdwg.mxu0
  %5707 = vmatpush.bf16.msra.mxu0 0
  %5708 = vmatpush.bf16.msra.mxu0 0
  %5709 = vmatpush.bf16.msra.mxu0 0
  %5710 = vmatpush.bf16.msra.mxu0 0
  %5711 = vmatpush.bf16.msra.mxu0 %v4545
  %5712 = vmatpush.bf16.msra.mxu0 %v4544
  %5713 = vmatpush.bf16.msra.mxu0 %v4543
  %5714 = vmatpush.bf16.msra.mxu0 %v4542
  %5715 = vmatmul.bf16.gmra.mxu0 %v5471
  %v5716 = vpop.f32.mrf.mxu0
  %v5717 = vadd.f32 %v4438, %v5716
  %v5718 = vpop.f32.mrf.mxu0
  %5719 = vdwg.mxu0
  %5720 = vmatpush.bf16.msra.mxu0 0
  %5721 = vmatpush.bf16.msra.mxu0 0
  %5722 = vmatpush.bf16.msra.mxu0 0
  %5723 = vmatpush.bf16.msra.mxu0 0
  %5724 = vmatpush.bf16.msra.mxu0 %v4582
  %5725 = vmatpush.bf16.msra.mxu0 %v4581
  %5726 = vmatpush.bf16.msra.mxu0 %v4580
  %5727 = vmatpush.bf16.msra.mxu0 %v4579
  %5728 = vmatmul.bf16.gmra.mxu0 %v5471
  %v5729 = vpop.f32.mrf.mxu0
  %v5730 = vadd.f32 %v4439, %v5729
  %v5731 = vpop.f32.mrf.mxu0
  %5732 = vdwg.mxu0
  %5733 = vmatpush.bf16.msra.mxu0 0
  %5734 = vmatpush.bf16.msra.mxu0 0
  %5735 = vmatpush.bf16.msra.mxu0 0
  %5736 = vmatpush.bf16.msra.mxu0 0
  %5737 = vmatpush.bf16.msra.mxu0 %v4619
  %5738 = vmatpush.bf16.msra.mxu0 %v4618
  %5739 = vmatpush.bf16.msra.mxu0 %v4617
  %5740 = vmatpush.bf16.msra.mxu0 %v4616
  %5741 = vmatmul.bf16.gmra.mxu0 %v5471
  %v5742 = vpop.f32.mrf.mxu0
  %v5743 = vadd.f32 %v4440, %v5742
  %v5744 = vpop.f32.mrf.mxu0
  %5745 = vdwg.mxu0
  %5746 = vmatpush.bf16.msra.mxu0 0
  %5747 = vmatpush.bf16.msra.mxu0 0
  %5748 = vmatpush.bf16.msra.mxu0 0
  %5749 = vmatpush.bf16.msra.mxu0 0
  %5750 = vmatpush.bf16.msra.mxu0 %v4656
  %5751 = vmatpush.bf16.msra.mxu0 %v4655
  %5752 = vmatpush.bf16.msra.mxu0 %v4654
  %5753 = vmatpush.bf16.msra.mxu0 %v4653
  %5754 = vmatmul.bf16.gmra.mxu0 %v5471
  %v5755 = vpop.f32.mrf.mxu0
  %v5756 = vadd.f32 %v4441, %v5755
  %v5757 = vpop.f32.mrf.mxu0
  %5758 = vdwg.mxu0
  %5759 = vmatpush.bf16.msra.mxu0 0
  %5760 = vmatpush.bf16.msra.mxu0 0
  %5761 = vmatpush.bf16.msra.mxu0 0
  %5762 = vmatpush.bf16.msra.mxu0 0
  %5763 = vmatpush.bf16.msra.mxu0 %v4693
  %5764 = vmatpush.bf16.msra.mxu0 %v4692
  %5765 = vmatpush.bf16.msra.mxu0 %v4691
  %5766 = vmatpush.bf16.msra.mxu0 %v4690
  %5767 = vmatmul.bf16.gmra.mxu0 %v5471
  %v5768 = vpop.f32.mrf.mxu0
  %v5769 = vadd.f32 %v4442, %v5768
  %v5770 = vpop.f32.mrf.mxu0
  %5771 = vdwg.mxu0
  %5772 = vmatpush.bf16.msra.mxu0 0
  %5773 = vmatpush.bf16.msra.mxu0 0
  %5774 = vmatpush.bf16.msra.mxu0 0
  %5775 = vmatpush.bf16.msra.mxu0 0
  %5776 = vmatpush.bf16.msra.mxu0 %v4730
  %5777 = vmatpush.bf16.msra.mxu0 %v4729
  %5778 = vmatpush.bf16.msra.mxu0 %v4728
  %5779 = vmatpush.bf16.msra.mxu0 %v4727
  %5780 = vmatmul.bf16.gmra.mxu0 %v5471
  %v5781 = vpop.f32.mrf.mxu0
  %v5782 = vadd.f32 %v4443, %v5781
  %v5783 = vpop.f32.mrf.mxu0
  %5784 = vdwg.mxu0
  %v5785 = vpack.c.bf16 %v5483, %v5483
  %v5786 = vpack.c.bf16 %v5496, %v5496
  %v5787 = vpack.c.bf16 %v5509, %v5509
  %v5788 = vpack.c.bf16 %v5522, %v5522
  %v5789 = vpack.c.bf16 %v5535, %v5535
  %v5790 = vpack.c.bf16 %v5548, %v5548
  %v5791 = vpack.c.bf16 %v5561, %v5561
  %v5792 = vpack.c.bf16 %v5574, %v5574
  %v5793 = vpack.c.bf16 %v5587, %v5587
  %v5794 = vpack.c.bf16 %v5600, %v5600
  %v5795 = vpack.c.bf16 %v5613, %v5613
  %v5796 = vpack.c.bf16 %v5626, %v5626
  %v5797 = vpack.c.bf16 %v5639, %v5639
  %v5798 = vpack.c.bf16 %v5652, %v5652
  %v5799 = vpack.c.bf16 %v5665, %v5665
  %v5800 = vpack.c.bf16 %v5678, %v5678
  %v5802 = vsel %vm1450, %v5785, 0
  %v5805 = vsel %vm1450, %v5793, 0
  %5807 = vmatpush.bf16.xpose.msra.mxu0 0
  %5808 = vmatpush.bf16.xpose.msra.mxu0 0
  %5809 = vmatpush.bf16.xpose.msra.mxu0 0
  %5810 = vmatpush.bf16.xpose.msra.mxu0 0
  %5811 = vmatpush.bf16.xpose.msra.mxu0 0
  %5812 = vmatpush.bf16.xpose.msra.mxu0 0
  %5813 = vmatpush.bf16.xpose.msra.mxu0 0
  %5814 = vmatpush.bf16.xpose.msra.mxu0 %v5805
  %5815 = vmatmul.bf16.gmra.mxu0 %v5802
  %v5816 = vpop.f32.mrf.mxu0
  %v5817 = vadd.f32 0.0, %v5816
  %v5818 = vpop.f32.mrf.mxu0
  %5819 = vdwg.mxu0
  %v5821 = vsel %vm1450, %v5786, 0
  %v5824 = vsel %vm1450, %v5794, 0
  %5826 = vmatpush.bf16.xpose.msra.mxu0 0
  %5827 = vmatpush.bf16.xpose.msra.mxu0 0
  %5828 = vmatpush.bf16.xpose.msra.mxu0 0
  %5829 = vmatpush.bf16.xpose.msra.mxu0 0
  %5830 = vmatpush.bf16.xpose.msra.mxu0 0
  %5831 = vmatpush.bf16.xpose.msra.mxu0 0
  %5832 = vmatpush.bf16.xpose.msra.mxu0 0
  %5833 = vmatpush.bf16.xpose.msra.mxu0 %v5824
  %5834 = vmatmul.bf16.gmra.mxu0 %v5821
  %v5835 = vpop.f32.mrf.mxu0
  %v5836 = vadd.f32 0.0, %v5835
  %v5837 = vpop.f32.mrf.mxu0
  %5838 = vdwg.mxu0
  %v5840 = vsel %vm1450, %v5787, 0
  %v5843 = vsel %vm1450, %v5795, 0
  %5845 = vmatpush.bf16.xpose.msra.mxu0 0
  %5846 = vmatpush.bf16.xpose.msra.mxu0 0
  %5847 = vmatpush.bf16.xpose.msra.mxu0 0
  %5848 = vmatpush.bf16.xpose.msra.mxu0 0
  %5849 = vmatpush.bf16.xpose.msra.mxu0 0
  %5850 = vmatpush.bf16.xpose.msra.mxu0 0
  %5851 = vmatpush.bf16.xpose.msra.mxu0 0
  %5852 = vmatpush.bf16.xpose.msra.mxu0 %v5843
  %5853 = vmatmul.bf16.gmra.mxu0 %v5840
  %v5854 = vpop.f32.mrf.mxu0
  %v5855 = vadd.f32 0.0, %v5854
  %v5856 = vpop.f32.mrf.mxu0
  %5857 = vdwg.mxu0
  %v5859 = vsel %vm1450, %v5788, 0
  %v5862 = vsel %vm1450, %v5796, 0
  %5864 = vmatpush.bf16.xpose.msra.mxu0 0
  %5865 = vmatpush.bf16.xpose.msra.mxu0 0
  %5866 = vmatpush.bf16.xpose.msra.mxu0 0
  %5867 = vmatpush.bf16.xpose.msra.mxu0 0
  %5868 = vmatpush.bf16.xpose.msra.mxu0 0
  %5869 = vmatpush.bf16.xpose.msra.mxu0 0
  %5870 = vmatpush.bf16.xpose.msra.mxu0 0
  %5871 = vmatpush.bf16.xpose.msra.mxu0 %v5862
  %5872 = vmatmul.bf16.gmra.mxu0 %v5859
  %v5873 = vpop.f32.mrf.mxu0
  %v5874 = vadd.f32 0.0, %v5873
  %v5875 = vpop.f32.mrf.mxu0
  %5876 = vdwg.mxu0
  %v5878 = vsel %vm1450, %v5789, 0
  %v5881 = vsel %vm1450, %v5797, 0
  %5883 = vmatpush.bf16.xpose.msra.mxu0 0
  %5884 = vmatpush.bf16.xpose.msra.mxu0 0
  %5885 = vmatpush.bf16.xpose.msra.mxu0 0
  %5886 = vmatpush.bf16.xpose.msra.mxu0 0
  %5887 = vmatpush.bf16.xpose.msra.mxu0 0
  %5888 = vmatpush.bf16.xpose.msra.mxu0 0
  %5889 = vmatpush.bf16.xpose.msra.mxu0 0
  %5890 = vmatpush.bf16.xpose.msra.mxu0 %v5881
  %5891 = vmatmul.bf16.gmra.mxu0 %v5878
  %v5892 = vpop.f32.mrf.mxu0
  %v5893 = vadd.f32 0.0, %v5892
  %v5894 = vpop.f32.mrf.mxu0
  %5895 = vdwg.mxu0
  %v5897 = vsel %vm1450, %v5790, 0
  %v5900 = vsel %vm1450, %v5798, 0
  %5902 = vmatpush.bf16.xpose.msra.mxu0 0
  %5903 = vmatpush.bf16.xpose.msra.mxu0 0
  %5904 = vmatpush.bf16.xpose.msra.mxu0 0
  %5905 = vmatpush.bf16.xpose.msra.mxu0 0
  %5906 = vmatpush.bf16.xpose.msra.mxu0 0
  %5907 = vmatpush.bf16.xpose.msra.mxu0 0
  %5908 = vmatpush.bf16.xpose.msra.mxu0 0
  %5909 = vmatpush.bf16.xpose.msra.mxu0 %v5900
  %5910 = vmatmul.bf16.gmra.mxu0 %v5897
  %v5911 = vpop.f32.mrf.mxu0
  %v5912 = vadd.f32 0.0, %v5911
  %v5913 = vpop.f32.mrf.mxu0
  %5914 = vdwg.mxu0
  %v5916 = vsel %vm1450, %v5791, 0
  %v5919 = vsel %vm1450, %v5799, 0
  %5921 = vmatpush.bf16.xpose.msra.mxu0 0
  %5922 = vmatpush.bf16.xpose.msra.mxu0 0
  %5923 = vmatpush.bf16.xpose.msra.mxu0 0
  %5924 = vmatpush.bf16.xpose.msra.mxu0 0
  %5925 = vmatpush.bf16.xpose.msra.mxu0 0
  %5926 = vmatpush.bf16.xpose.msra.mxu0 0
  %5927 = vmatpush.bf16.xpose.msra.mxu0 0
  %5928 = vmatpush.bf16.xpose.msra.mxu0 %v5919
  %5929 = vmatmul.bf16.gmra.mxu0 %v5916
  %v5930 = vpop.f32.mrf.mxu0
  %v5931 = vadd.f32 0.0, %v5930
  %v5932 = vpop.f32.mrf.mxu0
  %5933 = vdwg.mxu0
  %v5935 = vsel %vm1450, %v5792, 0
  %v5938 = vsel %vm1450, %v5800, 0
  %5940 = vmatpush.bf16.xpose.msra.mxu0 0
  %5941 = vmatpush.bf16.xpose.msra.mxu0 0
  %5942 = vmatpush.bf16.xpose.msra.mxu0 0
  %5943 = vmatpush.bf16.xpose.msra.mxu0 0
  %5944 = vmatpush.bf16.xpose.msra.mxu0 0
  %5945 = vmatpush.bf16.xpose.msra.mxu0 0
  %5946 = vmatpush.bf16.xpose.msra.mxu0 0
  %5947 = vmatpush.bf16.xpose.msra.mxu0 %v5938
  %5948 = vmatmul.bf16.gmra.mxu0 %v5935
  %v5949 = vpop.f32.mrf.mxu0
  %v5950 = vadd.f32 0.0, %v5949
  %v5951 = vpop.f32.mrf.mxu0
  %5952 = vdwg.mxu0
  %v5953 = vmul.f32 %v5817, 0.35355338
  %v5954 = vmul.f32 %v5836, 0.35355338
  %v5955 = vmul.f32 %v5855, 0.35355338
  %v5956 = vmul.f32 %v5874, 0.35355338
  %v5957 = vmul.f32 %v5893, 0.35355338
  %v5958 = vmul.f32 %v5912, 0.35355338
  %v5959 = vmul.f32 %v5931, 0.35355338
  %v5960 = vmul.f32 %v5950, 0.35355338
  %v5961 = vsel %vm1611, %v5953, -inf
  %5962 = vmax.xlane.f32.xlu0 %v5961
  %v5963 = vpop.xlane.xlu0 %5962
  %v5964 = vsel %vm1611, %v5954, -inf
  %5965 = vmax.xlane.f32.xlu0 %v5964
  %v5966 = vpop.xlane.xlu0 %5965
  %v5967 = vsel %vm1611, %v5955, -inf
  %5968 = vmax.xlane.f32.xlu0 %v5967
  %v5969 = vpop.xlane.xlu0 %5968
  %v5970 = vsel %vm1611, %v5956, -inf
  %5971 = vmax.xlane.f32.xlu0 %v5970
  %v5972 = vpop.xlane.xlu0 %5971
  %v5973 = vsel %vm1611, %v5957, -inf
  %5974 = vmax.xlane.f32.xlu0 %v5973
  %v5975 = vpop.xlane.xlu0 %5974
  %v5976 = vsel %vm1611, %v5958, -inf
  %5977 = vmax.xlane.f32.xlu0 %v5976
  %v5978 = vpop.xlane.xlu0 %5977
  %v5979 = vsel %vm1611, %v5959, -inf
  %5980 = vmax.xlane.f32.xlu0 %v5979
  %v5981 = vpop.xlane.xlu0 %5980
  %v5982 = vsel %vm1611, %v5960, -inf
  %5983 = vmax.xlane.f32.xlu0 %v5982
  %v5984 = vpop.xlane.xlu0 %5983
  %v5985 = vsub.f32 %v5953, %v5963
  %v5986 = vsub.f32 %v5954, %v5966
  %v5987 = vsub.f32 %v5955, %v5969
  %v5988 = vsub.f32 %v5956, %v5972
  %v5989 = vsub.f32 %v5957, %v5975
  %v5990 = vsub.f32 %v5958, %v5978
  %v5991 = vsub.f32 %v5959, %v5981
  %v5992 = vsub.f32 %v5960, %v5984
  %v5993 = vmul.f32 %v5985, 1.442695
  %v5994 = vpow.pop %v5993
  %v5995 = vmul.f32 %v5986, 1.442695
  %v5996 = vpow.pop %v5995
  %v5997 = vmul.f32 %v5987, 1.442695
  %v5998 = vpow.pop %v5997
  %v5999 = vmul.f32 %v5988, 1.442695
  %v6000 = vpow.pop %v5999
  %v6001 = vmul.f32 %v5989, 1.442695
  %v6002 = vpow.pop %v6001
  %v6003 = vmul.f32 %v5990, 1.442695
  %v6004 = vpow.pop %v6003
  %v6005 = vmul.f32 %v5991, 1.442695
  %v6006 = vpow.pop %v6005
  %v6007 = vmul.f32 %v5992, 1.442695
  %v6008 = vpow.pop %v6007
  %v6009 = vsel %vm1611, %v5994, 0.0
  %6010 = vadd.xlane.f32.xlu0 %v6009
  %v6011 = vpop.xlane.xlu0 %6010
  %v6012 = vsel %vm1611, %v5996, 0.0
  %6013 = vadd.xlane.f32.xlu0 %v6012
  %v6014 = vpop.xlane.xlu0 %6013
  %v6015 = vsel %vm1611, %v5998, 0.0
  %6016 = vadd.xlane.f32.xlu0 %v6015
  %v6017 = vpop.xlane.xlu0 %6016
  %v6018 = vsel %vm1611, %v6000, 0.0
  %6019 = vadd.xlane.f32.xlu0 %v6018
  %v6020 = vpop.xlane.xlu0 %6019
  %v6021 = vsel %vm1611, %v6002, 0.0
  %6022 = vadd.xlane.f32.xlu0 %v6021
  %v6023 = vpop.xlane.xlu0 %6022
  %v6024 = vsel %vm1611, %v6004, 0.0
  %6025 = vadd.xlane.f32.xlu0 %v6024
  %v6026 = vpop.xlane.xlu0 %6025
  %v6027 = vsel %vm1611, %v6006, 0.0
  %6028 = vadd.xlane.f32.xlu0 %v6027
  %v6029 = vpop.xlane.xlu0 %6028
  %v6030 = vsel %vm1611, %v6008, 0.0
  %6031 = vadd.xlane.f32.xlu0 %v6030
  %v6032 = vpop.xlane.xlu0 %6031
  %v6033 = vrcp.pop %v6011
  %v6034 = vmul.f32 %v6011, %v6033
  %v6035 = vsub.f32 1.0, %v6034
  %v6036 = vmul.f32 %v6033, %v6035
  %v6037 = vadd.f32 %v6033, %v6036
  %vm6038 = vweird.f32 %v6011
  %vm6039 = vweird.f32 %v6033
  %vm6040 = vmor %vm6038, %vm6039
  %v6041 = vsel %vm6040, %v6033, %v6037
  %v6042 = vand.u32 2147483647, %v6011
  %vm6043 = vcmp.eq.f32.partialorder %v6042, 8.507059e+37
  %v6044 = vand.u32 %v6011, 2147483648
  %v6045 = vor.u32 1.1754944e-38, %v6044
  %v6046 = vsel %vm6043, %v6045, %v6041
  %v6047 = vmul.f32 %v5994, %v6046
  %v6048 = vrcp.pop %v6014
  %v6049 = vmul.f32 %v6014, %v6048
  %v6050 = vsub.f32 1.0, %v6049
  %v6051 = vmul.f32 %v6048, %v6050
  %v6052 = vadd.f32 %v6048, %v6051
  %vm6053 = vweird.f32 %v6014
  %vm6054 = vweird.f32 %v6048
  %vm6055 = vmor %vm6053, %vm6054
  %v6056 = vsel %vm6055, %v6048, %v6052
  %v6057 = vand.u32 2147483647, %v6014
  %vm6058 = vcmp.eq.f32.partialorder %v6057, 8.507059e+37
  %v6059 = vand.u32 %v6014, 2147483648
  %v6060 = vor.u32 1.1754944e-38, %v6059
  %v6061 = vsel %vm6058, %v6060, %v6056
  %v6062 = vmul.f32 %v5996, %v6061
  %v6063 = vrcp.pop %v6017
  %v6064 = vmul.f32 %v6017, %v6063
  %v6065 = vsub.f32 1.0, %v6064
  %v6066 = vmul.f32 %v6063, %v6065
  %v6067 = vadd.f32 %v6063, %v6066
  %vm6068 = vweird.f32 %v6017
  %vm6069 = vweird.f32 %v6063
  %vm6070 = vmor %vm6068, %vm6069
  %v6071 = vsel %vm6070, %v6063, %v6067
  %v6072 = vand.u32 2147483647, %v6017
  %vm6073 = vcmp.eq.f32.partialorder %v6072, 8.507059e+37
  %v6074 = vand.u32 %v6017, 2147483648
  %v6075 = vor.u32 1.1754944e-38, %v6074
  %v6076 = vsel %vm6073, %v6075, %v6071
  %v6077 = vmul.f32 %v5998, %v6076
  %v6078 = vrcp.pop %v6020
  %v6079 = vmul.f32 %v6020, %v6078
  %v6080 = vsub.f32 1.0, %v6079
  %v6081 = vmul.f32 %v6078, %v6080
  %v6082 = vadd.f32 %v6078, %v6081
  %vm6083 = vweird.f32 %v6020
  %vm6084 = vweird.f32 %v6078
  %vm6085 = vmor %vm6083, %vm6084
  %v6086 = vsel %vm6085, %v6078, %v6082
  %v6087 = vand.u32 2147483647, %v6020
  %vm6088 = vcmp.eq.f32.partialorder %v6087, 8.507059e+37
  %v6089 = vand.u32 %v6020, 2147483648
  %v6090 = vor.u32 1.1754944e-38, %v6089
  %v6091 = vsel %vm6088, %v6090, %v6086
  %v6092 = vmul.f32 %v6000, %v6091
  %v6093 = vrcp.pop %v6023
  %v6094 = vmul.f32 %v6023, %v6093
  %v6095 = vsub.f32 1.0, %v6094
  %v6096 = vmul.f32 %v6093, %v6095
  %v6097 = vadd.f32 %v6093, %v6096
  %vm6098 = vweird.f32 %v6023
  %vm6099 = vweird.f32 %v6093
  %vm6100 = vmor %vm6098, %vm6099
  %v6101 = vsel %vm6100, %v6093, %v6097
  %v6102 = vand.u32 2147483647, %v6023
  %vm6103 = vcmp.eq.f32.partialorder %v6102, 8.507059e+37
  %v6104 = vand.u32 %v6023, 2147483648
  %v6105 = vor.u32 1.1754944e-38, %v6104
  %v6106 = vsel %vm6103, %v6105, %v6101
  %v6107 = vmul.f32 %v6002, %v6106
  %v6108 = vrcp.pop %v6026
  %v6109 = vmul.f32 %v6026, %v6108
  %v6110 = vsub.f32 1.0, %v6109
  %v6111 = vmul.f32 %v6108, %v6110
  %v6112 = vadd.f32 %v6108, %v6111
  %vm6113 = vweird.f32 %v6026
  %vm6114 = vweird.f32 %v6108
  %vm6115 = vmor %vm6113, %vm6114
  %v6116 = vsel %vm6115, %v6108, %v6112
  %v6117 = vand.u32 2147483647, %v6026
  %vm6118 = vcmp.eq.f32.partialorder %v6117, 8.507059e+37
  %v6119 = vand.u32 %v6026, 2147483648
  %v6120 = vor.u32 1.1754944e-38, %v6119
  %v6121 = vsel %vm6118, %v6120, %v6116
  %v6122 = vmul.f32 %v6004, %v6121
  %v6123 = vrcp.pop %v6029
  %v6124 = vmul.f32 %v6029, %v6123
  %v6125 = vsub.f32 1.0, %v6124
  %v6126 = vmul.f32 %v6123, %v6125
  %v6127 = vadd.f32 %v6123, %v6126
  %vm6128 = vweird.f32 %v6029
  %vm6129 = vweird.f32 %v6123
  %vm6130 = vmor %vm6128, %vm6129
  %v6131 = vsel %vm6130, %v6123, %v6127
  %v6132 = vand.u32 2147483647, %v6029
  %vm6133 = vcmp.eq.f32.partialorder %v6132, 8.507059e+37
  %v6134 = vand.u32 %v6029, 2147483648
  %v6135 = vor.u32 1.1754944e-38, %v6134
  %v6136 = vsel %vm6133, %v6135, %v6131
  %v6137 = vmul.f32 %v6006, %v6136
  %v6138 = vrcp.pop %v6032
  %v6139 = vmul.f32 %v6032, %v6138
  %v6140 = vsub.f32 1.0, %v6139
  %v6141 = vmul.f32 %v6138, %v6140
  %v6142 = vadd.f32 %v6138, %v6141
  %vm6143 = vweird.f32 %v6032
  %vm6144 = vweird.f32 %v6138
  %vm6145 = vmor %vm6143, %vm6144
  %v6146 = vsel %vm6145, %v6138, %v6142
  %v6147 = vand.u32 2147483647, %v6032
  %vm6148 = vcmp.eq.f32.partialorder %v6147, 8.507059e+37
  %v6149 = vand.u32 %v6032, 2147483648
  %v6150 = vor.u32 1.1754944e-38, %v6149
  %v6151 = vsel %vm6148, %v6150, %v6146
  %v6152 = vmul.f32 %v6008, %v6151
  %v6153 = vpack.c.bf16 %v6047, %v6047
  %v6154 = vpack.c.bf16 %v6062, %v6062
  %v6155 = vpack.c.bf16 %v6077, %v6077
  %v6156 = vpack.c.bf16 %v6092, %v6092
  %v6157 = vpack.c.bf16 %v6107, %v6107
  %v6158 = vpack.c.bf16 %v6122, %v6122
  %v6159 = vpack.c.bf16 %v6137, %v6137
  %v6160 = vpack.c.bf16 %v6152, %v6152
  %v6161 = vpack.c.bf16 %v5691, %v5691
  %v6162 = vpack.c.bf16 %v5704, %v5704
  %v6163 = vpack.c.bf16 %v5717, %v5717
  %v6164 = vpack.c.bf16 %v5730, %v5730
  %v6165 = vpack.c.bf16 %v5743, %v5743
  %v6166 = vpack.c.bf16 %v5756, %v5756
  %v6167 = vpack.c.bf16 %v5769, %v5769
  %v6168 = vpack.c.bf16 %v5782, %v5782
  %v6170 = vsel %vm1820, %v6153, 0
  %v6173 = vsel %vm141, %v6161, 0
  %6175 = vmatpush.bf16.msra.mxu0 0
  %6176 = vmatpush.bf16.msra.mxu0 0
  %6177 = vmatpush.bf16.msra.mxu0 0
  %6178 = vmatpush.bf16.msra.mxu0 0
  %6179 = vmatpush.bf16.msra.mxu0 0
  %6180 = vmatpush.bf16.msra.mxu0 0
  %6181 = vmatpush.bf16.msra.mxu0 0
  %6182 = vmatpush.bf16.msra.mxu0 %v6173
  %6183 = vmatmul.bf16.gmra.mxu0 %v6170
  %v6184 = vpop.f32.mrf.mxu0
  %v6185 = vadd.f32 0.0, %v6184
  %v6186 = vpop.f32.mrf.mxu0
  %6187 = vdwg.mxu0
  %v6189 = vsel %vm1820, %v6154, 0
  %v6192 = vsel %vm141, %v6162, 0
  %6194 = vmatpush.bf16.msra.mxu0 0
  %6195 = vmatpush.bf16.msra.mxu0 0
  %6196 = vmatpush.bf16.msra.mxu0 0
  %6197 = vmatpush.bf16.msra.mxu0 0
  %6198 = vmatpush.bf16.msra.mxu0 0
  %6199 = vmatpush.bf16.msra.mxu0 0
  %6200 = vmatpush.bf16.msra.mxu0 0
  %6201 = vmatpush.bf16.msra.mxu0 %v6192
  %6202 = vmatmul.bf16.gmra.mxu0 %v6189
  %v6203 = vpop.f32.mrf.mxu0
  %v6204 = vadd.f32 0.0, %v6203
  %v6205 = vpop.f32.mrf.mxu0
  %6206 = vdwg.mxu0
  %v6208 = vsel %vm1820, %v6155, 0
  %v6211 = vsel %vm141, %v6163, 0
  %6213 = vmatpush.bf16.msra.mxu0 0
  %6214 = vmatpush.bf16.msra.mxu0 0
  %6215 = vmatpush.bf16.msra.mxu0 0
  %6216 = vmatpush.bf16.msra.mxu0 0
  %6217 = vmatpush.bf16.msra.mxu0 0
  %6218 = vmatpush.bf16.msra.mxu0 0
  %6219 = vmatpush.bf16.msra.mxu0 0
  %6220 = vmatpush.bf16.msra.mxu0 %v6211
  %6221 = vmatmul.bf16.gmra.mxu0 %v6208
  %v6222 = vpop.f32.mrf.mxu0
  %v6223 = vadd.f32 0.0, %v6222
  %v6224 = vpop.f32.mrf.mxu0
  %6225 = vdwg.mxu0
  %v6227 = vsel %vm1820, %v6156, 0
  %v6230 = vsel %vm141, %v6164, 0
  %6232 = vmatpush.bf16.msra.mxu0 0
  %6233 = vmatpush.bf16.msra.mxu0 0
  %6234 = vmatpush.bf16.msra.mxu0 0
  %6235 = vmatpush.bf16.msra.mxu0 0
  %6236 = vmatpush.bf16.msra.mxu0 0
  %6237 = vmatpush.bf16.msra.mxu0 0
  %6238 = vmatpush.bf16.msra.mxu0 0
  %6239 = vmatpush.bf16.msra.mxu0 %v6230
  %6240 = vmatmul.bf16.gmra.mxu0 %v6227
  %v6241 = vpop.f32.mrf.mxu0
  %v6242 = vadd.f32 0.0, %v6241
  %v6243 = vpop.f32.mrf.mxu0
  %6244 = vdwg.mxu0
  %v6246 = vsel %vm1820, %v6157, 0
  %v6249 = vsel %vm141, %v6165, 0
  %6251 = vmatpush.bf16.msra.mxu0 0
  %6252 = vmatpush.bf16.msra.mxu0 0
  %6253 = vmatpush.bf16.msra.mxu0 0
  %6254 = vmatpush.bf16.msra.mxu0 0
  %6255 = vmatpush.bf16.msra.mxu0 0
  %6256 = vmatpush.bf16.msra.mxu0 0
  %6257 = vmatpush.bf16.msra.mxu0 0
  %6258 = vmatpush.bf16.msra.mxu0 %v6249
  %6259 = vmatmul.bf16.gmra.mxu0 %v6246
  %v6260 = vpop.f32.mrf.mxu0
  %v6261 = vadd.f32 0.0, %v6260
  %v6262 = vpop.f32.mrf.mxu0
  %6263 = vdwg.mxu0
  %v6265 = vsel %vm1820, %v6158, 0
  %v6268 = vsel %vm141, %v6166, 0
  %6270 = vmatpush.bf16.msra.mxu0 0
  %6271 = vmatpush.bf16.msra.mxu0 0
  %6272 = vmatpush.bf16.msra.mxu0 0
  %6273 = vmatpush.bf16.msra.mxu0 0
  %6274 = vmatpush.bf16.msra.mxu0 0
  %6275 = vmatpush.bf16.msra.mxu0 0
  %6276 = vmatpush.bf16.msra.mxu0 0
  %6277 = vmatpush.bf16.msra.mxu0 %v6268
  %6278 = vmatmul.bf16.gmra.mxu0 %v6265
  %v6279 = vpop.f32.mrf.mxu0
  %v6280 = vadd.f32 0.0, %v6279
  %v6281 = vpop.f32.mrf.mxu0
  %6282 = vdwg.mxu0
  %v6284 = vsel %vm1820, %v6159, 0
  %v6287 = vsel %vm141, %v6167, 0
  %6289 = vmatpush.bf16.msra.mxu0 0
  %6290 = vmatpush.bf16.msra.mxu0 0
  %6291 = vmatpush.bf16.msra.mxu0 0
  %6292 = vmatpush.bf16.msra.mxu0 0
  %6293 = vmatpush.bf16.msra.mxu0 0
  %6294 = vmatpush.bf16.msra.mxu0 0
  %6295 = vmatpush.bf16.msra.mxu0 0
  %6296 = vmatpush.bf16.msra.mxu0 %v6287
  %6297 = vmatmul.bf16.gmra.mxu0 %v6284
  %v6298 = vpop.f32.mrf.mxu0
  %v6299 = vadd.f32 0.0, %v6298
  %v6300 = vpop.f32.mrf.mxu0
  %6301 = vdwg.mxu0
  %v6303 = vsel %vm1820, %v6160, 0
  %v6306 = vsel %vm141, %v6168, 0
  %6308 = vmatpush.bf16.msra.mxu0 0
  %6309 = vmatpush.bf16.msra.mxu0 0
  %6310 = vmatpush.bf16.msra.mxu0 0
  %6311 = vmatpush.bf16.msra.mxu0 0
  %6312 = vmatpush.bf16.msra.mxu0 0
  %6313 = vmatpush.bf16.msra.mxu0 0
  %6314 = vmatpush.bf16.msra.mxu0 0
  %6315 = vmatpush.bf16.msra.mxu0 %v6306
  %6316 = vmatmul.bf16.gmra.mxu0 %v6303
  %v6317 = vpop.f32.mrf.mxu0
  %v6318 = vadd.f32 0.0, %v6317
  %v6319 = vpop.f32.mrf.mxu0
  %6320 = vdwg.mxu0
  %v6321 = vpack.c.bf16 %v6185, %v6185
  %v6322 = vpack.c.bf16 %v6204, %v6204
  %v6323 = vpack.c.bf16 %v6223, %v6223
  %v6324 = vpack.c.bf16 %v6242, %v6242
  %v6325 = vpack.c.bf16 %v6261, %v6261
  %v6326 = vpack.c.bf16 %v6280, %v6280
  %v6327 = vpack.c.bf16 %v6299, %v6299
  %v6328 = vpack.c.bf16 %v6318, %v6318
  %v6330 = vsel %vm1450, %v6321, 0
  %6332 = vmatpush.bf16.msra.mxu0 0
  %6333 = vmatpush.bf16.msra.mxu0 0
  %6334 = vmatpush.bf16.msra.mxu0 0
  %6335 = vmatpush.bf16.msra.mxu0 0
  %6336 = vmatpush.bf16.msra.mxu0 0
  %6337 = vmatpush.bf16.msra.mxu0 0
  %6338 = vmatpush.bf16.msra.mxu0 0
  %6339 = vmatpush.bf16.msra.mxu0 %v5296
  %6340 = vmatmul.bf16.gmra.mxu0 %v6330
  %v6341 = vpop.f32.mrf.mxu0
  %v6342 = vadd.f32 0.0, %v6341
  %v6343 = vpop.f32.mrf.mxu0
  %6344 = vdwg.mxu0
  %v6346 = vsel %vm1450, %v6322, 0
  %6348 = vmatpush.bf16.msra.mxu0 0
  %6349 = vmatpush.bf16.msra.mxu0 0
  %6350 = vmatpush.bf16.msra.mxu0 0
  %6351 = vmatpush.bf16.msra.mxu0 0
  %6352 = vmatpush.bf16.msra.mxu0 0
  %6353 = vmatpush.bf16.msra.mxu0 0
  %6354 = vmatpush.bf16.msra.mxu0 0
  %6355 = vmatpush.bf16.msra.mxu0 %v5315
  %6356 = vmatmul.bf16.gmra.mxu0 %v6346
  %v6357 = vpop.f32.mrf.mxu0
  %v6358 = vadd.f32 0.0, %v6357
  %v6359 = vpop.f32.mrf.mxu0
  %6360 = vdwg.mxu0
  %v6362 = vsel %vm1450, %v6323, 0
  %6364 = vmatpush.bf16.msra.mxu0 0
  %6365 = vmatpush.bf16.msra.mxu0 0
  %6366 = vmatpush.bf16.msra.mxu0 0
  %6367 = vmatpush.bf16.msra.mxu0 0
  %6368 = vmatpush.bf16.msra.mxu0 0
  %6369 = vmatpush.bf16.msra.mxu0 0
  %6370 = vmatpush.bf16.msra.mxu0 0
  %6371 = vmatpush.bf16.msra.mxu0 %v5334
  %6372 = vmatmul.bf16.gmra.mxu0 %v6362
  %v6373 = vpop.f32.mrf.mxu0
  %v6374 = vadd.f32 0.0, %v6373
  %v6375 = vpop.f32.mrf.mxu0
  %6376 = vdwg.mxu0
  %v6378 = vsel %vm1450, %v6324, 0
  %6380 = vmatpush.bf16.msra.mxu0 0
  %6381 = vmatpush.bf16.msra.mxu0 0
  %6382 = vmatpush.bf16.msra.mxu0 0
  %6383 = vmatpush.bf16.msra.mxu0 0
  %6384 = vmatpush.bf16.msra.mxu0 0
  %6385 = vmatpush.bf16.msra.mxu0 0
  %6386 = vmatpush.bf16.msra.mxu0 0
  %6387 = vmatpush.bf16.msra.mxu0 %v5353
  %6388 = vmatmul.bf16.gmra.mxu0 %v6378
  %v6389 = vpop.f32.mrf.mxu0
  %v6390 = vadd.f32 0.0, %v6389
  %v6391 = vpop.f32.mrf.mxu0
  %6392 = vdwg.mxu0
  %v6394 = vsel %vm1450, %v6325, 0
  %6396 = vmatpush.bf16.msra.mxu0 0
  %6397 = vmatpush.bf16.msra.mxu0 0
  %6398 = vmatpush.bf16.msra.mxu0 0
  %6399 = vmatpush.bf16.msra.mxu0 0
  %6400 = vmatpush.bf16.msra.mxu0 0
  %6401 = vmatpush.bf16.msra.mxu0 0
  %6402 = vmatpush.bf16.msra.mxu0 0
  %6403 = vmatpush.bf16.msra.mxu0 %v5372
  %6404 = vmatmul.bf16.gmra.mxu0 %v6394
  %v6405 = vpop.f32.mrf.mxu0
  %v6406 = vadd.f32 0.0, %v6405
  %v6407 = vpop.f32.mrf.mxu0
  %6408 = vdwg.mxu0
  %v6410 = vsel %vm1450, %v6326, 0
  %6412 = vmatpush.bf16.msra.mxu0 0
  %6413 = vmatpush.bf16.msra.mxu0 0
  %6414 = vmatpush.bf16.msra.mxu0 0
  %6415 = vmatpush.bf16.msra.mxu0 0
  %6416 = vmatpush.bf16.msra.mxu0 0
  %6417 = vmatpush.bf16.msra.mxu0 0
  %6418 = vmatpush.bf16.msra.mxu0 0
  %6419 = vmatpush.bf16.msra.mxu0 %v5391
  %6420 = vmatmul.bf16.gmra.mxu0 %v6410
  %v6421 = vpop.f32.mrf.mxu0
  %v6422 = vadd.f32 0.0, %v6421
  %v6423 = vpop.f32.mrf.mxu0
  %6424 = vdwg.mxu0
  %v6426 = vsel %vm1450, %v6327, 0
  %6428 = vmatpush.bf16.msra.mxu0 0
  %6429 = vmatpush.bf16.msra.mxu0 0
  %6430 = vmatpush.bf16.msra.mxu0 0
  %6431 = vmatpush.bf16.msra.mxu0 0
  %6432 = vmatpush.bf16.msra.mxu0 0
  %6433 = vmatpush.bf16.msra.mxu0 0
  %6434 = vmatpush.bf16.msra.mxu0 0
  %6435 = vmatpush.bf16.msra.mxu0 %v5410
  %6436 = vmatmul.bf16.gmra.mxu0 %v6426
  %v6437 = vpop.f32.mrf.mxu0
  %v6438 = vadd.f32 0.0, %v6437
  %v6439 = vpop.f32.mrf.mxu0
  %6440 = vdwg.mxu0
  %v6442 = vsel %vm1450, %v6328, 0
  %6444 = vmatpush.bf16.msra.mxu0 0
  %6445 = vmatpush.bf16.msra.mxu0 0
  %6446 = vmatpush.bf16.msra.mxu0 0
  %6447 = vmatpush.bf16.msra.mxu0 0
  %6448 = vmatpush.bf16.msra.mxu0 0
  %6449 = vmatpush.bf16.msra.mxu0 0
  %6450 = vmatpush.bf16.msra.mxu0 0
  %6451 = vmatpush.bf16.msra.mxu0 %v5429
  %6452 = vmatmul.bf16.gmra.mxu0 %v6442
  %v6453 = vpop.f32.mrf.mxu0
  %v6454 = vadd.f32 0.0, %v6453
  %v6455 = vpop.f32.mrf.mxu0
  %6456 = vdwg.mxu0
  %v6457 = vsel %vm2133, %v6342, 0.0
  %v6458 = vsel %vm2133, %v6358, 0.0
  %v6459 = vadd.f32 %v6457, %v6458
  %v6460 = vsel %vm2133, %v6374, 0.0
  %v6461 = vadd.f32 %v6459, %v6460
  %v6462 = vsel %vm2133, %v6390, 0.0
  %v6463 = vadd.f32 %v6461, %v6462
  %v6464 = vsel %vm2133, %v6406, 0.0
  %v6465 = vadd.f32 %v6463, %v6464
  %v6466 = vsel %vm2133, %v6422, 0.0
  %v6467 = vadd.f32 %v6465, %v6466
  %v6468 = vsel %vm2133, %v6438, 0.0
  %v6469 = vadd.f32 %v6467, %v6468
  %v6470 = vsel %vm2133, %v6454, 0.0
  %v6471 = vadd.f32 %v6469, %v6470
  %v6472 = vadd.f32 %v6471, %v5460
  %v6474 = vrot.slane %v6472, 2
  %v6476 = vsel %vm196, %v5462, %v6474
  %v6477 = vadd.f32 %v3495, %v6476
  %v6478 = vadd.f32 %v3496, %v6474
  %v6479 = vsel %vm518, %v6477, 0.0
  %6480 = vadd.xlane.f32.xlu0 %v6479
  %v6481 = vpop.xlane.xlu0 %6480
  %v6482 = vsel %vm3172, %v6478, 0.0
  %6483 = vadd.xlane.f32.xlu0 %v6482
  %v6484 = vpop.xlane.xlu0 %6483
  %v6485 = vmul.f32 %v6481, %v3182
  %v6486 = vmul.f32 %v6484, %v3182
  %v6487 = vsub.f32 %v6477, %v6485
  %v6488 = vsub.f32 %v6478, %v6486
  %v6489 = vmul.f32 %v6487, %v6487
  %v6490 = vmul.f32 %v6488, %v6488
  %v6491 = vsel %vm518, %v6489, 0.0
  %6492 = vadd.xlane.f32.xlu0 %v6491
  %v6493 = vpop.xlane.xlu0 %6492
  %v6494 = vsel %vm3172, %v6490, 0.0
  %6495 = vadd.xlane.f32.xlu0 %v6494
  %v6496 = vpop.xlane.xlu0 %6495
  %v6497 = vmul.f32 %v6493, %v3182
  %v6498 = vmul.f32 %v6496, %v3182
  %v6499 = vadd.f32 %v6497, 1e-05
  %v6500 = vadd.f32 %v6498, 1e-05
  %v6501 = vrsqrt.pop %v6499
  %v6502 = vmul.f32 %v6501, %v6499
  %v6503 = vmul.f32 %v6502, %v6501
  %v6504 = vmul.f32 0.5, %v6503
  %v6505 = vsub.f32 1.5, %v6504
  %v6506 = vmul.f32 %v6501, %v6505
  %vm6507 = vweird.f32 %v6499
  %vm6508 = vweird.f32 %v6501
  %vm6509 = vmor %vm6507, %vm6508
  %v6510 = vsel %vm6509, %v6501, %v6506
  %v6511 = vrsqrt.pop %v6500
  %v6512 = vmul.f32 %v6511, %v6500
  %v6513 = vmul.f32 %v6512, %v6511
  %v6514 = vmul.f32 0.5, %v6513
  %v6515 = vsub.f32 1.5, %v6514
  %v6516 = vmul.f32 %v6511, %v6515
  %vm6517 = vweird.f32 %v6500
  %vm6518 = vweird.f32 %v6511
  %vm6519 = vmor %vm6517, %vm6518
  %v6520 = vsel %vm6519, %v6511, %v6516
  %v6521 = vmul.f32 %v6487, %v6510
  %v6522 = vmul.f32 %v6488, %v6520
  %v6524 = vperm.slane %v3731, 0
  %v6526 = vmul.f32 %v6521, %v6524
  %v6527 = vmul.f32 %v6522, %v6524
  %v6529 = vperm.slane %v3733, 0
  %v6531 = vadd.f32 %v6526, %v6529
  %v6532 = vadd.f32 %v6527, %v6529
  %v6533 = vpack.c.bf16 %v6532, %v6531
  %v6535 = vperm.slane %v3744, 0
  %v6536 = vperm.slane %v3744, 1
  %v6547 = vunpack.c.l.b16 %v3735
  %v6548 = vunpack.c.h.b16 %v3735
  %v6549 = vunpack.c.l.b16 %v3736
  %v6550 = vunpack.c.h.b16 %v3736
  %v6551 = vunpack.c.l.b16 %v3737
  %v6552 = vunpack.c.h.b16 %v3737
  %v6553 = vunpack.c.l.b16 %v3738
  %v6554 = vunpack.c.h.b16 %v3738
  %v6555 = vunpack.c.l.b16 %v3739
  %v6556 = vunpack.c.h.b16 %v3739
  %v6557 = vunpack.c.l.b16 %v3740
  %v6558 = vunpack.c.h.b16 %v3740
  %v6559 = vunpack.c.l.b16 %v3741
  %v6560 = vunpack.c.h.b16 %v3741
  %v6561 = vunpack.c.l.b16 %v3742
  %v6562 = vunpack.c.h.b16 %v3742
  %v6563 = vpack.c.b16 %v6549, %v6547
  %v6564 = vpack.c.b16 %v6550, %v6548
  %v6565 = vpack.c.b16 %v6553, %v6551
  %v6566 = vpack.c.b16 %v6554, %v6552
  %v6567 = vpack.c.b16 %v6557, %v6555
  %v6568 = vpack.c.b16 %v6558, %v6556
  %v6569 = vpack.c.b16 %v6561, %v6559
  %v6570 = vpack.c.b16 %v6562, %v6560
  %v6580 = vsel %vm518, %v6533, 0
  %6582 = vmatpush.bf16.msra.mxu0 0
  %6583 = vmatpush.bf16.msra.mxu0 0
  %6584 = vmatpush.bf16.msra.mxu0 0
  %6585 = vmatpush.bf16.msra.mxu0 0
  %6586 = vmatpush.bf16.msra.mxu0 %v6569
  %6587 = vmatpush.bf16.msra.mxu0 %v6567
  %6588 = vmatpush.bf16.msra.mxu0 %v6565
  %6589 = vmatpush.bf16.msra.mxu0 %v6563
  %6590 = vmatmul.bf16.gmra.mxu0 %v6580
  %v6591 = vpop.f32.mrf.mxu0
  %v6592 = vadd.f32 %v6535, %v6591
  %v6593 = vpop.f32.mrf.mxu0
  %v6594 = vadd.f32 %v6535, %v6593
  %6595 = vdwg.mxu0
  %6596 = vmatpush.bf16.msra.mxu0 0
  %6597 = vmatpush.bf16.msra.mxu0 0
  %6598 = vmatpush.bf16.msra.mxu0 0
  %6599 = vmatpush.bf16.msra.mxu0 0
  %6600 = vmatpush.bf16.msra.mxu0 %v6570
  %6601 = vmatpush.bf16.msra.mxu0 %v6568
  %6602 = vmatpush.bf16.msra.mxu0 %v6566
  %6603 = vmatpush.bf16.msra.mxu0 %v6564
  %6604 = vmatmul.bf16.gmra.mxu0 %v6580
  %v6605 = vpop.f32.mrf.mxu0
  %v6606 = vadd.f32 %v6536, %v6605
  %v6607 = vpop.f32.mrf.mxu0
  %v6608 = vadd.f32 %v6536, %v6607
  %6609 = vdwg.mxu0
  %v6610 = vmax.f32 %v6592, 0.0
  %v6611 = vmax.f32 %v6606, 0.0
  %v6612 = vmax.f32 %v6594, 0.0
  %v6613 = vmax.f32 %v6608, 0.0
  %v6614 = vpack.c.bf16 %v6612, %v6610
  %v6615 = vpack.c.bf16 %v6613, %v6611
  %v6617 = vperm.slane %v3779, 0
  %v6651 = vunpack.c.l.b16 %v3746
  %v6652 = vunpack.c.l.b16 %v3747
  %v6653 = vunpack.c.l.b16 %v3748
  %v6654 = vunpack.c.l.b16 %v3749
  %v6655 = vunpack.c.l.b16 %v3750
  %v6656 = vunpack.c.l.b16 %v3751
  %v6657 = vunpack.c.l.b16 %v3752
  %v6658 = vunpack.c.l.b16 %v3753
  %v6659 = vunpack.c.l.b16 %v3754
  %v6660 = vunpack.c.l.b16 %v3755
  %v6661 = vunpack.c.l.b16 %v3756
  %v6662 = vunpack.c.l.b16 %v3757
  %v6663 = vunpack.c.l.b16 %v3758
  %v6664 = vunpack.c.l.b16 %v3759
  %v6665 = vunpack.c.l.b16 %v3760
  %v6666 = vunpack.c.l.b16 %v3761
  %v6667 = vunpack.c.l.b16 %v3762
  %v6668 = vunpack.c.l.b16 %v3763
  %v6669 = vunpack.c.l.b16 %v3764
  %v6670 = vunpack.c.l.b16 %v3765
  %v6671 = vunpack.c.l.b16 %v3766
  %v6672 = vunpack.c.l.b16 %v3767
  %v6673 = vunpack.c.l.b16 %v3768
  %v6674 = vunpack.c.l.b16 %v3769
  %v6675 = vunpack.c.l.b16 %v3770
  %v6676 = vunpack.c.l.b16 %v3771
  %v6677 = vunpack.c.l.b16 %v3772
  %v6678 = vunpack.c.l.b16 %v3773
  %v6679 = vunpack.c.l.b16 %v3774
  %v6680 = vunpack.c.l.b16 %v3775
  %v6681 = vunpack.c.l.b16 %v3776
  %v6682 = vunpack.c.l.b16 %v3777
  %v6683 = vpack.c.b16 %v6652, %v6651
  %v6684 = vpack.c.b16 %v6654, %v6653
  %v6685 = vpack.c.b16 %v6656, %v6655
  %v6686 = vpack.c.b16 %v6658, %v6657
  %v6687 = vpack.c.b16 %v6660, %v6659
  %v6688 = vpack.c.b16 %v6662, %v6661
  %v6689 = vpack.c.b16 %v6664, %v6663
  %v6690 = vpack.c.b16 %v6666, %v6665
  %v6691 = vpack.c.b16 %v6668, %v6667
  %v6692 = vpack.c.b16 %v6670, %v6669
  %v6693 = vpack.c.b16 %v6672, %v6671
  %v6694 = vpack.c.b16 %v6674, %v6673
  %v6695 = vpack.c.b16 %v6676, %v6675
  %v6696 = vpack.c.b16 %v6678, %v6677
  %v6697 = vpack.c.b16 %v6680, %v6679
  %v6698 = vpack.c.b16 %v6682, %v6681
  %6715 = vmatpush.bf16.msra.mxu0 %v6690
  %6716 = vmatpush.bf16.msra.mxu0 %v6689
  %6717 = vmatpush.bf16.msra.mxu0 %v6688
  %6718 = vmatpush.bf16.msra.mxu0 %v6687
  %6719 = vmatpush.bf16.msra.mxu0 %v6686
  %6720 = vmatpush.bf16.msra.mxu0 %v6685
  %6721 = vmatpush.bf16.msra.mxu0 %v6684
  %6722 = vmatpush.bf16.msra.mxu0 %v6683
  %6723 = vmatmul.bf16.gmra.mxu0 %v6614
  %v6724 = vpop.f32.mrf.mxu0
  %v6725 = vadd.f32 %v6617, %v6724
  %v6726 = vpop.f32.mrf.mxu0
  %v6727 = vadd.f32 %v6617, %v6726
  %6728 = vdwg.mxu0
  %6729 = vmatpush.bf16.msra.mxu0 %v6698
  %6730 = vmatpush.bf16.msra.mxu0 %v6697
  %6731 = vmatpush.bf16.msra.mxu0 %v6696
  %6732 = vmatpush.bf16.msra.mxu0 %v6695
  %6733 = vmatpush.bf16.msra.mxu0 %v6694
  %6734 = vmatpush.bf16.msra.mxu0 %v6693
  %6735 = vmatpush.bf16.msra.mxu0 %v6692
  %6736 = vmatpush.bf16.msra.mxu0 %v6691
  %6737 = vmatmul.bf16.gmra.mxu0 %v6615
  %v6738 = vpop.f32.mrf.mxu0
  %v6739 = vadd.f32 %v6725, %v6738
  %v6740 = vpop.f32.mrf.mxu0
  %v6741 = vadd.f32 %v6727, %v6740
  %6742 = vdwg.mxu0
  %v6743 = vadd.f32 %v6531, %v6739
  %v6744 = vadd.f32 %v6532, %v6741
  %v6745 = vsel %vm518, %v6743, 0.0
  %6746 = vadd.xlane.f32.xlu0 %v6745
  %v6747 = vpop.xlane.xlu0 %6746
  %v6748 = vsel %vm3172, %v6744, 0.0
  %6749 = vadd.xlane.f32.xlu0 %v6748
  %v6750 = vpop.xlane.xlu0 %6749
  %v6751 = vmul.f32 %v6747, %v3182
  %v6752 = vmul.f32 %v6750, %v3182
  %v6753 = vsub.f32 %v6743, %v6751
  %v6754 = vsub.f32 %v6744, %v6752
  %v6755 = vmul.f32 %v6753, %v6753
  %v6756 = vmul.f32 %v6754, %v6754
  %v6757 = vsel %vm518, %v6755, 0.0
  %6758 = vadd.xlane.f32.xlu0 %v6757
  %v6759 = vpop.xlane.xlu0 %6758
  %v6760 = vsel %vm3172, %v6756, 0.0
  %6761 = vadd.xlane.f32.xlu0 %v6760
  %v6762 = vpop.xlane.xlu0 %6761
  %v6763 = vmul.f32 %v6759, %v3182
  %v6764 = vmul.f32 %v6762, %v3182
  %v6765 = vadd.f32 %v6763, 1e-05
  %v6766 = vadd.f32 %v6764, 1e-05
  %v6767 = vrsqrt.pop %v6765
  %v6768 = vmul.f32 %v6767, %v6765
  %v6769 = vmul.f32 %v6768, %v6767
  %v6770 = vmul.f32 0.5, %v6769
  %v6771 = vsub.f32 1.5, %v6770
  %v6772 = vmul.f32 %v6767, %v6771
  %vm6773 = vweird.f32 %v6765
  %vm6774 = vweird.f32 %v6767
  %vm6775 = vmor %vm6773, %vm6774
  %v6776 = vsel %vm6775, %v6767, %v6772
  %v6777 = vrsqrt.pop %v6766
  %v6778 = vmul.f32 %v6777, %v6766
  %v6779 = vmul.f32 %v6778, %v6777
  %v6780 = vmul.f32 0.5, %v6779
  %v6781 = vsub.f32 1.5, %v6780
  %v6782 = vmul.f32 %v6777, %v6781
  %vm6783 = vweird.f32 %v6766
  %vm6784 = vweird.f32 %v6777
  %vm6785 = vmor %vm6783, %vm6784
  %v6786 = vsel %vm6785, %v6777, %v6782
  %v6787 = vmul.f32 %v6753, %v6776
  %v6788 = vmul.f32 %v6754, %v6786
  %v6790 = vperm.slane %v3781, 0
  %v6792 = vmul.f32 %v6787, %v6790
  %v6793 = vmul.f32 %v6788, %v6790
  %v6795 = vperm.slane %v3783, 0
  %v6797 = vadd.f32 %v6792, %v6795
  %v6798 = vadd.f32 %v6793, %v6795
  %s6799 = scalar_lea.vmem %s7, 512
  %v6800 = vld [vmem:[%s6799] sm:$0xf]
  %v6801 = vld [vmem:[%s6799 + $0x4] sm:$0xf]
  %v6802 = vld [vmem:[%s6799 + $0x8] sm:$0xf]
  %v6803 = vld [vmem:[%s6799 + $0xc] sm:$0xf]
  %v6804 = vld [vmem:[%s6799 + $0x10] sm:$0xf]
  %v6805 = vld [vmem:[%s6799 + $0x14] sm:$0xf]
  %v6806 = vld [vmem:[%s6799 + $0x18] sm:$0xf]
  %v6807 = vld [vmem:[%s6799 + $0x1c] sm:$0xf]
  %v6808 = vld [vmem:[%s6799 + $0x20] sm:$0xf]
  %v6809 = vld [vmem:[%s6799 + $0x24] sm:$0xf]
  %v6810 = vld [vmem:[%s6799 + $0x28] sm:$0xf]
  %v6811 = vld [vmem:[%s6799 + $0x2c] sm:$0xf]
  %v6812 = vld [vmem:[%s6799 + $0x30] sm:$0xf]
  %v6813 = vld [vmem:[%s6799 + $0x34] sm:$0xf]
  %v6814 = vld [vmem:[%s6799 + $0x38] sm:$0xf]
  %v6815 = vld [vmem:[%s6799 + $0x3c] sm:$0xf]
  %v6816 = vld [vmem:[%s6799 + $0x40] sm:$0xf]
  %v6817 = vld [vmem:[%s6799 + $0x44] sm:$0xf]
  %v6818 = vld [vmem:[%s6799 + $0x48] sm:$0xf]
  %v6819 = vld [vmem:[%s6799 + $0x4c] sm:$0xf]
  %v6820 = vld [vmem:[%s6799 + $0x50] sm:$0xf]
  %v6821 = vld [vmem:[%s6799 + $0x54] sm:$0xf]
  %v6822 = vld [vmem:[%s6799 + $0x58] sm:$0xf]
  %v6823 = vld [vmem:[%s6799 + $0x5c] sm:$0xf]
  %v6824 = vld [vmem:[%s6799 + $0x60] sm:$0xf]
  %v6825 = vld [vmem:[%s6799 + $0x64] sm:$0xf]
  %v6826 = vld [vmem:[%s6799 + $0x68] sm:$0xf]
  %v6827 = vld [vmem:[%s6799 + $0x6c] sm:$0xf]
  %v6828 = vld [vmem:[%s6799 + $0x70] sm:$0xf]
  %v6829 = vld [vmem:[%s6799 + $0x74] sm:$0xf]
  %v6830 = vld [vmem:[%s6799 + $0x78] sm:$0xf]
  %v6831 = vld [vmem:[%s6799 + $0x7c] sm:$0xf]
  %v6832 = vld [vmem:[%s6799 + $0x80] sm:$0xf]
  %v6833 = vld [vmem:[%s6799 + $0x84] sm:$0xf]
  %v6834 = vld [vmem:[%s6799 + $0x88] sm:$0xf]
  %v6835 = vld [vmem:[%s6799 + $0x8c] sm:$0xf]
  %v6836 = vld [vmem:[%s6799 + $0x90] sm:$0xf]
  %v6837 = vld [vmem:[%s6799 + $0x94] sm:$0xf]
  %v6838 = vld [vmem:[%s6799 + $0x98] sm:$0xf]
  %v6839 = vld [vmem:[%s6799 + $0x9c] sm:$0xf]
  %v6840 = vld [vmem:[%s6799 + $0xa0] sm:$0xf]
  %v6841 = vld [vmem:[%s6799 + $0xa4] sm:$0xf]
  %v6842 = vld [vmem:[%s6799 + $0xa8] sm:$0xf]
  %v6843 = vld [vmem:[%s6799 + $0xac] sm:$0xf]
  %v6844 = vld [vmem:[%s6799 + $0xb0] sm:$0xf]
  %v6845 = vld [vmem:[%s6799 + $0xb4] sm:$0xf]
  %v6846 = vld [vmem:[%s6799 + $0xb8] sm:$0xf]
  %v6847 = vld [vmem:[%s6799 + $0xbc] sm:$0xf]
  %v6848 = vld [vmem:[%s6799 + $0xc0] sm:$0xf]
  %v6849 = vld [vmem:[%s6799 + $0xc4] sm:$0xf]
  %v6850 = vld [vmem:[%s6799 + $0xc8] sm:$0xf]
  %v6851 = vld [vmem:[%s6799 + $0xcc] sm:$0xf]
  %v6852 = vld [vmem:[%s6799 + $0xd0] sm:$0xf]
  %v6853 = vld [vmem:[%s6799 + $0xd4] sm:$0xf]
  %v6854 = vld [vmem:[%s6799 + $0xd8] sm:$0xf]
  %v6855 = vld [vmem:[%s6799 + $0xdc] sm:$0xf]
  %v6856 = vld [vmem:[%s6799 + $0xe0] sm:$0xf]
  %v6857 = vld [vmem:[%s6799 + $0xe4] sm:$0xf]
  %v6858 = vld [vmem:[%s6799 + $0xe8] sm:$0xf]
  %v6859 = vld [vmem:[%s6799 + $0xec] sm:$0xf]
  %v6860 = vld [vmem:[%s6799 + $0xf0] sm:$0xf]
  %v6861 = vld [vmem:[%s6799 + $0xf4] sm:$0xf]
  %v6862 = vld [vmem:[%s6799 + $0xf8] sm:$0xf]
  %v6863 = vld [vmem:[%s6799 + $0xfc] sm:$0xf]
  %s6864 = scalar_lea.vmem %s9, 512
  %v6865 = vld [vmem:[%s6864] sm:$0xf]
  %v6866 = vld [vmem:[%s6864 + $0x4] sm:$0xf]
  %v6867 = vld [vmem:[%s6864 + $0x8] sm:$0xf]
  %v6868 = vld [vmem:[%s6864 + $0xc] sm:$0xf]
  %v6869 = vld [vmem:[%s6864 + $0x10] sm:$0xf]
  %v6870 = vld [vmem:[%s6864 + $0x14] sm:$0xf]
  %v6871 = vld [vmem:[%s6864 + $0x18] sm:$0xf]
  %v6872 = vld [vmem:[%s6864 + $0x1c] sm:$0xf]
  %v6873 = vld [vmem:[%s6864 + $0x20] sm:$0xf]
  %v6874 = vld [vmem:[%s6864 + $0x24] sm:$0xf]
  %v6875 = vld [vmem:[%s6864 + $0x28] sm:$0xf]
  %v6876 = vld [vmem:[%s6864 + $0x2c] sm:$0xf]
  %v6877 = vld [vmem:[%s6864 + $0x30] sm:$0xf]
  %v6878 = vld [vmem:[%s6864 + $0x34] sm:$0xf]
  %v6879 = vld [vmem:[%s6864 + $0x38] sm:$0xf]
  %v6880 = vld [vmem:[%s6864 + $0x3c] sm:$0xf]
  %v6881 = vld [vmem:[%s6864 + $0x40] sm:$0xf]
  %v6882 = vld [vmem:[%s6864 + $0x44] sm:$0xf]
  %v6883 = vld [vmem:[%s6864 + $0x48] sm:$0xf]
  %v6884 = vld [vmem:[%s6864 + $0x4c] sm:$0xf]
  %v6885 = vld [vmem:[%s6864 + $0x50] sm:$0xf]
  %v6886 = vld [vmem:[%s6864 + $0x54] sm:$0xf]
  %v6887 = vld [vmem:[%s6864 + $0x58] sm:$0xf]
  %v6888 = vld [vmem:[%s6864 + $0x5c] sm:$0xf]
  %v6889 = vld [vmem:[%s6864 + $0x60] sm:$0xf]
  %v6890 = vld [vmem:[%s6864 + $0x64] sm:$0xf]
  %v6891 = vld [vmem:[%s6864 + $0x68] sm:$0xf]
  %v6892 = vld [vmem:[%s6864 + $0x6c] sm:$0xf]
  %v6893 = vld [vmem:[%s6864 + $0x70] sm:$0xf]
  %v6894 = vld [vmem:[%s6864 + $0x74] sm:$0xf]
  %v6895 = vld [vmem:[%s6864 + $0x78] sm:$0xf]
  %v6896 = vld [vmem:[%s6864 + $0x7c] sm:$0xf]
  %v6897 = vld [vmem:[%s6864 + $0x80] sm:$0xf]
  %v6898 = vld [vmem:[%s6864 + $0x84] sm:$0xf]
  %v6899 = vld [vmem:[%s6864 + $0x88] sm:$0xf]
  %v6900 = vld [vmem:[%s6864 + $0x8c] sm:$0xf]
  %v6901 = vld [vmem:[%s6864 + $0x90] sm:$0xf]
  %v6902 = vld [vmem:[%s6864 + $0x94] sm:$0xf]
  %v6903 = vld [vmem:[%s6864 + $0x98] sm:$0xf]
  %v6904 = vld [vmem:[%s6864 + $0x9c] sm:$0xf]
  %v6905 = vld [vmem:[%s6864 + $0xa0] sm:$0xf]
  %v6906 = vld [vmem:[%s6864 + $0xa4] sm:$0xf]
  %v6907 = vld [vmem:[%s6864 + $0xa8] sm:$0xf]
  %v6908 = vld [vmem:[%s6864 + $0xac] sm:$0xf]
  %v6909 = vld [vmem:[%s6864 + $0xb0] sm:$0xf]
  %v6910 = vld [vmem:[%s6864 + $0xb4] sm:$0xf]
  %v6911 = vld [vmem:[%s6864 + $0xb8] sm:$0xf]
  %v6912 = vld [vmem:[%s6864 + $0xbc] sm:$0xf]
  %v6913 = vld [vmem:[%s6864 + $0xc0] sm:$0xf]
  %v6914 = vld [vmem:[%s6864 + $0xc4] sm:$0xf]
  %v6915 = vld [vmem:[%s6864 + $0xc8] sm:$0xf]
  %v6916 = vld [vmem:[%s6864 + $0xcc] sm:$0xf]
  %v6917 = vld [vmem:[%s6864 + $0xd0] sm:$0xf]
  %v6918 = vld [vmem:[%s6864 + $0xd4] sm:$0xf]
  %v6919 = vld [vmem:[%s6864 + $0xd8] sm:$0xf]
  %v6920 = vld [vmem:[%s6864 + $0xdc] sm:$0xf]
  %v6921 = vld [vmem:[%s6864 + $0xe0] sm:$0xf]
  %v6922 = vld [vmem:[%s6864 + $0xe4] sm:$0xf]
  %v6923 = vld [vmem:[%s6864 + $0xe8] sm:$0xf]
  %v6924 = vld [vmem:[%s6864 + $0xec] sm:$0xf]
  %v6925 = vld [vmem:[%s6864 + $0xf0] sm:$0xf]
  %v6926 = vld [vmem:[%s6864 + $0xf4] sm:$0xf]
  %v6927 = vld [vmem:[%s6864 + $0xf8] sm:$0xf]
  %v6928 = vld [vmem:[%s6864 + $0xfc] sm:$0xf]
  %s6929 = scalar_lea.vmem %s11, 512
  %v6930 = vld [vmem:[%s6929] sm:$0xf]
  %v6931 = vld [vmem:[%s6929 + $0x4] sm:$0xf]
  %v6932 = vld [vmem:[%s6929 + $0x8] sm:$0xf]
  %v6933 = vld [vmem:[%s6929 + $0xc] sm:$0xf]
  %v6934 = vld [vmem:[%s6929 + $0x10] sm:$0xf]
  %v6935 = vld [vmem:[%s6929 + $0x14] sm:$0xf]
  %v6936 = vld [vmem:[%s6929 + $0x18] sm:$0xf]
  %v6937 = vld [vmem:[%s6929 + $0x1c] sm:$0xf]
  %v6938 = vld [vmem:[%s6929 + $0x20] sm:$0xf]
  %v6939 = vld [vmem:[%s6929 + $0x24] sm:$0xf]
  %v6940 = vld [vmem:[%s6929 + $0x28] sm:$0xf]
  %v6941 = vld [vmem:[%s6929 + $0x2c] sm:$0xf]
  %v6942 = vld [vmem:[%s6929 + $0x30] sm:$0xf]
  %v6943 = vld [vmem:[%s6929 + $0x34] sm:$0xf]
  %v6944 = vld [vmem:[%s6929 + $0x38] sm:$0xf]
  %v6945 = vld [vmem:[%s6929 + $0x3c] sm:$0xf]
  %v6946 = vld [vmem:[%s6929 + $0x40] sm:$0xf]
  %v6947 = vld [vmem:[%s6929 + $0x44] sm:$0xf]
  %v6948 = vld [vmem:[%s6929 + $0x48] sm:$0xf]
  %v6949 = vld [vmem:[%s6929 + $0x4c] sm:$0xf]
  %v6950 = vld [vmem:[%s6929 + $0x50] sm:$0xf]
  %v6951 = vld [vmem:[%s6929 + $0x54] sm:$0xf]
  %v6952 = vld [vmem:[%s6929 + $0x58] sm:$0xf]
  %v6953 = vld [vmem:[%s6929 + $0x5c] sm:$0xf]
  %v6954 = vld [vmem:[%s6929 + $0x60] sm:$0xf]
  %v6955 = vld [vmem:[%s6929 + $0x64] sm:$0xf]
  %v6956 = vld [vmem:[%s6929 + $0x68] sm:$0xf]
  %v6957 = vld [vmem:[%s6929 + $0x6c] sm:$0xf]
  %v6958 = vld [vmem:[%s6929 + $0x70] sm:$0xf]
  %v6959 = vld [vmem:[%s6929 + $0x74] sm:$0xf]
  %v6960 = vld [vmem:[%s6929 + $0x78] sm:$0xf]
  %v6961 = vld [vmem:[%s6929 + $0x7c] sm:$0xf]
  %v6962 = vld [vmem:[%s6929 + $0x80] sm:$0xf]
  %v6963 = vld [vmem:[%s6929 + $0x84] sm:$0xf]
  %v6964 = vld [vmem:[%s6929 + $0x88] sm:$0xf]
  %v6965 = vld [vmem:[%s6929 + $0x8c] sm:$0xf]
  %v6966 = vld [vmem:[%s6929 + $0x90] sm:$0xf]
  %v6967 = vld [vmem:[%s6929 + $0x94] sm:$0xf]
  %v6968 = vld [vmem:[%s6929 + $0x98] sm:$0xf]
  %v6969 = vld [vmem:[%s6929 + $0x9c] sm:$0xf]
  %v6970 = vld [vmem:[%s6929 + $0xa0] sm:$0xf]
  %v6971 = vld [vmem:[%s6929 + $0xa4] sm:$0xf]
  %v6972 = vld [vmem:[%s6929 + $0xa8] sm:$0xf]
  %v6973 = vld [vmem:[%s6929 + $0xac] sm:$0xf]
  %v6974 = vld [vmem:[%s6929 + $0xb0] sm:$0xf]
  %v6975 = vld [vmem:[%s6929 + $0xb4] sm:$0xf]
  %v6976 = vld [vmem:[%s6929 + $0xb8] sm:$0xf]
  %v6977 = vld [vmem:[%s6929 + $0xbc] sm:$0xf]
  %v6978 = vld [vmem:[%s6929 + $0xc0] sm:$0xf]
  %v6979 = vld [vmem:[%s6929 + $0xc4] sm:$0xf]
  %v6980 = vld [vmem:[%s6929 + $0xc8] sm:$0xf]
  %v6981 = vld [vmem:[%s6929 + $0xcc] sm:$0xf]
  %v6982 = vld [vmem:[%s6929 + $0xd0] sm:$0xf]
  %v6983 = vld [vmem:[%s6929 + $0xd4] sm:$0xf]
  %v6984 = vld [vmem:[%s6929 + $0xd8] sm:$0xf]
  %v6985 = vld [vmem:[%s6929 + $0xdc] sm:$0xf]
  %v6986 = vld [vmem:[%s6929 + $0xe0] sm:$0xf]
  %v6987 = vld [vmem:[%s6929 + $0xe4] sm:$0xf]
  %v6988 = vld [vmem:[%s6929 + $0xe8] sm:$0xf]
  %v6989 = vld [vmem:[%s6929 + $0xec] sm:$0xf]
  %v6990 = vld [vmem:[%s6929 + $0xf0] sm:$0xf]
  %v6991 = vld [vmem:[%s6929 + $0xf4] sm:$0xf]
  %v6992 = vld [vmem:[%s6929 + $0xf8] sm:$0xf]
  %v6993 = vld [vmem:[%s6929 + $0xfc] sm:$0xf]
  %s6994 = scalar_lea.vmem %s8, 16
  %v6995 = vld [vmem:[%s6994] sm:$0x1]
  %v6996 = vld [vmem:[%s6994 + $0x1] sm:$0x1]
  %v6997 = vld [vmem:[%s6994 + $0x2] sm:$0x1]
  %v6998 = vld [vmem:[%s6994 + $0x3] sm:$0x1]
  %v6999 = vld [vmem:[%s6994 + $0x4] sm:$0x1]
  %v7000 = vld [vmem:[%s6994 + $0x5] sm:$0x1]
  %v7001 = vld [vmem:[%s6994 + $0x6] sm:$0x1]
  %v7002 = vld [vmem:[%s6994 + $0x7] sm:$0x1]
  %s7003 = scalar_lea.vmem %s10, 16
  %v7004 = vld [vmem:[%s7003] sm:$0x1]
  %v7005 = vld [vmem:[%s7003 + $0x1] sm:$0x1]
  %v7006 = vld [vmem:[%s7003 + $0x2] sm:$0x1]
  %v7007 = vld [vmem:[%s7003 + $0x3] sm:$0x1]
  %v7008 = vld [vmem:[%s7003 + $0x4] sm:$0x1]
  %v7009 = vld [vmem:[%s7003 + $0x5] sm:$0x1]
  %v7010 = vld [vmem:[%s7003 + $0x6] sm:$0x1]
  %v7011 = vld [vmem:[%s7003 + $0x7] sm:$0x1]
  %s7012 = scalar_lea.vmem %s12, 16
  %v7013 = vld [vmem:[%s7012] sm:$0x1]
  %v7014 = vld [vmem:[%s7012 + $0x1] sm:$0x1]
  %v7015 = vld [vmem:[%s7012 + $0x2] sm:$0x1]
  %v7016 = vld [vmem:[%s7012 + $0x3] sm:$0x1]
  %v7017 = vld [vmem:[%s7012 + $0x4] sm:$0x1]
  %v7018 = vld [vmem:[%s7012 + $0x5] sm:$0x1]
  %v7019 = vld [vmem:[%s7012 + $0x6] sm:$0x1]
  %v7020 = vld [vmem:[%s7012 + $0x7] sm:$0x1]
  %s7021 = scalar_lea.vmem %s13, 64
  %v7022 = vld [vmem:[%s7021] sm:$0xf]
  %v7023 = vld [vmem:[%s7021 + $0x4] sm:$0xf]
  %v7024 = vld [vmem:[%s7021 + $0x8] sm:$0xf]
  %v7025 = vld [vmem:[%s7021 + $0xc] sm:$0xf]
  %v7026 = vld [vmem:[%s7021 + $0x10] sm:$0xf]
  %v7027 = vld [vmem:[%s7021 + $0x14] sm:$0xf]
  %v7028 = vld [vmem:[%s7021 + $0x18] sm:$0xf]
  %v7029 = vld [vmem:[%s7021 + $0x1c] sm:$0xf]
  %s7030 = scalar_lea.vmem %s14, 2
  %v7031 = vld [vmem:[%s7030] sm:$0x1]
  %s7032 = scalar_lea.vmem %s15, 2
  %v7033 = vld [vmem:[%s7032] sm:$0x1]
  %s7034 = scalar_lea.vmem %s16, 2
  %v7035 = vld [vmem:[%s7034] sm:$0x1]
  %s7036 = scalar_lea.vmem %s17, 128
  %v7037 = vld [vmem:[%s7036] sm:$0xff]
  %v7038 = vld [vmem:[%s7036 + $0x8] sm:$0xff]
  %v7039 = vld [vmem:[%s7036 + $0x10] sm:$0xff]
  %v7040 = vld [vmem:[%s7036 + $0x18] sm:$0xff]
  %v7041 = vld [vmem:[%s7036 + $0x20] sm:$0xff]
  %v7042 = vld [vmem:[%s7036 + $0x28] sm:$0xff]
  %v7043 = vld [vmem:[%s7036 + $0x30] sm:$0xff]
  %v7044 = vld [vmem:[%s7036 + $0x38] sm:$0xff]
  %s7045 = scalar_lea.vmem %s18, 4
  %v7046 = vld [vmem:[%s7045] sm:$0x3]
  %s7047 = scalar_lea.vmem %s19, 256
  %v7048 = vld [vmem:[%s7047] sm:$0xf]
  %v7049 = vld [vmem:[%s7047 + $0x4] sm:$0xf]
  %v7050 = vld [vmem:[%s7047 + $0x8] sm:$0xf]
  %v7051 = vld [vmem:[%s7047 + $0xc] sm:$0xf]
  %v7052 = vld [vmem:[%s7047 + $0x10] sm:$0xf]
  %v7053 = vld [vmem:[%s7047 + $0x14] sm:$0xf]
  %v7054 = vld [vmem:[%s7047 + $0x18] sm:$0xf]
  %v7055 = vld [vmem:[%s7047 + $0x1c] sm:$0xf]
  %v7056 = vld [vmem:[%s7047 + $0x20] sm:$0xf]
  %v7057 = vld [vmem:[%s7047 + $0x24] sm:$0xf]
  %v7058 = vld [vmem:[%s7047 + $0x28] sm:$0xf]
  %v7059 = vld [vmem:[%s7047 + $0x2c] sm:$0xf]
  %v7060 = vld [vmem:[%s7047 + $0x30] sm:$0xf]
  %v7061 = vld [vmem:[%s7047 + $0x34] sm:$0xf]
  %v7062 = vld [vmem:[%s7047 + $0x38] sm:$0xf]
  %v7063 = vld [vmem:[%s7047 + $0x3c] sm:$0xf]
  %v7064 = vld [vmem:[%s7047 + $0x40] sm:$0xf]
  %v7065 = vld [vmem:[%s7047 + $0x44] sm:$0xf]
  %v7066 = vld [vmem:[%s7047 + $0x48] sm:$0xf]
  %v7067 = vld [vmem:[%s7047 + $0x4c] sm:$0xf]
  %v7068 = vld [vmem:[%s7047 + $0x50] sm:$0xf]
  %v7069 = vld [vmem:[%s7047 + $0x54] sm:$0xf]
  %v7070 = vld [vmem:[%s7047 + $0x58] sm:$0xf]
  %v7071 = vld [vmem:[%s7047 + $0x5c] sm:$0xf]
  %v7072 = vld [vmem:[%s7047 + $0x60] sm:$0xf]
  %v7073 = vld [vmem:[%s7047 + $0x64] sm:$0xf]
  %v7074 = vld [vmem:[%s7047 + $0x68] sm:$0xf]
  %v7075 = vld [vmem:[%s7047 + $0x6c] sm:$0xf]
  %v7076 = vld [vmem:[%s7047 + $0x70] sm:$0xf]
  %v7077 = vld [vmem:[%s7047 + $0x74] sm:$0xf]
  %v7078 = vld [vmem:[%s7047 + $0x78] sm:$0xf]
  %v7079 = vld [vmem:[%s7047 + $0x7c] sm:$0xf]
  %s7080 = scalar_lea.vmem %s20, 2
  %v7081 = vld [vmem:[%s7080] sm:$0x1]
  %s7082 = scalar_lea.vmem %s21, 2
  %v7083 = vld [vmem:[%s7082] sm:$0x1]
  %s7084 = scalar_lea.vmem %s22, 2
  %v7085 = vld [vmem:[%s7084] sm:$0x1]
  %v7086 = vpack.c.bf16 %v6797, %v6797
  %v7095 = vperm.slane %v6995, 0
  %v7096 = vperm.slane %v6996, 0
  %v7097 = vperm.slane %v6997, 0
  %v7098 = vperm.slane %v6998, 0
  %v7099 = vperm.slane %v6999, 0
  %v7100 = vperm.slane %v7000, 0
  %v7101 = vperm.slane %v7001, 0
  %v7102 = vperm.slane %v7002, 0
  %v7119 = vunpack.c.l.b16 %v6800
  %v7120 = vunpack.c.l.b16 %v6801
  %v7121 = vunpack.c.l.b16 %v6802
  %v7122 = vunpack.c.l.b16 %v6803
  %v7123 = vunpack.c.l.b16 %v6804
  %v7124 = vunpack.c.l.b16 %v6805
  %v7125 = vunpack.c.l.b16 %v6806
  %v7126 = vunpack.c.l.b16 %v6807
  %v7127 = vpack.c.b16 %v7120, %v7119
  %v7128 = vpack.c.b16 %v7122, %v7121
  %v7129 = vpack.c.b16 %v7124, %v7123
  %v7130 = vpack.c.b16 %v7126, %v7125
  %v7136 = vsel %vm518, %v7086, 0
  %7138 = vmatpush.bf16.msra.mxu0 0
  %7139 = vmatpush.bf16.msra.mxu0 0
  %7140 = vmatpush.bf16.msra.mxu0 0
  %7141 = vmatpush.bf16.msra.mxu0 0
  %7142 = vmatpush.bf16.msra.mxu0 %v7130
  %7143 = vmatpush.bf16.msra.mxu0 %v7129
  %7144 = vmatpush.bf16.msra.mxu0 %v7128
  %7145 = vmatpush.bf16.msra.mxu0 %v7127
  %7146 = vmatmul.bf16.gmra.mxu0 %v7136
  %v7147 = vpop.f32.mrf.mxu0
  %v7148 = vadd.f32 %v7095, %v7147
  %v7149 = vpop.f32.mrf.mxu0
  %7150 = vdwg.mxu0
  %v7159 = vunpack.c.l.b16 %v6808
  %v7160 = vunpack.c.l.b16 %v6809
  %v7161 = vunpack.c.l.b16 %v6810
  %v7162 = vunpack.c.l.b16 %v6811
  %v7163 = vunpack.c.l.b16 %v6812
  %v7164 = vunpack.c.l.b16 %v6813
  %v7165 = vunpack.c.l.b16 %v6814
  %v7166 = vunpack.c.l.b16 %v6815
  %v7167 = vpack.c.b16 %v7160, %v7159
  %v7168 = vpack.c.b16 %v7162, %v7161
  %v7169 = vpack.c.b16 %v7164, %v7163
  %v7170 = vpack.c.b16 %v7166, %v7165
  %7175 = vmatpush.bf16.msra.mxu0 0
  %7176 = vmatpush.bf16.msra.mxu0 0
  %7177 = vmatpush.bf16.msra.mxu0 0
  %7178 = vmatpush.bf16.msra.mxu0 0
  %7179 = vmatpush.bf16.msra.mxu0 %v7170
  %7180 = vmatpush.bf16.msra.mxu0 %v7169
  %7181 = vmatpush.bf16.msra.mxu0 %v7168
  %7182 = vmatpush.bf16.msra.mxu0 %v7167
  %7183 = vmatmul.bf16.gmra.mxu0 %v7136
  %v7184 = vpop.f32.mrf.mxu0
  %v7185 = vadd.f32 %v7096, %v7184
  %v7186 = vpop.f32.mrf.mxu0
  %7187 = vdwg.mxu0
  %v7196 = vunpack.c.l.b16 %v6816
  %v7197 = vunpack.c.l.b16 %v6817
  %v7198 = vunpack.c.l.b16 %v6818
  %v7199 = vunpack.c.l.b16 %v6819
  %v7200 = vunpack.c.l.b16 %v6820
  %v7201 = vunpack.c.l.b16 %v6821
  %v7202 = vunpack.c.l.b16 %v6822
  %v7203 = vunpack.c.l.b16 %v6823
  %v7204 = vpack.c.b16 %v7197, %v7196
  %v7205 = vpack.c.b16 %v7199, %v7198
  %v7206 = vpack.c.b16 %v7201, %v7200
  %v7207 = vpack.c.b16 %v7203, %v7202
  %7212 = vmatpush.bf16.msra.mxu0 0
  %7213 = vmatpush.bf16.msra.mxu0 0
  %7214 = vmatpush.bf16.msra.mxu0 0
  %7215 = vmatpush.bf16.msra.mxu0 0
  %7216 = vmatpush.bf16.msra.mxu0 %v7207
  %7217 = vmatpush.bf16.msra.mxu0 %v7206
  %7218 = vmatpush.bf16.msra.mxu0 %v7205
  %7219 = vmatpush.bf16.msra.mxu0 %v7204
  %7220 = vmatmul.bf16.gmra.mxu0 %v7136
  %v7221 = vpop.f32.mrf.mxu0
  %v7222 = vadd.f32 %v7097, %v7221
  %v7223 = vpop.f32.mrf.mxu0
  %7224 = vdwg.mxu0
  %v7233 = vunpack.c.l.b16 %v6824
  %v7234 = vunpack.c.l.b16 %v6825
  %v7235 = vunpack.c.l.b16 %v6826
  %v7236 = vunpack.c.l.b16 %v6827
  %v7237 = vunpack.c.l.b16 %v6828
  %v7238 = vunpack.c.l.b16 %v6829
  %v7239 = vunpack.c.l.b16 %v6830
  %v7240 = vunpack.c.l.b16 %v6831
  %v7241 = vpack.c.b16 %v7234, %v7233
  %v7242 = vpack.c.b16 %v7236, %v7235
  %v7243 = vpack.c.b16 %v7238, %v7237
  %v7244 = vpack.c.b16 %v7240, %v7239
  %7249 = vmatpush.bf16.msra.mxu0 0
  %7250 = vmatpush.bf16.msra.mxu0 0
  %7251 = vmatpush.bf16.msra.mxu0 0
  %7252 = vmatpush.bf16.msra.mxu0 0
  %7253 = vmatpush.bf16.msra.mxu0 %v7244
  %7254 = vmatpush.bf16.msra.mxu0 %v7243
  %7255 = vmatpush.bf16.msra.mxu0 %v7242
  %7256 = vmatpush.bf16.msra.mxu0 %v7241
  %7257 = vmatmul.bf16.gmra.mxu0 %v7136
  %v7258 = vpop.f32.mrf.mxu0
  %v7259 = vadd.f32 %v7098, %v7258
  %v7260 = vpop.f32.mrf.mxu0
  %7261 = vdwg.mxu0
  %v7270 = vunpack.c.l.b16 %v6832
  %v7271 = vunpack.c.l.b16 %v6833
  %v7272 = vunpack.c.l.b16 %v6834
  %v7273 = vunpack.c.l.b16 %v6835
  %v7274 = vunpack.c.l.b16 %v6836
  %v7275 = vunpack.c.l.b16 %v6837
  %v7276 = vunpack.c.l.b16 %v6838
  %v7277 = vunpack.c.l.b16 %v6839
  %v7278 = vpack.c.b16 %v7271, %v7270
  %v7279 = vpack.c.b16 %v7273, %v7272
  %v7280 = vpack.c.b16 %v7275, %v7274
  %v7281 = vpack.c.b16 %v7277, %v7276
  %7286 = vmatpush.bf16.msra.mxu0 0
  %7287 = vmatpush.bf16.msra.mxu0 0
  %7288 = vmatpush.bf16.msra.mxu0 0
  %7289 = vmatpush.bf16.msra.mxu0 0
  %7290 = vmatpush.bf16.msra.mxu0 %v7281
  %7291 = vmatpush.bf16.msra.mxu0 %v7280
  %7292 = vmatpush.bf16.msra.mxu0 %v7279
  %7293 = vmatpush.bf16.msra.mxu0 %v7278
  %7294 = vmatmul.bf16.gmra.mxu0 %v7136
  %v7295 = vpop.f32.mrf.mxu0
  %v7296 = vadd.f32 %v7099, %v7295
  %v7297 = vpop.f32.mrf.mxu0
  %7298 = vdwg.mxu0
  %v7307 = vunpack.c.l.b16 %v6840
  %v7308 = vunpack.c.l.b16 %v6841
  %v7309 = vunpack.c.l.b16 %v6842
  %v7310 = vunpack.c.l.b16 %v6843
  %v7311 = vunpack.c.l.b16 %v6844
  %v7312 = vunpack.c.l.b16 %v6845
  %v7313 = vunpack.c.l.b16 %v6846
  %v7314 = vunpack.c.l.b16 %v6847
  %v7315 = vpack.c.b16 %v7308, %v7307
  %v7316 = vpack.c.b16 %v7310, %v7309
  %v7317 = vpack.c.b16 %v7312, %v7311
  %v7318 = vpack.c.b16 %v7314, %v7313
  %7323 = vmatpush.bf16.msra.mxu0 0
  %7324 = vmatpush.bf16.msra.mxu0 0
  %7325 = vmatpush.bf16.msra.mxu0 0
  %7326 = vmatpush.bf16.msra.mxu0 0
  %7327 = vmatpush.bf16.msra.mxu0 %v7318
  %7328 = vmatpush.bf16.msra.mxu0 %v7317
  %7329 = vmatpush.bf16.msra.mxu0 %v7316
  %7330 = vmatpush.bf16.msra.mxu0 %v7315
  %7331 = vmatmul.bf16.gmra.mxu0 %v7136
  %v7332 = vpop.f32.mrf.mxu0
  %v7333 = vadd.f32 %v7100, %v7332
  %v7334 = vpop.f32.mrf.mxu0
  %7335 = vdwg.mxu0
  %v7344 = vunpack.c.l.b16 %v6848
  %v7345 = vunpack.c.l.b16 %v6849
  %v7346 = vunpack.c.l.b16 %v6850
  %v7347 = vunpack.c.l.b16 %v6851
  %v7348 = vunpack.c.l.b16 %v6852
  %v7349 = vunpack.c.l.b16 %v6853
  %v7350 = vunpack.c.l.b16 %v6854
  %v7351 = vunpack.c.l.b16 %v6855
  %v7352 = vpack.c.b16 %v7345, %v7344
  %v7353 = vpack.c.b16 %v7347, %v7346
  %v7354 = vpack.c.b16 %v7349, %v7348
  %v7355 = vpack.c.b16 %v7351, %v7350
  %7360 = vmatpush.bf16.msra.mxu0 0
  %7361 = vmatpush.bf16.msra.mxu0 0
  %7362 = vmatpush.bf16.msra.mxu0 0
  %7363 = vmatpush.bf16.msra.mxu0 0
  %7364 = vmatpush.bf16.msra.mxu0 %v7355
  %7365 = vmatpush.bf16.msra.mxu0 %v7354
  %7366 = vmatpush.bf16.msra.mxu0 %v7353
  %7367 = vmatpush.bf16.msra.mxu0 %v7352
  %7368 = vmatmul.bf16.gmra.mxu0 %v7136
  %v7369 = vpop.f32.mrf.mxu0
  %v7370 = vadd.f32 %v7101, %v7369
  %v7371 = vpop.f32.mrf.mxu0
  %7372 = vdwg.mxu0
  %v7381 = vunpack.c.l.b16 %v6856
  %v7382 = vunpack.c.l.b16 %v6857
  %v7383 = vunpack.c.l.b16 %v6858
  %v7384 = vunpack.c.l.b16 %v6859
  %v7385 = vunpack.c.l.b16 %v6860
  %v7386 = vunpack.c.l.b16 %v6861
  %v7387 = vunpack.c.l.b16 %v6862
  %v7388 = vunpack.c.l.b16 %v6863
  %v7389 = vpack.c.b16 %v7382, %v7381
  %v7390 = vpack.c.b16 %v7384, %v7383
  %v7391 = vpack.c.b16 %v7386, %v7385
  %v7392 = vpack.c.b16 %v7388, %v7387
  %7397 = vmatpush.bf16.msra.mxu0 0
  %7398 = vmatpush.bf16.msra.mxu0 0
  %7399 = vmatpush.bf16.msra.mxu0 0
  %7400 = vmatpush.bf16.msra.mxu0 0
  %7401 = vmatpush.bf16.msra.mxu0 %v7392
  %7402 = vmatpush.bf16.msra.mxu0 %v7391
  %7403 = vmatpush.bf16.msra.mxu0 %v7390
  %7404 = vmatpush.bf16.msra.mxu0 %v7389
  %7405 = vmatmul.bf16.gmra.mxu0 %v7136
  %v7406 = vpop.f32.mrf.mxu0
  %v7407 = vadd.f32 %v7102, %v7406
  %v7408 = vpop.f32.mrf.mxu0
  %7409 = vdwg.mxu0
  %v7418 = vperm.slane %v7004, 0
  %v7419 = vperm.slane %v7005, 0
  %v7420 = vperm.slane %v7006, 0
  %v7421 = vperm.slane %v7007, 0
  %v7422 = vperm.slane %v7008, 0
  %v7423 = vperm.slane %v7009, 0
  %v7424 = vperm.slane %v7010, 0
  %v7425 = vperm.slane %v7011, 0
  %v7442 = vunpack.c.l.b16 %v6865
  %v7443 = vunpack.c.l.b16 %v6866
  %v7444 = vunpack.c.l.b16 %v6867
  %v7445 = vunpack.c.l.b16 %v6868
  %v7446 = vunpack.c.l.b16 %v6869
  %v7447 = vunpack.c.l.b16 %v6870
  %v7448 = vunpack.c.l.b16 %v6871
  %v7449 = vunpack.c.l.b16 %v6872
  %v7450 = vpack.c.b16 %v7443, %v7442
  %v7451 = vpack.c.b16 %v7445, %v7444
  %v7452 = vpack.c.b16 %v7447, %v7446
  %v7453 = vpack.c.b16 %v7449, %v7448
  %7458 = vmatpush.bf16.msra.mxu0 0
  %7459 = vmatpush.bf16.msra.mxu0 0
  %7460 = vmatpush.bf16.msra.mxu0 0
  %7461 = vmatpush.bf16.msra.mxu0 0
  %7462 = vmatpush.bf16.msra.mxu0 %v7453
  %7463 = vmatpush.bf16.msra.mxu0 %v7452
  %7464 = vmatpush.bf16.msra.mxu0 %v7451
  %7465 = vmatpush.bf16.msra.mxu0 %v7450
  %7466 = vmatmul.bf16.gmra.mxu0 %v7136
  %v7467 = vpop.f32.mrf.mxu0
  %v7468 = vadd.f32 %v7418, %v7467
  %v7469 = vpop.f32.mrf.mxu0
  %7470 = vdwg.mxu0
  %v7479 = vunpack.c.l.b16 %v6873
  %v7480 = vunpack.c.l.b16 %v6874
  %v7481 = vunpack.c.l.b16 %v6875
  %v7482 = vunpack.c.l.b16 %v6876
  %v7483 = vunpack.c.l.b16 %v6877
  %v7484 = vunpack.c.l.b16 %v6878
  %v7485 = vunpack.c.l.b16 %v6879
  %v7486 = vunpack.c.l.b16 %v6880
  %v7487 = vpack.c.b16 %v7480, %v7479
  %v7488 = vpack.c.b16 %v7482, %v7481
  %v7489 = vpack.c.b16 %v7484, %v7483
  %v7490 = vpack.c.b16 %v7486, %v7485
  %7495 = vmatpush.bf16.msra.mxu0 0
  %7496 = vmatpush.bf16.msra.mxu0 0
  %7497 = vmatpush.bf16.msra.mxu0 0
  %7498 = vmatpush.bf16.msra.mxu0 0
  %7499 = vmatpush.bf16.msra.mxu0 %v7490
  %7500 = vmatpush.bf16.msra.mxu0 %v7489
  %7501 = vmatpush.bf16.msra.mxu0 %v7488
  %7502 = vmatpush.bf16.msra.mxu0 %v7487
  %7503 = vmatmul.bf16.gmra.mxu0 %v7136
  %v7504 = vpop.f32.mrf.mxu0
  %v7505 = vadd.f32 %v7419, %v7504
  %v7506 = vpop.f32.mrf.mxu0
  %7507 = vdwg.mxu0
  %v7516 = vunpack.c.l.b16 %v6881
  %v7517 = vunpack.c.l.b16 %v6882
  %v7518 = vunpack.c.l.b16 %v6883
  %v7519 = vunpack.c.l.b16 %v6884
  %v7520 = vunpack.c.l.b16 %v6885
  %v7521 = vunpack.c.l.b16 %v6886
  %v7522 = vunpack.c.l.b16 %v6887
  %v7523 = vunpack.c.l.b16 %v6888
  %v7524 = vpack.c.b16 %v7517, %v7516
  %v7525 = vpack.c.b16 %v7519, %v7518
  %v7526 = vpack.c.b16 %v7521, %v7520
  %v7527 = vpack.c.b16 %v7523, %v7522
  %7532 = vmatpush.bf16.msra.mxu0 0
  %7533 = vmatpush.bf16.msra.mxu0 0
  %7534 = vmatpush.bf16.msra.mxu0 0
  %7535 = vmatpush.bf16.msra.mxu0 0
  %7536 = vmatpush.bf16.msra.mxu0 %v7527
  %7537 = vmatpush.bf16.msra.mxu0 %v7526
  %7538 = vmatpush.bf16.msra.mxu0 %v7525
  %7539 = vmatpush.bf16.msra.mxu0 %v7524
  %7540 = vmatmul.bf16.gmra.mxu0 %v7136
  %v7541 = vpop.f32.mrf.mxu0
  %v7542 = vadd.f32 %v7420, %v7541
  %v7543 = vpop.f32.mrf.mxu0
  %7544 = vdwg.mxu0
  %v7553 = vunpack.c.l.b16 %v6889
  %v7554 = vunpack.c.l.b16 %v6890
  %v7555 = vunpack.c.l.b16 %v6891
  %v7556 = vunpack.c.l.b16 %v6892
  %v7557 = vunpack.c.l.b16 %v6893
  %v7558 = vunpack.c.l.b16 %v6894
  %v7559 = vunpack.c.l.b16 %v6895
  %v7560 = vunpack.c.l.b16 %v6896
  %v7561 = vpack.c.b16 %v7554, %v7553
  %v7562 = vpack.c.b16 %v7556, %v7555
  %v7563 = vpack.c.b16 %v7558, %v7557
  %v7564 = vpack.c.b16 %v7560, %v7559
  %7569 = vmatpush.bf16.msra.mxu0 0
  %7570 = vmatpush.bf16.msra.mxu0 0
  %7571 = vmatpush.bf16.msra.mxu0 0
  %7572 = vmatpush.bf16.msra.mxu0 0
  %7573 = vmatpush.bf16.msra.mxu0 %v7564
  %7574 = vmatpush.bf16.msra.mxu0 %v7563
  %7575 = vmatpush.bf16.msra.mxu0 %v7562
  %7576 = vmatpush.bf16.msra.mxu0 %v7561
  %7577 = vmatmul.bf16.gmra.mxu0 %v7136
  %v7578 = vpop.f32.mrf.mxu0
  %v7579 = vadd.f32 %v7421, %v7578
  %v7580 = vpop.f32.mrf.mxu0
  %7581 = vdwg.mxu0
  %v7590 = vunpack.c.l.b16 %v6897
  %v7591 = vunpack.c.l.b16 %v6898
  %v7592 = vunpack.c.l.b16 %v6899
  %v7593 = vunpack.c.l.b16 %v6900
  %v7594 = vunpack.c.l.b16 %v6901
  %v7595 = vunpack.c.l.b16 %v6902
  %v7596 = vunpack.c.l.b16 %v6903
  %v7597 = vunpack.c.l.b16 %v6904
  %v7598 = vpack.c.b16 %v7591, %v7590
  %v7599 = vpack.c.b16 %v7593, %v7592
  %v7600 = vpack.c.b16 %v7595, %v7594
  %v7601 = vpack.c.b16 %v7597, %v7596
  %7606 = vmatpush.bf16.msra.mxu0 0
  %7607 = vmatpush.bf16.msra.mxu0 0
  %7608 = vmatpush.bf16.msra.mxu0 0
  %7609 = vmatpush.bf16.msra.mxu0 0
  %7610 = vmatpush.bf16.msra.mxu0 %v7601
  %7611 = vmatpush.bf16.msra.mxu0 %v7600
  %7612 = vmatpush.bf16.msra.mxu0 %v7599
  %7613 = vmatpush.bf16.msra.mxu0 %v7598
  %7614 = vmatmul.bf16.gmra.mxu0 %v7136
  %v7615 = vpop.f32.mrf.mxu0
  %v7616 = vadd.f32 %v7422, %v7615
  %v7617 = vpop.f32.mrf.mxu0
  %7618 = vdwg.mxu0
  %v7627 = vunpack.c.l.b16 %v6905
  %v7628 = vunpack.c.l.b16 %v6906
  %v7629 = vunpack.c.l.b16 %v6907
  %v7630 = vunpack.c.l.b16 %v6908
  %v7631 = vunpack.c.l.b16 %v6909
  %v7632 = vunpack.c.l.b16 %v6910
  %v7633 = vunpack.c.l.b16 %v6911
  %v7634 = vunpack.c.l.b16 %v6912
  %v7635 = vpack.c.b16 %v7628, %v7627
  %v7636 = vpack.c.b16 %v7630, %v7629
  %v7637 = vpack.c.b16 %v7632, %v7631
  %v7638 = vpack.c.b16 %v7634, %v7633
  %7643 = vmatpush.bf16.msra.mxu0 0
  %7644 = vmatpush.bf16.msra.mxu0 0
  %7645 = vmatpush.bf16.msra.mxu0 0
  %7646 = vmatpush.bf16.msra.mxu0 0
  %7647 = vmatpush.bf16.msra.mxu0 %v7638
  %7648 = vmatpush.bf16.msra.mxu0 %v7637
  %7649 = vmatpush.bf16.msra.mxu0 %v7636
  %7650 = vmatpush.bf16.msra.mxu0 %v7635
  %7651 = vmatmul.bf16.gmra.mxu0 %v7136
  %v7652 = vpop.f32.mrf.mxu0
  %v7653 = vadd.f32 %v7423, %v7652
  %v7654 = vpop.f32.mrf.mxu0
  %7655 = vdwg.mxu0
  %v7664 = vunpack.c.l.b16 %v6913
  %v7665 = vunpack.c.l.b16 %v6914
  %v7666 = vunpack.c.l.b16 %v6915
  %v7667 = vunpack.c.l.b16 %v6916
  %v7668 = vunpack.c.l.b16 %v6917
  %v7669 = vunpack.c.l.b16 %v6918
  %v7670 = vunpack.c.l.b16 %v6919
  %v7671 = vunpack.c.l.b16 %v6920
  %v7672 = vpack.c.b16 %v7665, %v7664
  %v7673 = vpack.c.b16 %v7667, %v7666
  %v7674 = vpack.c.b16 %v7669, %v7668
  %v7675 = vpack.c.b16 %v7671, %v7670
  %7680 = vmatpush.bf16.msra.mxu0 0
  %7681 = vmatpush.bf16.msra.mxu0 0
  %7682 = vmatpush.bf16.msra.mxu0 0
  %7683 = vmatpush.bf16.msra.mxu0 0
  %7684 = vmatpush.bf16.msra.mxu0 %v7675
  %7685 = vmatpush.bf16.msra.mxu0 %v7674
  %7686 = vmatpush.bf16.msra.mxu0 %v7673
  %7687 = vmatpush.bf16.msra.mxu0 %v7672
  %7688 = vmatmul.bf16.gmra.mxu0 %v7136
  %v7689 = vpop.f32.mrf.mxu0
  %v7690 = vadd.f32 %v7424, %v7689
  %v7691 = vpop.f32.mrf.mxu0
  %7692 = vdwg.mxu0
  %v7701 = vunpack.c.l.b16 %v6921
  %v7702 = vunpack.c.l.b16 %v6922
  %v7703 = vunpack.c.l.b16 %v6923
  %v7704 = vunpack.c.l.b16 %v6924
  %v7705 = vunpack.c.l.b16 %v6925
  %v7706 = vunpack.c.l.b16 %v6926
  %v7707 = vunpack.c.l.b16 %v6927
  %v7708 = vunpack.c.l.b16 %v6928
  %v7709 = vpack.c.b16 %v7702, %v7701
  %v7710 = vpack.c.b16 %v7704, %v7703
  %v7711 = vpack.c.b16 %v7706, %v7705
  %v7712 = vpack.c.b16 %v7708, %v7707
  %7717 = vmatpush.bf16.msra.mxu0 0
  %7718 = vmatpush.bf16.msra.mxu0 0
  %7719 = vmatpush.bf16.msra.mxu0 0
  %7720 = vmatpush.bf16.msra.mxu0 0
  %7721 = vmatpush.bf16.msra.mxu0 %v7712
  %7722 = vmatpush.bf16.msra.mxu0 %v7711
  %7723 = vmatpush.bf16.msra.mxu0 %v7710
  %7724 = vmatpush.bf16.msra.mxu0 %v7709
  %7725 = vmatmul.bf16.gmra.mxu0 %v7136
  %v7726 = vpop.f32.mrf.mxu0
  %v7727 = vadd.f32 %v7425, %v7726
  %v7728 = vpop.f32.mrf.mxu0
  %7729 = vdwg.mxu0
  %v7738 = vperm.slane %v7013, 0
  %v7739 = vperm.slane %v7014, 0
  %v7740 = vperm.slane %v7015, 0
  %v7741 = vperm.slane %v7016, 0
  %v7742 = vperm.slane %v7017, 0
  %v7743 = vperm.slane %v7018, 0
  %v7744 = vperm.slane %v7019, 0
  %v7745 = vperm.slane %v7020, 0
  %v7762 = vunpack.c.l.b16 %v6930
  %v7763 = vunpack.c.l.b16 %v6931
  %v7764 = vunpack.c.l.b16 %v6932
  %v7765 = vunpack.c.l.b16 %v6933
  %v7766 = vunpack.c.l.b16 %v6934
  %v7767 = vunpack.c.l.b16 %v6935
  %v7768 = vunpack.c.l.b16 %v6936
  %v7769 = vunpack.c.l.b16 %v6937
  %v7770 = vpack.c.b16 %v7763, %v7762
  %v7771 = vpack.c.b16 %v7765, %v7764
  %v7772 = vpack.c.b16 %v7767, %v7766
  %v7773 = vpack.c.b16 %v7769, %v7768
  %7778 = vmatpush.bf16.msra.mxu0 0
  %7779 = vmatpush.bf16.msra.mxu0 0
  %7780 = vmatpush.bf16.msra.mxu0 0
  %7781 = vmatpush.bf16.msra.mxu0 0
  %7782 = vmatpush.bf16.msra.mxu0 %v7773
  %7783 = vmatpush.bf16.msra.mxu0 %v7772
  %7784 = vmatpush.bf16.msra.mxu0 %v7771
  %7785 = vmatpush.bf16.msra.mxu0 %v7770
  %7786 = vmatmul.bf16.gmra.mxu0 %v7136
  %v7787 = vpop.f32.mrf.mxu0
  %v7788 = vadd.f32 %v7738, %v7787
  %v7789 = vpop.f32.mrf.mxu0
  %7790 = vdwg.mxu0
  %v7799 = vunpack.c.l.b16 %v6938
  %v7800 = vunpack.c.l.b16 %v6939
  %v7801 = vunpack.c.l.b16 %v6940
  %v7802 = vunpack.c.l.b16 %v6941
  %v7803 = vunpack.c.l.b16 %v6942
  %v7804 = vunpack.c.l.b16 %v6943
  %v7805 = vunpack.c.l.b16 %v6944
  %v7806 = vunpack.c.l.b16 %v6945
  %v7807 = vpack.c.b16 %v7800, %v7799
  %v7808 = vpack.c.b16 %v7802, %v7801
  %v7809 = vpack.c.b16 %v7804, %v7803
  %v7810 = vpack.c.b16 %v7806, %v7805
  %7815 = vmatpush.bf16.msra.mxu0 0
  %7816 = vmatpush.bf16.msra.mxu0 0
  %7817 = vmatpush.bf16.msra.mxu0 0
  %7818 = vmatpush.bf16.msra.mxu0 0
  %7819 = vmatpush.bf16.msra.mxu0 %v7810
  %7820 = vmatpush.bf16.msra.mxu0 %v7809
  %7821 = vmatpush.bf16.msra.mxu0 %v7808
  %7822 = vmatpush.bf16.msra.mxu0 %v7807
  %7823 = vmatmul.bf16.gmra.mxu0 %v7136
  %v7824 = vpop.f32.mrf.mxu0
  %v7825 = vadd.f32 %v7739, %v7824
  %v7826 = vpop.f32.mrf.mxu0
  %7827 = vdwg.mxu0
  %v7836 = vunpack.c.l.b16 %v6946
  %v7837 = vunpack.c.l.b16 %v6947
  %v7838 = vunpack.c.l.b16 %v6948
  %v7839 = vunpack.c.l.b16 %v6949
  %v7840 = vunpack.c.l.b16 %v6950
  %v7841 = vunpack.c.l.b16 %v6951
  %v7842 = vunpack.c.l.b16 %v6952
  %v7843 = vunpack.c.l.b16 %v6953
  %v7844 = vpack.c.b16 %v7837, %v7836
  %v7845 = vpack.c.b16 %v7839, %v7838
  %v7846 = vpack.c.b16 %v7841, %v7840
  %v7847 = vpack.c.b16 %v7843, %v7842
  %7852 = vmatpush.bf16.msra.mxu0 0
  %7853 = vmatpush.bf16.msra.mxu0 0
  %7854 = vmatpush.bf16.msra.mxu0 0
  %7855 = vmatpush.bf16.msra.mxu0 0
  %7856 = vmatpush.bf16.msra.mxu0 %v7847
  %7857 = vmatpush.bf16.msra.mxu0 %v7846
  %7858 = vmatpush.bf16.msra.mxu0 %v7845
  %7859 = vmatpush.bf16.msra.mxu0 %v7844
  %7860 = vmatmul.bf16.gmra.mxu0 %v7136
  %v7861 = vpop.f32.mrf.mxu0
  %v7862 = vadd.f32 %v7740, %v7861
  %v7863 = vpop.f32.mrf.mxu0
  %7864 = vdwg.mxu0
  %v7873 = vunpack.c.l.b16 %v6954
  %v7874 = vunpack.c.l.b16 %v6955
  %v7875 = vunpack.c.l.b16 %v6956
  %v7876 = vunpack.c.l.b16 %v6957
  %v7877 = vunpack.c.l.b16 %v6958
  %v7878 = vunpack.c.l.b16 %v6959
  %v7879 = vunpack.c.l.b16 %v6960
  %v7880 = vunpack.c.l.b16 %v6961
  %v7881 = vpack.c.b16 %v7874, %v7873
  %v7882 = vpack.c.b16 %v7876, %v7875
  %v7883 = vpack.c.b16 %v7878, %v7877
  %v7884 = vpack.c.b16 %v7880, %v7879
  %7889 = vmatpush.bf16.msra.mxu0 0
  %7890 = vmatpush.bf16.msra.mxu0 0
  %7891 = vmatpush.bf16.msra.mxu0 0
  %7892 = vmatpush.bf16.msra.mxu0 0
  %7893 = vmatpush.bf16.msra.mxu0 %v7884
  %7894 = vmatpush.bf16.msra.mxu0 %v7883
  %7895 = vmatpush.bf16.msra.mxu0 %v7882
  %7896 = vmatpush.bf16.msra.mxu0 %v7881
  %7897 = vmatmul.bf16.gmra.mxu0 %v7136
  %v7898 = vpop.f32.mrf.mxu0
  %v7899 = vadd.f32 %v7741, %v7898
  %v7900 = vpop.f32.mrf.mxu0
  %7901 = vdwg.mxu0
  %v7910 = vunpack.c.l.b16 %v6962
  %v7911 = vunpack.c.l.b16 %v6963
  %v7912 = vunpack.c.l.b16 %v6964
  %v7913 = vunpack.c.l.b16 %v6965
  %v7914 = vunpack.c.l.b16 %v6966
  %v7915 = vunpack.c.l.b16 %v6967
  %v7916 = vunpack.c.l.b16 %v6968
  %v7917 = vunpack.c.l.b16 %v6969
  %v7918 = vpack.c.b16 %v7911, %v7910
  %v7919 = vpack.c.b16 %v7913, %v7912
  %v7920 = vpack.c.b16 %v7915, %v7914
  %v7921 = vpack.c.b16 %v7917, %v7916
  %7926 = vmatpush.bf16.msra.mxu0 0
  %7927 = vmatpush.bf16.msra.mxu0 0
  %7928 = vmatpush.bf16.msra.mxu0 0
  %7929 = vmatpush.bf16.msra.mxu0 0
  %7930 = vmatpush.bf16.msra.mxu0 %v7921
  %7931 = vmatpush.bf16.msra.mxu0 %v7920
  %7932 = vmatpush.bf16.msra.mxu0 %v7919
  %7933 = vmatpush.bf16.msra.mxu0 %v7918
  %7934 = vmatmul.bf16.gmra.mxu0 %v7136
  %v7935 = vpop.f32.mrf.mxu0
  %v7936 = vadd.f32 %v7742, %v7935
  %v7937 = vpop.f32.mrf.mxu0
  %7938 = vdwg.mxu0
  %v7947 = vunpack.c.l.b16 %v6970
  %v7948 = vunpack.c.l.b16 %v6971
  %v7949 = vunpack.c.l.b16 %v6972
  %v7950 = vunpack.c.l.b16 %v6973
  %v7951 = vunpack.c.l.b16 %v6974
  %v7952 = vunpack.c.l.b16 %v6975
  %v7953 = vunpack.c.l.b16 %v6976
  %v7954 = vunpack.c.l.b16 %v6977
  %v7955 = vpack.c.b16 %v7948, %v7947
  %v7956 = vpack.c.b16 %v7950, %v7949
  %v7957 = vpack.c.b16 %v7952, %v7951
  %v7958 = vpack.c.b16 %v7954, %v7953
  %7963 = vmatpush.bf16.msra.mxu0 0
  %7964 = vmatpush.bf16.msra.mxu0 0
  %7965 = vmatpush.bf16.msra.mxu0 0
  %7966 = vmatpush.bf16.msra.mxu0 0
  %7967 = vmatpush.bf16.msra.mxu0 %v7958
  %7968 = vmatpush.bf16.msra.mxu0 %v7957
  %7969 = vmatpush.bf16.msra.mxu0 %v7956
  %7970 = vmatpush.bf16.msra.mxu0 %v7955
  %7971 = vmatmul.bf16.gmra.mxu0 %v7136
  %v7972 = vpop.f32.mrf.mxu0
  %v7973 = vadd.f32 %v7743, %v7972
  %v7974 = vpop.f32.mrf.mxu0
  %7975 = vdwg.mxu0
  %v7984 = vunpack.c.l.b16 %v6978
  %v7985 = vunpack.c.l.b16 %v6979
  %v7986 = vunpack.c.l.b16 %v6980
  %v7987 = vunpack.c.l.b16 %v6981
  %v7988 = vunpack.c.l.b16 %v6982
  %v7989 = vunpack.c.l.b16 %v6983
  %v7990 = vunpack.c.l.b16 %v6984
  %v7991 = vunpack.c.l.b16 %v6985
  %v7992 = vpack.c.b16 %v7985, %v7984
  %v7993 = vpack.c.b16 %v7987, %v7986
  %v7994 = vpack.c.b16 %v7989, %v7988
  %v7995 = vpack.c.b16 %v7991, %v7990
  %8000 = vmatpush.bf16.msra.mxu0 0
  %8001 = vmatpush.bf16.msra.mxu0 0
  %8002 = vmatpush.bf16.msra.mxu0 0
  %8003 = vmatpush.bf16.msra.mxu0 0
  %8004 = vmatpush.bf16.msra.mxu0 %v7995
  %8005 = vmatpush.bf16.msra.mxu0 %v7994
  %8006 = vmatpush.bf16.msra.mxu0 %v7993
  %8007 = vmatpush.bf16.msra.mxu0 %v7992
  %8008 = vmatmul.bf16.gmra.mxu0 %v7136
  %v8009 = vpop.f32.mrf.mxu0
  %v8010 = vadd.f32 %v7744, %v8009
  %v8011 = vpop.f32.mrf.mxu0
  %8012 = vdwg.mxu0
  %v8021 = vunpack.c.l.b16 %v6986
  %v8022 = vunpack.c.l.b16 %v6987
  %v8023 = vunpack.c.l.b16 %v6988
  %v8024 = vunpack.c.l.b16 %v6989
  %v8025 = vunpack.c.l.b16 %v6990
  %v8026 = vunpack.c.l.b16 %v6991
  %v8027 = vunpack.c.l.b16 %v6992
  %v8028 = vunpack.c.l.b16 %v6993
  %v8029 = vpack.c.b16 %v8022, %v8021
  %v8030 = vpack.c.b16 %v8024, %v8023
  %v8031 = vpack.c.b16 %v8026, %v8025
  %v8032 = vpack.c.b16 %v8028, %v8027
  %8037 = vmatpush.bf16.msra.mxu0 0
  %8038 = vmatpush.bf16.msra.mxu0 0
  %8039 = vmatpush.bf16.msra.mxu0 0
  %8040 = vmatpush.bf16.msra.mxu0 0
  %8041 = vmatpush.bf16.msra.mxu0 %v8032
  %8042 = vmatpush.bf16.msra.mxu0 %v8031
  %8043 = vmatpush.bf16.msra.mxu0 %v8030
  %8044 = vmatpush.bf16.msra.mxu0 %v8029
  %8045 = vmatmul.bf16.gmra.mxu0 %v7136
  %v8046 = vpop.f32.mrf.mxu0
  %v8047 = vadd.f32 %v7745, %v8046
  %v8048 = vpop.f32.mrf.mxu0
  %8049 = vdwg.mxu0
  %v8050 = vpack.c.bf16 %v7148, %v7148
  %v8051 = vpack.c.bf16 %v7185, %v7185
  %v8052 = vpack.c.bf16 %v7222, %v7222
  %v8053 = vpack.c.bf16 %v7259, %v7259
  %v8054 = vpack.c.bf16 %v7296, %v7296
  %v8055 = vpack.c.bf16 %v7333, %v7333
  %v8056 = vpack.c.bf16 %v7370, %v7370
  %v8057 = vpack.c.bf16 %v7407, %v7407
  %v8058 = vpack.c.bf16 %v7468, %v7468
  %v8059 = vpack.c.bf16 %v7505, %v7505
  %v8060 = vpack.c.bf16 %v7542, %v7542
  %v8061 = vpack.c.bf16 %v7579, %v7579
  %v8062 = vpack.c.bf16 %v7616, %v7616
  %v8063 = vpack.c.bf16 %v7653, %v7653
  %v8064 = vpack.c.bf16 %v7690, %v7690
  %v8065 = vpack.c.bf16 %v7727, %v7727
  %v8067 = vsel %vm1450, %v8050, 0
  %v8070 = vsel %vm1450, %v8058, 0
  %8072 = vmatpush.bf16.xpose.msra.mxu0 0
  %8073 = vmatpush.bf16.xpose.msra.mxu0 0
  %8074 = vmatpush.bf16.xpose.msra.mxu0 0
  %8075 = vmatpush.bf16.xpose.msra.mxu0 0
  %8076 = vmatpush.bf16.xpose.msra.mxu0 0
  %8077 = vmatpush.bf16.xpose.msra.mxu0 0
  %8078 = vmatpush.bf16.xpose.msra.mxu0 0
  %8079 = vmatpush.bf16.xpose.msra.mxu0 %v8070
  %8080 = vmatmul.bf16.gmra.mxu0 %v8067
  %v8081 = vpop.f32.mrf.mxu0
  %v8082 = vadd.f32 0.0, %v8081
  %v8083 = vpop.f32.mrf.mxu0
  %8084 = vdwg.mxu0
  %v8086 = vsel %vm1450, %v8051, 0
  %v8089 = vsel %vm1450, %v8059, 0
  %8091 = vmatpush.bf16.xpose.msra.mxu0 0
  %8092 = vmatpush.bf16.xpose.msra.mxu0 0
  %8093 = vmatpush.bf16.xpose.msra.mxu0 0
  %8094 = vmatpush.bf16.xpose.msra.mxu0 0
  %8095 = vmatpush.bf16.xpose.msra.mxu0 0
  %8096 = vmatpush.bf16.xpose.msra.mxu0 0
  %8097 = vmatpush.bf16.xpose.msra.mxu0 0
  %8098 = vmatpush.bf16.xpose.msra.mxu0 %v8089
  %8099 = vmatmul.bf16.gmra.mxu0 %v8086
  %v8100 = vpop.f32.mrf.mxu0
  %v8101 = vadd.f32 0.0, %v8100
  %v8102 = vpop.f32.mrf.mxu0
  %8103 = vdwg.mxu0
  %v8105 = vsel %vm1450, %v8052, 0
  %v8108 = vsel %vm1450, %v8060, 0
  %8110 = vmatpush.bf16.xpose.msra.mxu0 0
  %8111 = vmatpush.bf16.xpose.msra.mxu0 0
  %8112 = vmatpush.bf16.xpose.msra.mxu0 0
  %8113 = vmatpush.bf16.xpose.msra.mxu0 0
  %8114 = vmatpush.bf16.xpose.msra.mxu0 0
  %8115 = vmatpush.bf16.xpose.msra.mxu0 0
  %8116 = vmatpush.bf16.xpose.msra.mxu0 0
  %8117 = vmatpush.bf16.xpose.msra.mxu0 %v8108
  %8118 = vmatmul.bf16.gmra.mxu0 %v8105
  %v8119 = vpop.f32.mrf.mxu0
  %v8120 = vadd.f32 0.0, %v8119
  %v8121 = vpop.f32.mrf.mxu0
  %8122 = vdwg.mxu0
  %v8124 = vsel %vm1450, %v8053, 0
  %v8127 = vsel %vm1450, %v8061, 0
  %8129 = vmatpush.bf16.xpose.msra.mxu0 0
  %8130 = vmatpush.bf16.xpose.msra.mxu0 0
  %8131 = vmatpush.bf16.xpose.msra.mxu0 0
  %8132 = vmatpush.bf16.xpose.msra.mxu0 0
  %8133 = vmatpush.bf16.xpose.msra.mxu0 0
  %8134 = vmatpush.bf16.xpose.msra.mxu0 0
  %8135 = vmatpush.bf16.xpose.msra.mxu0 0
  %8136 = vmatpush.bf16.xpose.msra.mxu0 %v8127
  %8137 = vmatmul.bf16.gmra.mxu0 %v8124
  %v8138 = vpop.f32.mrf.mxu0
  %v8139 = vadd.f32 0.0, %v8138
  %v8140 = vpop.f32.mrf.mxu0
  %8141 = vdwg.mxu0
  %v8143 = vsel %vm1450, %v8054, 0
  %v8146 = vsel %vm1450, %v8062, 0
  %8148 = vmatpush.bf16.xpose.msra.mxu0 0
  %8149 = vmatpush.bf16.xpose.msra.mxu0 0
  %8150 = vmatpush.bf16.xpose.msra.mxu0 0
  %8151 = vmatpush.bf16.xpose.msra.mxu0 0
  %8152 = vmatpush.bf16.xpose.msra.mxu0 0
  %8153 = vmatpush.bf16.xpose.msra.mxu0 0
  %8154 = vmatpush.bf16.xpose.msra.mxu0 0
  %8155 = vmatpush.bf16.xpose.msra.mxu0 %v8146
  %8156 = vmatmul.bf16.gmra.mxu0 %v8143
  %v8157 = vpop.f32.mrf.mxu0
  %v8158 = vadd.f32 0.0, %v8157
  %v8159 = vpop.f32.mrf.mxu0
  %8160 = vdwg.mxu0
  %v8162 = vsel %vm1450, %v8055, 0
  %v8165 = vsel %vm1450, %v8063, 0
  %8167 = vmatpush.bf16.xpose.msra.mxu0 0
  %8168 = vmatpush.bf16.xpose.msra.mxu0 0
  %8169 = vmatpush.bf16.xpose.msra.mxu0 0
  %8170 = vmatpush.bf16.xpose.msra.mxu0 0
  %8171 = vmatpush.bf16.xpose.msra.mxu0 0
  %8172 = vmatpush.bf16.xpose.msra.mxu0 0
  %8173 = vmatpush.bf16.xpose.msra.mxu0 0
  %8174 = vmatpush.bf16.xpose.msra.mxu0 %v8165
  %8175 = vmatmul.bf16.gmra.mxu0 %v8162
  %v8176 = vpop.f32.mrf.mxu0
  %v8177 = vadd.f32 0.0, %v8176
  %v8178 = vpop.f32.mrf.mxu0
  %8179 = vdwg.mxu0
  %v8181 = vsel %vm1450, %v8056, 0
  %v8184 = vsel %vm1450, %v8064, 0
  %8186 = vmatpush.bf16.xpose.msra.mxu0 0
  %8187 = vmatpush.bf16.xpose.msra.mxu0 0
  %8188 = vmatpush.bf16.xpose.msra.mxu0 0
  %8189 = vmatpush.bf16.xpose.msra.mxu0 0
  %8190 = vmatpush.bf16.xpose.msra.mxu0 0
  %8191 = vmatpush.bf16.xpose.msra.mxu0 0
  %8192 = vmatpush.bf16.xpose.msra.mxu0 0
  %8193 = vmatpush.bf16.xpose.msra.mxu0 %v8184
  %8194 = vmatmul.bf16.gmra.mxu0 %v8181
  %v8195 = vpop.f32.mrf.mxu0
  %v8196 = vadd.f32 0.0, %v8195
  %v8197 = vpop.f32.mrf.mxu0
  %8198 = vdwg.mxu0
  %v8200 = vsel %vm1450, %v8057, 0
  %v8203 = vsel %vm1450, %v8065, 0
  %8205 = vmatpush.bf16.xpose.msra.mxu0 0
  %8206 = vmatpush.bf16.xpose.msra.mxu0 0
  %8207 = vmatpush.bf16.xpose.msra.mxu0 0
  %8208 = vmatpush.bf16.xpose.msra.mxu0 0
  %8209 = vmatpush.bf16.xpose.msra.mxu0 0
  %8210 = vmatpush.bf16.xpose.msra.mxu0 0
  %8211 = vmatpush.bf16.xpose.msra.mxu0 0
  %8212 = vmatpush.bf16.xpose.msra.mxu0 %v8203
  %8213 = vmatmul.bf16.gmra.mxu0 %v8200
  %v8214 = vpop.f32.mrf.mxu0
  %v8215 = vadd.f32 0.0, %v8214
  %v8216 = vpop.f32.mrf.mxu0
  %8217 = vdwg.mxu0
  %v8218 = vmul.f32 %v8082, 0.35355338
  %v8219 = vmul.f32 %v8101, 0.35355338
  %v8220 = vmul.f32 %v8120, 0.35355338
  %v8221 = vmul.f32 %v8139, 0.35355338
  %v8222 = vmul.f32 %v8158, 0.35355338
  %v8223 = vmul.f32 %v8177, 0.35355338
  %v8224 = vmul.f32 %v8196, 0.35355338
  %v8225 = vmul.f32 %v8215, 0.35355338
  %v8226 = vsel %vm1611, %v8218, -inf
  %8227 = vmax.xlane.f32.xlu0 %v8226
  %v8228 = vpop.xlane.xlu0 %8227
  %v8229 = vsel %vm1611, %v8219, -inf
  %8230 = vmax.xlane.f32.xlu0 %v8229
  %v8231 = vpop.xlane.xlu0 %8230
  %v8232 = vsel %vm1611, %v8220, -inf
  %8233 = vmax.xlane.f32.xlu0 %v8232
  %v8234 = vpop.xlane.xlu0 %8233
  %v8235 = vsel %vm1611, %v8221, -inf
  %8236 = vmax.xlane.f32.xlu0 %v8235
  %v8237 = vpop.xlane.xlu0 %8236
  %v8238 = vsel %vm1611, %v8222, -inf
  %8239 = vmax.xlane.f32.xlu0 %v8238
  %v8240 = vpop.xlane.xlu0 %8239
  %v8241 = vsel %vm1611, %v8223, -inf
  %8242 = vmax.xlane.f32.xlu0 %v8241
  %v8243 = vpop.xlane.xlu0 %8242
  %v8244 = vsel %vm1611, %v8224, -inf
  %8245 = vmax.xlane.f32.xlu0 %v8244
  %v8246 = vpop.xlane.xlu0 %8245
  %v8247 = vsel %vm1611, %v8225, -inf
  %8248 = vmax.xlane.f32.xlu0 %v8247
  %v8249 = vpop.xlane.xlu0 %8248
  %v8250 = vsub.f32 %v8218, %v8228
  %v8251 = vsub.f32 %v8219, %v8231
  %v8252 = vsub.f32 %v8220, %v8234
  %v8253 = vsub.f32 %v8221, %v8237
  %v8254 = vsub.f32 %v8222, %v8240
  %v8255 = vsub.f32 %v8223, %v8243
  %v8256 = vsub.f32 %v8224, %v8246
  %v8257 = vsub.f32 %v8225, %v8249
  %v8258 = vmul.f32 %v8250, 1.442695
  %v8259 = vpow.pop %v8258
  %v8260 = vmul.f32 %v8251, 1.442695
  %v8261 = vpow.pop %v8260
  %v8262 = vmul.f32 %v8252, 1.442695
  %v8263 = vpow.pop %v8262
  %v8264 = vmul.f32 %v8253, 1.442695
  %v8265 = vpow.pop %v8264
  %v8266 = vmul.f32 %v8254, 1.442695
  %v8267 = vpow.pop %v8266
  %v8268 = vmul.f32 %v8255, 1.442695
  %v8269 = vpow.pop %v8268
  %v8270 = vmul.f32 %v8256, 1.442695
  %v8271 = vpow.pop %v8270
  %v8272 = vmul.f32 %v8257, 1.442695
  %v8273 = vpow.pop %v8272
  %v8274 = vsel %vm1611, %v8259, 0.0
  %8275 = vadd.xlane.f32.xlu0 %v8274
  %v8276 = vpop.xlane.xlu0 %8275
  %v8277 = vsel %vm1611, %v8261, 0.0
  %8278 = vadd.xlane.f32.xlu0 %v8277
  %v8279 = vpop.xlane.xlu0 %8278
  %v8280 = vsel %vm1611, %v8263, 0.0
  %8281 = vadd.xlane.f32.xlu0 %v8280
  %v8282 = vpop.xlane.xlu0 %8281
  %v8283 = vsel %vm1611, %v8265, 0.0
  %8284 = vadd.xlane.f32.xlu0 %v8283
  %v8285 = vpop.xlane.xlu0 %8284
  %v8286 = vsel %vm1611, %v8267, 0.0
  %8287 = vadd.xlane.f32.xlu0 %v8286
  %v8288 = vpop.xlane.xlu0 %8287
  %v8289 = vsel %vm1611, %v8269, 0.0
  %8290 = vadd.xlane.f32.xlu0 %v8289
  %v8291 = vpop.xlane.xlu0 %8290
  %v8292 = vsel %vm1611, %v8271, 0.0
  %8293 = vadd.xlane.f32.xlu0 %v8292
  %v8294 = vpop.xlane.xlu0 %8293
  %v8295 = vsel %vm1611, %v8273, 0.0
  %8296 = vadd.xlane.f32.xlu0 %v8295
  %v8297 = vpop.xlane.xlu0 %8296
  %v8298 = vrcp.pop %v8276
  %v8299 = vmul.f32 %v8276, %v8298
  %v8300 = vsub.f32 1.0, %v8299
  %v8301 = vmul.f32 %v8298, %v8300
  %v8302 = vadd.f32 %v8298, %v8301
  %vm8303 = vweird.f32 %v8276
  %vm8304 = vweird.f32 %v8298
  %vm8305 = vmor %vm8303, %vm8304
  %v8306 = vsel %vm8305, %v8298, %v8302
  %v8307 = vand.u32 2147483647, %v8276
  %vm8308 = vcmp.eq.f32.partialorder %v8307, 8.507059e+37
  %v8309 = vand.u32 %v8276, 2147483648
  %v8310 = vor.u32 1.1754944e-38, %v8309
  %v8311 = vsel %vm8308, %v8310, %v8306
  %v8312 = vmul.f32 %v8259, %v8311
  %v8313 = vrcp.pop %v8279
  %v8314 = vmul.f32 %v8279, %v8313
  %v8315 = vsub.f32 1.0, %v8314
  %v8316 = vmul.f32 %v8313, %v8315
  %v8317 = vadd.f32 %v8313, %v8316
  %vm8318 = vweird.f32 %v8279
  %vm8319 = vweird.f32 %v8313
  %vm8320 = vmor %vm8318, %vm8319
  %v8321 = vsel %vm8320, %v8313, %v8317
  %v8322 = vand.u32 2147483647, %v8279
  %vm8323 = vcmp.eq.f32.partialorder %v8322, 8.507059e+37
  %v8324 = vand.u32 %v8279, 2147483648
  %v8325 = vor.u32 1.1754944e-38, %v8324
  %v8326 = vsel %vm8323, %v8325, %v8321
  %v8327 = vmul.f32 %v8261, %v8326
  %v8328 = vrcp.pop %v8282
  %v8329 = vmul.f32 %v8282, %v8328
  %v8330 = vsub.f32 1.0, %v8329
  %v8331 = vmul.f32 %v8328, %v8330
  %v8332 = vadd.f32 %v8328, %v8331
  %vm8333 = vweird.f32 %v8282
  %vm8334 = vweird.f32 %v8328
  %vm8335 = vmor %vm8333, %vm8334
  %v8336 = vsel %vm8335, %v8328, %v8332
  %v8337 = vand.u32 2147483647, %v8282
  %vm8338 = vcmp.eq.f32.partialorder %v8337, 8.507059e+37
  %v8339 = vand.u32 %v8282, 2147483648
  %v8340 = vor.u32 1.1754944e-38, %v8339
  %v8341 = vsel %vm8338, %v8340, %v8336
  %v8342 = vmul.f32 %v8263, %v8341
  %v8343 = vrcp.pop %v8285
  %v8344 = vmul.f32 %v8285, %v8343
  %v8345 = vsub.f32 1.0, %v8344
  %v8346 = vmul.f32 %v8343, %v8345
  %v8347 = vadd.f32 %v8343, %v8346
  %vm8348 = vweird.f32 %v8285
  %vm8349 = vweird.f32 %v8343
  %vm8350 = vmor %vm8348, %vm8349
  %v8351 = vsel %vm8350, %v8343, %v8347
  %v8352 = vand.u32 2147483647, %v8285
  %vm8353 = vcmp.eq.f32.partialorder %v8352, 8.507059e+37
  %v8354 = vand.u32 %v8285, 2147483648
  %v8355 = vor.u32 1.1754944e-38, %v8354
  %v8356 = vsel %vm8353, %v8355, %v8351
  %v8357 = vmul.f32 %v8265, %v8356
  %v8358 = vrcp.pop %v8288
  %v8359 = vmul.f32 %v8288, %v8358
  %v8360 = vsub.f32 1.0, %v8359
  %v8361 = vmul.f32 %v8358, %v8360
  %v8362 = vadd.f32 %v8358, %v8361
  %vm8363 = vweird.f32 %v8288
  %vm8364 = vweird.f32 %v8358
  %vm8365 = vmor %vm8363, %vm8364
  %v8366 = vsel %vm8365, %v8358, %v8362
  %v8367 = vand.u32 2147483647, %v8288
  %vm8368 = vcmp.eq.f32.partialorder %v8367, 8.507059e+37
  %v8369 = vand.u32 %v8288, 2147483648
  %v8370 = vor.u32 1.1754944e-38, %v8369
  %v8371 = vsel %vm8368, %v8370, %v8366
  %v8372 = vmul.f32 %v8267, %v8371
  %v8373 = vrcp.pop %v8291
  %v8374 = vmul.f32 %v8291, %v8373
  %v8375 = vsub.f32 1.0, %v8374
  %v8376 = vmul.f32 %v8373, %v8375
  %v8377 = vadd.f32 %v8373, %v8376
  %vm8378 = vweird.f32 %v8291
  %vm8379 = vweird.f32 %v8373
  %vm8380 = vmor %vm8378, %vm8379
  %v8381 = vsel %vm8380, %v8373, %v8377
  %v8382 = vand.u32 2147483647, %v8291
  %vm8383 = vcmp.eq.f32.partialorder %v8382, 8.507059e+37
  %v8384 = vand.u32 %v8291, 2147483648
  %v8385 = vor.u32 1.1754944e-38, %v8384
  %v8386 = vsel %vm8383, %v8385, %v8381
  %v8387 = vmul.f32 %v8269, %v8386
  %v8388 = vrcp.pop %v8294
  %v8389 = vmul.f32 %v8294, %v8388
  %v8390 = vsub.f32 1.0, %v8389
  %v8391 = vmul.f32 %v8388, %v8390
  %v8392 = vadd.f32 %v8388, %v8391
  %vm8393 = vweird.f32 %v8294
  %vm8394 = vweird.f32 %v8388
  %vm8395 = vmor %vm8393, %vm8394
  %v8396 = vsel %vm8395, %v8388, %v8392
  %v8397 = vand.u32 2147483647, %v8294
  %vm8398 = vcmp.eq.f32.partialorder %v8397, 8.507059e+37
  %v8399 = vand.u32 %v8294, 2147483648
  %v8400 = vor.u32 1.1754944e-38, %v8399
  %v8401 = vsel %vm8398, %v8400, %v8396
  %v8402 = vmul.f32 %v8271, %v8401
  %v8403 = vrcp.pop %v8297
  %v8404 = vmul.f32 %v8297, %v8403
  %v8405 = vsub.f32 1.0, %v8404
  %v8406 = vmul.f32 %v8403, %v8405
  %v8407 = vadd.f32 %v8403, %v8406
  %vm8408 = vweird.f32 %v8297
  %vm8409 = vweird.f32 %v8403
  %vm8410 = vmor %vm8408, %vm8409
  %v8411 = vsel %vm8410, %v8403, %v8407
  %v8412 = vand.u32 2147483647, %v8297
  %vm8413 = vcmp.eq.f32.partialorder %v8412, 8.507059e+37
  %v8414 = vand.u32 %v8297, 2147483648
  %v8415 = vor.u32 1.1754944e-38, %v8414
  %v8416 = vsel %vm8413, %v8415, %v8411
  %v8417 = vmul.f32 %v8273, %v8416
  %v8418 = vpack.c.bf16 %v8312, %v8312
  %v8419 = vpack.c.bf16 %v8327, %v8327
  %v8420 = vpack.c.bf16 %v8342, %v8342
  %v8421 = vpack.c.bf16 %v8357, %v8357
  %v8422 = vpack.c.bf16 %v8372, %v8372
  %v8423 = vpack.c.bf16 %v8387, %v8387
  %v8424 = vpack.c.bf16 %v8402, %v8402
  %v8425 = vpack.c.bf16 %v8417, %v8417
  %v8426 = vpack.c.bf16 %v7788, %v7788
  %v8427 = vpack.c.bf16 %v7825, %v7825
  %v8428 = vpack.c.bf16 %v7862, %v7862
  %v8429 = vpack.c.bf16 %v7899, %v7899
  %v8430 = vpack.c.bf16 %v7936, %v7936
  %v8431 = vpack.c.bf16 %v7973, %v7973
  %v8432 = vpack.c.bf16 %v8010, %v8010
  %v8433 = vpack.c.bf16 %v8047, %v8047
  %v8435 = vsel %vm1820, %v8418, 0
  %v8438 = vsel %vm141, %v8426, 0
  %8440 = vmatpush.bf16.msra.mxu0 0
  %8441 = vmatpush.bf16.msra.mxu0 0
  %8442 = vmatpush.bf16.msra.mxu0 0
  %8443 = vmatpush.bf16.msra.mxu0 0
  %8444 = vmatpush.bf16.msra.mxu0 0
  %8445 = vmatpush.bf16.msra.mxu0 0
  %8446 = vmatpush.bf16.msra.mxu0 0
  %8447 = vmatpush.bf16.msra.mxu0 %v8438
  %8448 = vmatmul.bf16.gmra.mxu0 %v8435
  %v8449 = vpop.f32.mrf.mxu0
  %v8450 = vadd.f32 0.0, %v8449
  %v8451 = vpop.f32.mrf.mxu0
  %8452 = vdwg.mxu0
  %v8454 = vsel %vm1820, %v8419, 0
  %v8457 = vsel %vm141, %v8427, 0
  %8459 = vmatpush.bf16.msra.mxu0 0
  %8460 = vmatpush.bf16.msra.mxu0 0
  %8461 = vmatpush.bf16.msra.mxu0 0
  %8462 = vmatpush.bf16.msra.mxu0 0
  %8463 = vmatpush.bf16.msra.mxu0 0
  %8464 = vmatpush.bf16.msra.mxu0 0
  %8465 = vmatpush.bf16.msra.mxu0 0
  %8466 = vmatpush.bf16.msra.mxu0 %v8457
  %8467 = vmatmul.bf16.gmra.mxu0 %v8454
  %v8468 = vpop.f32.mrf.mxu0
  %v8469 = vadd.f32 0.0, %v8468
  %v8470 = vpop.f32.mrf.mxu0
  %8471 = vdwg.mxu0
  %v8473 = vsel %vm1820, %v8420, 0
  %v8476 = vsel %vm141, %v8428, 0
  %8478 = vmatpush.bf16.msra.mxu0 0
  %8479 = vmatpush.bf16.msra.mxu0 0
  %8480 = vmatpush.bf16.msra.mxu0 0
  %8481 = vmatpush.bf16.msra.mxu0 0
  %8482 = vmatpush.bf16.msra.mxu0 0
  %8483 = vmatpush.bf16.msra.mxu0 0
  %8484 = vmatpush.bf16.msra.mxu0 0
  %8485 = vmatpush.bf16.msra.mxu0 %v8476
  %8486 = vmatmul.bf16.gmra.mxu0 %v8473
  %v8487 = vpop.f32.mrf.mxu0
  %v8488 = vadd.f32 0.0, %v8487
  %v8489 = vpop.f32.mrf.mxu0
  %8490 = vdwg.mxu0
  %v8492 = vsel %vm1820, %v8421, 0
  %v8495 = vsel %vm141, %v8429, 0
  %8497 = vmatpush.bf16.msra.mxu0 0
  %8498 = vmatpush.bf16.msra.mxu0 0
  %8499 = vmatpush.bf16.msra.mxu0 0
  %8500 = vmatpush.bf16.msra.mxu0 0
  %8501 = vmatpush.bf16.msra.mxu0 0
  %8502 = vmatpush.bf16.msra.mxu0 0
  %8503 = vmatpush.bf16.msra.mxu0 0
  %8504 = vmatpush.bf16.msra.mxu0 %v8495
  %8505 = vmatmul.bf16.gmra.mxu0 %v8492
  %v8506 = vpop.f32.mrf.mxu0
  %v8507 = vadd.f32 0.0, %v8506
  %v8508 = vpop.f32.mrf.mxu0
  %8509 = vdwg.mxu0
  %v8511 = vsel %vm1820, %v8422, 0
  %v8514 = vsel %vm141, %v8430, 0
  %8516 = vmatpush.bf16.msra.mxu0 0
  %8517 = vmatpush.bf16.msra.mxu0 0
  %8518 = vmatpush.bf16.msra.mxu0 0
  %8519 = vmatpush.bf16.msra.mxu0 0
  %8520 = vmatpush.bf16.msra.mxu0 0
  %8521 = vmatpush.bf16.msra.mxu0 0
  %8522 = vmatpush.bf16.msra.mxu0 0
  %8523 = vmatpush.bf16.msra.mxu0 %v8514
  %8524 = vmatmul.bf16.gmra.mxu0 %v8511
  %v8525 = vpop.f32.mrf.mxu0
  %v8526 = vadd.f32 0.0, %v8525
  %v8527 = vpop.f32.mrf.mxu0
  %8528 = vdwg.mxu0
  %v8530 = vsel %vm1820, %v8423, 0
  %v8533 = vsel %vm141, %v8431, 0
  %8535 = vmatpush.bf16.msra.mxu0 0
  %8536 = vmatpush.bf16.msra.mxu0 0
  %8537 = vmatpush.bf16.msra.mxu0 0
  %8538 = vmatpush.bf16.msra.mxu0 0
  %8539 = vmatpush.bf16.msra.mxu0 0
  %8540 = vmatpush.bf16.msra.mxu0 0
  %8541 = vmatpush.bf16.msra.mxu0 0
  %8542 = vmatpush.bf16.msra.mxu0 %v8533
  %8543 = vmatmul.bf16.gmra.mxu0 %v8530
  %v8544 = vpop.f32.mrf.mxu0
  %v8545 = vadd.f32 0.0, %v8544
  %v8546 = vpop.f32.mrf.mxu0
  %8547 = vdwg.mxu0
  %v8549 = vsel %vm1820, %v8424, 0
  %v8552 = vsel %vm141, %v8432, 0
  %8554 = vmatpush.bf16.msra.mxu0 0
  %8555 = vmatpush.bf16.msra.mxu0 0
  %8556 = vmatpush.bf16.msra.mxu0 0
  %8557 = vmatpush.bf16.msra.mxu0 0
  %8558 = vmatpush.bf16.msra.mxu0 0
  %8559 = vmatpush.bf16.msra.mxu0 0
  %8560 = vmatpush.bf16.msra.mxu0 0
  %8561 = vmatpush.bf16.msra.mxu0 %v8552
  %8562 = vmatmul.bf16.gmra.mxu0 %v8549
  %v8563 = vpop.f32.mrf.mxu0
  %v8564 = vadd.f32 0.0, %v8563
  %v8565 = vpop.f32.mrf.mxu0
  %8566 = vdwg.mxu0
  %v8568 = vsel %vm1820, %v8425, 0
  %v8571 = vsel %vm141, %v8433, 0
  %8573 = vmatpush.bf16.msra.mxu0 0
  %8574 = vmatpush.bf16.msra.mxu0 0
  %8575 = vmatpush.bf16.msra.mxu0 0
  %8576 = vmatpush.bf16.msra.mxu0 0
  %8577 = vmatpush.bf16.msra.mxu0 0
  %8578 = vmatpush.bf16.msra.mxu0 0
  %8579 = vmatpush.bf16.msra.mxu0 0
  %8580 = vmatpush.bf16.msra.mxu0 %v8571
  %8581 = vmatmul.bf16.gmra.mxu0 %v8568
  %v8582 = vpop.f32.mrf.mxu0
  %v8583 = vadd.f32 0.0, %v8582
  %v8584 = vpop.f32.mrf.mxu0
  %8585 = vdwg.mxu0
  %v8586 = vpack.c.bf16 %v8450, %v8450
  %v8587 = vpack.c.bf16 %v8469, %v8469
  %v8588 = vpack.c.bf16 %v8488, %v8488
  %v8589 = vpack.c.bf16 %v8507, %v8507
  %v8590 = vpack.c.bf16 %v8526, %v8526
  %v8591 = vpack.c.bf16 %v8545, %v8545
  %v8592 = vpack.c.bf16 %v8564, %v8564
  %v8593 = vpack.c.bf16 %v8583, %v8583
  %v8595 = vsel %vm1450, %v8586, 0
  %v8598 = vsel %vm142, %v7022, 0
  %8600 = vmatpush.bf16.msra.mxu0 0
  %8601 = vmatpush.bf16.msra.mxu0 0
  %8602 = vmatpush.bf16.msra.mxu0 0
  %8603 = vmatpush.bf16.msra.mxu0 0
  %8604 = vmatpush.bf16.msra.mxu0 0
  %8605 = vmatpush.bf16.msra.mxu0 0
  %8606 = vmatpush.bf16.msra.mxu0 0
  %8607 = vmatpush.bf16.msra.mxu0 %v8598
  %8608 = vmatmul.bf16.gmra.mxu0 %v8595
  %v8609 = vpop.f32.mrf.mxu0
  %v8610 = vadd.f32 0.0, %v8609
  %v8611 = vpop.f32.mrf.mxu0
  %8612 = vdwg.mxu0
  %v8614 = vsel %vm1450, %v8587, 0
  %v8617 = vsel %vm142, %v7023, 0
  %8619 = vmatpush.bf16.msra.mxu0 0
  %8620 = vmatpush.bf16.msra.mxu0 0
  %8621 = vmatpush.bf16.msra.mxu0 0
  %8622 = vmatpush.bf16.msra.mxu0 0
  %8623 = vmatpush.bf16.msra.mxu0 0
  %8624 = vmatpush.bf16.msra.mxu0 0
  %8625 = vmatpush.bf16.msra.mxu0 0
  %8626 = vmatpush.bf16.msra.mxu0 %v8617
  %8627 = vmatmul.bf16.gmra.mxu0 %v8614
  %v8628 = vpop.f32.mrf.mxu0
  %v8629 = vadd.f32 0.0, %v8628
  %v8630 = vpop.f32.mrf.mxu0
  %8631 = vdwg.mxu0
  %v8633 = vsel %vm1450, %v8588, 0
  %v8636 = vsel %vm142, %v7024, 0
  %8638 = vmatpush.bf16.msra.mxu0 0
  %8639 = vmatpush.bf16.msra.mxu0 0
  %8640 = vmatpush.bf16.msra.mxu0 0
  %8641 = vmatpush.bf16.msra.mxu0 0
  %8642 = vmatpush.bf16.msra.mxu0 0
  %8643 = vmatpush.bf16.msra.mxu0 0
  %8644 = vmatpush.bf16.msra.mxu0 0
  %8645 = vmatpush.bf16.msra.mxu0 %v8636
  %8646 = vmatmul.bf16.gmra.mxu0 %v8633
  %v8647 = vpop.f32.mrf.mxu0
  %v8648 = vadd.f32 0.0, %v8647
  %v8649 = vpop.f32.mrf.mxu0
  %8650 = vdwg.mxu0
  %v8652 = vsel %vm1450, %v8589, 0
  %v8655 = vsel %vm142, %v7025, 0
  %8657 = vmatpush.bf16.msra.mxu0 0
  %8658 = vmatpush.bf16.msra.mxu0 0
  %8659 = vmatpush.bf16.msra.mxu0 0
  %8660 = vmatpush.bf16.msra.mxu0 0
  %8661 = vmatpush.bf16.msra.mxu0 0
  %8662 = vmatpush.bf16.msra.mxu0 0
  %8663 = vmatpush.bf16.msra.mxu0 0
  %8664 = vmatpush.bf16.msra.mxu0 %v8655
  %8665 = vmatmul.bf16.gmra.mxu0 %v8652
  %v8666 = vpop.f32.mrf.mxu0
  %v8667 = vadd.f32 0.0, %v8666
  %v8668 = vpop.f32.mrf.mxu0
  %8669 = vdwg.mxu0
  %v8671 = vsel %vm1450, %v8590, 0
  %v8674 = vsel %vm142, %v7026, 0
  %8676 = vmatpush.bf16.msra.mxu0 0
  %8677 = vmatpush.bf16.msra.mxu0 0
  %8678 = vmatpush.bf16.msra.mxu0 0
  %8679 = vmatpush.bf16.msra.mxu0 0
  %8680 = vmatpush.bf16.msra.mxu0 0
  %8681 = vmatpush.bf16.msra.mxu0 0
  %8682 = vmatpush.bf16.msra.mxu0 0
  %8683 = vmatpush.bf16.msra.mxu0 %v8674
  %8684 = vmatmul.bf16.gmra.mxu0 %v8671
  %v8685 = vpop.f32.mrf.mxu0
  %v8686 = vadd.f32 0.0, %v8685
  %v8687 = vpop.f32.mrf.mxu0
  %8688 = vdwg.mxu0
  %v8690 = vsel %vm1450, %v8591, 0
  %v8693 = vsel %vm142, %v7027, 0
  %8695 = vmatpush.bf16.msra.mxu0 0
  %8696 = vmatpush.bf16.msra.mxu0 0
  %8697 = vmatpush.bf16.msra.mxu0 0
  %8698 = vmatpush.bf16.msra.mxu0 0
  %8699 = vmatpush.bf16.msra.mxu0 0
  %8700 = vmatpush.bf16.msra.mxu0 0
  %8701 = vmatpush.bf16.msra.mxu0 0
  %8702 = vmatpush.bf16.msra.mxu0 %v8693
  %8703 = vmatmul.bf16.gmra.mxu0 %v8690
  %v8704 = vpop.f32.mrf.mxu0
  %v8705 = vadd.f32 0.0, %v8704
  %v8706 = vpop.f32.mrf.mxu0
  %8707 = vdwg.mxu0
  %v8709 = vsel %vm1450, %v8592, 0
  %v8712 = vsel %vm142, %v7028, 0
  %8714 = vmatpush.bf16.msra.mxu0 0
  %8715 = vmatpush.bf16.msra.mxu0 0
  %8716 = vmatpush.bf16.msra.mxu0 0
  %8717 = vmatpush.bf16.msra.mxu0 0
  %8718 = vmatpush.bf16.msra.mxu0 0
  %8719 = vmatpush.bf16.msra.mxu0 0
  %8720 = vmatpush.bf16.msra.mxu0 0
  %8721 = vmatpush.bf16.msra.mxu0 %v8712
  %8722 = vmatmul.bf16.gmra.mxu0 %v8709
  %v8723 = vpop.f32.mrf.mxu0
  %v8724 = vadd.f32 0.0, %v8723
  %v8725 = vpop.f32.mrf.mxu0
  %8726 = vdwg.mxu0
  %v8728 = vsel %vm1450, %v8593, 0
  %v8731 = vsel %vm142, %v7029, 0
  %8733 = vmatpush.bf16.msra.mxu0 0
  %8734 = vmatpush.bf16.msra.mxu0 0
  %8735 = vmatpush.bf16.msra.mxu0 0
  %8736 = vmatpush.bf16.msra.mxu0 0
  %8737 = vmatpush.bf16.msra.mxu0 0
  %8738 = vmatpush.bf16.msra.mxu0 0
  %8739 = vmatpush.bf16.msra.mxu0 0
  %8740 = vmatpush.bf16.msra.mxu0 %v8731
  %8741 = vmatmul.bf16.gmra.mxu0 %v8728
  %v8742 = vpop.f32.mrf.mxu0
  %v8743 = vadd.f32 0.0, %v8742
  %v8744 = vpop.f32.mrf.mxu0
  %8745 = vdwg.mxu0
  %v8746 = vsel %vm2133, %v8610, 0.0
  %v8747 = vsel %vm2133, %v8629, 0.0
  %v8748 = vadd.f32 %v8746, %v8747
  %v8749 = vsel %vm2133, %v8648, 0.0
  %v8750 = vadd.f32 %v8748, %v8749
  %v8751 = vsel %vm2133, %v8667, 0.0
  %v8752 = vadd.f32 %v8750, %v8751
  %v8753 = vsel %vm2133, %v8686, 0.0
  %v8754 = vadd.f32 %v8752, %v8753
  %v8755 = vsel %vm2133, %v8705, 0.0
  %v8756 = vadd.f32 %v8754, %v8755
  %v8757 = vsel %vm2133, %v8724, 0.0
  %v8758 = vadd.f32 %v8756, %v8757
  %v8759 = vsel %vm2133, %v8743, 0.0
  %v8760 = vadd.f32 %v8758, %v8759
  %v8762 = vperm.slane %v7031, 0
  %v8764 = vadd.f32 %v8760, %v8762
  %v8765 = vpack.c.bf16 %v6798, %v6798
  %v8768 = vunpack.c.l.b16 %v7086
  %v8769 = vunpack.c.l.b16 %v8765
  %v8770 = vpack.c.b16 %v8769, %v8768
  %v8771 = vrot.slane %v8770, 3
  %v8773 = vsel %vm518, %v8771, 0
  %8775 = vmatpush.bf16.msra.mxu0 0
  %8776 = vmatpush.bf16.msra.mxu0 0
  %8777 = vmatpush.bf16.msra.mxu0 0
  %8778 = vmatpush.bf16.msra.mxu0 0
  %8779 = vmatpush.bf16.msra.mxu0 %v7130
  %8780 = vmatpush.bf16.msra.mxu0 %v7129
  %8781 = vmatpush.bf16.msra.mxu0 %v7128
  %8782 = vmatpush.bf16.msra.mxu0 %v7127
  %8783 = vmatmul.bf16.gmra.mxu0 %v8773
  %v8784 = vpop.f32.mrf.mxu0
  %v8785 = vadd.f32 %v7095, %v8784
  %v8786 = vpop.f32.mrf.mxu0
  %8787 = vdwg.mxu0
  %8788 = vmatpush.bf16.msra.mxu0 0
  %8789 = vmatpush.bf16.msra.mxu0 0
  %8790 = vmatpush.bf16.msra.mxu0 0
  %8791 = vmatpush.bf16.msra.mxu0 0
  %8792 = vmatpush.bf16.msra.mxu0 %v7170
  %8793 = vmatpush.bf16.msra.mxu0 %v7169
  %8794 = vmatpush.bf16.msra.mxu0 %v7168
  %8795 = vmatpush.bf16.msra.mxu0 %v7167
  %8796 = vmatmul.bf16.gmra.mxu0 %v8773
  %v8797 = vpop.f32.mrf.mxu0
  %v8798 = vadd.f32 %v7096, %v8797
  %v8799 = vpop.f32.mrf.mxu0
  %8800 = vdwg.mxu0
  %8801 = vmatpush.bf16.msra.mxu0 0
  %8802 = vmatpush.bf16.msra.mxu0 0
  %8803 = vmatpush.bf16.msra.mxu0 0
  %8804 = vmatpush.bf16.msra.mxu0 0
  %8805 = vmatpush.bf16.msra.mxu0 %v7207
  %8806 = vmatpush.bf16.msra.mxu0 %v7206
  %8807 = vmatpush.bf16.msra.mxu0 %v7205
  %8808 = vmatpush.bf16.msra.mxu0 %v7204
  %8809 = vmatmul.bf16.gmra.mxu0 %v8773
  %v8810 = vpop.f32.mrf.mxu0
  %v8811 = vadd.f32 %v7097, %v8810
  %v8812 = vpop.f32.mrf.mxu0
  %8813 = vdwg.mxu0
  %8814 = vmatpush.bf16.msra.mxu0 0
  %8815 = vmatpush.bf16.msra.mxu0 0
  %8816 = vmatpush.bf16.msra.mxu0 0
  %8817 = vmatpush.bf16.msra.mxu0 0
  %8818 = vmatpush.bf16.msra.mxu0 %v7244
  %8819 = vmatpush.bf16.msra.mxu0 %v7243
  %8820 = vmatpush.bf16.msra.mxu0 %v7242
  %8821 = vmatpush.bf16.msra.mxu0 %v7241
  %8822 = vmatmul.bf16.gmra.mxu0 %v8773
  %v8823 = vpop.f32.mrf.mxu0
  %v8824 = vadd.f32 %v7098, %v8823
  %v8825 = vpop.f32.mrf.mxu0
  %8826 = vdwg.mxu0
  %8827 = vmatpush.bf16.msra.mxu0 0
  %8828 = vmatpush.bf16.msra.mxu0 0
  %8829 = vmatpush.bf16.msra.mxu0 0
  %8830 = vmatpush.bf16.msra.mxu0 0
  %8831 = vmatpush.bf16.msra.mxu0 %v7281
  %8832 = vmatpush.bf16.msra.mxu0 %v7280
  %8833 = vmatpush.bf16.msra.mxu0 %v7279
  %8834 = vmatpush.bf16.msra.mxu0 %v7278
  %8835 = vmatmul.bf16.gmra.mxu0 %v8773
  %v8836 = vpop.f32.mrf.mxu0
  %v8837 = vadd.f32 %v7099, %v8836
  %v8838 = vpop.f32.mrf.mxu0
  %8839 = vdwg.mxu0
  %8840 = vmatpush.bf16.msra.mxu0 0
  %8841 = vmatpush.bf16.msra.mxu0 0
  %8842 = vmatpush.bf16.msra.mxu0 0
  %8843 = vmatpush.bf16.msra.mxu0 0
  %8844 = vmatpush.bf16.msra.mxu0 %v7318
  %8845 = vmatpush.bf16.msra.mxu0 %v7317
  %8846 = vmatpush.bf16.msra.mxu0 %v7316
  %8847 = vmatpush.bf16.msra.mxu0 %v7315
  %8848 = vmatmul.bf16.gmra.mxu0 %v8773
  %v8849 = vpop.f32.mrf.mxu0
  %v8850 = vadd.f32 %v7100, %v8849
  %v8851 = vpop.f32.mrf.mxu0
  %8852 = vdwg.mxu0
  %8853 = vmatpush.bf16.msra.mxu0 0
  %8854 = vmatpush.bf16.msra.mxu0 0
  %8855 = vmatpush.bf16.msra.mxu0 0
  %8856 = vmatpush.bf16.msra.mxu0 0
  %8857 = vmatpush.bf16.msra.mxu0 %v7355
  %8858 = vmatpush.bf16.msra.mxu0 %v7354
  %8859 = vmatpush.bf16.msra.mxu0 %v7353
  %8860 = vmatpush.bf16.msra.mxu0 %v7352
  %8861 = vmatmul.bf16.gmra.mxu0 %v8773
  %v8862 = vpop.f32.mrf.mxu0
  %v8863 = vadd.f32 %v7101, %v8862
  %v8864 = vpop.f32.mrf.mxu0
  %8865 = vdwg.mxu0
  %8866 = vmatpush.bf16.msra.mxu0 0
  %8867 = vmatpush.bf16.msra.mxu0 0
  %8868 = vmatpush.bf16.msra.mxu0 0
  %8869 = vmatpush.bf16.msra.mxu0 0
  %8870 = vmatpush.bf16.msra.mxu0 %v7392
  %8871 = vmatpush.bf16.msra.mxu0 %v7391
  %8872 = vmatpush.bf16.msra.mxu0 %v7390
  %8873 = vmatpush.bf16.msra.mxu0 %v7389
  %8874 = vmatmul.bf16.gmra.mxu0 %v8773
  %v8875 = vpop.f32.mrf.mxu0
  %v8876 = vadd.f32 %v7102, %v8875
  %v8877 = vpop.f32.mrf.mxu0
  %8878 = vdwg.mxu0
  %8879 = vmatpush.bf16.msra.mxu0 0
  %8880 = vmatpush.bf16.msra.mxu0 0
  %8881 = vmatpush.bf16.msra.mxu0 0
  %8882 = vmatpush.bf16.msra.mxu0 0
  %8883 = vmatpush.bf16.msra.mxu0 %v7453
  %8884 = vmatpush.bf16.msra.mxu0 %v7452
  %8885 = vmatpush.bf16.msra.mxu0 %v7451
  %8886 = vmatpush.bf16.msra.mxu0 %v7450
  %8887 = vmatmul.bf16.gmra.mxu0 %v8773
  %v8888 = vpop.f32.mrf.mxu0
  %v8889 = vadd.f32 %v7418, %v8888
  %v8890 = vpop.f32.mrf.mxu0
  %8891 = vdwg.mxu0
  %8892 = vmatpush.bf16.msra.mxu0 0
  %8893 = vmatpush.bf16.msra.mxu0 0
  %8894 = vmatpush.bf16.msra.mxu0 0
  %8895 = vmatpush.bf16.msra.mxu0 0
  %8896 = vmatpush.bf16.msra.mxu0 %v7490
  %8897 = vmatpush.bf16.msra.mxu0 %v7489
  %8898 = vmatpush.bf16.msra.mxu0 %v7488
  %8899 = vmatpush.bf16.msra.mxu0 %v7487
  %8900 = vmatmul.bf16.gmra.mxu0 %v8773
  %v8901 = vpop.f32.mrf.mxu0
  %v8902 = vadd.f32 %v7419, %v8901
  %v8903 = vpop.f32.mrf.mxu0
  %8904 = vdwg.mxu0
  %8905 = vmatpush.bf16.msra.mxu0 0
  %8906 = vmatpush.bf16.msra.mxu0 0
  %8907 = vmatpush.bf16.msra.mxu0 0
  %8908 = vmatpush.bf16.msra.mxu0 0
  %8909 = vmatpush.bf16.msra.mxu0 %v7527
  %8910 = vmatpush.bf16.msra.mxu0 %v7526
  %8911 = vmatpush.bf16.msra.mxu0 %v7525
  %8912 = vmatpush.bf16.msra.mxu0 %v7524
  %8913 = vmatmul.bf16.gmra.mxu0 %v8773
  %v8914 = vpop.f32.mrf.mxu0
  %v8915 = vadd.f32 %v7420, %v8914
  %v8916 = vpop.f32.mrf.mxu0
  %8917 = vdwg.mxu0
  %8918 = vmatpush.bf16.msra.mxu0 0
  %8919 = vmatpush.bf16.msra.mxu0 0
  %8920 = vmatpush.bf16.msra.mxu0 0
  %8921 = vmatpush.bf16.msra.mxu0 0
  %8922 = vmatpush.bf16.msra.mxu0 %v7564
  %8923 = vmatpush.bf16.msra.mxu0 %v7563
  %8924 = vmatpush.bf16.msra.mxu0 %v7562
  %8925 = vmatpush.bf16.msra.mxu0 %v7561
  %8926 = vmatmul.bf16.gmra.mxu0 %v8773
  %v8927 = vpop.f32.mrf.mxu0
  %v8928 = vadd.f32 %v7421, %v8927
  %v8929 = vpop.f32.mrf.mxu0
  %8930 = vdwg.mxu0
  %8931 = vmatpush.bf16.msra.mxu0 0
  %8932 = vmatpush.bf16.msra.mxu0 0
  %8933 = vmatpush.bf16.msra.mxu0 0
  %8934 = vmatpush.bf16.msra.mxu0 0
  %8935 = vmatpush.bf16.msra.mxu0 %v7601
  %8936 = vmatpush.bf16.msra.mxu0 %v7600
  %8937 = vmatpush.bf16.msra.mxu0 %v7599
  %8938 = vmatpush.bf16.msra.mxu0 %v7598
  %8939 = vmatmul.bf16.gmra.mxu0 %v8773
  %v8940 = vpop.f32.mrf.mxu0
  %v8941 = vadd.f32 %v7422, %v8940
  %v8942 = vpop.f32.mrf.mxu0
  %8943 = vdwg.mxu0
  %8944 = vmatpush.bf16.msra.mxu0 0
  %8945 = vmatpush.bf16.msra.mxu0 0
  %8946 = vmatpush.bf16.msra.mxu0 0
  %8947 = vmatpush.bf16.msra.mxu0 0
  %8948 = vmatpush.bf16.msra.mxu0 %v7638
  %8949 = vmatpush.bf16.msra.mxu0 %v7637
  %8950 = vmatpush.bf16.msra.mxu0 %v7636
  %8951 = vmatpush.bf16.msra.mxu0 %v7635
  %8952 = vmatmul.bf16.gmra.mxu0 %v8773
  %v8953 = vpop.f32.mrf.mxu0
  %v8954 = vadd.f32 %v7423, %v8953
  %v8955 = vpop.f32.mrf.mxu0
  %8956 = vdwg.mxu0
  %8957 = vmatpush.bf16.msra.mxu0 0
  %8958 = vmatpush.bf16.msra.mxu0 0
  %8959 = vmatpush.bf16.msra.mxu0 0
  %8960 = vmatpush.bf16.msra.mxu0 0
  %8961 = vmatpush.bf16.msra.mxu0 %v7675
  %8962 = vmatpush.bf16.msra.mxu0 %v7674
  %8963 = vmatpush.bf16.msra.mxu0 %v7673
  %8964 = vmatpush.bf16.msra.mxu0 %v7672
  %8965 = vmatmul.bf16.gmra.mxu0 %v8773
  %v8966 = vpop.f32.mrf.mxu0
  %v8967 = vadd.f32 %v7424, %v8966
  %v8968 = vpop.f32.mrf.mxu0
  %8969 = vdwg.mxu0
  %8970 = vmatpush.bf16.msra.mxu0 0
  %8971 = vmatpush.bf16.msra.mxu0 0
  %8972 = vmatpush.bf16.msra.mxu0 0
  %8973 = vmatpush.bf16.msra.mxu0 0
  %8974 = vmatpush.bf16.msra.mxu0 %v7712
  %8975 = vmatpush.bf16.msra.mxu0 %v7711
  %8976 = vmatpush.bf16.msra.mxu0 %v7710
  %8977 = vmatpush.bf16.msra.mxu0 %v7709
  %8978 = vmatmul.bf16.gmra.mxu0 %v8773
  %v8979 = vpop.f32.mrf.mxu0
  %v8980 = vadd.f32 %v7425, %v8979
  %v8981 = vpop.f32.mrf.mxu0
  %8982 = vdwg.mxu0
  %8983 = vmatpush.bf16.msra.mxu0 0
  %8984 = vmatpush.bf16.msra.mxu0 0
  %8985 = vmatpush.bf16.msra.mxu0 0
  %8986 = vmatpush.bf16.msra.mxu0 0
  %8987 = vmatpush.bf16.msra.mxu0 %v7773
  %8988 = vmatpush.bf16.msra.mxu0 %v7772
  %8989 = vmatpush.bf16.msra.mxu0 %v7771
  %8990 = vmatpush.bf16.msra.mxu0 %v7770
  %8991 = vmatmul.bf16.gmra.mxu0 %v8773
  %v8992 = vpop.f32.mrf.mxu0
  %v8993 = vadd.f32 %v7738, %v8992
  %v8994 = vpop.f32.mrf.mxu0
  %8995 = vdwg.mxu0
  %8996 = vmatpush.bf16.msra.mxu0 0
  %8997 = vmatpush.bf16.msra.mxu0 0
  %8998 = vmatpush.bf16.msra.mxu0 0
  %8999 = vmatpush.bf16.msra.mxu0 0
  %9000 = vmatpush.bf16.msra.mxu0 %v7810
  %9001 = vmatpush.bf16.msra.mxu0 %v7809
  %9002 = vmatpush.bf16.msra.mxu0 %v7808
  %9003 = vmatpush.bf16.msra.mxu0 %v7807
  %9004 = vmatmul.bf16.gmra.mxu0 %v8773
  %v9005 = vpop.f32.mrf.mxu0
  %v9006 = vadd.f32 %v7739, %v9005
  %v9007 = vpop.f32.mrf.mxu0
  %9008 = vdwg.mxu0
  %9009 = vmatpush.bf16.msra.mxu0 0
  %9010 = vmatpush.bf16.msra.mxu0 0
  %9011 = vmatpush.bf16.msra.mxu0 0
  %9012 = vmatpush.bf16.msra.mxu0 0
  %9013 = vmatpush.bf16.msra.mxu0 %v7847
  %9014 = vmatpush.bf16.msra.mxu0 %v7846
  %9015 = vmatpush.bf16.msra.mxu0 %v7845
  %9016 = vmatpush.bf16.msra.mxu0 %v7844
  %9017 = vmatmul.bf16.gmra.mxu0 %v8773
  %v9018 = vpop.f32.mrf.mxu0
  %v9019 = vadd.f32 %v7740, %v9018
  %v9020 = vpop.f32.mrf.mxu0
  %9021 = vdwg.mxu0
  %9022 = vmatpush.bf16.msra.mxu0 0
  %9023 = vmatpush.bf16.msra.mxu0 0
  %9024 = vmatpush.bf16.msra.mxu0 0
  %9025 = vmatpush.bf16.msra.mxu0 0
  %9026 = vmatpush.bf16.msra.mxu0 %v7884
  %9027 = vmatpush.bf16.msra.mxu0 %v7883
  %9028 = vmatpush.bf16.msra.mxu0 %v7882
  %9029 = vmatpush.bf16.msra.mxu0 %v7881
  %9030 = vmatmul.bf16.gmra.mxu0 %v8773
  %v9031 = vpop.f32.mrf.mxu0
  %v9032 = vadd.f32 %v7741, %v9031
  %v9033 = vpop.f32.mrf.mxu0
  %9034 = vdwg.mxu0
  %9035 = vmatpush.bf16.msra.mxu0 0
  %9036 = vmatpush.bf16.msra.mxu0 0
  %9037 = vmatpush.bf16.msra.mxu0 0
  %9038 = vmatpush.bf16.msra.mxu0 0
  %9039 = vmatpush.bf16.msra.mxu0 %v7921
  %9040 = vmatpush.bf16.msra.mxu0 %v7920
  %9041 = vmatpush.bf16.msra.mxu0 %v7919
  %9042 = vmatpush.bf16.msra.mxu0 %v7918
  %9043 = vmatmul.bf16.gmra.mxu0 %v8773
  %v9044 = vpop.f32.mrf.mxu0
  %v9045 = vadd.f32 %v7742, %v9044
  %v9046 = vpop.f32.mrf.mxu0
  %9047 = vdwg.mxu0
  %9048 = vmatpush.bf16.msra.mxu0 0
  %9049 = vmatpush.bf16.msra.mxu0 0
  %9050 = vmatpush.bf16.msra.mxu0 0
  %9051 = vmatpush.bf16.msra.mxu0 0
  %9052 = vmatpush.bf16.msra.mxu0 %v7958
  %9053 = vmatpush.bf16.msra.mxu0 %v7957
  %9054 = vmatpush.bf16.msra.mxu0 %v7956
  %9055 = vmatpush.bf16.msra.mxu0 %v7955
  %9056 = vmatmul.bf16.gmra.mxu0 %v8773
  %v9057 = vpop.f32.mrf.mxu0
  %v9058 = vadd.f32 %v7743, %v9057
  %v9059 = vpop.f32.mrf.mxu0
  %9060 = vdwg.mxu0
  %9061 = vmatpush.bf16.msra.mxu0 0
  %9062 = vmatpush.bf16.msra.mxu0 0
  %9063 = vmatpush.bf16.msra.mxu0 0
  %9064 = vmatpush.bf16.msra.mxu0 0
  %9065 = vmatpush.bf16.msra.mxu0 %v7995
  %9066 = vmatpush.bf16.msra.mxu0 %v7994
  %9067 = vmatpush.bf16.msra.mxu0 %v7993
  %9068 = vmatpush.bf16.msra.mxu0 %v7992
  %9069 = vmatmul.bf16.gmra.mxu0 %v8773
  %v9070 = vpop.f32.mrf.mxu0
  %v9071 = vadd.f32 %v7744, %v9070
  %v9072 = vpop.f32.mrf.mxu0
  %9073 = vdwg.mxu0
  %9074 = vmatpush.bf16.msra.mxu0 0
  %9075 = vmatpush.bf16.msra.mxu0 0
  %9076 = vmatpush.bf16.msra.mxu0 0
  %9077 = vmatpush.bf16.msra.mxu0 0
  %9078 = vmatpush.bf16.msra.mxu0 %v8032
  %9079 = vmatpush.bf16.msra.mxu0 %v8031
  %9080 = vmatpush.bf16.msra.mxu0 %v8030
  %9081 = vmatpush.bf16.msra.mxu0 %v8029
  %9082 = vmatmul.bf16.gmra.mxu0 %v8773
  %v9083 = vpop.f32.mrf.mxu0
  %v9084 = vadd.f32 %v7745, %v9083
  %v9085 = vpop.f32.mrf.mxu0
  %9086 = vdwg.mxu0
  %v9087 = vpack.c.bf16 %v8785, %v8785
  %v9088 = vpack.c.bf16 %v8798, %v8798
  %v9089 = vpack.c.bf16 %v8811, %v8811
  %v9090 = vpack.c.bf16 %v8824, %v8824
  %v9091 = vpack.c.bf16 %v8837, %v8837
  %v9092 = vpack.c.bf16 %v8850, %v8850
  %v9093 = vpack.c.bf16 %v8863, %v8863
  %v9094 = vpack.c.bf16 %v8876, %v8876
  %v9095 = vpack.c.bf16 %v8889, %v8889
  %v9096 = vpack.c.bf16 %v8902, %v8902
  %v9097 = vpack.c.bf16 %v8915, %v8915
  %v9098 = vpack.c.bf16 %v8928, %v8928
  %v9099 = vpack.c.bf16 %v8941, %v8941
  %v9100 = vpack.c.bf16 %v8954, %v8954
  %v9101 = vpack.c.bf16 %v8967, %v8967
  %v9102 = vpack.c.bf16 %v8980, %v8980
  %v9104 = vsel %vm1450, %v9087, 0
  %v9107 = vsel %vm1450, %v9095, 0
  %9109 = vmatpush.bf16.xpose.msra.mxu0 0
  %9110 = vmatpush.bf16.xpose.msra.mxu0 0
  %9111 = vmatpush.bf16.xpose.msra.mxu0 0
  %9112 = vmatpush.bf16.xpose.msra.mxu0 0
  %9113 = vmatpush.bf16.xpose.msra.mxu0 0
  %9114 = vmatpush.bf16.xpose.msra.mxu0 0
  %9115 = vmatpush.bf16.xpose.msra.mxu0 0
  %9116 = vmatpush.bf16.xpose.msra.mxu0 %v9107
  %9117 = vmatmul.bf16.gmra.mxu0 %v9104
  %v9118 = vpop.f32.mrf.mxu0
  %v9119 = vadd.f32 0.0, %v9118
  %v9120 = vpop.f32.mrf.mxu0
  %9121 = vdwg.mxu0
  %v9123 = vsel %vm1450, %v9088, 0
  %v9126 = vsel %vm1450, %v9096, 0
  %9128 = vmatpush.bf16.xpose.msra.mxu0 0
  %9129 = vmatpush.bf16.xpose.msra.mxu0 0
  %9130 = vmatpush.bf16.xpose.msra.mxu0 0
  %9131 = vmatpush.bf16.xpose.msra.mxu0 0
  %9132 = vmatpush.bf16.xpose.msra.mxu0 0
  %9133 = vmatpush.bf16.xpose.msra.mxu0 0
  %9134 = vmatpush.bf16.xpose.msra.mxu0 0
  %9135 = vmatpush.bf16.xpose.msra.mxu0 %v9126
  %9136 = vmatmul.bf16.gmra.mxu0 %v9123
  %v9137 = vpop.f32.mrf.mxu0
  %v9138 = vadd.f32 0.0, %v9137
  %v9139 = vpop.f32.mrf.mxu0
  %9140 = vdwg.mxu0
  %v9142 = vsel %vm1450, %v9089, 0
  %v9145 = vsel %vm1450, %v9097, 0
  %9147 = vmatpush.bf16.xpose.msra.mxu0 0
  %9148 = vmatpush.bf16.xpose.msra.mxu0 0
  %9149 = vmatpush.bf16.xpose.msra.mxu0 0
  %9150 = vmatpush.bf16.xpose.msra.mxu0 0
  %9151 = vmatpush.bf16.xpose.msra.mxu0 0
  %9152 = vmatpush.bf16.xpose.msra.mxu0 0
  %9153 = vmatpush.bf16.xpose.msra.mxu0 0
  %9154 = vmatpush.bf16.xpose.msra.mxu0 %v9145
  %9155 = vmatmul.bf16.gmra.mxu0 %v9142
  %v9156 = vpop.f32.mrf.mxu0
  %v9157 = vadd.f32 0.0, %v9156
  %v9158 = vpop.f32.mrf.mxu0
  %9159 = vdwg.mxu0
  %v9161 = vsel %vm1450, %v9090, 0
  %v9164 = vsel %vm1450, %v9098, 0
  %9166 = vmatpush.bf16.xpose.msra.mxu0 0
  %9167 = vmatpush.bf16.xpose.msra.mxu0 0
  %9168 = vmatpush.bf16.xpose.msra.mxu0 0
  %9169 = vmatpush.bf16.xpose.msra.mxu0 0
  %9170 = vmatpush.bf16.xpose.msra.mxu0 0
  %9171 = vmatpush.bf16.xpose.msra.mxu0 0
  %9172 = vmatpush.bf16.xpose.msra.mxu0 0
  %9173 = vmatpush.bf16.xpose.msra.mxu0 %v9164
  %9174 = vmatmul.bf16.gmra.mxu0 %v9161
  %v9175 = vpop.f32.mrf.mxu0
  %v9176 = vadd.f32 0.0, %v9175
  %v9177 = vpop.f32.mrf.mxu0
  %9178 = vdwg.mxu0
  %v9180 = vsel %vm1450, %v9091, 0
  %v9183 = vsel %vm1450, %v9099, 0
  %9185 = vmatpush.bf16.xpose.msra.mxu0 0
  %9186 = vmatpush.bf16.xpose.msra.mxu0 0
  %9187 = vmatpush.bf16.xpose.msra.mxu0 0
  %9188 = vmatpush.bf16.xpose.msra.mxu0 0
  %9189 = vmatpush.bf16.xpose.msra.mxu0 0
  %9190 = vmatpush.bf16.xpose.msra.mxu0 0
  %9191 = vmatpush.bf16.xpose.msra.mxu0 0
  %9192 = vmatpush.bf16.xpose.msra.mxu0 %v9183
  %9193 = vmatmul.bf16.gmra.mxu0 %v9180
  %v9194 = vpop.f32.mrf.mxu0
  %v9195 = vadd.f32 0.0, %v9194
  %v9196 = vpop.f32.mrf.mxu0
  %9197 = vdwg.mxu0
  %v9199 = vsel %vm1450, %v9092, 0
  %v9202 = vsel %vm1450, %v9100, 0
  %9204 = vmatpush.bf16.xpose.msra.mxu0 0
  %9205 = vmatpush.bf16.xpose.msra.mxu0 0
  %9206 = vmatpush.bf16.xpose.msra.mxu0 0
  %9207 = vmatpush.bf16.xpose.msra.mxu0 0
  %9208 = vmatpush.bf16.xpose.msra.mxu0 0
  %9209 = vmatpush.bf16.xpose.msra.mxu0 0
  %9210 = vmatpush.bf16.xpose.msra.mxu0 0
  %9211 = vmatpush.bf16.xpose.msra.mxu0 %v9202
  %9212 = vmatmul.bf16.gmra.mxu0 %v9199
  %v9213 = vpop.f32.mrf.mxu0
  %v9214 = vadd.f32 0.0, %v9213
  %v9215 = vpop.f32.mrf.mxu0
  %9216 = vdwg.mxu0
  %v9218 = vsel %vm1450, %v9093, 0
  %v9221 = vsel %vm1450, %v9101, 0
  %9223 = vmatpush.bf16.xpose.msra.mxu0 0
  %9224 = vmatpush.bf16.xpose.msra.mxu0 0
  %9225 = vmatpush.bf16.xpose.msra.mxu0 0
  %9226 = vmatpush.bf16.xpose.msra.mxu0 0
  %9227 = vmatpush.bf16.xpose.msra.mxu0 0
  %9228 = vmatpush.bf16.xpose.msra.mxu0 0
  %9229 = vmatpush.bf16.xpose.msra.mxu0 0
  %9230 = vmatpush.bf16.xpose.msra.mxu0 %v9221
  %9231 = vmatmul.bf16.gmra.mxu0 %v9218
  %v9232 = vpop.f32.mrf.mxu0
  %v9233 = vadd.f32 0.0, %v9232
  %v9234 = vpop.f32.mrf.mxu0
  %9235 = vdwg.mxu0
  %v9237 = vsel %vm1450, %v9094, 0
  %v9240 = vsel %vm1450, %v9102, 0
  %9242 = vmatpush.bf16.xpose.msra.mxu0 0
  %9243 = vmatpush.bf16.xpose.msra.mxu0 0
  %9244 = vmatpush.bf16.xpose.msra.mxu0 0
  %9245 = vmatpush.bf16.xpose.msra.mxu0 0
  %9246 = vmatpush.bf16.xpose.msra.mxu0 0
  %9247 = vmatpush.bf16.xpose.msra.mxu0 0
  %9248 = vmatpush.bf16.xpose.msra.mxu0 0
  %9249 = vmatpush.bf16.xpose.msra.mxu0 %v9240
  %9250 = vmatmul.bf16.gmra.mxu0 %v9237
  %v9251 = vpop.f32.mrf.mxu0
  %v9252 = vadd.f32 0.0, %v9251
  %v9253 = vpop.f32.mrf.mxu0
  %9254 = vdwg.mxu0
  %v9255 = vmul.f32 %v9119, 0.35355338
  %v9256 = vmul.f32 %v9138, 0.35355338
  %v9257 = vmul.f32 %v9157, 0.35355338
  %v9258 = vmul.f32 %v9176, 0.35355338
  %v9259 = vmul.f32 %v9195, 0.35355338
  %v9260 = vmul.f32 %v9214, 0.35355338
  %v9261 = vmul.f32 %v9233, 0.35355338
  %v9262 = vmul.f32 %v9252, 0.35355338
  %v9263 = vsel %vm1611, %v9255, -inf
  %9264 = vmax.xlane.f32.xlu0 %v9263
  %v9265 = vpop.xlane.xlu0 %9264
  %v9266 = vsel %vm1611, %v9256, -inf
  %9267 = vmax.xlane.f32.xlu0 %v9266
  %v9268 = vpop.xlane.xlu0 %9267
  %v9269 = vsel %vm1611, %v9257, -inf
  %9270 = vmax.xlane.f32.xlu0 %v9269
  %v9271 = vpop.xlane.xlu0 %9270
  %v9272 = vsel %vm1611, %v9258, -inf
  %9273 = vmax.xlane.f32.xlu0 %v9272
  %v9274 = vpop.xlane.xlu0 %9273
  %v9275 = vsel %vm1611, %v9259, -inf
  %9276 = vmax.xlane.f32.xlu0 %v9275
  %v9277 = vpop.xlane.xlu0 %9276
  %v9278 = vsel %vm1611, %v9260, -inf
  %9279 = vmax.xlane.f32.xlu0 %v9278
  %v9280 = vpop.xlane.xlu0 %9279
  %v9281 = vsel %vm1611, %v9261, -inf
  %9282 = vmax.xlane.f32.xlu0 %v9281
  %v9283 = vpop.xlane.xlu0 %9282
  %v9284 = vsel %vm1611, %v9262, -inf
  %9285 = vmax.xlane.f32.xlu0 %v9284
  %v9286 = vpop.xlane.xlu0 %9285
  %v9287 = vsub.f32 %v9255, %v9265
  %v9288 = vsub.f32 %v9256, %v9268
  %v9289 = vsub.f32 %v9257, %v9271
  %v9290 = vsub.f32 %v9258, %v9274
  %v9291 = vsub.f32 %v9259, %v9277
  %v9292 = vsub.f32 %v9260, %v9280
  %v9293 = vsub.f32 %v9261, %v9283
  %v9294 = vsub.f32 %v9262, %v9286
  %v9295 = vmul.f32 %v9287, 1.442695
  %v9296 = vpow.pop %v9295
  %v9297 = vmul.f32 %v9288, 1.442695
  %v9298 = vpow.pop %v9297
  %v9299 = vmul.f32 %v9289, 1.442695
  %v9300 = vpow.pop %v9299
  %v9301 = vmul.f32 %v9290, 1.442695
  %v9302 = vpow.pop %v9301
  %v9303 = vmul.f32 %v9291, 1.442695
  %v9304 = vpow.pop %v9303
  %v9305 = vmul.f32 %v9292, 1.442695
  %v9306 = vpow.pop %v9305
  %v9307 = vmul.f32 %v9293, 1.442695
  %v9308 = vpow.pop %v9307
  %v9309 = vmul.f32 %v9294, 1.442695
  %v9310 = vpow.pop %v9309
  %v9311 = vsel %vm1611, %v9296, 0.0
  %9312 = vadd.xlane.f32.xlu0 %v9311
  %v9313 = vpop.xlane.xlu0 %9312
  %v9314 = vsel %vm1611, %v9298, 0.0
  %9315 = vadd.xlane.f32.xlu0 %v9314
  %v9316 = vpop.xlane.xlu0 %9315
  %v9317 = vsel %vm1611, %v9300, 0.0
  %9318 = vadd.xlane.f32.xlu0 %v9317
  %v9319 = vpop.xlane.xlu0 %9318
  %v9320 = vsel %vm1611, %v9302, 0.0
  %9321 = vadd.xlane.f32.xlu0 %v9320
  %v9322 = vpop.xlane.xlu0 %9321
  %v9323 = vsel %vm1611, %v9304, 0.0
  %9324 = vadd.xlane.f32.xlu0 %v9323
  %v9325 = vpop.xlane.xlu0 %9324
  %v9326 = vsel %vm1611, %v9306, 0.0
  %9327 = vadd.xlane.f32.xlu0 %v9326
  %v9328 = vpop.xlane.xlu0 %9327
  %v9329 = vsel %vm1611, %v9308, 0.0
  %9330 = vadd.xlane.f32.xlu0 %v9329
  %v9331 = vpop.xlane.xlu0 %9330
  %v9332 = vsel %vm1611, %v9310, 0.0
  %9333 = vadd.xlane.f32.xlu0 %v9332
  %v9334 = vpop.xlane.xlu0 %9333
  %v9335 = vrcp.pop %v9313
  %v9336 = vmul.f32 %v9313, %v9335
  %v9337 = vsub.f32 1.0, %v9336
  %v9338 = vmul.f32 %v9335, %v9337
  %v9339 = vadd.f32 %v9335, %v9338
  %vm9340 = vweird.f32 %v9313
  %vm9341 = vweird.f32 %v9335
  %vm9342 = vmor %vm9340, %vm9341
  %v9343 = vsel %vm9342, %v9335, %v9339
  %v9344 = vand.u32 2147483647, %v9313
  %vm9345 = vcmp.eq.f32.partialorder %v9344, 8.507059e+37
  %v9346 = vand.u32 %v9313, 2147483648
  %v9347 = vor.u32 1.1754944e-38, %v9346
  %v9348 = vsel %vm9345, %v9347, %v9343
  %v9349 = vmul.f32 %v9296, %v9348
  %v9350 = vrcp.pop %v9316
  %v9351 = vmul.f32 %v9316, %v9350
  %v9352 = vsub.f32 1.0, %v9351
  %v9353 = vmul.f32 %v9350, %v9352
  %v9354 = vadd.f32 %v9350, %v9353
  %vm9355 = vweird.f32 %v9316
  %vm9356 = vweird.f32 %v9350
  %vm9357 = vmor %vm9355, %vm9356
  %v9358 = vsel %vm9357, %v9350, %v9354
  %v9359 = vand.u32 2147483647, %v9316
  %vm9360 = vcmp.eq.f32.partialorder %v9359, 8.507059e+37
  %v9361 = vand.u32 %v9316, 2147483648
  %v9362 = vor.u32 1.1754944e-38, %v9361
  %v9363 = vsel %vm9360, %v9362, %v9358
  %v9364 = vmul.f32 %v9298, %v9363
  %v9365 = vrcp.pop %v9319
  %v9366 = vmul.f32 %v9319, %v9365
  %v9367 = vsub.f32 1.0, %v9366
  %v9368 = vmul.f32 %v9365, %v9367
  %v9369 = vadd.f32 %v9365, %v9368
  %vm9370 = vweird.f32 %v9319
  %vm9371 = vweird.f32 %v9365
  %vm9372 = vmor %vm9370, %vm9371
  %v9373 = vsel %vm9372, %v9365, %v9369
  %v9374 = vand.u32 2147483647, %v9319
  %vm9375 = vcmp.eq.f32.partialorder %v9374, 8.507059e+37
  %v9376 = vand.u32 %v9319, 2147483648
  %v9377 = vor.u32 1.1754944e-38, %v9376
  %v9378 = vsel %vm9375, %v9377, %v9373
  %v9379 = vmul.f32 %v9300, %v9378
  %v9380 = vrcp.pop %v9322
  %v9381 = vmul.f32 %v9322, %v9380
  %v9382 = vsub.f32 1.0, %v9381
  %v9383 = vmul.f32 %v9380, %v9382
  %v9384 = vadd.f32 %v9380, %v9383
  %vm9385 = vweird.f32 %v9322
  %vm9386 = vweird.f32 %v9380
  %vm9387 = vmor %vm9385, %vm9386
  %v9388 = vsel %vm9387, %v9380, %v9384
  %v9389 = vand.u32 2147483647, %v9322
  %vm9390 = vcmp.eq.f32.partialorder %v9389, 8.507059e+37
  %v9391 = vand.u32 %v9322, 2147483648
  %v9392 = vor.u32 1.1754944e-38, %v9391
  %v9393 = vsel %vm9390, %v9392, %v9388
  %v9394 = vmul.f32 %v9302, %v9393
  %v9395 = vrcp.pop %v9325
  %v9396 = vmul.f32 %v9325, %v9395
  %v9397 = vsub.f32 1.0, %v9396
  %v9398 = vmul.f32 %v9395, %v9397
  %v9399 = vadd.f32 %v9395, %v9398
  %vm9400 = vweird.f32 %v9325
  %vm9401 = vweird.f32 %v9395
  %vm9402 = vmor %vm9400, %vm9401
  %v9403 = vsel %vm9402, %v9395, %v9399
  %v9404 = vand.u32 2147483647, %v9325
  %vm9405 = vcmp.eq.f32.partialorder %v9404, 8.507059e+37
  %v9406 = vand.u32 %v9325, 2147483648
  %v9407 = vor.u32 1.1754944e-38, %v9406
  %v9408 = vsel %vm9405, %v9407, %v9403
  %v9409 = vmul.f32 %v9304, %v9408
  %v9410 = vrcp.pop %v9328
  %v9411 = vmul.f32 %v9328, %v9410
  %v9412 = vsub.f32 1.0, %v9411
  %v9413 = vmul.f32 %v9410, %v9412
  %v9414 = vadd.f32 %v9410, %v9413
  %vm9415 = vweird.f32 %v9328
  %vm9416 = vweird.f32 %v9410
  %vm9417 = vmor %vm9415, %vm9416
  %v9418 = vsel %vm9417, %v9410, %v9414
  %v9419 = vand.u32 2147483647, %v9328
  %vm9420 = vcmp.eq.f32.partialorder %v9419, 8.507059e+37
  %v9421 = vand.u32 %v9328, 2147483648
  %v9422 = vor.u32 1.1754944e-38, %v9421
  %v9423 = vsel %vm9420, %v9422, %v9418
  %v9424 = vmul.f32 %v9306, %v9423
  %v9425 = vrcp.pop %v9331
  %v9426 = vmul.f32 %v9331, %v9425
  %v9427 = vsub.f32 1.0, %v9426
  %v9428 = vmul.f32 %v9425, %v9427
  %v9429 = vadd.f32 %v9425, %v9428
  %vm9430 = vweird.f32 %v9331
  %vm9431 = vweird.f32 %v9425
  %vm9432 = vmor %vm9430, %vm9431
  %v9433 = vsel %vm9432, %v9425, %v9429
  %v9434 = vand.u32 2147483647, %v9331
  %vm9435 = vcmp.eq.f32.partialorder %v9434, 8.507059e+37
  %v9436 = vand.u32 %v9331, 2147483648
  %v9437 = vor.u32 1.1754944e-38, %v9436
  %v9438 = vsel %vm9435, %v9437, %v9433
  %v9439 = vmul.f32 %v9308, %v9438
  %v9440 = vrcp.pop %v9334
  %v9441 = vmul.f32 %v9334, %v9440
  %v9442 = vsub.f32 1.0, %v9441
  %v9443 = vmul.f32 %v9440, %v9442
  %v9444 = vadd.f32 %v9440, %v9443
  %vm9445 = vweird.f32 %v9334
  %vm9446 = vweird.f32 %v9440
  %vm9447 = vmor %vm9445, %vm9446
  %v9448 = vsel %vm9447, %v9440, %v9444
  %v9449 = vand.u32 2147483647, %v9334
  %vm9450 = vcmp.eq.f32.partialorder %v9449, 8.507059e+37
  %v9451 = vand.u32 %v9334, 2147483648
  %v9452 = vor.u32 1.1754944e-38, %v9451
  %v9453 = vsel %vm9450, %v9452, %v9448
  %v9454 = vmul.f32 %v9310, %v9453
  %v9455 = vpack.c.bf16 %v9349, %v9349
  %v9456 = vpack.c.bf16 %v9364, %v9364
  %v9457 = vpack.c.bf16 %v9379, %v9379
  %v9458 = vpack.c.bf16 %v9394, %v9394
  %v9459 = vpack.c.bf16 %v9409, %v9409
  %v9460 = vpack.c.bf16 %v9424, %v9424
  %v9461 = vpack.c.bf16 %v9439, %v9439
  %v9462 = vpack.c.bf16 %v9454, %v9454
  %v9463 = vpack.c.bf16 %v8993, %v8993
  %v9464 = vpack.c.bf16 %v9006, %v9006
  %v9465 = vpack.c.bf16 %v9019, %v9019
  %v9466 = vpack.c.bf16 %v9032, %v9032
  %v9467 = vpack.c.bf16 %v9045, %v9045
  %v9468 = vpack.c.bf16 %v9058, %v9058
  %v9469 = vpack.c.bf16 %v9071, %v9071
  %v9470 = vpack.c.bf16 %v9084, %v9084
  %v9472 = vsel %vm1820, %v9455, 0
  %v9475 = vsel %vm141, %v9463, 0
  %9477 = vmatpush.bf16.msra.mxu0 0
  %9478 = vmatpush.bf16.msra.mxu0 0
  %9479 = vmatpush.bf16.msra.mxu0 0
  %9480 = vmatpush.bf16.msra.mxu0 0
  %9481 = vmatpush.bf16.msra.mxu0 0
  %9482 = vmatpush.bf16.msra.mxu0 0
  %9483 = vmatpush.bf16.msra.mxu0 0
  %9484 = vmatpush.bf16.msra.mxu0 %v9475
  %9485 = vmatmul.bf16.gmra.mxu0 %v9472
  %v9486 = vpop.f32.mrf.mxu0
  %v9487 = vadd.f32 0.0, %v9486
  %v9488 = vpop.f32.mrf.mxu0
  %9489 = vdwg.mxu0
  %v9491 = vsel %vm1820, %v9456, 0
  %v9494 = vsel %vm141, %v9464, 0
  %9496 = vmatpush.bf16.msra.mxu0 0
  %9497 = vmatpush.bf16.msra.mxu0 0
  %9498 = vmatpush.bf16.msra.mxu0 0
  %9499 = vmatpush.bf16.msra.mxu0 0
  %9500 = vmatpush.bf16.msra.mxu0 0
  %9501 = vmatpush.bf16.msra.mxu0 0
  %9502 = vmatpush.bf16.msra.mxu0 0
  %9503 = vmatpush.bf16.msra.mxu0 %v9494
  %9504 = vmatmul.bf16.gmra.mxu0 %v9491
  %v9505 = vpop.f32.mrf.mxu0
  %v9506 = vadd.f32 0.0, %v9505
  %v9507 = vpop.f32.mrf.mxu0
  %9508 = vdwg.mxu0
  %v9510 = vsel %vm1820, %v9457, 0
  %v9513 = vsel %vm141, %v9465, 0
  %9515 = vmatpush.bf16.msra.mxu0 0
  %9516 = vmatpush.bf16.msra.mxu0 0
  %9517 = vmatpush.bf16.msra.mxu0 0
  %9518 = vmatpush.bf16.msra.mxu0 0
  %9519 = vmatpush.bf16.msra.mxu0 0
  %9520 = vmatpush.bf16.msra.mxu0 0
  %9521 = vmatpush.bf16.msra.mxu0 0
  %9522 = vmatpush.bf16.msra.mxu0 %v9513
  %9523 = vmatmul.bf16.gmra.mxu0 %v9510
  %v9524 = vpop.f32.mrf.mxu0
  %v9525 = vadd.f32 0.0, %v9524
  %v9526 = vpop.f32.mrf.mxu0
  %9527 = vdwg.mxu0
  %v9529 = vsel %vm1820, %v9458, 0
  %v9532 = vsel %vm141, %v9466, 0
  %9534 = vmatpush.bf16.msra.mxu0 0
  %9535 = vmatpush.bf16.msra.mxu0 0
  %9536 = vmatpush.bf16.msra.mxu0 0
  %9537 = vmatpush.bf16.msra.mxu0 0
  %9538 = vmatpush.bf16.msra.mxu0 0
  %9539 = vmatpush.bf16.msra.mxu0 0
  %9540 = vmatpush.bf16.msra.mxu0 0
  %9541 = vmatpush.bf16.msra.mxu0 %v9532
  %9542 = vmatmul.bf16.gmra.mxu0 %v9529
  %v9543 = vpop.f32.mrf.mxu0
  %v9544 = vadd.f32 0.0, %v9543
  %v9545 = vpop.f32.mrf.mxu0
  %9546 = vdwg.mxu0
  %v9548 = vsel %vm1820, %v9459, 0
  %v9551 = vsel %vm141, %v9467, 0
  %9553 = vmatpush.bf16.msra.mxu0 0
  %9554 = vmatpush.bf16.msra.mxu0 0
  %9555 = vmatpush.bf16.msra.mxu0 0
  %9556 = vmatpush.bf16.msra.mxu0 0
  %9557 = vmatpush.bf16.msra.mxu0 0
  %9558 = vmatpush.bf16.msra.mxu0 0
  %9559 = vmatpush.bf16.msra.mxu0 0
  %9560 = vmatpush.bf16.msra.mxu0 %v9551
  %9561 = vmatmul.bf16.gmra.mxu0 %v9548
  %v9562 = vpop.f32.mrf.mxu0
  %v9563 = vadd.f32 0.0, %v9562
  %v9564 = vpop.f32.mrf.mxu0
  %9565 = vdwg.mxu0
  %v9567 = vsel %vm1820, %v9460, 0
  %v9570 = vsel %vm141, %v9468, 0
  %9572 = vmatpush.bf16.msra.mxu0 0
  %9573 = vmatpush.bf16.msra.mxu0 0
  %9574 = vmatpush.bf16.msra.mxu0 0
  %9575 = vmatpush.bf16.msra.mxu0 0
  %9576 = vmatpush.bf16.msra.mxu0 0
  %9577 = vmatpush.bf16.msra.mxu0 0
  %9578 = vmatpush.bf16.msra.mxu0 0
  %9579 = vmatpush.bf16.msra.mxu0 %v9570
  %9580 = vmatmul.bf16.gmra.mxu0 %v9567
  %v9581 = vpop.f32.mrf.mxu0
  %v9582 = vadd.f32 0.0, %v9581
  %v9583 = vpop.f32.mrf.mxu0
  %9584 = vdwg.mxu0
  %v9586 = vsel %vm1820, %v9461, 0
  %v9589 = vsel %vm141, %v9469, 0
  %9591 = vmatpush.bf16.msra.mxu0 0
  %9592 = vmatpush.bf16.msra.mxu0 0
  %9593 = vmatpush.bf16.msra.mxu0 0
  %9594 = vmatpush.bf16.msra.mxu0 0
  %9595 = vmatpush.bf16.msra.mxu0 0
  %9596 = vmatpush.bf16.msra.mxu0 0
  %9597 = vmatpush.bf16.msra.mxu0 0
  %9598 = vmatpush.bf16.msra.mxu0 %v9589
  %9599 = vmatmul.bf16.gmra.mxu0 %v9586
  %v9600 = vpop.f32.mrf.mxu0
  %v9601 = vadd.f32 0.0, %v9600
  %v9602 = vpop.f32.mrf.mxu0
  %9603 = vdwg.mxu0
  %v9605 = vsel %vm1820, %v9462, 0
  %v9608 = vsel %vm141, %v9470, 0
  %9610 = vmatpush.bf16.msra.mxu0 0
  %9611 = vmatpush.bf16.msra.mxu0 0
  %9612 = vmatpush.bf16.msra.mxu0 0
  %9613 = vmatpush.bf16.msra.mxu0 0
  %9614 = vmatpush.bf16.msra.mxu0 0
  %9615 = vmatpush.bf16.msra.mxu0 0
  %9616 = vmatpush.bf16.msra.mxu0 0
  %9617 = vmatpush.bf16.msra.mxu0 %v9608
  %9618 = vmatmul.bf16.gmra.mxu0 %v9605
  %v9619 = vpop.f32.mrf.mxu0
  %v9620 = vadd.f32 0.0, %v9619
  %v9621 = vpop.f32.mrf.mxu0
  %9622 = vdwg.mxu0
  %v9623 = vpack.c.bf16 %v9487, %v9487
  %v9624 = vpack.c.bf16 %v9506, %v9506
  %v9625 = vpack.c.bf16 %v9525, %v9525
  %v9626 = vpack.c.bf16 %v9544, %v9544
  %v9627 = vpack.c.bf16 %v9563, %v9563
  %v9628 = vpack.c.bf16 %v9582, %v9582
  %v9629 = vpack.c.bf16 %v9601, %v9601
  %v9630 = vpack.c.bf16 %v9620, %v9620
  %v9632 = vsel %vm1450, %v9623, 0
  %9634 = vmatpush.bf16.msra.mxu0 0
  %9635 = vmatpush.bf16.msra.mxu0 0
  %9636 = vmatpush.bf16.msra.mxu0 0
  %9637 = vmatpush.bf16.msra.mxu0 0
  %9638 = vmatpush.bf16.msra.mxu0 0
  %9639 = vmatpush.bf16.msra.mxu0 0
  %9640 = vmatpush.bf16.msra.mxu0 0
  %9641 = vmatpush.bf16.msra.mxu0 %v8598
  %9642 = vmatmul.bf16.gmra.mxu0 %v9632
  %v9643 = vpop.f32.mrf.mxu0
  %v9644 = vadd.f32 0.0, %v9643
  %v9645 = vpop.f32.mrf.mxu0
  %9646 = vdwg.mxu0
  %v9648 = vsel %vm1450, %v9624, 0
  %9650 = vmatpush.bf16.msra.mxu0 0
  %9651 = vmatpush.bf16.msra.mxu0 0
  %9652 = vmatpush.bf16.msra.mxu0 0
  %9653 = vmatpush.bf16.msra.mxu0 0
  %9654 = vmatpush.bf16.msra.mxu0 0
  %9655 = vmatpush.bf16.msra.mxu0 0
  %9656 = vmatpush.bf16.msra.mxu0 0
  %9657 = vmatpush.bf16.msra.mxu0 %v8617
  %9658 = vmatmul.bf16.gmra.mxu0 %v9648
  %v9659 = vpop.f32.mrf.mxu0
  %v9660 = vadd.f32 0.0, %v9659
  %v9661 = vpop.f32.mrf.mxu0
  %9662 = vdwg.mxu0
  %v9664 = vsel %vm1450, %v9625, 0
  %9666 = vmatpush.bf16.msra.mxu0 0
  %9667 = vmatpush.bf16.msra.mxu0 0
  %9668 = vmatpush.bf16.msra.mxu0 0
  %9669 = vmatpush.bf16.msra.mxu0 0
  %9670 = vmatpush.bf16.msra.mxu0 0
  %9671 = vmatpush.bf16.msra.mxu0 0
  %9672 = vmatpush.bf16.msra.mxu0 0
  %9673 = vmatpush.bf16.msra.mxu0 %v8636
  %9674 = vmatmul.bf16.gmra.mxu0 %v9664
  %v9675 = vpop.f32.mrf.mxu0
  %v9676 = vadd.f32 0.0, %v9675
  %v9677 = vpop.f32.mrf.mxu0
  %9678 = vdwg.mxu0
  %v9680 = vsel %vm1450, %v9626, 0
  %9682 = vmatpush.bf16.msra.mxu0 0
  %9683 = vmatpush.bf16.msra.mxu0 0
  %9684 = vmatpush.bf16.msra.mxu0 0
  %9685 = vmatpush.bf16.msra.mxu0 0
  %9686 = vmatpush.bf16.msra.mxu0 0
  %9687 = vmatpush.bf16.msra.mxu0 0
  %9688 = vmatpush.bf16.msra.mxu0 0
  %9689 = vmatpush.bf16.msra.mxu0 %v8655
  %9690 = vmatmul.bf16.gmra.mxu0 %v9680
  %v9691 = vpop.f32.mrf.mxu0
  %v9692 = vadd.f32 0.0, %v9691
  %v9693 = vpop.f32.mrf.mxu0
  %9694 = vdwg.mxu0
  %v9696 = vsel %vm1450, %v9627, 0
  %9698 = vmatpush.bf16.msra.mxu0 0
  %9699 = vmatpush.bf16.msra.mxu0 0
  %9700 = vmatpush.bf16.msra.mxu0 0
  %9701 = vmatpush.bf16.msra.mxu0 0
  %9702 = vmatpush.bf16.msra.mxu0 0
  %9703 = vmatpush.bf16.msra.mxu0 0
  %9704 = vmatpush.bf16.msra.mxu0 0
  %9705 = vmatpush.bf16.msra.mxu0 %v8674
  %9706 = vmatmul.bf16.gmra.mxu0 %v9696
  %v9707 = vpop.f32.mrf.mxu0
  %v9708 = vadd.f32 0.0, %v9707
  %v9709 = vpop.f32.mrf.mxu0
  %9710 = vdwg.mxu0
  %v9712 = vsel %vm1450, %v9628, 0
  %9714 = vmatpush.bf16.msra.mxu0 0
  %9715 = vmatpush.bf16.msra.mxu0 0
  %9716 = vmatpush.bf16.msra.mxu0 0
  %9717 = vmatpush.bf16.msra.mxu0 0
  %9718 = vmatpush.bf16.msra.mxu0 0
  %9719 = vmatpush.bf16.msra.mxu0 0
  %9720 = vmatpush.bf16.msra.mxu0 0
  %9721 = vmatpush.bf16.msra.mxu0 %v8693
  %9722 = vmatmul.bf16.gmra.mxu0 %v9712
  %v9723 = vpop.f32.mrf.mxu0
  %v9724 = vadd.f32 0.0, %v9723
  %v9725 = vpop.f32.mrf.mxu0
  %9726 = vdwg.mxu0
  %v9728 = vsel %vm1450, %v9629, 0
  %9730 = vmatpush.bf16.msra.mxu0 0
  %9731 = vmatpush.bf16.msra.mxu0 0
  %9732 = vmatpush.bf16.msra.mxu0 0
  %9733 = vmatpush.bf16.msra.mxu0 0
  %9734 = vmatpush.bf16.msra.mxu0 0
  %9735 = vmatpush.bf16.msra.mxu0 0
  %9736 = vmatpush.bf16.msra.mxu0 0
  %9737 = vmatpush.bf16.msra.mxu0 %v8712
  %9738 = vmatmul.bf16.gmra.mxu0 %v9728
  %v9739 = vpop.f32.mrf.mxu0
  %v9740 = vadd.f32 0.0, %v9739
  %v9741 = vpop.f32.mrf.mxu0
  %9742 = vdwg.mxu0
  %v9744 = vsel %vm1450, %v9630, 0
  %9746 = vmatpush.bf16.msra.mxu0 0
  %9747 = vmatpush.bf16.msra.mxu0 0
  %9748 = vmatpush.bf16.msra.mxu0 0
  %9749 = vmatpush.bf16.msra.mxu0 0
  %9750 = vmatpush.bf16.msra.mxu0 0
  %9751 = vmatpush.bf16.msra.mxu0 0
  %9752 = vmatpush.bf16.msra.mxu0 0
  %9753 = vmatpush.bf16.msra.mxu0 %v8731
  %9754 = vmatmul.bf16.gmra.mxu0 %v9744
  %v9755 = vpop.f32.mrf.mxu0
  %v9756 = vadd.f32 0.0, %v9755
  %v9757 = vpop.f32.mrf.mxu0
  %9758 = vdwg.mxu0
  %v9759 = vsel %vm2133, %v9644, 0.0
  %v9760 = vsel %vm2133, %v9660, 0.0
  %v9761 = vadd.f32 %v9759, %v9760
  %v9762 = vsel %vm2133, %v9676, 0.0
  %v9763 = vadd.f32 %v9761, %v9762
  %v9764 = vsel %vm2133, %v9692, 0.0
  %v9765 = vadd.f32 %v9763, %v9764
  %v9766 = vsel %vm2133, %v9708, 0.0
  %v9767 = vadd.f32 %v9765, %v9766
  %v9768 = vsel %vm2133, %v9724, 0.0
  %v9769 = vadd.f32 %v9767, %v9768
  %v9770 = vsel %vm2133, %v9740, 0.0
  %v9771 = vadd.f32 %v9769, %v9770
  %v9772 = vsel %vm2133, %v9756, 0.0
  %v9773 = vadd.f32 %v9771, %v9772
  %v9774 = vadd.f32 %v9773, %v8762
  %v9776 = vrot.slane %v9774, 2
  %v9778 = vsel %vm196, %v8764, %v9776
  %v9779 = vadd.f32 %v6797, %v9778
  %v9780 = vadd.f32 %v6798, %v9776
  %v9781 = vsel %vm518, %v9779, 0.0
  %9782 = vadd.xlane.f32.xlu0 %v9781
  %v9783 = vpop.xlane.xlu0 %9782
  %v9784 = vsel %vm3172, %v9780, 0.0
  %9785 = vadd.xlane.f32.xlu0 %v9784
  %v9786 = vpop.xlane.xlu0 %9785
  %v9787 = vmul.f32 %v9783, %v3182
  %v9788 = vmul.f32 %v9786, %v3182
  %v9789 = vsub.f32 %v9779, %v9787
  %v9790 = vsub.f32 %v9780, %v9788
  %v9791 = vmul.f32 %v9789, %v9789
  %v9792 = vmul.f32 %v9790, %v9790
  %v9793 = vsel %vm518, %v9791, 0.0
  %9794 = vadd.xlane.f32.xlu0 %v9793
  %v9795 = vpop.xlane.xlu0 %9794
  %v9796 = vsel %vm3172, %v9792, 0.0
  %9797 = vadd.xlane.f32.xlu0 %v9796
  %v9798 = vpop.xlane.xlu0 %9797
  %v9799 = vmul.f32 %v9795, %v3182
  %v9800 = vmul.f32 %v9798, %v3182
  %v9801 = vadd.f32 %v9799, 1e-05
  %v9802 = vadd.f32 %v9800, 1e-05
  %v9803 = vrsqrt.pop %v9801
  %v9804 = vmul.f32 %v9803, %v9801
  %v9805 = vmul.f32 %v9804, %v9803
  %v9806 = vmul.f32 0.5, %v9805
  %v9807 = vsub.f32 1.5, %v9806
  %v9808 = vmul.f32 %v9803, %v9807
  %vm9809 = vweird.f32 %v9801
  %vm9810 = vweird.f32 %v9803
  %vm9811 = vmor %vm9809, %vm9810
  %v9812 = vsel %vm9811, %v9803, %v9808
  %v9813 = vrsqrt.pop %v9802
  %v9814 = vmul.f32 %v9813, %v9802
  %v9815 = vmul.f32 %v9814, %v9813
  %v9816 = vmul.f32 0.5, %v9815
  %v9817 = vsub.f32 1.5, %v9816
  %v9818 = vmul.f32 %v9813, %v9817
  %vm9819 = vweird.f32 %v9802
  %vm9820 = vweird.f32 %v9813
  %vm9821 = vmor %vm9819, %vm9820
  %v9822 = vsel %vm9821, %v9813, %v9818
  %v9823 = vmul.f32 %v9789, %v9812
  %v9824 = vmul.f32 %v9790, %v9822
  %v9826 = vperm.slane %v7033, 0
  %v9828 = vmul.f32 %v9823, %v9826
  %v9829 = vmul.f32 %v9824, %v9826
  %v9831 = vperm.slane %v7035, 0
  %v9833 = vadd.f32 %v9828, %v9831
  %v9834 = vadd.f32 %v9829, %v9831
  %v9835 = vpack.c.bf16 %v9834, %v9833
  %v9837 = vperm.slane %v7046, 0
  %v9838 = vperm.slane %v7046, 1
  %v9849 = vunpack.c.l.b16 %v7037
  %v9850 = vunpack.c.h.b16 %v7037
  %v9851 = vunpack.c.l.b16 %v7038
  %v9852 = vunpack.c.h.b16 %v7038
  %v9853 = vunpack.c.l.b16 %v7039
  %v9854 = vunpack.c.h.b16 %v7039
  %v9855 = vunpack.c.l.b16 %v7040
  %v9856 = vunpack.c.h.b16 %v7040
  %v9857 = vunpack.c.l.b16 %v7041
  %v9858 = vunpack.c.h.b16 %v7041
  %v9859 = vunpack.c.l.b16 %v7042
  %v9860 = vunpack.c.h.b16 %v7042
  %v9861 = vunpack.c.l.b16 %v7043
  %v9862 = vunpack.c.h.b16 %v7043
  %v9863 = vunpack.c.l.b16 %v7044
  %v9864 = vunpack.c.h.b16 %v7044
  %v9865 = vpack.c.b16 %v9851, %v9849
  %v9866 = vpack.c.b16 %v9852, %v9850
  %v9867 = vpack.c.b16 %v9855, %v9853
  %v9868 = vpack.c.b16 %v9856, %v9854
  %v9869 = vpack.c.b16 %v9859, %v9857
  %v9870 = vpack.c.b16 %v9860, %v9858
  %v9871 = vpack.c.b16 %v9863, %v9861
  %v9872 = vpack.c.b16 %v9864, %v9862
  %v9882 = vsel %vm518, %v9835, 0
  %9884 = vmatpush.bf16.msra.mxu0 0
  %9885 = vmatpush.bf16.msra.mxu0 0
  %9886 = vmatpush.bf16.msra.mxu0 0
  %9887 = vmatpush.bf16.msra.mxu0 0
  %9888 = vmatpush.bf16.msra.mxu0 %v9871
  %9889 = vmatpush.bf16.msra.mxu0 %v9869
  %9890 = vmatpush.bf16.msra.mxu0 %v9867
  %9891 = vmatpush.bf16.msra.mxu0 %v9865
  %9892 = vmatmul.bf16.gmra.mxu0 %v9882
  %v9893 = vpop.f32.mrf.mxu0
  %v9894 = vadd.f32 %v9837, %v9893
  %v9895 = vpop.f32.mrf.mxu0
  %v9896 = vadd.f32 %v9837, %v9895
  %9897 = vdwg.mxu0
  %9898 = vmatpush.bf16.msra.mxu0 0
  %9899 = vmatpush.bf16.msra.mxu0 0
  %9900 = vmatpush.bf16.msra.mxu0 0
  %9901 = vmatpush.bf16.msra.mxu0 0
  %9902 = vmatpush.bf16.msra.mxu0 %v9872
  %9903 = vmatpush.bf16.msra.mxu0 %v9870
  %9904 = vmatpush.bf16.msra.mxu0 %v9868
  %9905 = vmatpush.bf16.msra.mxu0 %v9866
  %9906 = vmatmul.bf16.gmra.mxu0 %v9882
  %v9907 = vpop.f32.mrf.mxu0
  %v9908 = vadd.f32 %v9838, %v9907
  %v9909 = vpop.f32.mrf.mxu0
  %v9910 = vadd.f32 %v9838, %v9909
  %9911 = vdwg.mxu0
  %v9912 = vmax.f32 %v9894, 0.0
  %v9913 = vmax.f32 %v9908, 0.0
  %v9914 = vmax.f32 %v9896, 0.0
  %v9915 = vmax.f32 %v9910, 0.0
  %v9916 = vpack.c.bf16 %v9914, %v9912
  %v9917 = vpack.c.bf16 %v9915, %v9913
  %v9919 = vperm.slane %v7081, 0
  %v9953 = vunpack.c.l.b16 %v7048
  %v9954 = vunpack.c.l.b16 %v7049
  %v9955 = vunpack.c.l.b16 %v7050
  %v9956 = vunpack.c.l.b16 %v7051
  %v9957 = vunpack.c.l.b16 %v7052
  %v9958 = vunpack.c.l.b16 %v7053
  %v9959 = vunpack.c.l.b16 %v7054
  %v9960 = vunpack.c.l.b16 %v7055
  %v9961 = vunpack.c.l.b16 %v7056
  %v9962 = vunpack.c.l.b16 %v7057
  %v9963 = vunpack.c.l.b16 %v7058
  %v9964 = vunpack.c.l.b16 %v7059
  %v9965 = vunpack.c.l.b16 %v7060
  %v9966 = vunpack.c.l.b16 %v7061
  %v9967 = vunpack.c.l.b16 %v7062
  %v9968 = vunpack.c.l.b16 %v7063
  %v9969 = vunpack.c.l.b16 %v7064
  %v9970 = vunpack.c.l.b16 %v7065
  %v9971 = vunpack.c.l.b16 %v7066
  %v9972 = vunpack.c.l.b16 %v7067
  %v9973 = vunpack.c.l.b16 %v7068
  %v9974 = vunpack.c.l.b16 %v7069
  %v9975 = vunpack.c.l.b16 %v7070
  %v9976 = vunpack.c.l.b16 %v7071
  %v9977 = vunpack.c.l.b16 %v7072
  %v9978 = vunpack.c.l.b16 %v7073
  %v9979 = vunpack.c.l.b16 %v7074
  %v9980 = vunpack.c.l.b16 %v7075
  %v9981 = vunpack.c.l.b16 %v7076
  %v9982 = vunpack.c.l.b16 %v7077
  %v9983 = vunpack.c.l.b16 %v7078
  %v9984 = vunpack.c.l.b16 %v7079
  %v9985 = vpack.c.b16 %v9954, %v9953
  %v9986 = vpack.c.b16 %v9956, %v9955
  %v9987 = vpack.c.b16 %v9958, %v9957
  %v9988 = vpack.c.b16 %v9960, %v9959
  %v9989 = vpack.c.b16 %v9962, %v9961
  %v9990 = vpack.c.b16 %v9964, %v9963
  %v9991 = vpack.c.b16 %v9966, %v9965
  %v9992 = vpack.c.b16 %v9968, %v9967
  %v9993 = vpack.c.b16 %v9970, %v9969
  %v9994 = vpack.c.b16 %v9972, %v9971
  %v9995 = vpack.c.b16 %v9974, %v9973
  %v9996 = vpack.c.b16 %v9976, %v9975
  %v9997 = vpack.c.b16 %v9978, %v9977
  %v9998 = vpack.c.b16 %v9980, %v9979
  %v9999 = vpack.c.b16 %v9982, %v9981
  %v10000 = vpack.c.b16 %v9984, %v9983
  %10017 = vmatpush.bf16.msra.mxu0 %v9992
  %10018 = vmatpush.bf16.msra.mxu0 %v9991
  %10019 = vmatpush.bf16.msra.mxu0 %v9990
  %10020 = vmatpush.bf16.msra.mxu0 %v9989
  %10021 = vmatpush.bf16.msra.mxu0 %v9988
  %10022 = vmatpush.bf16.msra.mxu0 %v9987
  %10023 = vmatpush.bf16.msra.mxu0 %v9986
  %10024 = vmatpush.bf16.msra.mxu0 %v9985
  %10025 = vmatmul.bf16.gmra.mxu0 %v9916
  %v10026 = vpop.f32.mrf.mxu0
  %v10027 = vadd.f32 %v9919, %v10026
  %v10028 = vpop.f32.mrf.mxu0
  %v10029 = vadd.f32 %v9919, %v10028
  %10030 = vdwg.mxu0
  %10031 = vmatpush.bf16.msra.mxu0 %v10000
  %10032 = vmatpush.bf16.msra.mxu0 %v9999
  %10033 = vmatpush.bf16.msra.mxu0 %v9998
  %10034 = vmatpush.bf16.msra.mxu0 %v9997
  %10035 = vmatpush.bf16.msra.mxu0 %v9996
  %10036 = vmatpush.bf16.msra.mxu0 %v9995
  %10037 = vmatpush.bf16.msra.mxu0 %v9994
  %10038 = vmatpush.bf16.msra.mxu0 %v9993
  %10039 = vmatmul.bf16.gmra.mxu0 %v9917
  %v10040 = vpop.f32.mrf.mxu0
  %v10041 = vadd.f32 %v10027, %v10040
  %v10042 = vpop.f32.mrf.mxu0
  %v10043 = vadd.f32 %v10029, %v10042
  %10044 = vdwg.mxu0
  %v10045 = vadd.f32 %v9833, %v10041
  %v10046 = vadd.f32 %v9834, %v10043
  %v10047 = vsel %vm518, %v10045, 0.0
  %10048 = vadd.xlane.f32.xlu0 %v10047
  %v10049 = vpop.xlane.xlu0 %10048
  %v10050 = vsel %vm3172, %v10046, 0.0
  %10051 = vadd.xlane.f32.xlu0 %v10050
  %v10052 = vpop.xlane.xlu0 %10051
  %v10053 = vmul.f32 %v10049, %v3182
  %v10054 = vmul.f32 %v10052, %v3182
  %v10055 = vsub.f32 %v10045, %v10053
  %v10056 = vsub.f32 %v10046, %v10054
  %v10057 = vmul.f32 %v10055, %v10055
  %v10058 = vmul.f32 %v10056, %v10056
  %v10059 = vsel %vm518, %v10057, 0.0
  %10060 = vadd.xlane.f32.xlu0 %v10059
  %v10061 = vpop.xlane.xlu0 %10060
  %v10062 = vsel %vm3172, %v10058, 0.0
  %10063 = vadd.xlane.f32.xlu0 %v10062
  %v10064 = vpop.xlane.xlu0 %10063
  %v10065 = vmul.f32 %v10061, %v3182
  %v10066 = vmul.f32 %v10064, %v3182
  %v10067 = vadd.f32 %v10065, 1e-05
  %v10068 = vadd.f32 %v10066, 1e-05
  %v10069 = vrsqrt.pop %v10067
  %v10070 = vmul.f32 %v10069, %v10067
  %v10071 = vmul.f32 %v10070, %v10069
  %v10072 = vmul.f32 0.5, %v10071
  %v10073 = vsub.f32 1.5, %v10072
  %v10074 = vmul.f32 %v10069, %v10073
  %vm10075 = vweird.f32 %v10067
  %vm10076 = vweird.f32 %v10069
  %vm10077 = vmor %vm10075, %vm10076
  %v10078 = vsel %vm10077, %v10069, %v10074
  %v10079 = vrsqrt.pop %v10068
  %v10080 = vmul.f32 %v10079, %v10068
  %v10081 = vmul.f32 %v10080, %v10079
  %v10082 = vmul.f32 0.5, %v10081
  %v10083 = vsub.f32 1.5, %v10082
  %v10084 = vmul.f32 %v10079, %v10083
  %vm10085 = vweird.f32 %v10068
  %vm10086 = vweird.f32 %v10079
  %vm10087 = vmor %vm10085, %vm10086
  %v10088 = vsel %vm10087, %v10079, %v10084
  %v10089 = vmul.f32 %v10055, %v10078
  %v10090 = vmul.f32 %v10056, %v10088
  %v10092 = vperm.slane %v7083, 0
  %v10094 = vmul.f32 %v10089, %v10092
  %v10095 = vmul.f32 %v10090, %v10092
  %v10097 = vperm.slane %v7085, 0
  %v10099 = vadd.f32 %v10094, %v10097
  %v10100 = vadd.f32 %v10095, %v10097
  %v10102 = vrot.slane %v10099, 1
  %v10105 = vrot.slane %v10099, 2
  %v10106 = vrot.slane %v10100, 2
  %v10107 = vsel %vm196, %v10105, %v10106
  %vm10110 = vcmask 1044480
  %v10111 = vsel %vm10110, %v10102, %v10107
  %v10112 = vld [vmem:[%s23] sm:$0xf]
  %v10113 = vld [vmem:[%s23 + $0x4] sm:$0xf]
  %v10114 = vld [vmem:[%s23 + $0x8] sm:$0xf]
  %v10115 = vld [vmem:[%s23 + $0xc] sm:$0xf]
  %v10116 = vld [vmem:[%s23 + $0x10] sm:$0xf]
  %v10117 = vld [vmem:[%s23 + $0x14] sm:$0xf]
  %v10118 = vld [vmem:[%s23 + $0x18] sm:$0xf]
  %v10119 = vld [vmem:[%s23 + $0x1c] sm:$0xf]
  %v10120 = vpack.c.bf16 %v10106, %v10111
  %v10121 = vld [vmem:[%s24] sm:$0x1]
  %v10123 = vperm.slane %v10121, 0
  %v10133 = vunpack.c.l.b16 %v10112
  %v10134 = vunpack.c.l.b16 %v10113
  %v10135 = vunpack.c.l.b16 %v10114
  %v10136 = vunpack.c.l.b16 %v10115
  %v10137 = vunpack.c.l.b16 %v10116
  %v10138 = vunpack.c.l.b16 %v10117
  %v10139 = vunpack.c.l.b16 %v10118
  %v10140 = vunpack.c.l.b16 %v10119
  %v10141 = vpack.c.b16 %v10134, %v10133
  %v10142 = vpack.c.b16 %v10136, %v10135
  %v10143 = vpack.c.b16 %v10138, %v10137
  %v10144 = vpack.c.b16 %v10140, %v10139
  %v10150 = vsel %vm518, %v10120, 0
  %10152 = vmatpush.bf16.msra.mxu0 0
  %10153 = vmatpush.bf16.msra.mxu0 0
  %10154 = vmatpush.bf16.msra.mxu0 0
  %10155 = vmatpush.bf16.msra.mxu0 0
  %10156 = vmatpush.bf16.msra.mxu0 %v10144
  %10157 = vmatpush.bf16.msra.mxu0 %v10143
  %10158 = vmatpush.bf16.msra.mxu0 %v10142
  %10159 = vmatpush.bf16.msra.mxu0 %v10141
  %10160 = vmatmul.bf16.gmra.mxu0 %v10150
  %v10161 = vpop.f32.mrf.mxu0
  %v10162 = vadd.f32 %v10123, %v10161
  %v10163 = vpop.f32.mrf.mxu0
  %v10164 = vadd.f32 %v10123, %v10163
  %10165 = vdwg.mxu0
  %v10166 = vmax.f32 %v10162, 0.0
  %v10167 = vmax.f32 %v10164, 0.0
  %v10168 = vld [vmem:[%s25] sm:$0xf]
  %v10169 = vld [vmem:[%s25 + $0x4] sm:$0xf]
  %v10170 = vld [vmem:[%s25 + $0x8] sm:$0xf]
  %v10171 = vld [vmem:[%s25 + $0xc] sm:$0xf]
  %v10172 = vld [vmem:[%s25 + $0x10] sm:$0xf]
  %v10173 = vld [vmem:[%s25 + $0x14] sm:$0xf]
  %v10174 = vld [vmem:[%s25 + $0x18] sm:$0xf]
  %v10175 = vld [vmem:[%s25 + $0x1c] sm:$0xf]
  %v10176 = vpack.c.bf16 %v10167, %v10166
  %v10177 = vld [vmem:[%s26] sm:$0x1]
  %v10179 = vperm.slane %v10177, 0
  %v10189 = vunpack.c.l.b16 %v10168
  %v10190 = vunpack.c.l.b16 %v10169
  %v10191 = vunpack.c.l.b16 %v10170
  %v10192 = vunpack.c.l.b16 %v10171
  %v10193 = vunpack.c.l.b16 %v10172
  %v10194 = vunpack.c.l.b16 %v10173
  %v10195 = vunpack.c.l.b16 %v10174
  %v10196 = vunpack.c.l.b16 %v10175
  %v10197 = vpack.c.b16 %v10190, %v10189
  %v10198 = vpack.c.b16 %v10192, %v10191
  %v10199 = vpack.c.b16 %v10194, %v10193
  %v10200 = vpack.c.b16 %v10196, %v10195
  %v10206 = vsel %vm518, %v10176, 0
  %10208 = vmatpush.bf16.msra.mxu0 0
  %10209 = vmatpush.bf16.msra.mxu0 0
  %10210 = vmatpush.bf16.msra.mxu0 0
  %10211 = vmatpush.bf16.msra.mxu0 0
  %10212 = vmatpush.bf16.msra.mxu0 %v10200
  %10213 = vmatpush.bf16.msra.mxu0 %v10199
  %10214 = vmatpush.bf16.msra.mxu0 %v10198
  %10215 = vmatpush.bf16.msra.mxu0 %v10197
  %10216 = vmatmul.bf16.gmra.mxu0 %v10206
  %v10217 = vpop.f32.mrf.mxu0
  %v10218 = vadd.f32 %v10179, %v10217
  %v10219 = vpop.f32.mrf.mxu0
  %v10220 = vadd.f32 %v10179, %v10219
  %10221 = vdwg.mxu0
  %v10222 = vxor.u32 %v10218, 2147483648
  %v10223 = vxor.u32 %v10220, 2147483648
  %v10224 = vmul.f32 %v10222, 1.442695
  %v10225 = vpow.pop %v10224
  %v10226 = vmul.f32 %v10223, 1.442695
  %v10227 = vpow.pop %v10226
  %v10228 = vadd.f32 %v10225, 1.0
  %v10229 = vadd.f32 %v10227, 1.0
  %v10230 = vrcp.pop %v10228
  %v10231 = vmul.f32 %v10228, %v10230
  %v10232 = vsub.f32 1.0, %v10231
  %v10233 = vmul.f32 %v10230, %v10232
  %v10234 = vadd.f32 %v10230, %v10233
  %vm10235 = vweird.f32 %v10228
  %vm10236 = vweird.f32 %v10230
  %vm10237 = vmor %vm10235, %vm10236
  %v10238 = vsel %vm10237, %v10230, %v10234
  %v10239 = vand.u32 2147483647, %v10228
  %vm10240 = vcmp.eq.f32.partialorder %v10239, 8.507059e+37
  %v10241 = vand.u32 %v10228, 2147483648
  %v10242 = vor.u32 1.1754944e-38, %v10241
  %v10243 = vsel %vm10240, %v10242, %v10238
  %v10244 = vmul.f32 1.0, %v10243
  %v10245 = vrcp.pop %v10229
  %v10246 = vmul.f32 %v10229, %v10245
  %v10247 = vsub.f32 1.0, %v10246
  %v10248 = vmul.f32 %v10245, %v10247
  %v10249 = vadd.f32 %v10245, %v10248
  %vm10250 = vweird.f32 %v10229
  %vm10251 = vweird.f32 %v10245
  %vm10252 = vmor %vm10250, %vm10251
  %v10253 = vsel %vm10252, %v10245, %v10249
  %v10254 = vand.u32 2147483647, %v10229
  %vm10255 = vcmp.eq.f32.partialorder %v10254, 8.507059e+37
  %v10256 = vand.u32 %v10229, 2147483648
  %v10257 = vor.u32 1.1754944e-38, %v10256
  %v10258 = vsel %vm10255, %v10257, %v10253
  %v10259 = vmul.f32 1.0, %v10258
  %vm10260 = vcmask 4096
  %v10261 = vsel %vm10260, %v10218, -inf
  %v10262 = vrot.slane %v10261, 4
  %v10263 = vmax.f32 %v10261, %v10262
  %v10264 = vrot.slane %v10263, 2
  %v10265 = vmax.f32 %v10263, %v10264
  %v10266 = vrot.slane %v10265, 1
  %v10267 = vmax.f32 %v10265, %v10266
  %v10268 = vsub.f32 %v10218, %v10267
  %v10269 = vmul.f32 %v10268, 1.442695
  %v10270 = vpow.pop %v10269
  %v10271 = vsel %vm10260, %v10270, 0.0
  %v10272 = vrot.slane %v10271, 4
  %v10273 = vadd.f32 %v10271, %v10272
  %v10274 = vrot.slane %v10273, 2
  %v10275 = vadd.f32 %v10273, %v10274
  %v10276 = vrot.slane %v10275, 1
  %v10277 = vadd.f32 %v10275, %v10276
  %v10278 = vrcp.pop %v10277
  %v10279 = vmul.f32 %v10277, %v10278
  %v10280 = vsub.f32 1.0, %v10279
  %v10281 = vmul.f32 %v10278, %v10280
  %v10282 = vadd.f32 %v10278, %v10281
  %vm10283 = vweird.f32 %v10277
  %vm10284 = vweird.f32 %v10278
  %vm10285 = vmor %vm10283, %vm10284
  %v10286 = vsel %vm10285, %v10278, %v10282
  %v10287 = vand.u32 2147483647, %v10277
  %vm10288 = vcmp.eq.f32.partialorder %v10287, 8.507059e+37
  %v10289 = vand.u32 %v10277, 2147483648
  %v10290 = vor.u32 1.1754944e-38, %v10289
  %v10291 = vsel %vm10288, %v10290, %v10286
  %v10292 = vmul.f32 %v10270, %v10291
  %vm10293 = vcmask 7168
  %v10294 = vsel %vm10293, %v10292, %v10244
  %vm10295 = vcmask 12288
  %10296 = vst.msk [vmem:[%s27] sm:$0x1f] %vm10295, %v10294
  %vm10297 = vcmask 7173
  %v10298 = vsel %vm10297, %v10218, -inf
  %vm10299 = vcmask 1024
  %v10300 = vsel %vm10299, %v10220, -inf
  %v10301 = vmax.f32 %v10298, %v10300
  %v10302 = vrot.slane %v10301, 4
  %v10303 = vmax.f32 %v10301, %v10302
  %v10304 = vrot.slane %v10303, 2
  %v10305 = vmax.f32 %v10303, %v10304
  %v10306 = vrot.slane %v10305, 1
  %v10307 = vmax.f32 %v10305, %v10306
  %v10308 = vsub.f32 %v10218, %v10307
  %v10309 = vsub.f32 %v10220, %v10307
  %v10310 = vmul.f32 %v10308, 1.442695
  %v10311 = vpow.pop %v10310
  %v10312 = vmul.f32 %v10309, 1.442695
  %v10313 = vpow.pop %v10312
  %v10316 = vrot.slane %v10311, 5
  %v10317 = vrot.slane %v10313, 5
  %v10318 = vsel %vm141, %v10316, %v10317
  %v10320 = vsel %vm10260, %v10318, 0.0
  %v10321 = vrot.slane %v10320, 4
  %v10322 = vadd.f32 %v10320, %v10321
  %v10323 = vrot.slane %v10322, 2
  %v10324 = vadd.f32 %v10322, %v10323
  %v10325 = vrot.slane %v10324, 1
  %v10326 = vadd.f32 %v10324, %v10325
  %v10327 = vrcp.pop %v10326
  %v10328 = vmul.f32 %v10326, %v10327
  %v10329 = vsub.f32 1.0, %v10328
  %v10330 = vmul.f32 %v10327, %v10329
  %v10331 = vadd.f32 %v10327, %v10330
  %vm10332 = vweird.f32 %v10326
  %vm10333 = vweird.f32 %v10327
  %vm10334 = vmor %vm10332, %vm10333
  %v10335 = vsel %vm10334, %v10327, %v10331
  %v10336 = vand.u32 2147483647, %v10326
  %vm10337 = vcmp.eq.f32.partialorder %v10336, 8.507059e+37
  %v10338 = vand.u32 %v10326, 2147483648
  %v10339 = vor.u32 1.1754944e-38, %v10338
  %v10340 = vsel %vm10337, %v10339, %v10335
  %v10341 = vmul.f32 %v10311, %v10340
  %v10342 = vmul.f32 %v10313, %v10340
  %v10343 = vsel %vm10293, %v10341, %v10244
  %v10344 = vsel %vm10293, %v10342, %v10259
  %s10345 = scalar_lea.vmem %s27, 8
  %vm10346 = vcmask 15365
  %10347 = vst.msk [vmem:[%s10345 - $0x5] sm:$0xe0] %vm10346, %v10343
  %vm10348 = vcmask 9216
  %10349 = vst.msk [vmem:[%s10345 + $0x3] sm:$0x3] %vm10348, %v10344
  // Predicated region
  $region110: #{attention_strategy_forward.1} parent=0 // pred_check
    _
  $region111: #{attention_strategy_forward.1} parent=0 // pred_check_branch
    %10351 = sbr.rel (0) target = $region113
  $region112: #{attention_strategy_forward.1} parent=0 // pred_region
    _
  $region113: #{attention_strategy_forward.1} parent=0 // pred_fallthru
    _
  // Predicated region
  $region114: #{attention_strategy_forward.1} parent=0 // pred_check
    _
  $region115: #{attention_strategy_forward.1} parent=0 // pred_check_branch
    %10353 = sbr.rel (0) target = $region117
  $region116: #{attention_strategy_forward.1} parent=0 // pred_region
    _
  $region117: #{attention_strategy_forward.1} parent=0 // pred_fallthru
    _

</llo_original>
